<compile_context>
chip_gen: v5e
topology: v5e:2x2
jax: 0.10.0
libtpu: 0.0.40
codegen_flags: <defaults>
</compile_context>

<pallas_src>
import jax
import jax.numpy as jnp
from jax import lax
from jax.experimental import pallas as pl
from jax.experimental.pallas import tpu as pltpu

F32 = jnp.float32
BF16 = jnp.bfloat16
EPS_BN = 1e-5            # nn.BatchNorm2d default eps (eval / running-stats mode)
_NT = (((1,), (1,)), ((), ()))    # dot_general dims for A @ B^T


def _round_up(x, m):
    return (x + m - 1) // m * m


# ---------------------------------------------------------------------------
# Fused whole-network kernel (one batch element per grid step)
# ---------------------------------------------------------------------------
def _make_fused_kernel(H1, W1, H2, W2, H3, W3, Wp1, Wp2, Wp3, L2, L3, L4, L5):
    M2, M3, M4 = H1 * Wp1, H2 * Wp2, H3 * Wp3
    N = H3 * W3
    LL2 = (H1 - 1) * Wp1 - 1        # length of 2x2-max helper array (pool 1)
    LL3 = (H2 - 1) * Wp2 - 1        # (pool 2)

    def affine_relu(acc, aff_ref, row, cout):
        # folded conv-bias + BatchNorm affine and ReLU, in f32.
        scale = aff_ref[row:row + 1, 0:cout]
        shift = aff_ref[row + 1:row + 2, 0:cout]
        return jnp.maximum(acc * scale + shift, 0.0)

    def conv3x3(src_ref, w_ref, rows, wp):
        # 3x3 conv on a zero-padded, row-flattened f32 VMEM plane: 9 tap
        # matmuls with bf16 operands / f32 accumulation.  wp is a multiple of
        # 8, so the di*wp row offsets are sublane-aligned; only dj=1,2 reads
        # need realignment.
        acc = None
        for di in range(3):
            for dj in range(3):
                off = di * wp + dj
                x = src_ref[off:off + rows, :].astype(BF16)
                d = jnp.dot(x, w_ref[di * 3 + dj], preferred_element_type=F32)
                acc = d if acc is None else acc + d
        return acc

    def repack_rows(dst_ref, get_row, h, w, wp, length, cout):
        # Rewrites the *entire* padded plane every grid step: interior data
        # rows plus small explicit zero stores covering the pad border and
        # the alignment-slack columns.  No whole-buffer zero fill, and no
        # reliance on "first grid step" state (safe under megacore splits).
        dst_ref[0:wp + 1, :] = jnp.zeros((wp + 1, cout), F32)
        zrow = jnp.zeros((wp - w, cout), F32)
        for i in range(h):
            base = (i + 1) * wp + 1
            dst_ref[base:base + w, :] = get_row(i)
            if i < h - 1:
                dst_ref[base + w:base + wp, :] = zrow
        tail = h * wp + 1 + w
        dst_ref[tail:length, :] = jnp.zeros((length - tail, cout), F32)

    def pool2x2(y, wp, ll, pbuf):
        # fused 2x2 maxpool: vectorized 4-way max over the flattened conv
        # output; column/row decimation happens in the strided repack reads.
        pbuf[...] = jnp.maximum(
            jnp.maximum(y[0:ll, :], y[1:ll + 1, :]),
            jnp.maximum(y[wp:wp + ll, :], y[wp + 1:wp + 1 + ll, :]))

    def kernel(patch_ref, w1_ref, w2_ref, w3_ref, w4_ref, w5_ref, aff_ref,
               o_ref, pad2, pad3, pad4, pad5, pbuf2, pbuf3, featbuf):
        # ---- stage 1: conv1a | conv1b (Cin=1) as one 36-tap im2col matmul --
        y1 = jnp.dot(patch_ref[0], w1_ref[...], preferred_element_type=F32)
        y1 = affine_relu(y1, aff_ref, 0, 16)
        repack_rows(pad2, lambda i: y1[i * W1:(i + 1) * W1, :],
                    H1, W1, Wp1, L2, 16)

        # ---- conv2 + bn2 + relu + 2x2 maxpool -------------------------------
        y2 = affine_relu(conv3x3(pad2, w2_ref, M2, Wp1), aff_ref, 2, 32)
        pool2x2(y2, Wp1, LL2, pbuf2)
        repack_rows(pad3, lambda i: pbuf2[pl.ds(2 * i * Wp1, W2, 2), :],
                    H2, W2, Wp2, L3, 32)

        # ---- conv3 + bn3 + relu + 2x2 maxpool -------------------------------
        y3 = affine_relu(conv3x3(pad3, w3_ref, M3, Wp2), aff_ref, 4, 48)
        pool2x2(y3, Wp2, LL3, pbuf3)
        repack_rows(pad4, lambda i: pbuf3[pl.ds(2 * i * Wp2, W3, 2), :],
                    H3, W3, Wp3, L4, 48)

        # ---- conv4 + bn4 + relu (no pool) ------------------------------------
        y4 = affine_relu(conv3x3(pad4, w4_ref, M4, Wp3), aff_ref, 6, 64)
        repack_rows(pad5, lambda i: y4[i * Wp3:i * Wp3 + W3, :],
                    H3, W3, Wp3, L5, 64)

        # ---- conv5 + bn5 + relu ----------------------------------------------
        y5 = affine_relu(conv3x3(pad5, w5_ref, M4, Wp3), aff_ref, 8, 80)
        for i in range(H3):
            featbuf[i * W3:(i + 1) * W3, :] = y5[i * Wp3:i * Wp3 + W3, :]

        # ---- area attention (1-D areas of width 1..3, mean keys / sum
        #      values, unscaled logits) + ReLU ---------------------------------
        # TODO(synk): AreaAttention internals are not part of the given spec;
        # this follows the standard PyTorch port with its default
        # memory_height=1; attention dropout(0.5) is a no-op at inference.
        f = featbuf[...]                                  # (N, 80) f32
        s2 = f[0:N - 1, :] + f[1:N, :]
        s3 = s2[0:N - 2, :] + f[2:N, :]
        fb, s2b, s3b = f.astype(BF16), s2.astype(BF16), s3.astype(BF16)
        l1 = lax.dot_general(fb, fb, _NT, preferred_element_type=F32)
        l2 = lax.dot_general(fb, s2b, _NT, preferred_element_type=F32) * 0.5
        l3 = lax.dot_general(fb, s3b, _NT, preferred_element_type=F32) * (1.0 / 3.0)
        m = jnp.maximum(jnp.maximum(l1.max(axis=-1, keepdims=True),
                                    l2.max(axis=-1, keepdims=True)),
                        l3.max(axis=-1, keepdims=True))
        e1 = jnp.exp(l1 - m)
        e2 = jnp.exp(l2 - m)
        e3 = jnp.exp(l3 - m)
        den = (e1.sum(axis=-1, keepdims=True)
               + e2.sum(axis=-1, keepdims=True)
               + e3.sum(axis=-1, keepdims=True))
        num = (jnp.dot(e1.astype(BF16), fb, preferred_element_type=F32)
               + jnp.dot(e2.astype(BF16), s2b, preferred_element_type=F32)
               + jnp.dot(e3.astype(BF16), s3b, preferred_element_type=F32))
        o_ref[0] = jnp.maximum(num * pl.reciprocal(den, approx=True), 0.0)

    return kernel


# ---------------------------------------------------------------------------
# Wrapper: layout plumbing, BN folding, bf16 weight packing (all trace-time)
# ---------------------------------------------------------------------------
def _fold_bn(bias, bn):
    scale = bn['gamma'] / jnp.sqrt(bn['var'] + EPS_BN)
    shift = (bias - bn['mean']) * scale + bn['beta']
    return scale, shift


def _pad80(v):
    return jnp.pad(v.astype(F32), (0, 80 - v.shape[0]))


def aacnn_headconcat_forward(x, p):
    """x: (B, 1, H, W) float32 (NCHW, like the PyTorch module)."""
    B, Cin, H, W = x.shape
    assert Cin == 1
    H1, W1 = H - 1, W - 1               # conv1a / conv1b output spatial size
    H2, W2 = H1 // 2, W1 // 2           # after first maxpool
    H3, W3 = H2 // 2, W2 // 2           # after second maxpool
    N = H3 * W3
    assert H3 >= 1 and W3 >= 1 and N >= 3
    # padded plane widths rounded up to 8 sublanes for aligned row offsets
    Wp1 = _round_up(W1 + 2, 8)
    Wp2 = _round_up(W2 + 2, 8)
    Wp3 = _round_up(W3 + 2, 8)
    L2 = _round_up((H1 + 2) * Wp1 + 2, 8)
    L3 = _round_up((H2 + 2) * Wp2 + 2, 8)
    L4 = _round_up((H3 + 2) * Wp3 + 2, 8)
    L5 = L4
    LL2 = (H1 - 1) * Wp1 - 1
    LL3 = (H2 - 1) * Wp2 - 1

    x = x.astype(F32)[:, 0]                           # (B, H, W)
    xs = jnp.pad(x, ((0, 0), (4, 4), (3, 3)))         # shared zero padding

    # im2col for the fused conv1a|conv1b matmul: 20 taps of the (10,2) kernel
    # (column offset +3) followed by 16 taps of the (2,8) kernel (row offset
    # +4).  Lanes stay at the true tap count (36), bf16.
    taps = ([(ki, kj + 3) for ki in range(10) for kj in range(2)]
            + [(ki + 4, kj) for ki in range(2) for kj in range(8)])
    patches = jnp.stack([xs[:, di:di + H1, dj:dj + W1] for di, dj in taps],
                        axis=-1).reshape(B, H1 * W1, len(taps)).astype(BF16)

    # combined conv1a|conv1b weight: 36 taps along K, 8+8 output channels
    w1 = jnp.zeros((len(taps), 16), F32)
    w1 = w1.at[0:20, 0:8].set(p['w1a'].reshape(20, 8).astype(F32))
    w1 = w1.at[20:36, 8:16].set(p['w1b'].reshape(16, 8).astype(F32))
    w1 = w1.astype(BF16)

    def conv_w(w):   # (3,3,Cin,Cout) -> (9,Cin,Cout), true channel dims, bf16
        kh, kw, ci, co = w.shape
        return w.reshape(kh * kw, ci, co).astype(BF16)

    w2, w3, w4, w5 = (conv_w(p['w2']), conv_w(p['w3']),
                      conv_w(p['w4']), conv_w(p['w5']))

    # conv bias + BatchNorm (eval / running stats) folded into one affine/stage
    s1a, t1a = _fold_bn(p['b1a'], p['bn1a'])
    s1b, t1b = _fold_bn(p['b1b'], p['bn1b'])
    s1 = jnp.concatenate([s1a, s1b])
    t1 = jnp.concatenate([t1a, t1b])
    s2, t2 = _fold_bn(p['b2'], p['bn2'])
    s3, t3 = _fold_bn(p['b3'], p['bn3'])
    s4, t4 = _fold_bn(p['b4'], p['bn4'])
    s5, t5 = _fold_bn(p['b5'], p['bn5'])
    aff = jnp.stack([_pad80(v) for v in
                     (s1, t1, s2, t2, s3, t3, s4, t4, s5, t5)])    # (10, 80)

    att = pl.pallas_call(
        _make_fused_kernel(H1, W1, H2, W2, H3, W3, Wp1, Wp2, Wp3,
                           L2, L3, L4, L5),
        out_shape=jax.ShapeDtypeStruct((B, N, 80), F32),
        grid=(B,),
        in_specs=[
            pl.BlockSpec((1, H1 * W1, len(taps)), lambda b: (b, 0, 0)),
            pl.BlockSpec(w1.shape, lambda b: (0, 0)),
            pl.BlockSpec(w2.shape, lambda b: (0, 0, 0)),
            pl.BlockSpec(w3.shape, lambda b: (0, 0, 0)),
            pl.BlockSpec(w4.shape, lambda b: (0, 0, 0)),
            pl.BlockSpec(w5.shape, lambda b: (0, 0, 0)),
            pl.BlockSpec(aff.shape, lambda b: (0, 0)),
        ],
        out_specs=pl.BlockSpec((1, N, 80), lambda b: (b, 0, 0)),
        scratch_shapes=[
            pltpu.VMEM((L2, 16), F32),     # padded conv2 input
            pltpu.VMEM((L3, 32), F32),     # padded conv3 input
            pltpu.VMEM((L4, 48), F32),     # padded conv4 input
            pltpu.VMEM((L5, 64), F32),     # padded conv5 input
            pltpu.VMEM((LL2, 32), F32),    # maxpool helper (stage 2)
            pltpu.VMEM((LL3, 48), F32),    # maxpool helper (stage 3)
            pltpu.VMEM((N, 80), F32),      # attention input features
        ],
        compiler_params=pltpu.CompilerParams(
            dimension_semantics=("parallel",),
            vmem_limit_bytes=32 * 1024 * 1024),
    )(patches, w1, w2, w3, w4, w5, aff)

    # final Linear (out_features=4): tiny, left to XLA per perf guidance.
    # Note: self.dropout(0.5) exists in __init__ but is never used in forward().
    return att.reshape(B, N * 80) @ p['fc_w'] + p['fc_b']


# ---------------------------------------------------------------------------
# Deterministic parameter initialization (PyTorch-default shapes / ranges)
# ---------------------------------------------------------------------------
def init_params(key, shape=(17, 17)):
    H, W = shape
    n_pos = ((H - 1) // 4) * ((W - 1) // 4)
    ks = iter(jax.random.split(key, 16))

    def conv(cin, cout, kh, kw):
        bound = 1.0 / (cin * kh * kw) ** 0.5
        w = jax.random.uniform(next(ks), (kh, kw, cin, cout), F32, -bound, bound)
        b = jax.random.uniform(next(ks), (cout,), F32, -bound, bound)
        return w, b

    def bn(c):   # eval-mode BatchNorm default init
        return dict(gamma=jnp.ones((c,), F32), beta=jnp.zeros((c,), F32),
                    mean=jnp.zeros((c,), F32), var=jnp.ones((c,), F32))

    p = {}
    p['w1a'], p['b1a'] = conv(1, 8, 10, 2)
    p['w1b'], p['b1b'] = conv(1, 8, 2, 8)
    p['bn1a'], p['bn1b'] = bn(8), bn(8)
    p['w2'], p['b2'] = conv(16, 32, 3, 3)
    p['bn2'] = bn(32)
    p['w3'], p['b3'] = conv(32, 48, 3, 3)
    p['bn3'] = bn(48)
    p['w4'], p['b4'] = conv(48, 64, 3, 3)
    p['bn4'] = bn(64)
    p['w5'], p['b5'] = conv(64, 80, 3, 3)
    p['bn5'] = bn(80)
    fin = 80 * n_pos
    bound = 1.0 / fin ** 0.5
    p['fc_w'] = jax.random.uniform(next(ks), (fin, 4), F32, -bound, bound)
    p['fc_b'] = jax.random.uniform(next(ks), (4,), F32, -bound, bound)
    return p


if __name__ == "__main__":
    key = jax.random.PRNGKey(0)
    pkey, xkey = jax.random.split(key)
    SHAPE = (17, 17)       # small spatial shape (module default is (26, 63))
    B = 2
    params = init_params(pkey, SHAPE)
    x = jax.random.normal(xkey, (B, 1, SHAPE[0], SHAPE[1]), F32)   # NCHW
    out = jax.jit(aacnn_headconcat_forward)(x, params)
    out = jax.block_until_ready(out)
    assert out.shape == (B, 4) and out.dtype == F32
    print("KERNEL_OK")
</pallas_src>

<mosaic_0001>
module attributes {stable_mosaic.version = 11 : i64} {
  func.func @kernel(%arg0: i32, %arg1: memref<1x256x36xbf16, #tpu.memory_space<vmem>>, %arg2: memref<36x16xbf16, #tpu.memory_space<vmem>>, %arg3: memref<9x16x32xbf16, #tpu.memory_space<vmem>>, %arg4: memref<9x32x48xbf16, #tpu.memory_space<vmem>>, %arg5: memref<9x48x64xbf16, #tpu.memory_space<vmem>>, %arg6: memref<9x64x80xbf16, #tpu.memory_space<vmem>>, %arg7: memref<10x80xf32, #tpu.memory_space<vmem>>, %arg8: memref<1x16x80xf32, #tpu.memory_space<vmem>>, %arg9: memref<440x16xf32, #tpu.memory_space<vmem>>, %arg10: memref<168x32xf32, #tpu.memory_space<vmem>>, %arg11: memref<56x48xf32, #tpu.memory_space<vmem>>, %arg12: memref<56x64xf32, #tpu.memory_space<vmem>>, %arg13: memref<359x32xf32, #tpu.memory_space<vmem>>, %arg14: memref<111x48xf32, #tpu.memory_space<vmem>>, %arg15: memref<16x80xf32, #tpu.memory_space<vmem>>) attributes {dimension_semantics = [#tpu.dimension_semantics<parallel>], iteration_bounds = array<i64: 2>, scalar_prefetch = 0 : i64, scratch_operands = 7 : i64, tpu.core_type = #tpu.core_type<tc>, window_params = [{transform_indices = @transform_0, window_bounds = array<i64: 1, 256, 36>}, {pipeline_mode = #tpu.pipeline_mode<synchronous>, transform_indices = @transform_1, window_bounds = array<i64: 36, 16>}, {pipeline_mode = #tpu.pipeline_mode<synchronous>, transform_indices = @transform_2, window_bounds = array<i64: 9, 16, 32>}, {pipeline_mode = #tpu.pipeline_mode<synchronous>, transform_indices = @transform_3, window_bounds = array<i64: 9, 32, 48>}, {pipeline_mode = #tpu.pipeline_mode<synchronous>, transform_indices = @transform_4, window_bounds = array<i64: 9, 48, 64>}, {pipeline_mode = #tpu.pipeline_mode<synchronous>, transform_indices = @transform_5, window_bounds = array<i64: 9, 64, 80>}, {pipeline_mode = #tpu.pipeline_mode<synchronous>, transform_indices = @transform_6, window_bounds = array<i64: 10, 80>}, {transform_indices = @transform_7, window_bounds = array<i64: 1, 16, 80>}]} {
    %c0 = arith.constant 0 : index
    %c0_0 = arith.constant 0 : index
    %c0_1 = arith.constant 0 : index
    %0 = vector.load %arg1[%c0, %c0_0, %c0_1] : memref<1x256x36xbf16, #tpu.memory_space<vmem>>, vector<1x256x36xbf16>
    %1 = vector.shape_cast %0 : vector<1x256x36xbf16> to vector<256x36xbf16>
    %c0_2 = arith.constant 0 : index
    %c0_3 = arith.constant 0 : index
    %2 = vector.load %arg2[%c0_2, %c0_3] : memref<36x16xbf16, #tpu.memory_space<vmem>>, vector<36x16xbf16>
    %cst = arith.constant dense<0.000000e+00> : vector<256x16xf32>
    %3 = tpu.matmul %1, %2, %cst {dimension_numbers = #tpu.dot_dimension_numbers<[1], [0], [0], [1], [0, 0, 1, 1], [], []>} : vector<256x36xbf16>, vector<36x16xbf16>, vector<256x16xf32> -> vector<256x16xf32>
    %c0_4 = arith.constant 0 : index
    %c0_5 = arith.constant 0 : index
    %4 = vector.load %arg7[%c0_4, %c0_5] : memref<10x80xf32, #tpu.memory_space<vmem>>, vector<1x16xf32>
    %c1 = arith.constant 1 : index
    %c0_6 = arith.constant 0 : index
    %5 = vector.load %arg7[%c1, %c0_6] : memref<10x80xf32, #tpu.memory_space<vmem>>, vector<1x16xf32>
    %6 = vector.broadcast %4 : vector<1x16xf32> to vector<256x16xf32>
    %7 = arith.mulf %3, %6 : vector<256x16xf32>
    %8 = vector.broadcast %5 : vector<1x16xf32> to vector<256x16xf32>
    %9 = arith.addf %7, %8 : vector<256x16xf32>
    %cst_7 = arith.constant 0.000000e+00 : f32
    %10 = vector.broadcast %cst_7 : f32 to vector<256x16xf32>
    %11 = arith.maximumf %9, %10 : vector<256x16xf32>
    %cst_8 = arith.constant 0.000000e+00 : f32
    %12 = vector.broadcast %cst_8 : f32 to vector<25x16xf32>
    %c0_9 = arith.constant 0 : index
    %c0_10 = arith.constant 0 : index
    %13 = vector.load %arg9[%c0_9, %c0_10] : memref<440x16xf32, #tpu.memory_space<vmem>>, vector<25x16xf32>
    tpu.vector_store %arg9[%c0_9, %c0_10], %12 {strides = array<i32>} : memref<440x16xf32, #tpu.memory_space<vmem>>, vector<25x16xf32>,
    %cst_11 = arith.constant 0.000000e+00 : f32
    %14 = vector.broadcast %cst_11 : f32 to vector<8x16xf32>
    %15 = vector.extract_strided_slice %11 {offsets = [0, 0], sizes = [16, 16], strides = [1, 1]} : vector<256x16xf32> to vector<16x16xf32>
    %c25 = arith.constant 25 : index
    %c0_12 = arith.constant 0 : index
    %16 = vector.load %arg9[%c25, %c0_12] : memref<440x16xf32, #tpu.memory_space<vmem>>, vector<16x16xf32>
    tpu.vector_store %arg9[%c25, %c0_12], %15 {strides = array<i32>} : memref<440x16xf32, #tpu.memory_space<vmem>>, vector<16x16xf32>,
    %c41 = arith.constant 41 : index
    %c0_13 = arith.constant 0 : index
    %17 = vector.load %arg9[%c41, %c0_13] : memref<440x16xf32, #tpu.memory_space<vmem>>, vector<8x16xf32>
    tpu.vector_store %arg9[%c41, %c0_13], %14 {strides = array<i32>} : memref<440x16xf32, #tpu.memory_space<vmem>>, vector<8x16xf32>,
    %18 = vector.extract_strided_slice %11 {offsets = [16, 0], sizes = [16, 16], strides = [1, 1]} : vector<256x16xf32> to vector<16x16xf32>
    %c49 = arith.constant 49 : index
    %c0_14 = arith.constant 0 : index
    %19 = vector.load %arg9[%c49, %c0_14] : memref<440x16xf32, #tpu.memory_space<vmem>>, vector<16x16xf32>
    tpu.vector_store %arg9[%c49, %c0_14], %18 {strides = array<i32>} : memref<440x16xf32, #tpu.memory_space<vmem>>, vector<16x16xf32>,
    %c65 = arith.constant 65 : index
    %c0_15 = arith.constant 0 : index
    %20 = vector.load %arg9[%c65, %c0_15] : memref<440x16xf32, #tpu.memory_space<vmem>>, vector<8x16xf32>
    tpu.vector_store %arg9[%c65, %c0_15], %14 {strides = array<i32>} : memref<440x16xf32, #tpu.memory_space<vmem>>, vector<8x16xf32>,
    %21 = vector.extract_strided_slice %11 {offsets = [32, 0], sizes = [16, 16], strides = [1, 1]} : vector<256x16xf32> to vector<16x16xf32>
    %c73 = arith.constant 73 : index
    %c0_16 = arith.constant 0 : index
    %22 = vector.load %arg9[%c73, %c0_16] : memref<440x16xf32, #tpu.memory_space<vmem>>, vector<16x16xf32>
    tpu.vector_store %arg9[%c73, %c0_16], %21 {strides = array<i32>} : memref<440x16xf32, #tpu.memory_space<vmem>>, vector<16x16xf32>,
    %c89 = arith.constant 89 : index
    %c0_17 = arith.constant 0 : index
    %23 = vector.load %arg9[%c89, %c0_17] : memref<440x16xf32, #tpu.memory_space<vmem>>, vector<8x16xf32>
    tpu.vector_store %arg9[%c89, %c0_17], %14 {strides = array<i32>} : memref<440x16xf32, #tpu.memory_space<vmem>>, vector<8x16xf32>,
    %24 = vector.extract_strided_slice %11 {offsets = [48, 0], sizes = [16, 16], strides = [1, 1]} : vector<256x16xf32> to vector<16x16xf32>
    %c97 = arith.constant 97 : index
    %c0_18 = arith.constant 0 : index
    %25 = vector.load %arg9[%c97, %c0_18] : memref<440x16xf32, #tpu.memory_space<vmem>>, vector<16x16xf32>
    tpu.vector_store %arg9[%c97, %c0_18], %24 {strides = array<i32>} : memref<440x16xf32, #tpu.memory_space<vmem>>, vector<16x16xf32>,
    %c113 = arith.constant 113 : index
    %c0_19 = arith.constant 0 : index
    %26 = vector.load %arg9[%c113, %c0_19] : memref<440x16xf32, #tpu.memory_space<vmem>>, vector<8x16xf32>
    tpu.vector_store %arg9[%c113, %c0_19], %14 {strides = array<i32>} : memref<440x16xf32, #tpu.memory_space<vmem>>, vector<8x16xf32>,
    %27 = vector.extract_strided_slice %11 {offsets = [64, 0], sizes = [16, 16], strides = [1, 1]} : vector<256x16xf32> to vector<16x16xf32>
    %c121 = arith.constant 121 : index
    %c0_20 = arith.constant 0 : index
    %28 = vector.load %arg9[%c121, %c0_20] : memref<440x16xf32, #tpu.memory_space<vmem>>, vector<16x16xf32>
    tpu.vector_store %arg9[%c121, %c0_20], %27 {strides = array<i32>} : memref<440x16xf32, #tpu.memory_space<vmem>>, vector<16x16xf32>,
    %c137 = arith.constant 137 : index
    %c0_21 = arith.constant 0 : index
    %29 = vector.load %arg9[%c137, %c0_21] : memref<440x16xf32, #tpu.memory_space<vmem>>, vector<8x16xf32>
    tpu.vector_store %arg9[%c137, %c0_21], %14 {strides = array<i32>} : memref<440x16xf32, #tpu.memory_space<vmem>>, vector<8x16xf32>,
    %30 = vector.extract_strided_slice %11 {offsets = [80, 0], sizes = [16, 16], strides = [1, 1]} : vector<256x16xf32> to vector<16x16xf32>
    %c145 = arith.constant 145 : index
    %c0_22 = arith.constant 0 : index
    %31 = vector.load %arg9[%c145, %c0_22] : memref<440x16xf32, #tpu.memory_space<vmem>>, vector<16x16xf32>
    tpu.vector_store %arg9[%c145, %c0_22], %30 {strides = array<i32>} : memref<440x16xf32, #tpu.memory_space<vmem>>, vector<16x16xf32>,
    %c161 = arith.constant 161 : index
    %c0_23 = arith.constant 0 : index
    %32 = vector.load %arg9[%c161, %c0_23] : memref<440x16xf32, #tpu.memory_space<vmem>>, vector<8x16xf32>
    tpu.vector_store %arg9[%c161, %c0_23], %14 {strides = array<i32>} : memref<440x16xf32, #tpu.memory_space<vmem>>, vector<8x16xf32>,
    %33 = vector.extract_strided_slice %11 {offsets = [96, 0], sizes = [16, 16], strides = [1, 1]} : vector<256x16xf32> to vector<16x16xf32>
    %c169 = arith.constant 169 : index
    %c0_24 = arith.constant 0 : index
    %34 = vector.load %arg9[%c169, %c0_24] : memref<440x16xf32, #tpu.memory_space<vmem>>, vector<16x16xf32>
    tpu.vector_store %arg9[%c169, %c0_24], %33 {strides = array<i32>} : memref<440x16xf32, #tpu.memory_space<vmem>>, vector<16x16xf32>,
    %c185 = arith.constant 185 : index
    %c0_25 = arith.constant 0 : index
    %35 = vector.load %arg9[%c185, %c0_25] : memref<440x16xf32, #tpu.memory_space<vmem>>, vector<8x16xf32>
    tpu.vector_store %arg9[%c185, %c0_25], %14 {strides = array<i32>} : memref<440x16xf32, #tpu.memory_space<vmem>>, vector<8x16xf32>,
    %36 = vector.extract_strided_slice %11 {offsets = [112, 0], sizes = [16, 16], strides = [1, 1]} : vector<256x16xf32> to vector<16x16xf32>
    %c193 = arith.constant 193 : index
    %c0_26 = arith.constant 0 : index
    %37 = vector.load %arg9[%c193, %c0_26] : memref<440x16xf32, #tpu.memory_space<vmem>>, vector<16x16xf32>
    tpu.vector_store %arg9[%c193, %c0_26], %36 {strides = array<i32>} : memref<440x16xf32, #tpu.memory_space<vmem>>, vector<16x16xf32>,
    %c209 = arith.constant 209 : index
    %c0_27 = arith.constant 0 : index
    %38 = vector.load %arg9[%c209, %c0_27] : memref<440x16xf32, #tpu.memory_space<vmem>>, vector<8x16xf32>
    tpu.vector_store %arg9[%c209, %c0_27], %14 {strides = array<i32>} : memref<440x16xf32, #tpu.memory_space<vmem>>, vector<8x16xf32>,
    %39 = vector.extract_strided_slice %11 {offsets = [128, 0], sizes = [16, 16], strides = [1, 1]} : vector<256x16xf32> to vector<16x16xf32>
    %c217 = arith.constant 217 : index
    %c0_28 = arith.constant 0 : index
    %40 = vector.load %arg9[%c217, %c0_28] : memref<440x16xf32, #tpu.memory_space<vmem>>, vector<16x16xf32>
    tpu.vector_store %arg9[%c217, %c0_28], %39 {strides = array<i32>} : memref<440x16xf32, #tpu.memory_space<vmem>>, vector<16x16xf32>,
    %c233 = arith.constant 233 : index
    %c0_29 = arith.constant 0 : index
    %41 = vector.load %arg9[%c233, %c0_29] : memref<440x16xf32, #tpu.memory_space<vmem>>, vector<8x16xf32>
    tpu.vector_store %arg9[%c233, %c0_29], %14 {strides = array<i32>} : memref<440x16xf32, #tpu.memory_space<vmem>>, vector<8x16xf32>,
    %42 = vector.extract_strided_slice %11 {offsets = [144, 0], sizes = [16, 16], strides = [1, 1]} : vector<256x16xf32> to vector<16x16xf32>
    %c241 = arith.constant 241 : index
    %c0_30 = arith.constant 0 : index
    %43 = vector.load %arg9[%c241, %c0_30] : memref<440x16xf32, #tpu.memory_space<vmem>>, vector<16x16xf32>
    tpu.vector_store %arg9[%c241, %c0_30], %42 {strides = array<i32>} : memref<440x16xf32, #tpu.memory_space<vmem>>, vector<16x16xf32>,
    %c257 = arith.constant 257 : index
    %c0_31 = arith.constant 0 : index
    %44 = vector.load %arg9[%c257, %c0_31] : memref<440x16xf32, #tpu.memory_space<vmem>>, vector<8x16xf32>
    tpu.vector_store %arg9[%c257, %c0_31], %14 {strides = array<i32>} : memref<440x16xf32, #tpu.memory_space<vmem>>, vector<8x16xf32>,
    %45 = vector.extract_strided_slice %11 {offsets = [160, 0], sizes = [16, 16], strides = [1, 1]} : vector<256x16xf32> to vector<16x16xf32>
    %c265 = arith.constant 265 : index
    %c0_32 = arith.constant 0 : index
    %46 = vector.load %arg9[%c265, %c0_32] : memref<440x16xf32, #tpu.memory_space<vmem>>, vector<16x16xf32>
    tpu.vector_store %arg9[%c265, %c0_32], %45 {strides = array<i32>} : memref<440x16xf32, #tpu.memory_space<vmem>>, vector<16x16xf32>,
    %c281 = arith.constant 281 : index
    %c0_33 = arith.constant 0 : index
    %47 = vector.load %arg9[%c281, %c0_33] : memref<440x16xf32, #tpu.memory_space<vmem>>, vector<8x16xf32>
    tpu.vector_store %arg9[%c281, %c0_33], %14 {strides = array<i32>} : memref<440x16xf32, #tpu.memory_space<vmem>>, vector<8x16xf32>,
    %48 = vector.extract_strided_slice %11 {offsets = [176, 0], sizes = [16, 16], strides = [1, 1]} : vector<256x16xf32> to vector<16x16xf32>
    %c289 = arith.constant 289 : index
    %c0_34 = arith.constant 0 : index
    %49 = vector.load %arg9[%c289, %c0_34] : memref<440x16xf32, #tpu.memory_space<vmem>>, vector<16x16xf32>
    tpu.vector_store %arg9[%c289, %c0_34], %48 {strides = array<i32>} : memref<440x16xf32, #tpu.memory_space<vmem>>, vector<16x16xf32>,
    %c305 = arith.constant 305 : index
    %c0_35 = arith.constant 0 : index
    %50 = vector.load %arg9[%c305, %c0_35] : memref<440x16xf32, #tpu.memory_space<vmem>>, vector<8x16xf32>
    tpu.vector_store %arg9[%c305, %c0_35], %14 {strides = array<i32>} : memref<440x16xf32, #tpu.memory_space<vmem>>, vector<8x16xf32>,
    %51 = vector.extract_strided_slice %11 {offsets = [192, 0], sizes = [16, 16], strides = [1, 1]} : vector<256x16xf32> to vector<16x16xf32>
    %c313 = arith.constant 313 : index
    %c0_36 = arith.constant 0 : index
    %52 = vector.load %arg9[%c313, %c0_36] : memref<440x16xf32, #tpu.memory_space<vmem>>, vector<16x16xf32>
    tpu.vector_store %arg9[%c313, %c0_36], %51 {strides = array<i32>} : memref<440x16xf32, #tpu.memory_space<vmem>>, vector<16x16xf32>,
    %c329 = arith.constant 329 : index
    %c0_37 = arith.constant 0 : index
    %53 = vector.load %arg9[%c329, %c0_37] : memref<440x16xf32, #tpu.memory_space<vmem>>, vector<8x16xf32>
    tpu.vector_store %arg9[%c329, %c0_37], %14 {strides = array<i32>} : memref<440x16xf32, #tpu.memory_space<vmem>>, vector<8x16xf32>,
    %54 = vector.extract_strided_slice %11 {offsets = [208, 0], sizes = [16, 16], strides = [1, 1]} : vector<256x16xf32> to vector<16x16xf32>
    %c337 = arith.constant 337 : index
    %c0_38 = arith.constant 0 : index
    %55 = vector.load %arg9[%c337, %c0_38] : memref<440x16xf32, #tpu.memory_space<vmem>>, vector<16x16xf32>
    tpu.vector_store %arg9[%c337, %c0_38], %54 {strides = array<i32>} : memref<440x16xf32, #tpu.memory_space<vmem>>, vector<16x16xf32>,
    %c353 = arith.constant 353 : index
    %c0_39 = arith.constant 0 : index
    %56 = vector.load %arg9[%c353, %c0_39] : memref<440x16xf32, #tpu.memory_space<vmem>>, vector<8x16xf32>
    tpu.vector_store %arg9[%c353, %c0_39], %14 {strides = array<i32>} : memref<440x16xf32, #tpu.memory_space<vmem>>, vector<8x16xf32>,
    %57 = vector.extract_strided_slice %11 {offsets = [224, 0], sizes = [16, 16], strides = [1, 1]} : vector<256x16xf32> to vector<16x16xf32>
    %c361 = arith.constant 361 : index
    %c0_40 = arith.constant 0 : index
    %58 = vector.load %arg9[%c361, %c0_40] : memref<440x16xf32, #tpu.memory_space<vmem>>, vector<16x16xf32>
    tpu.vector_store %arg9[%c361, %c0_40], %57 {strides = array<i32>} : memref<440x16xf32, #tpu.memory_space<vmem>>, vector<16x16xf32>,
    %c377 = arith.constant 377 : index
    %c0_41 = arith.constant 0 : index
    %59 = vector.load %arg9[%c377, %c0_41] : memref<440x16xf32, #tpu.memory_space<vmem>>, vector<8x16xf32>
    tpu.vector_store %arg9[%c377, %c0_41], %14 {strides = array<i32>} : memref<440x16xf32, #tpu.memory_space<vmem>>, vector<8x16xf32>,
    %60 = vector.extract_strided_slice %11 {offsets = [240, 0], sizes = [16, 16], strides = [1, 1]} : vector<256x16xf32> to vector<16x16xf32>
    %c385 = arith.constant 385 : index
    %c0_42 = arith.constant 0 : index
    %61 = vector.load %arg9[%c385, %c0_42] : memref<440x16xf32, #tpu.memory_space<vmem>>, vector<16x16xf32>
    tpu.vector_store %arg9[%c385, %c0_42], %60 {strides = array<i32>} : memref<440x16xf32, #tpu.memory_space<vmem>>, vector<16x16xf32>,
    %cst_43 = arith.constant 0.000000e+00 : f32
    %62 = vector.broadcast %cst_43 : f32 to vector<39x16xf32>
    %c401 = arith.constant 401 : index
    %c0_44 = arith.constant 0 : index
    %63 = vector.load %arg9[%c401, %c0_44] : memref<440x16xf32, #tpu.memory_space<vmem>>, vector<39x16xf32>
    tpu.vector_store %arg9[%c401, %c0_44], %62 {strides = array<i32>} : memref<440x16xf32, #tpu.memory_space<vmem>>, vector<39x16xf32>,
    %c0_45 = arith.constant 0 : index
    %c0_46 = arith.constant 0 : index
    %64 = vector.load %arg9[%c0_45, %c0_46] : memref<440x16xf32, #tpu.memory_space<vmem>>, vector<384x16xf32>
    %65 = arith.truncf %64 : vector<384x16xf32> to vector<384x16xbf16>
    %c0_47 = arith.constant 0 : index
    %c0_48 = arith.constant 0 : index
    %c0_49 = arith.constant 0 : index
    %66 = vector.load %arg3[%c0_47, %c0_48, %c0_49] : memref<9x16x32xbf16, #tpu.memory_space<vmem>>, vector<1x16x32xbf16>
    %67 = vector.shape_cast %66 : vector<1x16x32xbf16> to vector<16x32xbf16>
    %cst_50 = arith.constant dense<0.000000e+00> : vector<384x32xf32>
    %68 = tpu.matmul %65, %67, %cst_50 {dimension_numbers = #tpu.dot_dimension_numbers<[1], [0], [0], [1], [0, 0, 1, 1], [], []>} : vector<384x16xbf16>, vector<16x32xbf16>, vector<384x32xf32> -> vector<384x32xf32>
    %c1_51 = arith.constant 1 : index
    %c0_52 = arith.constant 0 : index
    %69 = vector.load %arg9[%c1_51, %c0_52] : memref<440x16xf32, #tpu.memory_space<vmem>>, vector<384x16xf32>
    %70 = arith.truncf %69 : vector<384x16xf32> to vector<384x16xbf16>
    %c1_53 = arith.constant 1 : index
    %c0_54 = arith.constant 0 : index
    %c0_55 = arith.constant 0 : index
    %71 = vector.load %arg3[%c1_53, %c0_54, %c0_55] : memref<9x16x32xbf16, #tpu.memory_space<vmem>>, vector<1x16x32xbf16>
    %72 = vector.shape_cast %71 : vector<1x16x32xbf16> to vector<16x32xbf16>
    %cst_56 = arith.constant dense<0.000000e+00> : vector<384x32xf32>
    %73 = tpu.matmul %70, %72, %cst_56 {dimension_numbers = #tpu.dot_dimension_numbers<[1], [0], [0], [1], [0, 0, 1, 1], [], []>} : vector<384x16xbf16>, vector<16x32xbf16>, vector<384x32xf32> -> vector<384x32xf32>
    %74 = arith.addf %68, %73 : vector<384x32xf32>
    %c2 = arith.constant 2 : index
    %c0_57 = arith.constant 0 : index
    %75 = vector.load %arg9[%c2, %c0_57] : memref<440x16xf32, #tpu.memory_space<vmem>>, vector<384x16xf32>
    %76 = arith.truncf %75 : vector<384x16xf32> to vector<384x16xbf16>
    %c2_58 = arith.constant 2 : index
    %c0_59 = arith.constant 0 : index
    %c0_60 = arith.constant 0 : index
    %77 = vector.load %arg3[%c2_58, %c0_59, %c0_60] : memref<9x16x32xbf16, #tpu.memory_space<vmem>>, vector<1x16x32xbf16>
    %78 = vector.shape_cast %77 : vector<1x16x32xbf16> to vector<16x32xbf16>
    %cst_61 = arith.constant dense<0.000000e+00> : vector<384x32xf32>
    %79 = tpu.matmul %76, %78, %cst_61 {dimension_numbers = #tpu.dot_dimension_numbers<[1], [0], [0], [1], [0, 0, 1, 1], [], []>} : vector<384x16xbf16>, vector<16x32xbf16>, vector<384x32xf32> -> vector<384x32xf32>
    %80 = arith.addf %74, %79 : vector<384x32xf32>
    %c24 = arith.constant 24 : index
    %c0_62 = arith.constant 0 : index
    %81 = vector.load %arg9[%c24, %c0_62] : memref<440x16xf32, #tpu.memory_space<vmem>>, vector<384x16xf32>
    %82 = arith.truncf %81 : vector<384x16xf32> to vector<384x16xbf16>
    %c3 = arith.constant 3 : index
    %c0_63 = arith.constant 0 : index
    %c0_64 = arith.constant 0 : index
    %83 = vector.load %arg3[%c3, %c0_63, %c0_64] : memref<9x16x32xbf16, #tpu.memory_space<vmem>>, vector<1x16x32xbf16>
    %84 = vector.shape_cast %83 : vector<1x16x32xbf16> to vector<16x32xbf16>
    %cst_65 = arith.constant dense<0.000000e+00> : vector<384x32xf32>
    %85 = tpu.matmul %82, %84, %cst_65 {dimension_numbers = #tpu.dot_dimension_numbers<[1], [0], [0], [1], [0, 0, 1, 1], [], []>} : vector<384x16xbf16>, vector<16x32xbf16>, vector<384x32xf32> -> vector<384x32xf32>
    %86 = arith.addf %80, %85 : vector<384x32xf32>
    %c25_66 = arith.constant 25 : index
    %c0_67 = arith.constant 0 : index
    %87 = vector.load %arg9[%c25_66, %c0_67] : memref<440x16xf32, #tpu.memory_space<vmem>>, vector<384x16xf32>
    %88 = arith.truncf %87 : vector<384x16xf32> to vector<384x16xbf16>
    %c4 = arith.constant 4 : index
    %c0_68 = arith.constant 0 : index
    %c0_69 = arith.constant 0 : index
    %89 = vector.load %arg3[%c4, %c0_68, %c0_69] : memref<9x16x32xbf16, #tpu.memory_space<vmem>>, vector<1x16x32xbf16>
    %90 = vector.shape_cast %89 : vector<1x16x32xbf16> to vector<16x32xbf16>
    %cst_70 = arith.constant dense<0.000000e+00> : vector<384x32xf32>
    %91 = tpu.matmul %88, %90, %cst_70 {dimension_numbers = #tpu.dot_dimension_numbers<[1], [0], [0], [1], [0, 0, 1, 1], [], []>} : vector<384x16xbf16>, vector<16x32xbf16>, vector<384x32xf32> -> vector<384x32xf32>
    %92 = arith.addf %86, %91 : vector<384x32xf32>
    %c26 = arith.constant 26 : index
    %c0_71 = arith.constant 0 : index
    %93 = vector.load %arg9[%c26, %c0_71] : memref<440x16xf32, #tpu.memory_space<vmem>>, vector<384x16xf32>
    %94 = arith.truncf %93 : vector<384x16xf32> to vector<384x16xbf16>
    %c5 = arith.constant 5 : index
    %c0_72 = arith.constant 0 : index
    %c0_73 = arith.constant 0 : index
    %95 = vector.load %arg3[%c5, %c0_72, %c0_73] : memref<9x16x32xbf16, #tpu.memory_space<vmem>>, vector<1x16x32xbf16>
    %96 = vector.shape_cast %95 : vector<1x16x32xbf16> to vector<16x32xbf16>
    %cst_74 = arith.constant dense<0.000000e+00> : vector<384x32xf32>
    %97 = tpu.matmul %94, %96, %cst_74 {dimension_numbers = #tpu.dot_dimension_numbers<[1], [0], [0], [1], [0, 0, 1, 1], [], []>} : vector<384x16xbf16>, vector<16x32xbf16>, vector<384x32xf32> -> vector<384x32xf32>
    %98 = arith.addf %92, %97 : vector<384x32xf32>
    %c48 = arith.constant 48 : index
    %c0_75 = arith.constant 0 : index
    %99 = vector.load %arg9[%c48, %c0_75] : memref<440x16xf32, #tpu.memory_space<vmem>>, vector<384x16xf32>
    %100 = arith.truncf %99 : vector<384x16xf32> to vector<384x16xbf16>
    %c6 = arith.constant 6 : index
    %c0_76 = arith.constant 0 : index
    %c0_77 = arith.constant 0 : index
    %101 = vector.load %arg3[%c6, %c0_76, %c0_77] : memref<9x16x32xbf16, #tpu.memory_space<vmem>>, vector<1x16x32xbf16>
    %102 = vector.shape_cast %101 : vector<1x16x32xbf16> to vector<16x32xbf16>
    %cst_78 = arith.constant dense<0.000000e+00> : vector<384x32xf32>
    %103 = tpu.matmul %100, %102, %cst_78 {dimension_numbers = #tpu.dot_dimension_numbers<[1], [0], [0], [1], [0, 0, 1, 1], [], []>} : vector<384x16xbf16>, vector<16x32xbf16>, vector<384x32xf32> -> vector<384x32xf32>
    %104 = arith.addf %98, %103 : vector<384x32xf32>
    %c49_79 = arith.constant 49 : index
    %c0_80 = arith.constant 0 : index
    %105 = vector.load %arg9[%c49_79, %c0_80] : memref<440x16xf32, #tpu.memory_space<vmem>>, vector<384x16xf32>
    %106 = arith.truncf %105 : vector<384x16xf32> to vector<384x16xbf16>
    %c7 = arith.constant 7 : index
    %c0_81 = arith.constant 0 : index
    %c0_82 = arith.constant 0 : index
    %107 = vector.load %arg3[%c7, %c0_81, %c0_82] : memref<9x16x32xbf16, #tpu.memory_space<vmem>>, vector<1x16x32xbf16>
    %108 = vector.shape_cast %107 : vector<1x16x32xbf16> to vector<16x32xbf16>
    %cst_83 = arith.constant dense<0.000000e+00> : vector<384x32xf32>
    %109 = tpu.matmul %106, %108, %cst_83 {dimension_numbers = #tpu.dot_dimension_numbers<[1], [0], [0], [1], [0, 0, 1, 1], [], []>} : vector<384x16xbf16>, vector<16x32xbf16>, vector<384x32xf32> -> vector<384x32xf32>
    %110 = arith.addf %104, %109 : vector<384x32xf32>
    %c50 = arith.constant 50 : index
    %c0_84 = arith.constant 0 : index
    %111 = vector.load %arg9[%c50, %c0_84] : memref<440x16xf32, #tpu.memory_space<vmem>>, vector<384x16xf32>
    %112 = arith.truncf %111 : vector<384x16xf32> to vector<384x16xbf16>
    %c8 = arith.constant 8 : index
    %c0_85 = arith.constant 0 : index
    %c0_86 = arith.constant 0 : index
    %113 = vector.load %arg3[%c8, %c0_85, %c0_86] : memref<9x16x32xbf16, #tpu.memory_space<vmem>>, vector<1x16x32xbf16>
    %114 = vector.shape_cast %113 : vector<1x16x32xbf16> to vector<16x32xbf16>
    %cst_87 = arith.constant dense<0.000000e+00> : vector<384x32xf32>
    %115 = tpu.matmul %112, %114, %cst_87 {dimension_numbers = #tpu.dot_dimension_numbers<[1], [0], [0], [1], [0, 0, 1, 1], [], []>} : vector<384x16xbf16>, vector<16x32xbf16>, vector<384x32xf32> -> vector<384x32xf32>
    %116 = arith.addf %110, %115 : vector<384x32xf32>
    %c2_88 = arith.constant 2 : index
    %c0_89 = arith.constant 0 : index
    %117 = vector.load %arg7[%c2_88, %c0_89] : memref<10x80xf32, #tpu.memory_space<vmem>>, vector<1x32xf32>
    %c3_90 = arith.constant 3 : index
    %c0_91 = arith.constant 0 : index
    %118 = vector.load %arg7[%c3_90, %c0_91] : memref<10x80xf32, #tpu.memory_space<vmem>>, vector<1x32xf32>
    %119 = vector.broadcast %117 : vector<1x32xf32> to vector<384x32xf32>
    %120 = arith.mulf %116, %119 : vector<384x32xf32>
    %121 = vector.broadcast %118 : vector<1x32xf32> to vector<384x32xf32>
    %122 = arith.addf %120, %121 : vector<384x32xf32>
    %cst_92 = arith.constant 0.000000e+00 : f32
    %123 = vector.broadcast %cst_92 : f32 to vector<384x32xf32>
    %124 = arith.maximumf %122, %123 : vector<384x32xf32>
    %125 = vector.extract_strided_slice %124 {offsets = [0, 0], sizes = [359, 32], strides = [1, 1]} : vector<384x32xf32> to vector<359x32xf32>
    %126 = vector.extract_strided_slice %124 {offsets = [1, 0], sizes = [359, 32], strides = [1, 1]} : vector<384x32xf32> to vector<359x32xf32>
    %127 = arith.maximumf %125, %126 : vector<359x32xf32>
    %128 = vector.extract_strided_slice %124 {offsets = [24, 0], sizes = [359, 32], strides = [1, 1]} : vector<384x32xf32> to vector<359x32xf32>
    %129 = vector.extract_strided_slice %124 {offsets = [25, 0], sizes = [359, 32], strides = [1, 1]} : vector<384x32xf32> to vector<359x32xf32>
    %130 = arith.maximumf %128, %129 : vector<359x32xf32>
    %131 = arith.maximumf %127, %130 : vector<359x32xf32>
    %c0_93 = arith.constant 0 : index
    %c0_94 = arith.constant 0 : index
    %132 = vector.load %arg13[%c0_93, %c0_94] : memref<359x32xf32, #tpu.memory_space<vmem>>, vector<359x32xf32>
    tpu.vector_store %arg13[%c0_93, %c0_94], %131 {strides = array<i32>} : memref<359x32xf32, #tpu.memory_space<vmem>>, vector<359x32xf32>,
    %cst_95 = arith.constant 0.000000e+00 : f32
    %133 = vector.broadcast %cst_95 : f32 to vector<17x32xf32>
    %c0_96 = arith.constant 0 : index
    %c0_97 = arith.constant 0 : index
    %134 = vector.load %arg10[%c0_96, %c0_97] : memref<168x32xf32, #tpu.memory_space<vmem>>, vector<17x32xf32>
    tpu.vector_store %arg10[%c0_96, %c0_97], %133 {strides = array<i32>} : memref<168x32xf32, #tpu.memory_space<vmem>>, vector<17x32xf32>,
    %cst_98 = arith.constant 0.000000e+00 : f32
    %135 = vector.broadcast %cst_98 : f32 to vector<8x32xf32>
    %c0_99 = arith.constant 0 : index
    %c0_100 = arith.constant 0 : index
    %136 = tpu.strided_load %arg13[%c0_99, %c0_100] {strides = array<i32: 2, 1>} : memref<359x32xf32, #tpu.memory_space<vmem>>, vector<8x32xf32>
    %c17 = arith.constant 17 : index
    %c0_101 = arith.constant 0 : index
    %137 = vector.load %arg10[%c17, %c0_101] : memref<168x32xf32, #tpu.memory_space<vmem>>, vector<8x32xf32>
    tpu.vector_store %arg10[%c17, %c0_101], %136 {strides = array<i32>} : memref<168x32xf32, #tpu.memory_space<vmem>>, vector<8x32xf32>,
    %c25_102 = arith.constant 25 : index
    %c0_103 = arith.constant 0 : index
    %138 = vector.load %arg10[%c25_102, %c0_103] : memref<168x32xf32, #tpu.memory_space<vmem>>, vector<8x32xf32>
    tpu.vector_store %arg10[%c25_102, %c0_103], %135 {strides = array<i32>} : memref<168x32xf32, #tpu.memory_space<vmem>>, vector<8x32xf32>,
    %c48_104 = arith.constant 48 : index
    %c0_105 = arith.constant 0 : index
    %139 = tpu.strided_load %arg13[%c48_104, %c0_105] {strides = array<i32: 2, 1>} : memref<359x32xf32, #tpu.memory_space<vmem>>, vector<8x32xf32>
    %c33 = arith.constant 33 : index
    %c0_106 = arith.constant 0 : index
    %140 = vector.load %arg10[%c33, %c0_106] : memref<168x32xf32, #tpu.memory_space<vmem>>, vector<8x32xf32>
    tpu.vector_store %arg10[%c33, %c0_106], %139 {strides = array<i32>} : memref<168x32xf32, #tpu.memory_space<vmem>>, vector<8x32xf32>,
    %c41_107 = arith.constant 41 : index
    %c0_108 = arith.constant 0 : index
    %141 = vector.load %arg10[%c41_107, %c0_108] : memref<168x32xf32, #tpu.memory_space<vmem>>, vector<8x32xf32>
    tpu.vector_store %arg10[%c41_107, %c0_108], %135 {strides = array<i32>} : memref<168x32xf32, #tpu.memory_space<vmem>>, vector<8x32xf32>,
    %c96 = arith.constant 96 : index
    %c0_109 = arith.constant 0 : index
    %142 = tpu.strided_load %arg13[%c96, %c0_109] {strides = array<i32: 2, 1>} : memref<359x32xf32, #tpu.memory_space<vmem>>, vector<8x32xf32>
    %c49_110 = arith.constant 49 : index
    %c0_111 = arith.constant 0 : index
    %143 = vector.load %arg10[%c49_110, %c0_111] : memref<168x32xf32, #tpu.memory_space<vmem>>, vector<8x32xf32>
    tpu.vector_store %arg10[%c49_110, %c0_111], %142 {strides = array<i32>} : memref<168x32xf32, #tpu.memory_space<vmem>>, vector<8x32xf32>,
    %c57 = arith.constant 57 : index
    %c0_112 = arith.constant 0 : index
    %144 = vector.load %arg10[%c57, %c0_112] : memref<168x32xf32, #tpu.memory_space<vmem>>, vector<8x32xf32>
    tpu.vector_store %arg10[%c57, %c0_112], %135 {strides = array<i32>} : memref<168x32xf32, #tpu.memory_space<vmem>>, vector<8x32xf32>,
    %c144 = arith.constant 144 : index
    %c0_113 = arith.constant 0 : index
    %145 = tpu.strided_load %arg13[%c144, %c0_113] {strides = array<i32: 2, 1>} : memref<359x32xf32, #tpu.memory_space<vmem>>, vector<8x32xf32>
    %c65_114 = arith.constant 65 : index
    %c0_115 = arith.constant 0 : index
    %146 = vector.load %arg10[%c65_114, %c0_115] : memref<168x32xf32, #tpu.memory_space<vmem>>, vector<8x32xf32>
    tpu.vector_store %arg10[%c65_114, %c0_115], %145 {strides = array<i32>} : memref<168x32xf32, #tpu.memory_space<vmem>>, vector<8x32xf32>,
    %c73_116 = arith.constant 73 : index
    %c0_117 = arith.constant 0 : index
    %147 = vector.load %arg10[%c73_116, %c0_117] : memref<168x32xf32, #tpu.memory_space<vmem>>, vector<8x32xf32>
    tpu.vector_store %arg10[%c73_116, %c0_117], %135 {strides = array<i32>} : memref<168x32xf32, #tpu.memory_space<vmem>>, vector<8x32xf32>,
    %c192 = arith.constant 192 : index
    %c0_118 = arith.constant 0 : index
    %148 = tpu.strided_load %arg13[%c192, %c0_118] {strides = array<i32: 2, 1>} : memref<359x32xf32, #tpu.memory_space<vmem>>, vector<8x32xf32>
    %c81 = arith.constant 81 : index
    %c0_119 = arith.constant 0 : index
    %149 = vector.load %arg10[%c81, %c0_119] : memref<168x32xf32, #tpu.memory_space<vmem>>, vector<8x32xf32>
    tpu.vector_store %arg10[%c81, %c0_119], %148 {strides = array<i32>} : memref<168x32xf32, #tpu.memory_space<vmem>>, vector<8x32xf32>,
    %c89_120 = arith.constant 89 : index
    %c0_121 = arith.constant 0 : index
    %150 = vector.load %arg10[%c89_120, %c0_121] : memref<168x32xf32, #tpu.memory_space<vmem>>, vector<8x32xf32>
    tpu.vector_store %arg10[%c89_120, %c0_121], %135 {strides = array<i32>} : memref<168x32xf32, #tpu.memory_space<vmem>>, vector<8x32xf32>,
    %c240 = arith.constant 240 : index
    %c0_122 = arith.constant 0 : index
    %151 = tpu.strided_load %arg13[%c240, %c0_122] {strides = array<i32: 2, 1>} : memref<359x32xf32, #tpu.memory_space<vmem>>, vector<8x32xf32>
    %c97_123 = arith.constant 97 : index
    %c0_124 = arith.constant 0 : index
    %152 = vector.load %arg10[%c97_123, %c0_124] : memref<168x32xf32, #tpu.memory_space<vmem>>, vector<8x32xf32>
    tpu.vector_store %arg10[%c97_123, %c0_124], %151 {strides = array<i32>} : memref<168x32xf32, #tpu.memory_space<vmem>>, vector<8x32xf32>,
    %c105 = arith.constant 105 : index
    %c0_125 = arith.constant 0 : index
    %153 = vector.load %arg10[%c105, %c0_125] : memref<168x32xf32, #tpu.memory_space<vmem>>, vector<8x32xf32>
    tpu.vector_store %arg10[%c105, %c0_125], %135 {strides = array<i32>} : memref<168x32xf32, #tpu.memory_space<vmem>>, vector<8x32xf32>,
    %c288 = arith.constant 288 : index
    %c0_126 = arith.constant 0 : index
    %154 = tpu.strided_load %arg13[%c288, %c0_126] {strides = array<i32: 2, 1>} : memref<359x32xf32, #tpu.memory_space<vmem>>, vector<8x32xf32>
    %c113_127 = arith.constant 113 : index
    %c0_128 = arith.constant 0 : index
    %155 = vector.load %arg10[%c113_127, %c0_128] : memref<168x32xf32, #tpu.memory_space<vmem>>, vector<8x32xf32>
    tpu.vector_store %arg10[%c113_127, %c0_128], %154 {strides = array<i32>} : memref<168x32xf32, #tpu.memory_space<vmem>>, vector<8x32xf32>,
    %c121_129 = arith.constant 121 : index
    %c0_130 = arith.constant 0 : index
    %156 = vector.load %arg10[%c121_129, %c0_130] : memref<168x32xf32, #tpu.memory_space<vmem>>, vector<8x32xf32>
    tpu.vector_store %arg10[%c121_129, %c0_130], %135 {strides = array<i32>} : memref<168x32xf32, #tpu.memory_space<vmem>>, vector<8x32xf32>,
    %c336 = arith.constant 336 : index
    %c0_131 = arith.constant 0 : index
    %157 = tpu.strided_load %arg13[%c336, %c0_131] {strides = array<i32: 2, 1>} : memref<359x32xf32, #tpu.memory_space<vmem>>, vector<8x32xf32>
    %c129 = arith.constant 129 : index
    %c0_132 = arith.constant 0 : index
    %158 = vector.load %arg10[%c129, %c0_132] : memref<168x32xf32, #tpu.memory_space<vmem>>, vector<8x32xf32>
    tpu.vector_store %arg10[%c129, %c0_132], %157 {strides = array<i32>} : memref<168x32xf32, #tpu.memory_space<vmem>>, vector<8x32xf32>,
    %cst_133 = arith.constant 0.000000e+00 : f32
    %159 = vector.broadcast %cst_133 : f32 to vector<31x32xf32>
    %c137_134 = arith.constant 137 : index
    %c0_135 = arith.constant 0 : index
    %160 = vector.load %arg10[%c137_134, %c0_135] : memref<168x32xf32, #tpu.memory_space<vmem>>, vector<31x32xf32>
    tpu.vector_store %arg10[%c137_134, %c0_135], %159 {strides = array<i32>} : memref<168x32xf32, #tpu.memory_space<vmem>>, vector<31x32xf32>,
    %c0_136 = arith.constant 0 : index
    %c0_137 = arith.constant 0 : index
    %161 = vector.load %arg10[%c0_136, %c0_137] : memref<168x32xf32, #tpu.memory_space<vmem>>, vector<128x32xf32>
    %162 = arith.truncf %161 : vector<128x32xf32> to vector<128x32xbf16>
    %c0_138 = arith.constant 0 : index
    %c0_139 = arith.constant 0 : index
    %c0_140 = arith.constant 0 : index
    %163 = vector.load %arg4[%c0_138, %c0_139, %c0_140] : memref<9x32x48xbf16, #tpu.memory_space<vmem>>, vector<1x32x48xbf16>
    %164 = vector.shape_cast %163 : vector<1x32x48xbf16> to vector<32x48xbf16>
    %cst_141 = arith.constant dense<0.000000e+00> : vector<128x48xf32>
    %165 = tpu.matmul %162, %164, %cst_141 {dimension_numbers = #tpu.dot_dimension_numbers<[1], [0], [0], [1], [0, 0, 1, 1], [], []>} : vector<128x32xbf16>, vector<32x48xbf16>, vector<128x48xf32> -> vector<128x48xf32>
    %c1_142 = arith.constant 1 : index
    %c0_143 = arith.constant 0 : index
    %166 = vector.load %arg10[%c1_142, %c0_143] : memref<168x32xf32, #tpu.memory_space<vmem>>, vector<128x32xf32>
    %167 = arith.truncf %166 : vector<128x32xf32> to vector<128x32xbf16>
    %c1_144 = arith.constant 1 : index
    %c0_145 = arith.constant 0 : index
    %c0_146 = arith.constant 0 : index
    %168 = vector.load %arg4[%c1_144, %c0_145, %c0_146] : memref<9x32x48xbf16, #tpu.memory_space<vmem>>, vector<1x32x48xbf16>
    %169 = vector.shape_cast %168 : vector<1x32x48xbf16> to vector<32x48xbf16>
    %cst_147 = arith.constant dense<0.000000e+00> : vector<128x48xf32>
    %170 = tpu.matmul %167, %169, %cst_147 {dimension_numbers = #tpu.dot_dimension_numbers<[1], [0], [0], [1], [0, 0, 1, 1], [], []>} : vector<128x32xbf16>, vector<32x48xbf16>, vector<128x48xf32> -> vector<128x48xf32>
    %171 = arith.addf %165, %170 : vector<128x48xf32>
    %c2_148 = arith.constant 2 : index
    %c0_149 = arith.constant 0 : index
    %172 = vector.load %arg10[%c2_148, %c0_149] : memref<168x32xf32, #tpu.memory_space<vmem>>, vector<128x32xf32>
    %173 = arith.truncf %172 : vector<128x32xf32> to vector<128x32xbf16>
    %c2_150 = arith.constant 2 : index
    %c0_151 = arith.constant 0 : index
    %c0_152 = arith.constant 0 : index
    %174 = vector.load %arg4[%c2_150, %c0_151, %c0_152] : memref<9x32x48xbf16, #tpu.memory_space<vmem>>, vector<1x32x48xbf16>
    %175 = vector.shape_cast %174 : vector<1x32x48xbf16> to vector<32x48xbf16>
    %cst_153 = arith.constant dense<0.000000e+00> : vector<128x48xf32>
    %176 = tpu.matmul %173, %175, %cst_153 {dimension_numbers = #tpu.dot_dimension_numbers<[1], [0], [0], [1], [0, 0, 1, 1], [], []>} : vector<128x32xbf16>, vector<32x48xbf16>, vector<128x48xf32> -> vector<128x48xf32>
    %177 = arith.addf %171, %176 : vector<128x48xf32>
    %c16 = arith.constant 16 : index
    %c0_154 = arith.constant 0 : index
    %178 = vector.load %arg10[%c16, %c0_154] : memref<168x32xf32, #tpu.memory_space<vmem>>, vector<128x32xf32>
    %179 = arith.truncf %178 : vector<128x32xf32> to vector<128x32xbf16>
    %c3_155 = arith.constant 3 : index
    %c0_156 = arith.constant 0 : index
    %c0_157 = arith.constant 0 : index
    %180 = vector.load %arg4[%c3_155, %c0_156, %c0_157] : memref<9x32x48xbf16, #tpu.memory_space<vmem>>, vector<1x32x48xbf16>
    %181 = vector.shape_cast %180 : vector<1x32x48xbf16> to vector<32x48xbf16>
    %cst_158 = arith.constant dense<0.000000e+00> : vector<128x48xf32>
    %182 = tpu.matmul %179, %181, %cst_158 {dimension_numbers = #tpu.dot_dimension_numbers<[1], [0], [0], [1], [0, 0, 1, 1], [], []>} : vector<128x32xbf16>, vector<32x48xbf16>, vector<128x48xf32> -> vector<128x48xf32>
    %183 = arith.addf %177, %182 : vector<128x48xf32>
    %c17_159 = arith.constant 17 : index
    %c0_160 = arith.constant 0 : index
    %184 = vector.load %arg10[%c17_159, %c0_160] : memref<168x32xf32, #tpu.memory_space<vmem>>, vector<128x32xf32>
    %185 = arith.truncf %184 : vector<128x32xf32> to vector<128x32xbf16>
    %c4_161 = arith.constant 4 : index
    %c0_162 = arith.constant 0 : index
    %c0_163 = arith.constant 0 : index
    %186 = vector.load %arg4[%c4_161, %c0_162, %c0_163] : memref<9x32x48xbf16, #tpu.memory_space<vmem>>, vector<1x32x48xbf16>
    %187 = vector.shape_cast %186 : vector<1x32x48xbf16> to vector<32x48xbf16>
    %cst_164 = arith.constant dense<0.000000e+00> : vector<128x48xf32>
    %188 = tpu.matmul %185, %187, %cst_164 {dimension_numbers = #tpu.dot_dimension_numbers<[1], [0], [0], [1], [0, 0, 1, 1], [], []>} : vector<128x32xbf16>, vector<32x48xbf16>, vector<128x48xf32> -> vector<128x48xf32>
    %189 = arith.addf %183, %188 : vector<128x48xf32>
    %c18 = arith.constant 18 : index
    %c0_165 = arith.constant 0 : index
    %190 = vector.load %arg10[%c18, %c0_165] : memref<168x32xf32, #tpu.memory_space<vmem>>, vector<128x32xf32>
    %191 = arith.truncf %190 : vector<128x32xf32> to vector<128x32xbf16>
    %c5_166 = arith.constant 5 : index
    %c0_167 = arith.constant 0 : index
    %c0_168 = arith.constant 0 : index
    %192 = vector.load %arg4[%c5_166, %c0_167, %c0_168] : memref<9x32x48xbf16, #tpu.memory_space<vmem>>, vector<1x32x48xbf16>
    %193 = vector.shape_cast %192 : vector<1x32x48xbf16> to vector<32x48xbf16>
    %cst_169 = arith.constant dense<0.000000e+00> : vector<128x48xf32>
    %194 = tpu.matmul %191, %193, %cst_169 {dimension_numbers = #tpu.dot_dimension_numbers<[1], [0], [0], [1], [0, 0, 1, 1], [], []>} : vector<128x32xbf16>, vector<32x48xbf16>, vector<128x48xf32> -> vector<128x48xf32>
    %195 = arith.addf %189, %194 : vector<128x48xf32>
    %c32 = arith.constant 32 : index
    %c0_170 = arith.constant 0 : index
    %196 = vector.load %arg10[%c32, %c0_170] : memref<168x32xf32, #tpu.memory_space<vmem>>, vector<128x32xf32>
    %197 = arith.truncf %196 : vector<128x32xf32> to vector<128x32xbf16>
    %c6_171 = arith.constant 6 : index
    %c0_172 = arith.constant 0 : index
    %c0_173 = arith.constant 0 : index
    %198 = vector.load %arg4[%c6_171, %c0_172, %c0_173] : memref<9x32x48xbf16, #tpu.memory_space<vmem>>, vector<1x32x48xbf16>
    %199 = vector.shape_cast %198 : vector<1x32x48xbf16> to vector<32x48xbf16>
    %cst_174 = arith.constant dense<0.000000e+00> : vector<128x48xf32>
    %200 = tpu.matmul %197, %199, %cst_174 {dimension_numbers = #tpu.dot_dimension_numbers<[1], [0], [0], [1], [0, 0, 1, 1], [], []>} : vector<128x32xbf16>, vector<32x48xbf16>, vector<128x48xf32> -> vector<128x48xf32>
    %201 = arith.addf %195, %200 : vector<128x48xf32>
    %c33_175 = arith.constant 33 : index
    %c0_176 = arith.constant 0 : index
    %202 = vector.load %arg10[%c33_175, %c0_176] : memref<168x32xf32, #tpu.memory_space<vmem>>, vector<128x32xf32>
    %203 = arith.truncf %202 : vector<128x32xf32> to vector<128x32xbf16>
    %c7_177 = arith.constant 7 : index
    %c0_178 = arith.constant 0 : index
    %c0_179 = arith.constant 0 : index
    %204 = vector.load %arg4[%c7_177, %c0_178, %c0_179] : memref<9x32x48xbf16, #tpu.memory_space<vmem>>, vector<1x32x48xbf16>
    %205 = vector.shape_cast %204 : vector<1x32x48xbf16> to vector<32x48xbf16>
    %cst_180 = arith.constant dense<0.000000e+00> : vector<128x48xf32>
    %206 = tpu.matmul %203, %205, %cst_180 {dimension_numbers = #tpu.dot_dimension_numbers<[1], [0], [0], [1], [0, 0, 1, 1], [], []>} : vector<128x32xbf16>, vector<32x48xbf16>, vector<128x48xf32> -> vector<128x48xf32>
    %207 = arith.addf %201, %206 : vector<128x48xf32>
    %c34 = arith.constant 34 : index
    %c0_181 = arith.constant 0 : index
    %208 = vector.load %arg10[%c34, %c0_181] : memref<168x32xf32, #tpu.memory_space<vmem>>, vector<128x32xf32>
    %209 = arith.truncf %208 : vector<128x32xf32> to vector<128x32xbf16>
    %c8_182 = arith.constant 8 : index
    %c0_183 = arith.constant 0 : index
    %c0_184 = arith.constant 0 : index
    %210 = vector.load %arg4[%c8_182, %c0_183, %c0_184] : memref<9x32x48xbf16, #tpu.memory_space<vmem>>, vector<1x32x48xbf16>
    %211 = vector.shape_cast %210 : vector<1x32x48xbf16> to vector<32x48xbf16>
    %cst_185 = arith.constant dense<0.000000e+00> : vector<128x48xf32>
    %212 = tpu.matmul %209, %211, %cst_185 {dimension_numbers = #tpu.dot_dimension_numbers<[1], [0], [0], [1], [0, 0, 1, 1], [], []>} : vector<128x32xbf16>, vector<32x48xbf16>, vector<128x48xf32> -> vector<128x48xf32>
    %213 = arith.addf %207, %212 : vector<128x48xf32>
    %c4_186 = arith.constant 4 : index
    %c0_187 = arith.constant 0 : index
    %214 = vector.load %arg7[%c4_186, %c0_187] : memref<10x80xf32, #tpu.memory_space<vmem>>, vector<1x48xf32>
    %c5_188 = arith.constant 5 : index
    %c0_189 = arith.constant 0 : index
    %215 = vector.load %arg7[%c5_188, %c0_189] : memref<10x80xf32, #tpu.memory_space<vmem>>, vector<1x48xf32>
    %216 = vector.broadcast %214 : vector<1x48xf32> to vector<128x48xf32>
    %217 = arith.mulf %213, %216 : vector<128x48xf32>
    %218 = vector.broadcast %215 : vector<1x48xf32> to vector<128x48xf32>
    %219 = arith.addf %217, %218 : vector<128x48xf32>
    %cst_190 = arith.constant 0.000000e+00 : f32
    %220 = vector.broadcast %cst_190 : f32 to vector<128x48xf32>
    %221 = arith.maximumf %219, %220 : vector<128x48xf32>
    %222 = vector.extract_strided_slice %221 {offsets = [0, 0], sizes = [111, 48], strides = [1, 1]} : vector<128x48xf32> to vector<111x48xf32>
    %223 = vector.extract_strided_slice %221 {offsets = [1, 0], sizes = [111, 48], strides = [1, 1]} : vector<128x48xf32> to vector<111x48xf32>
    %224 = arith.maximumf %222, %223 : vector<111x48xf32>
    %225 = vector.extract_strided_slice %221 {offsets = [16, 0], sizes = [111, 48], strides = [1, 1]} : vector<128x48xf32> to vector<111x48xf32>
    %226 = vector.extract_strided_slice %221 {offsets = [17, 0], sizes = [111, 48], strides = [1, 1]} : vector<128x48xf32> to vector<111x48xf32>
    %227 = arith.maximumf %225, %226 : vector<111x48xf32>
    %228 = arith.maximumf %224, %227 : vector<111x48xf32>
    %c0_191 = arith.constant 0 : index
    %c0_192 = arith.constant 0 : index
    %229 = vector.load %arg14[%c0_191, %c0_192] : memref<111x48xf32, #tpu.memory_space<vmem>>, vector<111x48xf32>
    tpu.vector_store %arg14[%c0_191, %c0_192], %228 {strides = array<i32>} : memref<111x48xf32, #tpu.memory_space<vmem>>, vector<111x48xf32>,
    %cst_193 = arith.constant 0.000000e+00 : f32
    %230 = vector.broadcast %cst_193 : f32 to vector<9x48xf32>
    %c0_194 = arith.constant 0 : index
    %c0_195 = arith.constant 0 : index
    %231 = vector.load %arg11[%c0_194, %c0_195] : memref<56x48xf32, #tpu.memory_space<vmem>>, vector<9x48xf32>
    tpu.vector_store %arg11[%c0_194, %c0_195], %230 {strides = array<i32>} : memref<56x48xf32, #tpu.memory_space<vmem>>, vector<9x48xf32>,
    %cst_196 = arith.constant 0.000000e+00 : f32
    %232 = vector.broadcast %cst_196 : f32 to vector<4x48xf32>
    %c0_197 = arith.constant 0 : index
    %c0_198 = arith.constant 0 : index
    %233 = tpu.strided_load %arg14[%c0_197, %c0_198] {strides = array<i32: 2, 1>} : memref<111x48xf32, #tpu.memory_space<vmem>>, vector<4x48xf32>
    %c9 = arith.constant 9 : index
    %c0_199 = arith.constant 0 : index
    %234 = vector.load %arg11[%c9, %c0_199] : memref<56x48xf32, #tpu.memory_space<vmem>>, vector<4x48xf32>
    tpu.vector_store %arg11[%c9, %c0_199], %233 {strides = array<i32>} : memref<56x48xf32, #tpu.memory_space<vmem>>, vector<4x48xf32>,
    %c13 = arith.constant 13 : index
    %c0_200 = arith.constant 0 : index
    %235 = vector.load %arg11[%c13, %c0_200] : memref<56x48xf32, #tpu.memory_space<vmem>>, vector<4x48xf32>
    tpu.vector_store %arg11[%c13, %c0_200], %232 {strides = array<i32>} : memref<56x48xf32, #tpu.memory_space<vmem>>, vector<4x48xf32>,
    %c32_201 = arith.constant 32 : index
    %c0_202 = arith.constant 0 : index
    %236 = tpu.strided_load %arg14[%c32_201, %c0_202] {strides = array<i32: 2, 1>} : memref<111x48xf32, #tpu.memory_space<vmem>>, vector<4x48xf32>
    %c17_203 = arith.constant 17 : index
    %c0_204 = arith.constant 0 : index
    %237 = vector.load %arg11[%c17_203, %c0_204] : memref<56x48xf32, #tpu.memory_space<vmem>>, vector<4x48xf32>
    tpu.vector_store %arg11[%c17_203, %c0_204], %236 {strides = array<i32>} : memref<56x48xf32, #tpu.memory_space<vmem>>, vector<4x48xf32>,
    %c21 = arith.constant 21 : index
    %c0_205 = arith.constant 0 : index
    %238 = vector.load %arg11[%c21, %c0_205] : memref<56x48xf32, #tpu.memory_space<vmem>>, vector<4x48xf32>
    tpu.vector_store %arg11[%c21, %c0_205], %232 {strides = array<i32>} : memref<56x48xf32, #tpu.memory_space<vmem>>, vector<4x48xf32>,
    %c64 = arith.constant 64 : index
    %c0_206 = arith.constant 0 : index
    %239 = tpu.strided_load %arg14[%c64, %c0_206] {strides = array<i32: 2, 1>} : memref<111x48xf32, #tpu.memory_space<vmem>>, vector<4x48xf32>
    %c25_207 = arith.constant 25 : index
    %c0_208 = arith.constant 0 : index
    %240 = vector.load %arg11[%c25_207, %c0_208] : memref<56x48xf32, #tpu.memory_space<vmem>>, vector<4x48xf32>
    tpu.vector_store %arg11[%c25_207, %c0_208], %239 {strides = array<i32>} : memref<56x48xf32, #tpu.memory_space<vmem>>, vector<4x48xf32>,
    %c29 = arith.constant 29 : index
    %c0_209 = arith.constant 0 : index
    %241 = vector.load %arg11[%c29, %c0_209] : memref<56x48xf32, #tpu.memory_space<vmem>>, vector<4x48xf32>
    tpu.vector_store %arg11[%c29, %c0_209], %232 {strides = array<i32>} : memref<56x48xf32, #tpu.memory_space<vmem>>, vector<4x48xf32>,
    %c96_210 = arith.constant 96 : index
    %c0_211 = arith.constant 0 : index
    %242 = tpu.strided_load %arg14[%c96_210, %c0_211] {strides = array<i32: 2, 1>} : memref<111x48xf32, #tpu.memory_space<vmem>>, vector<4x48xf32>
    %c33_212 = arith.constant 33 : index
    %c0_213 = arith.constant 0 : index
    %243 = vector.load %arg11[%c33_212, %c0_213] : memref<56x48xf32, #tpu.memory_space<vmem>>, vector<4x48xf32>
    tpu.vector_store %arg11[%c33_212, %c0_213], %242 {strides = array<i32>} : memref<56x48xf32, #tpu.memory_space<vmem>>, vector<4x48xf32>,
    %cst_214 = arith.constant 0.000000e+00 : f32
    %244 = vector.broadcast %cst_214 : f32 to vector<19x48xf32>
    %c37 = arith.constant 37 : index
    %c0_215 = arith.constant 0 : index
    %245 = vector.load %arg11[%c37, %c0_215] : memref<56x48xf32, #tpu.memory_space<vmem>>, vector<19x48xf32>
    tpu.vector_store %arg11[%c37, %c0_215], %244 {strides = array<i32>} : memref<56x48xf32, #tpu.memory_space<vmem>>, vector<19x48xf32>,
    %c0_216 = arith.constant 0 : index
    %c0_217 = arith.constant 0 : index
    %246 = vector.load %arg11[%c0_216, %c0_217] : memref<56x48xf32, #tpu.memory_space<vmem>>, vector<32x48xf32>
    %247 = arith.truncf %246 : vector<32x48xf32> to vector<32x48xbf16>
    %c0_218 = arith.constant 0 : index
    %c0_219 = arith.constant 0 : index
    %c0_220 = arith.constant 0 : index
    %248 = vector.load %arg5[%c0_218, %c0_219, %c0_220] : memref<9x48x64xbf16, #tpu.memory_space<vmem>>, vector<1x48x64xbf16>
    %249 = vector.shape_cast %248 : vector<1x48x64xbf16> to vector<48x64xbf16>
    %cst_221 = arith.constant dense<0.000000e+00> : vector<32x64xf32>
    %250 = tpu.matmul %247, %249, %cst_221 {dimension_numbers = #tpu.dot_dimension_numbers<[1], [0], [0], [1], [0, 0, 1, 1], [], []>} : vector<32x48xbf16>, vector<48x64xbf16>, vector<32x64xf32> -> vector<32x64xf32>
    %c1_222 = arith.constant 1 : index
    %c0_223 = arith.constant 0 : index
    %251 = vector.load %arg11[%c1_222, %c0_223] : memref<56x48xf32, #tpu.memory_space<vmem>>, vector<32x48xf32>
    %252 = arith.truncf %251 : vector<32x48xf32> to vector<32x48xbf16>
    %c1_224 = arith.constant 1 : index
    %c0_225 = arith.constant 0 : index
    %c0_226 = arith.constant 0 : index
    %253 = vector.load %arg5[%c1_224, %c0_225, %c0_226] : memref<9x48x64xbf16, #tpu.memory_space<vmem>>, vector<1x48x64xbf16>
    %254 = vector.shape_cast %253 : vector<1x48x64xbf16> to vector<48x64xbf16>
    %cst_227 = arith.constant dense<0.000000e+00> : vector<32x64xf32>
    %255 = tpu.matmul %252, %254, %cst_227 {dimension_numbers = #tpu.dot_dimension_numbers<[1], [0], [0], [1], [0, 0, 1, 1], [], []>} : vector<32x48xbf16>, vector<48x64xbf16>, vector<32x64xf32> -> vector<32x64xf32>
    %256 = arith.addf %250, %255 : vector<32x64xf32>
    %c2_228 = arith.constant 2 : index
    %c0_229 = arith.constant 0 : index
    %257 = vector.load %arg11[%c2_228, %c0_229] : memref<56x48xf32, #tpu.memory_space<vmem>>, vector<32x48xf32>
    %258 = arith.truncf %257 : vector<32x48xf32> to vector<32x48xbf16>
    %c2_230 = arith.constant 2 : index
    %c0_231 = arith.constant 0 : index
    %c0_232 = arith.constant 0 : index
    %259 = vector.load %arg5[%c2_230, %c0_231, %c0_232] : memref<9x48x64xbf16, #tpu.memory_space<vmem>>, vector<1x48x64xbf16>
    %260 = vector.shape_cast %259 : vector<1x48x64xbf16> to vector<48x64xbf16>
    %cst_233 = arith.constant dense<0.000000e+00> : vector<32x64xf32>
    %261 = tpu.matmul %258, %260, %cst_233 {dimension_numbers = #tpu.dot_dimension_numbers<[1], [0], [0], [1], [0, 0, 1, 1], [], []>} : vector<32x48xbf16>, vector<48x64xbf16>, vector<32x64xf32> -> vector<32x64xf32>
    %262 = arith.addf %256, %261 : vector<32x64xf32>
    %c8_234 = arith.constant 8 : index
    %c0_235 = arith.constant 0 : index
    %263 = vector.load %arg11[%c8_234, %c0_235] : memref<56x48xf32, #tpu.memory_space<vmem>>, vector<32x48xf32>
    %264 = arith.truncf %263 : vector<32x48xf32> to vector<32x48xbf16>
    %c3_236 = arith.constant 3 : index
    %c0_237 = arith.constant 0 : index
    %c0_238 = arith.constant 0 : index
    %265 = vector.load %arg5[%c3_236, %c0_237, %c0_238] : memref<9x48x64xbf16, #tpu.memory_space<vmem>>, vector<1x48x64xbf16>
    %266 = vector.shape_cast %265 : vector<1x48x64xbf16> to vector<48x64xbf16>
    %cst_239 = arith.constant dense<0.000000e+00> : vector<32x64xf32>
    %267 = tpu.matmul %264, %266, %cst_239 {dimension_numbers = #tpu.dot_dimension_numbers<[1], [0], [0], [1], [0, 0, 1, 1], [], []>} : vector<32x48xbf16>, vector<48x64xbf16>, vector<32x64xf32> -> vector<32x64xf32>
    %268 = arith.addf %262, %267 : vector<32x64xf32>
    %c9_240 = arith.constant 9 : index
    %c0_241 = arith.constant 0 : index
    %269 = vector.load %arg11[%c9_240, %c0_241] : memref<56x48xf32, #tpu.memory_space<vmem>>, vector<32x48xf32>
    %270 = arith.truncf %269 : vector<32x48xf32> to vector<32x48xbf16>
    %c4_242 = arith.constant 4 : index
    %c0_243 = arith.constant 0 : index
    %c0_244 = arith.constant 0 : index
    %271 = vector.load %arg5[%c4_242, %c0_243, %c0_244] : memref<9x48x64xbf16, #tpu.memory_space<vmem>>, vector<1x48x64xbf16>
    %272 = vector.shape_cast %271 : vector<1x48x64xbf16> to vector<48x64xbf16>
    %cst_245 = arith.constant dense<0.000000e+00> : vector<32x64xf32>
    %273 = tpu.matmul %270, %272, %cst_245 {dimension_numbers = #tpu.dot_dimension_numbers<[1], [0], [0], [1], [0, 0, 1, 1], [], []>} : vector<32x48xbf16>, vector<48x64xbf16>, vector<32x64xf32> -> vector<32x64xf32>
    %274 = arith.addf %268, %273 : vector<32x64xf32>
    %c10 = arith.constant 10 : index
    %c0_246 = arith.constant 0 : index
    %275 = vector.load %arg11[%c10, %c0_246] : memref<56x48xf32, #tpu.memory_space<vmem>>, vector<32x48xf32>
    %276 = arith.truncf %275 : vector<32x48xf32> to vector<32x48xbf16>
    %c5_247 = arith.constant 5 : index
    %c0_248 = arith.constant 0 : index
    %c0_249 = arith.constant 0 : index
    %277 = vector.load %arg5[%c5_247, %c0_248, %c0_249] : memref<9x48x64xbf16, #tpu.memory_space<vmem>>, vector<1x48x64xbf16>
    %278 = vector.shape_cast %277 : vector<1x48x64xbf16> to vector<48x64xbf16>
    %cst_250 = arith.constant dense<0.000000e+00> : vector<32x64xf32>
    %279 = tpu.matmul %276, %278, %cst_250 {dimension_numbers = #tpu.dot_dimension_numbers<[1], [0], [0], [1], [0, 0, 1, 1], [], []>} : vector<32x48xbf16>, vector<48x64xbf16>, vector<32x64xf32> -> vector<32x64xf32>
    %280 = arith.addf %274, %279 : vector<32x64xf32>
    %c16_251 = arith.constant 16 : index
    %c0_252 = arith.constant 0 : index
    %281 = vector.load %arg11[%c16_251, %c0_252] : memref<56x48xf32, #tpu.memory_space<vmem>>, vector<32x48xf32>
    %282 = arith.truncf %281 : vector<32x48xf32> to vector<32x48xbf16>
    %c6_253 = arith.constant 6 : index
    %c0_254 = arith.constant 0 : index
    %c0_255 = arith.constant 0 : index
    %283 = vector.load %arg5[%c6_253, %c0_254, %c0_255] : memref<9x48x64xbf16, #tpu.memory_space<vmem>>, vector<1x48x64xbf16>
    %284 = vector.shape_cast %283 : vector<1x48x64xbf16> to vector<48x64xbf16>
    %cst_256 = arith.constant dense<0.000000e+00> : vector<32x64xf32>
    %285 = tpu.matmul %282, %284, %cst_256 {dimension_numbers = #tpu.dot_dimension_numbers<[1], [0], [0], [1], [0, 0, 1, 1], [], []>} : vector<32x48xbf16>, vector<48x64xbf16>, vector<32x64xf32> -> vector<32x64xf32>
    %286 = arith.addf %280, %285 : vector<32x64xf32>
    %c17_257 = arith.constant 17 : index
    %c0_258 = arith.constant 0 : index
    %287 = vector.load %arg11[%c17_257, %c0_258] : memref<56x48xf32, #tpu.memory_space<vmem>>, vector<32x48xf32>
    %288 = arith.truncf %287 : vector<32x48xf32> to vector<32x48xbf16>
    %c7_259 = arith.constant 7 : index
    %c0_260 = arith.constant 0 : index
    %c0_261 = arith.constant 0 : index
    %289 = vector.load %arg5[%c7_259, %c0_260, %c0_261] : memref<9x48x64xbf16, #tpu.memory_space<vmem>>, vector<1x48x64xbf16>
    %290 = vector.shape_cast %289 : vector<1x48x64xbf16> to vector<48x64xbf16>
    %cst_262 = arith.constant dense<0.000000e+00> : vector<32x64xf32>
    %291 = tpu.matmul %288, %290, %cst_262 {dimension_numbers = #tpu.dot_dimension_numbers<[1], [0], [0], [1], [0, 0, 1, 1], [], []>} : vector<32x48xbf16>, vector<48x64xbf16>, vector<32x64xf32> -> vector<32x64xf32>
    %292 = arith.addf %286, %291 : vector<32x64xf32>
    %c18_263 = arith.constant 18 : index
    %c0_264 = arith.constant 0 : index
    %293 = vector.load %arg11[%c18_263, %c0_264] : memref<56x48xf32, #tpu.memory_space<vmem>>, vector<32x48xf32>
    %294 = arith.truncf %293 : vector<32x48xf32> to vector<32x48xbf16>
    %c8_265 = arith.constant 8 : index
    %c0_266 = arith.constant 0 : index
    %c0_267 = arith.constant 0 : index
    %295 = vector.load %arg5[%c8_265, %c0_266, %c0_267] : memref<9x48x64xbf16, #tpu.memory_space<vmem>>, vector<1x48x64xbf16>
    %296 = vector.shape_cast %295 : vector<1x48x64xbf16> to vector<48x64xbf16>
    %cst_268 = arith.constant dense<0.000000e+00> : vector<32x64xf32>
    %297 = tpu.matmul %294, %296, %cst_268 {dimension_numbers = #tpu.dot_dimension_numbers<[1], [0], [0], [1], [0, 0, 1, 1], [], []>} : vector<32x48xbf16>, vector<48x64xbf16>, vector<32x64xf32> -> vector<32x64xf32>
    %298 = arith.addf %292, %297 : vector<32x64xf32>
    %c6_269 = arith.constant 6 : index
    %c0_270 = arith.constant 0 : index
    %299 = vector.load %arg7[%c6_269, %c0_270] : memref<10x80xf32, #tpu.memory_space<vmem>>, vector<1x64xf32>
    %c7_271 = arith.constant 7 : index
    %c0_272 = arith.constant 0 : index
    %300 = vector.load %arg7[%c7_271, %c0_272] : memref<10x80xf32, #tpu.memory_space<vmem>>, vector<1x64xf32>
    %301 = vector.broadcast %299 : vector<1x64xf32> to vector<32x64xf32>
    %302 = arith.mulf %298, %301 : vector<32x64xf32>
    %303 = vector.broadcast %300 : vector<1x64xf32> to vector<32x64xf32>
    %304 = arith.addf %302, %303 : vector<32x64xf32>
    %cst_273 = arith.constant 0.000000e+00 : f32
    %305 = vector.broadcast %cst_273 : f32 to vector<32x64xf32>
    %306 = arith.maximumf %304, %305 : vector<32x64xf32>
    %cst_274 = arith.constant 0.000000e+00 : f32
    %307 = vector.broadcast %cst_274 : f32 to vector<9x64xf32>
    %c0_275 = arith.constant 0 : index
    %c0_276 = arith.constant 0 : index
    %308 = vector.load %arg12[%c0_275, %c0_276] : memref<56x64xf32, #tpu.memory_space<vmem>>, vector<9x64xf32>
    tpu.vector_store %arg12[%c0_275, %c0_276], %307 {strides = array<i32>} : memref<56x64xf32, #tpu.memory_space<vmem>>, vector<9x64xf32>,
    %cst_277 = arith.constant 0.000000e+00 : f32
    %309 = vector.broadcast %cst_277 : f32 to vector<4x64xf32>
    %310 = vector.extract_strided_slice %306 {offsets = [0, 0], sizes = [4, 64], strides = [1, 1]} : vector<32x64xf32> to vector<4x64xf32>
    %c9_278 = arith.constant 9 : index
    %c0_279 = arith.constant 0 : index
    %311 = vector.load %arg12[%c9_278, %c0_279] : memref<56x64xf32, #tpu.memory_space<vmem>>, vector<4x64xf32>
    tpu.vector_store %arg12[%c9_278, %c0_279], %310 {strides = array<i32>} : memref<56x64xf32, #tpu.memory_space<vmem>>, vector<4x64xf32>,
    %c13_280 = arith.constant 13 : index
    %c0_281 = arith.constant 0 : index
    %312 = vector.load %arg12[%c13_280, %c0_281] : memref<56x64xf32, #tpu.memory_space<vmem>>, vector<4x64xf32>
    tpu.vector_store %arg12[%c13_280, %c0_281], %309 {strides = array<i32>} : memref<56x64xf32, #tpu.memory_space<vmem>>, vector<4x64xf32>,
    %313 = vector.extract_strided_slice %306 {offsets = [8, 0], sizes = [4, 64], strides = [1, 1]} : vector<32x64xf32> to vector<4x64xf32>
    %c17_282 = arith.constant 17 : index
    %c0_283 = arith.constant 0 : index
    %314 = vector.load %arg12[%c17_282, %c0_283] : memref<56x64xf32, #tpu.memory_space<vmem>>, vector<4x64xf32>
    tpu.vector_store %arg12[%c17_282, %c0_283], %313 {strides = array<i32>} : memref<56x64xf32, #tpu.memory_space<vmem>>, vector<4x64xf32>,
    %c21_284 = arith.constant 21 : index
    %c0_285 = arith.constant 0 : index
    %315 = vector.load %arg12[%c21_284, %c0_285] : memref<56x64xf32, #tpu.memory_space<vmem>>, vector<4x64xf32>
    tpu.vector_store %arg12[%c21_284, %c0_285], %309 {strides = array<i32>} : memref<56x64xf32, #tpu.memory_space<vmem>>, vector<4x64xf32>,
    %316 = vector.extract_strided_slice %306 {offsets = [16, 0], sizes = [4, 64], strides = [1, 1]} : vector<32x64xf32> to vector<4x64xf32>
    %c25_286 = arith.constant 25 : index
    %c0_287 = arith.constant 0 : index
    %317 = vector.load %arg12[%c25_286, %c0_287] : memref<56x64xf32, #tpu.memory_space<vmem>>, vector<4x64xf32>
    tpu.vector_store %arg12[%c25_286, %c0_287], %316 {strides = array<i32>} : memref<56x64xf32, #tpu.memory_space<vmem>>, vector<4x64xf32>,
    %c29_288 = arith.constant 29 : index
    %c0_289 = arith.constant 0 : index
    %318 = vector.load %arg12[%c29_288, %c0_289] : memref<56x64xf32, #tpu.memory_space<vmem>>, vector<4x64xf32>
    tpu.vector_store %arg12[%c29_288, %c0_289], %309 {strides = array<i32>} : memref<56x64xf32, #tpu.memory_space<vmem>>, vector<4x64xf32>,
    %319 = vector.extract_strided_slice %306 {offsets = [24, 0], sizes = [4, 64], strides = [1, 1]} : vector<32x64xf32> to vector<4x64xf32>
    %c33_290 = arith.constant 33 : index
    %c0_291 = arith.constant 0 : index
    %320 = vector.load %arg12[%c33_290, %c0_291] : memref<56x64xf32, #tpu.memory_space<vmem>>, vector<4x64xf32>
    tpu.vector_store %arg12[%c33_290, %c0_291], %319 {strides = array<i32>} : memref<56x64xf32, #tpu.memory_space<vmem>>, vector<4x64xf32>,
    %cst_292 = arith.constant 0.000000e+00 : f32
    %321 = vector.broadcast %cst_292 : f32 to vector<19x64xf32>
    %c37_293 = arith.constant 37 : index
    %c0_294 = arith.constant 0 : index
    %322 = vector.load %arg12[%c37_293, %c0_294] : memref<56x64xf32, #tpu.memory_space<vmem>>, vector<19x64xf32>
    tpu.vector_store %arg12[%c37_293, %c0_294], %321 {strides = array<i32>} : memref<56x64xf32, #tpu.memory_space<vmem>>, vector<19x64xf32>,
    %c0_295 = arith.constant 0 : index
    %c0_296 = arith.constant 0 : index
    %323 = vector.load %arg12[%c0_295, %c0_296] : memref<56x64xf32, #tpu.memory_space<vmem>>, vector<32x64xf32>
    %324 = arith.truncf %323 : vector<32x64xf32> to vector<32x64xbf16>
    %c0_297 = arith.constant 0 : index
    %c0_298 = arith.constant 0 : index
    %c0_299 = arith.constant 0 : index
    %325 = vector.load %arg6[%c0_297, %c0_298, %c0_299] : memref<9x64x80xbf16, #tpu.memory_space<vmem>>, vector<1x64x80xbf16>
    %326 = vector.shape_cast %325 : vector<1x64x80xbf16> to vector<64x80xbf16>
    %cst_300 = arith.constant dense<0.000000e+00> : vector<32x80xf32>
    %327 = tpu.matmul %324, %326, %cst_300 {dimension_numbers = #tpu.dot_dimension_numbers<[1], [0], [0], [1], [0, 0, 1, 1], [], []>} : vector<32x64xbf16>, vector<64x80xbf16>, vector<32x80xf32> -> vector<32x80xf32>
    %c1_301 = arith.constant 1 : index
    %c0_302 = arith.constant 0 : index
    %328 = vector.load %arg12[%c1_301, %c0_302] : memref<56x64xf32, #tpu.memory_space<vmem>>, vector<32x64xf32>
    %329 = arith.truncf %328 : vector<32x64xf32> to vector<32x64xbf16>
    %c1_303 = arith.constant 1 : index
    %c0_304 = arith.constant 0 : index
    %c0_305 = arith.constant 0 : index
    %330 = vector.load %arg6[%c1_303, %c0_304, %c0_305] : memref<9x64x80xbf16, #tpu.memory_space<vmem>>, vector<1x64x80xbf16>
    %331 = vector.shape_cast %330 : vector<1x64x80xbf16> to vector<64x80xbf16>
    %cst_306 = arith.constant dense<0.000000e+00> : vector<32x80xf32>
    %332 = tpu.matmul %329, %331, %cst_306 {dimension_numbers = #tpu.dot_dimension_numbers<[1], [0], [0], [1], [0, 0, 1, 1], [], []>} : vector<32x64xbf16>, vector<64x80xbf16>, vector<32x80xf32> -> vector<32x80xf32>
    %333 = arith.addf %327, %332 : vector<32x80xf32>
    %c2_307 = arith.constant 2 : index
    %c0_308 = arith.constant 0 : index
    %334 = vector.load %arg12[%c2_307, %c0_308] : memref<56x64xf32, #tpu.memory_space<vmem>>, vector<32x64xf32>
    %335 = arith.truncf %334 : vector<32x64xf32> to vector<32x64xbf16>
    %c2_309 = arith.constant 2 : index
    %c0_310 = arith.constant 0 : index
    %c0_311 = arith.constant 0 : index
    %336 = vector.load %arg6[%c2_309, %c0_310, %c0_311] : memref<9x64x80xbf16, #tpu.memory_space<vmem>>, vector<1x64x80xbf16>
    %337 = vector.shape_cast %336 : vector<1x64x80xbf16> to vector<64x80xbf16>
    %cst_312 = arith.constant dense<0.000000e+00> : vector<32x80xf32>
    %338 = tpu.matmul %335, %337, %cst_312 {dimension_numbers = #tpu.dot_dimension_numbers<[1], [0], [0], [1], [0, 0, 1, 1], [], []>} : vector<32x64xbf16>, vector<64x80xbf16>, vector<32x80xf32> -> vector<32x80xf32>
    %339 = arith.addf %333, %338 : vector<32x80xf32>
    %c8_313 = arith.constant 8 : index
    %c0_314 = arith.constant 0 : index
    %340 = vector.load %arg12[%c8_313, %c0_314] : memref<56x64xf32, #tpu.memory_space<vmem>>, vector<32x64xf32>
    %341 = arith.truncf %340 : vector<32x64xf32> to vector<32x64xbf16>
    %c3_315 = arith.constant 3 : index
    %c0_316 = arith.constant 0 : index
    %c0_317 = arith.constant 0 : index
    %342 = vector.load %arg6[%c3_315, %c0_316, %c0_317] : memref<9x64x80xbf16, #tpu.memory_space<vmem>>, vector<1x64x80xbf16>
    %343 = vector.shape_cast %342 : vector<1x64x80xbf16> to vector<64x80xbf16>
    %cst_318 = arith.constant dense<0.000000e+00> : vector<32x80xf32>
    %344 = tpu.matmul %341, %343, %cst_318 {dimension_numbers = #tpu.dot_dimension_numbers<[1], [0], [0], [1], [0, 0, 1, 1], [], []>} : vector<32x64xbf16>, vector<64x80xbf16>, vector<32x80xf32> -> vector<32x80xf32>
    %345 = arith.addf %339, %344 : vector<32x80xf32>
    %c9_319 = arith.constant 9 : index
    %c0_320 = arith.constant 0 : index
    %346 = vector.load %arg12[%c9_319, %c0_320] : memref<56x64xf32, #tpu.memory_space<vmem>>, vector<32x64xf32>
    %347 = arith.truncf %346 : vector<32x64xf32> to vector<32x64xbf16>
    %c4_321 = arith.constant 4 : index
    %c0_322 = arith.constant 0 : index
    %c0_323 = arith.constant 0 : index
    %348 = vector.load %arg6[%c4_321, %c0_322, %c0_323] : memref<9x64x80xbf16, #tpu.memory_space<vmem>>, vector<1x64x80xbf16>
    %349 = vector.shape_cast %348 : vector<1x64x80xbf16> to vector<64x80xbf16>
    %cst_324 = arith.constant dense<0.000000e+00> : vector<32x80xf32>
    %350 = tpu.matmul %347, %349, %cst_324 {dimension_numbers = #tpu.dot_dimension_numbers<[1], [0], [0], [1], [0, 0, 1, 1], [], []>} : vector<32x64xbf16>, vector<64x80xbf16>, vector<32x80xf32> -> vector<32x80xf32>
    %351 = arith.addf %345, %350 : vector<32x80xf32>
    %c10_325 = arith.constant 10 : index
    %c0_326 = arith.constant 0 : index
    %352 = vector.load %arg12[%c10_325, %c0_326] : memref<56x64xf32, #tpu.memory_space<vmem>>, vector<32x64xf32>
    %353 = arith.truncf %352 : vector<32x64xf32> to vector<32x64xbf16>
    %c5_327 = arith.constant 5 : index
    %c0_328 = arith.constant 0 : index
    %c0_329 = arith.constant 0 : index
    %354 = vector.load %arg6[%c5_327, %c0_328, %c0_329] : memref<9x64x80xbf16, #tpu.memory_space<vmem>>, vector<1x64x80xbf16>
    %355 = vector.shape_cast %354 : vector<1x64x80xbf16> to vector<64x80xbf16>
    %cst_330 = arith.constant dense<0.000000e+00> : vector<32x80xf32>
    %356 = tpu.matmul %353, %355, %cst_330 {dimension_numbers = #tpu.dot_dimension_numbers<[1], [0], [0], [1], [0, 0, 1, 1], [], []>} : vector<32x64xbf16>, vector<64x80xbf16>, vector<32x80xf32> -> vector<32x80xf32>
    %357 = arith.addf %351, %356 : vector<32x80xf32>
    %c16_331 = arith.constant 16 : index
    %c0_332 = arith.constant 0 : index
    %358 = vector.load %arg12[%c16_331, %c0_332] : memref<56x64xf32, #tpu.memory_space<vmem>>, vector<32x64xf32>
    %359 = arith.truncf %358 : vector<32x64xf32> to vector<32x64xbf16>
    %c6_333 = arith.constant 6 : index
    %c0_334 = arith.constant 0 : index
    %c0_335 = arith.constant 0 : index
    %360 = vector.load %arg6[%c6_333, %c0_334, %c0_335] : memref<9x64x80xbf16, #tpu.memory_space<vmem>>, vector<1x64x80xbf16>
    %361 = vector.shape_cast %360 : vector<1x64x80xbf16> to vector<64x80xbf16>
    %cst_336 = arith.constant dense<0.000000e+00> : vector<32x80xf32>
    %362 = tpu.matmul %359, %361, %cst_336 {dimension_numbers = #tpu.dot_dimension_numbers<[1], [0], [0], [1], [0, 0, 1, 1], [], []>} : vector<32x64xbf16>, vector<64x80xbf16>, vector<32x80xf32> -> vector<32x80xf32>
    %363 = arith.addf %357, %362 : vector<32x80xf32>
    %c17_337 = arith.constant 17 : index
    %c0_338 = arith.constant 0 : index
    %364 = vector.load %arg12[%c17_337, %c0_338] : memref<56x64xf32, #tpu.memory_space<vmem>>, vector<32x64xf32>
    %365 = arith.truncf %364 : vector<32x64xf32> to vector<32x64xbf16>
    %c7_339 = arith.constant 7 : index
    %c0_340 = arith.constant 0 : index
    %c0_341 = arith.constant 0 : index
    %366 = vector.load %arg6[%c7_339, %c0_340, %c0_341] : memref<9x64x80xbf16, #tpu.memory_space<vmem>>, vector<1x64x80xbf16>
    %367 = vector.shape_cast %366 : vector<1x64x80xbf16> to vector<64x80xbf16>
    %cst_342 = arith.constant dense<0.000000e+00> : vector<32x80xf32>
    %368 = tpu.matmul %365, %367, %cst_342 {dimension_numbers = #tpu.dot_dimension_numbers<[1], [0], [0], [1], [0, 0, 1, 1], [], []>} : vector<32x64xbf16>, vector<64x80xbf16>, vector<32x80xf32> -> vector<32x80xf32>
    %369 = arith.addf %363, %368 : vector<32x80xf32>
    %c18_343 = arith.constant 18 : index
    %c0_344 = arith.constant 0 : index
    %370 = vector.load %arg12[%c18_343, %c0_344] : memref<56x64xf32, #tpu.memory_space<vmem>>, vector<32x64xf32>
    %371 = arith.truncf %370 : vector<32x64xf32> to vector<32x64xbf16>
    %c8_345 = arith.constant 8 : index
    %c0_346 = arith.constant 0 : index
    %c0_347 = arith.constant 0 : index
    %372 = vector.load %arg6[%c8_345, %c0_346, %c0_347] : memref<9x64x80xbf16, #tpu.memory_space<vmem>>, vector<1x64x80xbf16>
    %373 = vector.shape_cast %372 : vector<1x64x80xbf16> to vector<64x80xbf16>
    %cst_348 = arith.constant dense<0.000000e+00> : vector<32x80xf32>
    %374 = tpu.matmul %371, %373, %cst_348 {dimension_numbers = #tpu.dot_dimension_numbers<[1], [0], [0], [1], [0, 0, 1, 1], [], []>} : vector<32x64xbf16>, vector<64x80xbf16>, vector<32x80xf32> -> vector<32x80xf32>
    %375 = arith.addf %369, %374 : vector<32x80xf32>
    %c8_349 = arith.constant 8 : index
    %c0_350 = arith.constant 0 : index
    %376 = vector.load %arg7[%c8_349, %c0_350] : memref<10x80xf32, #tpu.memory_space<vmem>>, vector<1x80xf32>
    %c9_351 = arith.constant 9 : index
    %c0_352 = arith.constant 0 : index
    %377 = vector.load %arg7[%c9_351, %c0_352] : memref<10x80xf32, #tpu.memory_space<vmem>>, vector<1x80xf32>
    %378 = vector.broadcast %376 : vector<1x80xf32> to vector<32x80xf32>
    %379 = arith.mulf %375, %378 : vector<32x80xf32>
    %380 = vector.broadcast %377 : vector<1x80xf32> to vector<32x80xf32>
    %381 = arith.addf %379, %380 : vector<32x80xf32>
    %cst_353 = arith.constant 0.000000e+00 : f32
    %382 = vector.broadcast %cst_353 : f32 to vector<32x80xf32>
    %383 = arith.maximumf %381, %382 : vector<32x80xf32>
    %384 = vector.extract_strided_slice %383 {offsets = [0, 0], sizes = [4, 80], strides = [1, 1]} : vector<32x80xf32> to vector<4x80xf32>
    %c0_354 = arith.constant 0 : index
    %c0_355 = arith.constant 0 : index
    %385 = vector.load %arg15[%c0_354, %c0_355] : memref<16x80xf32, #tpu.memory_space<vmem>>, vector<4x80xf32>
    tpu.vector_store %arg15[%c0_354, %c0_355], %384 {strides = array<i32>} : memref<16x80xf32, #tpu.memory_space<vmem>>, vector<4x80xf32>,
    %386 = vector.extract_strided_slice %383 {offsets = [8, 0], sizes = [4, 80], strides = [1, 1]} : vector<32x80xf32> to vector<4x80xf32>
    %c4_356 = arith.constant 4 : index
    %c0_357 = arith.constant 0 : index
    %387 = vector.load %arg15[%c4_356, %c0_357] : memref<16x80xf32, #tpu.memory_space<vmem>>, vector<4x80xf32>
    tpu.vector_store %arg15[%c4_356, %c0_357], %386 {strides = array<i32>} : memref<16x80xf32, #tpu.memory_space<vmem>>, vector<4x80xf32>,
    %388 = vector.extract_strided_slice %383 {offsets = [16, 0], sizes = [4, 80], strides = [1, 1]} : vector<32x80xf32> to vector<4x80xf32>
    %c8_358 = arith.constant 8 : index
    %c0_359 = arith.constant 0 : index
    %389 = vector.load %arg15[%c8_358, %c0_359] : memref<16x80xf32, #tpu.memory_space<vmem>>, vector<4x80xf32>
    tpu.vector_store %arg15[%c8_358, %c0_359], %388 {strides = array<i32>} : memref<16x80xf32, #tpu.memory_space<vmem>>, vector<4x80xf32>,
    %390 = vector.extract_strided_slice %383 {offsets = [24, 0], sizes = [4, 80], strides = [1, 1]} : vector<32x80xf32> to vector<4x80xf32>
    %c12 = arith.constant 12 : index
    %c0_360 = arith.constant 0 : index
    %391 = vector.load %arg15[%c12, %c0_360] : memref<16x80xf32, #tpu.memory_space<vmem>>, vector<4x80xf32>
    tpu.vector_store %arg15[%c12, %c0_360], %390 {strides = array<i32>} : memref<16x80xf32, #tpu.memory_space<vmem>>, vector<4x80xf32>,
    %c0_361 = arith.constant 0 : index
    %c0_362 = arith.constant 0 : index
    %392 = vector.load %arg15[%c0_361, %c0_362] : memref<16x80xf32, #tpu.memory_space<vmem>>, vector<16x80xf32>
    %393 = vector.extract_strided_slice %392 {offsets = [0, 0], sizes = [15, 80], strides = [1, 1]} : vector<16x80xf32> to vector<15x80xf32>
    %394 = vector.extract_strided_slice %392 {offsets = [1, 0], sizes = [15, 80], strides = [1, 1]} : vector<16x80xf32> to vector<15x80xf32>
    %395 = arith.addf %393, %394 : vector<15x80xf32>
    %396 = vector.extract_strided_slice %395 {offsets = [0, 0], sizes = [14, 80], strides = [1, 1]} : vector<15x80xf32> to vector<14x80xf32>
    %397 = vector.extract_strided_slice %392 {offsets = [2, 0], sizes = [14, 80], strides = [1, 1]} : vector<16x80xf32> to vector<14x80xf32>
    %398 = arith.addf %396, %397 : vector<14x80xf32>
    %399 = arith.truncf %392 : vector<16x80xf32> to vector<16x80xbf16>
    %400 = arith.truncf %395 : vector<15x80xf32> to vector<15x80xbf16>
    %401 = arith.truncf %398 : vector<14x80xf32> to vector<14x80xbf16>
    %cst_363 = arith.constant dense<0.000000e+00> : vector<16x16xf32>
    %402 = tpu.matmul %399, %399, %cst_363 {dimension_numbers = #tpu.dot_dimension_numbers<[1], [1], [0], [0], [0, 0, 1, 0], [], []>} : vector<16x80xbf16>, vector<16x80xbf16>, vector<16x16xf32> -> vector<16x16xf32>
    %cst_364 = arith.constant dense<0.000000e+00> : vector<16x15xf32>
    %403 = tpu.matmul %399, %400, %cst_364 {dimension_numbers = #tpu.dot_dimension_numbers<[1], [1], [0], [0], [0, 0, 1, 0], [], []>} : vector<16x80xbf16>, vector<15x80xbf16>, vector<16x15xf32> -> vector<16x15xf32>
    %cst_365 = arith.constant 5.000000e-01 : f32
    %404 = vector.broadcast %cst_365 : f32 to vector<16x15xf32>
    %405 = arith.mulf %403, %404 : vector<16x15xf32>
    %cst_366 = arith.constant dense<0.000000e+00> : vector<16x14xf32>
    %406 = tpu.matmul %399, %401, %cst_366 {dimension_numbers = #tpu.dot_dimension_numbers<[1], [1], [0], [0], [0, 0, 1, 0], [], []>} : vector<16x80xbf16>, vector<14x80xbf16>, vector<16x14xf32> -> vector<16x14xf32>
    %cst_367 = arith.constant 0.333333343 : f32
    %407 = vector.broadcast %cst_367 : f32 to vector<16x14xf32>
    %408 = arith.mulf %406, %407 : vector<16x14xf32>
    %cst_368 = arith.constant dense<0xFF800000> : vector<16xf32>
    %409 = vector.multi_reduction <maximumf>, %402, %cst_368 [1] : vector<16x16xf32> to vector<16xf32>
    %410 = vector.shape_cast %409 : vector<16xf32> to vector<16x1xf32>
    %cst_369 = arith.constant dense<0xFF800000> : vector<16xf32>
    %411 = vector.multi_reduction <maximumf>, %405, %cst_369 [1] : vector<16x15xf32> to vector<16xf32>
    %412 = vector.shape_cast %411 : vector<16xf32> to vector<16x1xf32>
    %413 = arith.maximumf %410, %412 : vector<16x1xf32>
    %cst_370 = arith.constant dense<0xFF800000> : vector<16xf32>
    %414 = vector.multi_reduction <maximumf>, %408, %cst_370 [1] : vector<16x14xf32> to vector<16xf32>
    %415 = vector.shape_cast %414 : vector<16xf32> to vector<16x1xf32>
    %416 = arith.maximumf %413, %415 : vector<16x1xf32>
    %417 = vector.broadcast %416 : vector<16x1xf32> to vector<16x16xf32>
    %418 = arith.subf %402, %417 : vector<16x16xf32>
    %419 = math.exp %418 : vector<16x16xf32>
    %420 = vector.broadcast %416 : vector<16x1xf32> to vector<16x15xf32>
    %421 = arith.subf %405, %420 : vector<16x15xf32>
    %422 = math.exp %421 : vector<16x15xf32>
    %423 = vector.broadcast %416 : vector<16x1xf32> to vector<16x14xf32>
    %424 = arith.subf %408, %423 : vector<16x14xf32>
    %425 = math.exp %424 : vector<16x14xf32>
    %cst_371 = arith.constant dense<0.000000e+00> : vector<16xf32>
    %426 = vector.multi_reduction <add>, %419, %cst_371 [1] : vector<16x16xf32> to vector<16xf32>
    %427 = vector.shape_cast %426 : vector<16xf32> to vector<16x1xf32>
    %cst_372 = arith.constant dense<0.000000e+00> : vector<16xf32>
    %428 = vector.multi_reduction <add>, %422, %cst_372 [1] : vector<16x15xf32> to vector<16xf32>
    %429 = vector.shape_cast %428 : vector<16xf32> to vector<16x1xf32>
    %430 = arith.addf %427, %429 : vector<16x1xf32>
    %cst_373 = arith.constant dense<0.000000e+00> : vector<16xf32>
    %431 = vector.multi_reduction <add>, %425, %cst_373 [1] : vector<16x14xf32> to vector<16xf32>
    %432 = vector.shape_cast %431 : vector<16xf32> to vector<16x1xf32>
    %433 = arith.addf %430, %432 : vector<16x1xf32>
    %434 = arith.truncf %419 : vector<16x16xf32> to vector<16x16xbf16>
    %cst_374 = arith.constant dense<0.000000e+00> : vector<16x80xf32>
    %435 = tpu.matmul %434, %399, %cst_374 {dimension_numbers = #tpu.dot_dimension_numbers<[1], [0], [0], [1], [0, 0, 1, 1], [], []>} : vector<16x16xbf16>, vector<16x80xbf16>, vector<16x80xf32> -> vector<16x80xf32>
    %436 = arith.truncf %422 : vector<16x15xf32> to vector<16x15xbf16>
    %cst_375 = arith.constant dense<0.000000e+00> : vector<16x80xf32>
    %437 = tpu.matmul %436, %400, %cst_375 {dimension_numbers = #tpu.dot_dimension_numbers<[1], [0], [0], [1], [0, 0, 1, 1], [], []>} : vector<16x15xbf16>, vector<15x80xbf16>, vector<16x80xf32> -> vector<16x80xf32>
    %438 = arith.addf %435, %437 : vector<16x80xf32>
    %439 = arith.truncf %425 : vector<16x14xf32> to vector<16x14xbf16>
    %cst_376 = arith.constant dense<0.000000e+00> : vector<16x80xf32>
    %440 = tpu.matmul %439, %401, %cst_376 {dimension_numbers = #tpu.dot_dimension_numbers<[1], [0], [0], [1], [0, 0, 1, 1], [], []>} : vector<16x14xbf16>, vector<14x80xbf16>, vector<16x80xf32> -> vector<16x80xf32>
    %441 = arith.addf %438, %440 : vector<16x80xf32>
    %442 = tpu.reciprocal %433 {approx = true} : vector<16x1xf32> -> vector<16x1xf32>
    %443 = vector.broadcast %442 : vector<16x1xf32> to vector<16x80xf32>
    %444 = arith.mulf %441, %443 : vector<16x80xf32>
    %cst_377 = arith.constant 0.000000e+00 : f32
    %445 = vector.broadcast %cst_377 : f32 to vector<16x80xf32>
    %446 = arith.maximumf %444, %445 : vector<16x80xf32>
    %c0_378 = arith.constant 0 : index
    %c0_379 = arith.constant 0 : index
    %c0_380 = arith.constant 0 : index
    %447 = vector.load %arg8[%c0_378, %c0_379, %c0_380] : memref<1x16x80xf32, #tpu.memory_space<vmem>>, vector<1x16x80xf32>
    %448 = vector.shape_cast %447 : vector<1x16x80xf32> to vector<16x80xf32>
    %449 = vector.shape_cast %446 : vector<16x80xf32> to vector<1x16x80xf32>
    tpu.vector_store %arg8[%c0_378, %c0_379, %c0_380], %449 {strides = array<i32>} : memref<1x16x80xf32, #tpu.memory_space<vmem>>, vector<1x16x80xf32>,
    return
  }
  func.func @transform_0(%arg0: i32) -> (i32, i32, i32) {
    %c0_i32 = arith.constant 0 : i32
    %c0_i32_0 = arith.constant 0 : i32
    %c0_i32_1 = arith.constant 0 : i32
    return %arg0, %c0_i32, %c0_i32_0 : i32, i32, i32
  }
  func.func @transform_1(%arg0: i32) -> (i32, i32) {
    %c0_i32 = arith.constant 0 : i32
    %c0_i32_0 = arith.constant 0 : i32
    %c0_i32_1 = arith.constant 0 : i32
    return %c0_i32, %c0_i32_0 : i32, i32
  }
  func.func @transform_2(%arg0: i32) -> (i32, i32, i32) {
    %c0_i32 = arith.constant 0 : i32
    %c0_i32_0 = arith.constant 0 : i32
    %c0_i32_1 = arith.constant 0 : i32
    %c0_i32_2 = arith.constant 0 : i32
    return %c0_i32, %c0_i32_0, %c0_i32_1 : i32, i32, i32
  }
  func.func @transform_3(%arg0: i32) -> (i32, i32, i32) {
    %c0_i32 = arith.constant 0 : i32
    %c0_i32_0 = arith.constant 0 : i32
    %c0_i32_1 = arith.constant 0 : i32
    %c0_i32_2 = arith.constant 0 : i32
    return %c0_i32, %c0_i32_0, %c0_i32_1 : i32, i32, i32
  }
  func.func @transform_4(%arg0: i32) -> (i32, i32, i32) {
    %c0_i32 = arith.constant 0 : i32
    %c0_i32_0 = arith.constant 0 : i32
    %c0_i32_1 = arith.constant 0 : i32
    %c0_i32_2 = arith.constant 0 : i32
    return %c0_i32, %c0_i32_0, %c0_i32_1 : i32, i32, i32
  }
  func.func @transform_5(%arg0: i32) -> (i32, i32, i32) {
    %c0_i32 = arith.constant 0 : i32
    %c0_i32_0 = arith.constant 0 : i32
    %c0_i32_1 = arith.constant 0 : i32
    %c0_i32_2 = arith.constant 0 : i32
    return %c0_i32, %c0_i32_0, %c0_i32_1 : i32, i32, i32
  }
  func.func @transform_6(%arg0: i32) -> (i32, i32) {
    %c0_i32 = arith.constant 0 : i32
    %c0_i32_0 = arith.constant 0 : i32
    %c0_i32_1 = arith.constant 0 : i32
    return %c0_i32, %c0_i32_0 : i32, i32
  }
  func.func @transform_7(%arg0: i32) -> (i32, i32, i32) {
    %c0_i32 = arith.constant 0 : i32
    %c0_i32_0 = arith.constant 0 : i32
    %c0_i32_1 = arith.constant 0 : i32
    return %arg0, %c0_i32, %c0_i32_0 : i32, i32, i32
  }
}

</mosaic_0001>

<llo_original>
// kernel: aacnn_headconcat_forward.1
$region0: #{aacnn_headconcat_forward.1}
  #allocation0 [shape = 'u32[]', space=smem, size = 0x4, offset = 0x4, fixed_abs, tag = 'smem constant byte address 0x4 - core index']
  #allocation1 [shape = 'u32[72,128]{1,0:T(1,128)}', space=vmem, size = 0x9000, scoped, tag = 'internal scratch']
  #allocation2 [shape = 'f32[440,16]{1,0:T(8,128)}', space=vmem, size = 0x37000, scoped, tag = 'scratch operand']
  #allocation3 [shape = 'f32[168,32]{1,0:T(8,128)}', space=vmem, size = 0x15000, scoped, tag = 'scratch operand']
  #allocation4 [shape = 'f32[56,48]{1,0:T(8,128)}', space=vmem, size = 0x7000, scoped, tag = 'scratch operand']
  #allocation5 [shape = 'f32[56,64]{1,0:T(8,128)}', space=vmem, size = 0x7000, scoped, tag = 'scratch operand']
  #allocation6 [shape = 'f32[359,32]{1,0:T(8,128)}', space=vmem, size = 0x2d000, scoped, tag = 'scratch operand']
  #allocation7 [shape = 'f32[111,48]{1,0:T(8,128)}', space=vmem, size = 0xe000, scoped, tag = 'scratch operand']
  #allocation8 [shape = 'f32[16,80]{1,0:T(8,128)}', space=vmem, size = 0x2000, scoped, tag = 'scratch operand']
  %s0 = inlined_call_operand.vmem [shape: bf16[2,256,36], index: 0, kind: input, shape index: {}]
  %s1 = inlined_call_operand.vmem [shape: bf16[36,16], index: 1, kind: input, shape index: {}]
  %s2 = inlined_call_operand.vmem [shape: bf16[9,16,32], index: 2, kind: input, shape index: {}]
  %s3 = inlined_call_operand.vmem [shape: bf16[9,32,48], index: 3, kind: input, shape index: {}]
  %s4 = inlined_call_operand.vmem [shape: bf16[9,48,64], index: 4, kind: input, shape index: {}]
  %s5 = inlined_call_operand.vmem [shape: bf16[9,64,80], index: 5, kind: input, shape index: {}]
  %s6 = inlined_call_operand.vmem [shape: f32[10,80], index: 6, kind: input, shape index: {}]
  %s7 = inlined_call_operand.vmem [shape: f32[2,16,80], index: 7, kind: output, shape index: {}]
  %s8 = sld [smem:[#allocation0]]
  $region61: #{aacnn_headconcat_forward.1} parent=0
    _
  %s10 = ssub.s32 1, %s8
  %s11 = scalar_select 0, %s10, %s8
  loop: start=0, step=1, limit=4
  $region2: #{aacnn_headconcat_forward.1} parent=0 // loop_pre_header
    _
  $region3: #{aacnn_headconcat_forward.1} parent=0 // loop_header
    %s13 = sphi 0, %s17
    %p14 = scmp.ge.s32.totalorder %s13, 4
    %s23 = sphi 0, %s25
    %s26 = sphi 0, %s23
    %s27 = sphi 0, %s26
    %s43 = sphi 0, %s27
    %s47 = sphi 0, %s47
    %s49 = sphi 0, %s47
    %s50 = sphi 0, %s49
    %s64 = sphi 0, %s50
    %s68 = sphi 0, %s68
    %s70 = sphi 0, %s68
    %s71 = sphi 0, %s70
    %s85 = sphi 0, %s71
    %s89 = sphi 0, %s89
    %s91 = sphi 0, %s89
    %s92 = sphi 0, %s91
    %s106 = sphi 0, %s92
    %s110 = sphi 0, %s110
    %s112 = sphi 0, %s110
    %s113 = sphi 0, %s112
    %s127 = sphi 0, %s113
    %s131 = sphi 0, %s131
    %s133 = sphi 0, %s131
    %s134 = sphi 0, %s133
    %s148 = sphi 0, %s134
    %s152 = sphi 0, %s152
    %s154 = sphi 0, %s152
    %s155 = sphi 0, %s154
    %s169 = sphi 0, %s155
    %s175 = sphi 0, %s177
    %s178 = sphi 0, %s175
    %s179 = sphi 0, %s178
    %s195 = sphi 0, %s179
  $region4: #{aacnn_headconcat_forward.1} parent=0 // loop_header_branch
    %16 = sbr.rel (%p14) target = $region8
  $region5: #{aacnn_headconcat_forward.1} parent=0 // loop_body
    %s18 = ssub.s32 %s13, 1
    %s19 = ssub.s32 %s13, 2
    %s20 = sadd.s32 %s13, 1
    %s21 = ssub.s32 %s13, %s20
    %p22 = scmp.eq.s32.totalorder %s21, 0
    %s24 = sadd.s32 %s23, 1
    %s25 = scalar_select %p22, %s23, %s24
    %p28 = pneg %p22
    %p29 = scmp.eq.s32.totalorder %s13, 1
    %p30 = por %p28, %p29
    %p31 = scmp.ne.s32.totalorder %s23, %s26
    %p32 = scmp.eq.s32.totalorder %s13, 0
    %p33 = por %p31, %p32
    %p34 = scmp.ne.s32.totalorder %s23, %s26
    %p35 = scmp.eq.s32.totalorder %s18, 1
    %p36 = por %p34, %p35
    %p37 = scmp.ne.s32.totalorder %s26, %s27
    %p38 = scmp.eq.s32.totalorder %s18, 0
    %p39 = por %p37, %p38
    %p40 = scmp.ne.s32.totalorder %s26, %s27
    %p41 = scmp.eq.s32.totalorder %s19, 1
    %p42 = por %p40, %p41
    %p44 = scmp.ne.s32.totalorder %s27, %s43
    %p45 = scmp.eq.s32.totalorder %s19, 0
    %p46 = por %p44, %p45
    %s48 = sadd.s32 %s47, 1
    %p51 = scmp.eq.s32.totalorder %s13, 1
    %p52 = scmp.ne.s32.totalorder %s47, %s49
    %p53 = scmp.eq.s32.totalorder %s13, 0
    %p54 = por %p52, %p53
    %p55 = scmp.ne.s32.totalorder %s47, %s49
    %p56 = scmp.eq.s32.totalorder %s18, 1
    %p57 = por %p55, %p56
    %p58 = scmp.ne.s32.totalorder %s49, %s50
    %p59 = scmp.eq.s32.totalorder %s18, 0
    %p60 = por %p58, %p59
    %p61 = scmp.ne.s32.totalorder %s49, %s50
    %p62 = scmp.eq.s32.totalorder %s19, 1
    %p63 = por %p61, %p62
    %p65 = scmp.ne.s32.totalorder %s50, %s64
    %p66 = scmp.eq.s32.totalorder %s19, 0
    %p67 = por %p65, %p66
    %s69 = sadd.s32 %s68, 1
    %p72 = scmp.eq.s32.totalorder %s13, 1
    %p73 = scmp.ne.s32.totalorder %s68, %s70
    %p74 = scmp.eq.s32.totalorder %s13, 0
    %p75 = por %p73, %p74
    %p76 = scmp.ne.s32.totalorder %s68, %s70
    %p77 = scmp.eq.s32.totalorder %s18, 1
    %p78 = por %p76, %p77
    %p79 = scmp.ne.s32.totalorder %s70, %s71
    %p80 = scmp.eq.s32.totalorder %s18, 0
    %p81 = por %p79, %p80
    %p82 = scmp.ne.s32.totalorder %s70, %s71
    %p83 = scmp.eq.s32.totalorder %s19, 1
    %p84 = por %p82, %p83
    %p86 = scmp.ne.s32.totalorder %s71, %s85
    %p87 = scmp.eq.s32.totalorder %s19, 0
    %p88 = por %p86, %p87
    %s90 = sadd.s32 %s89, 1
    %p93 = scmp.eq.s32.totalorder %s13, 1
    %p94 = scmp.ne.s32.totalorder %s89, %s91
    %p95 = scmp.eq.s32.totalorder %s13, 0
    %p96 = por %p94, %p95
    %p97 = scmp.ne.s32.totalorder %s89, %s91
    %p98 = scmp.eq.s32.totalorder %s18, 1
    %p99 = por %p97, %p98
    %p100 = scmp.ne.s32.totalorder %s91, %s92
    %p101 = scmp.eq.s32.totalorder %s18, 0
    %p102 = por %p100, %p101
    %p103 = scmp.ne.s32.totalorder %s91, %s92
    %p104 = scmp.eq.s32.totalorder %s19, 1
    %p105 = por %p103, %p104
    %p107 = scmp.ne.s32.totalorder %s92, %s106
    %p108 = scmp.eq.s32.totalorder %s19, 0
    %p109 = por %p107, %p108
    %s111 = sadd.s32 %s110, 1
    %p114 = scmp.eq.s32.totalorder %s13, 1
    %p115 = scmp.ne.s32.totalorder %s110, %s112
    %p116 = scmp.eq.s32.totalorder %s13, 0
    %p117 = por %p115, %p116
    %p118 = scmp.ne.s32.totalorder %s110, %s112
    %p119 = scmp.eq.s32.totalorder %s18, 1
    %p120 = por %p118, %p119
    %p121 = scmp.ne.s32.totalorder %s112, %s113
    %p122 = scmp.eq.s32.totalorder %s18, 0
    %p123 = por %p121, %p122
    %p124 = scmp.ne.s32.totalorder %s112, %s113
    %p125 = scmp.eq.s32.totalorder %s19, 1
    %p126 = por %p124, %p125
    %p128 = scmp.ne.s32.totalorder %s113, %s127
    %p129 = scmp.eq.s32.totalorder %s19, 0
    %p130 = por %p128, %p129
    %s132 = sadd.s32 %s131, 1
    %p135 = scmp.eq.s32.totalorder %s13, 1
    %p136 = scmp.ne.s32.totalorder %s131, %s133
    %p137 = scmp.eq.s32.totalorder %s13, 0
    %p138 = por %p136, %p137
    %p139 = scmp.ne.s32.totalorder %s131, %s133
    %p140 = scmp.eq.s32.totalorder %s18, 1
    %p141 = por %p139, %p140
    %p142 = scmp.ne.s32.totalorder %s133, %s134
    %p143 = scmp.eq.s32.totalorder %s18, 0
    %p144 = por %p142, %p143
    %p145 = scmp.ne.s32.totalorder %s133, %s134
    %p146 = scmp.eq.s32.totalorder %s19, 1
    %p147 = por %p145, %p146
    %p149 = scmp.ne.s32.totalorder %s134, %s148
    %p150 = scmp.eq.s32.totalorder %s19, 0
    %p151 = por %p149, %p150
    %s153 = sadd.s32 %s152, 1
    %p156 = scmp.eq.s32.totalorder %s13, 1
    %p157 = scmp.ne.s32.totalorder %s152, %s154
    %p158 = scmp.eq.s32.totalorder %s13, 0
    %p159 = por %p157, %p158
    %p160 = scmp.ne.s32.totalorder %s152, %s154
    %p161 = scmp.eq.s32.totalorder %s18, 1
    %p162 = por %p160, %p161
    %p163 = scmp.ne.s32.totalorder %s154, %s155
    %p164 = scmp.eq.s32.totalorder %s18, 0
    %p165 = por %p163, %p164
    %p166 = scmp.ne.s32.totalorder %s154, %s155
    %p167 = scmp.eq.s32.totalorder %s19, 1
    %p168 = por %p166, %p167
    %p170 = scmp.ne.s32.totalorder %s155, %s169
    %p171 = scmp.eq.s32.totalorder %s19, 0
    %p172 = por %p170, %p171
    %s173 = ssub.s32 %s13, %s20
    %p174 = scmp.eq.s32.totalorder %s173, 0
    %s176 = sadd.s32 %s175, 1
    %s177 = scalar_select %p174, %s175, %s176
    %p180 = pneg %p174
    %p181 = scmp.eq.s32.totalorder %s13, 1
    %p182 = por %p180, %p181
    %p183 = scmp.ne.s32.totalorder %s175, %s178
    %p184 = scmp.eq.s32.totalorder %s13, 0
    %p185 = por %p183, %p184
    %p186 = scmp.ne.s32.totalorder %s175, %s178
    %p187 = scmp.eq.s32.totalorder %s18, 1
    %p188 = por %p186, %p187
    %p189 = scmp.ne.s32.totalorder %s178, %s179
    %p190 = scmp.eq.s32.totalorder %s18, 0
    %p191 = por %p189, %p190
    %p192 = scmp.ne.s32.totalorder %s178, %s179
    %p193 = scmp.eq.s32.totalorder %s19, 1
    %p194 = por %p192, %p193
    %p196 = scmp.ne.s32.totalorder %s179, %s195
    %p197 = scmp.eq.s32.totalorder %s19, 0
    %p198 = por %p196, %p197
    %p199 = scmp.le.s32.totalorder 1, %s13
    %p200 = scmp.lt.s32.totalorder %s13, 3
    %p201 = pnand %p199, %p200
    %p202 = pneg %p201
    // Predicated region
    $region9: #{aacnn_headconcat_forward.1} parent=5 // pred_check
      _
    $region10: #{aacnn_headconcat_forward.1} parent=5 // pred_check_branch
      %204 = sbr.rel (%p201) target = $region12
    $region11: #{aacnn_headconcat_forward.1} parent=5 // pred_region
      %s205 = ssub.s32 %s13, 1
      // Predicated region
      $region13: #{aacnn_headconcat_forward.1} parent=11 // pred_check
        %p206 = pneg %p60
      $region14: #{aacnn_headconcat_forward.1} parent=11 // pred_check_branch
        %208 = sbr.rel (%p206) target = $region16
      $region15: #{aacnn_headconcat_forward.1} parent=11 // pred_region
        _
      $region16: #{aacnn_headconcat_forward.1} parent=11 // pred_fallthru
        _
      // Predicated region
      $region17: #{aacnn_headconcat_forward.1} parent=11 // pred_check
        %p209 = pneg %p81
      $region18: #{aacnn_headconcat_forward.1} parent=11 // pred_check_branch
        %211 = sbr.rel (%p209) target = $region20
      $region19: #{aacnn_headconcat_forward.1} parent=11 // pred_region
        _
      $region20: #{aacnn_headconcat_forward.1} parent=11 // pred_fallthru
        _
      // Predicated region
      $region21: #{aacnn_headconcat_forward.1} parent=11 // pred_check
        %p212 = pneg %p102
      $region22: #{aacnn_headconcat_forward.1} parent=11 // pred_check_branch
        %214 = sbr.rel (%p212) target = $region24
      $region23: #{aacnn_headconcat_forward.1} parent=11 // pred_region
        _
      $region24: #{aacnn_headconcat_forward.1} parent=11 // pred_fallthru
        _
      // Predicated region
      $region25: #{aacnn_headconcat_forward.1} parent=11 // pred_check
        %p215 = pneg %p123
      $region26: #{aacnn_headconcat_forward.1} parent=11 // pred_check_branch
        %217 = sbr.rel (%p215) target = $region28
      $region27: #{aacnn_headconcat_forward.1} parent=11 // pred_region
        _
      $region28: #{aacnn_headconcat_forward.1} parent=11 // pred_fallthru
        _
      // Predicated region
      $region29: #{aacnn_headconcat_forward.1} parent=11 // pred_check
        %p218 = pneg %p144
      $region30: #{aacnn_headconcat_forward.1} parent=11 // pred_check_branch
        %220 = sbr.rel (%p218) target = $region32
      $region31: #{aacnn_headconcat_forward.1} parent=11 // pred_region
        _
      $region32: #{aacnn_headconcat_forward.1} parent=11 // pred_fallthru
        _
      // Predicated region
      $region33: #{aacnn_headconcat_forward.1} parent=11 // pred_check
        %p221 = pneg %p165
      $region34: #{aacnn_headconcat_forward.1} parent=11 // pred_check_branch
        %223 = sbr.rel (%p221) target = $region36
      $region35: #{aacnn_headconcat_forward.1} parent=11 // pred_region
        _
      $region36: #{aacnn_headconcat_forward.1} parent=11 // pred_fallthru
        _
    $region12: #{aacnn_headconcat_forward.1} parent=5 // pred_fallthru
      _
    %p224 = scmp.lt.s32.totalorder %s13, 2
    // Predicated region
    $region37: #{aacnn_headconcat_forward.1} parent=5 // pred_check
      %p225 = pneg %p224
    $region38: #{aacnn_headconcat_forward.1} parent=5 // pred_check_branch
      %227 = sbr.rel (%p225) target = $region40
    $region39: #{aacnn_headconcat_forward.1} parent=5 // pred_region
      // Predicated region
      $region41: #{aacnn_headconcat_forward.1} parent=39 // pred_check
        %p228 = pneg %p33
      $region42: #{aacnn_headconcat_forward.1} parent=39 // pred_check_branch
        %230 = sbr.rel (%p228) target = $region44
      $region43: #{aacnn_headconcat_forward.1} parent=39 // pred_region
        %p231 = scmp.lt.s32.totalorder %s13, 1
        %s232 = scalar_select %p231, %s13, 1
        %s233 = smul.addr %s232, 32
        %s234 = smul.addr %s233, 4
        %s235 = scalar_lea.vmem %s0, %s234
      $region44: #{aacnn_headconcat_forward.1} parent=39 // pred_fallthru
        _
    $region40: #{aacnn_headconcat_forward.1} parent=5 // pred_fallthru
      _
    %p236 = scmp.le.s32.totalorder 1, %s13
    %p237 = scmp.lt.s32.totalorder %s13, 3
    %p238 = pnand %p236, %p237
    %p239 = pneg %p238
    // Predicated region
    $region45: #{aacnn_headconcat_forward.1} parent=5 // pred_check
      _
    $region46: #{aacnn_headconcat_forward.1} parent=5 // pred_check_branch
      %241 = sbr.rel (%p238) target = $region48
    $region47: #{aacnn_headconcat_forward.1} parent=5 // pred_region
      %s242 = ssub.s32 %s13, 1
      %p243 = scmp.lt.s32.totalorder %s18, 1
      %s244 = scalar_select %p243, %s18, 1
      %s245 = smul.addr %s244, 32
      %s246 = smul.addr %s245, 4
      %s247 = scalar_lea.vmem %s0, %s246
      %p248 = pneg %p39
      %p249 = pneg %p36
      %p250 = pneg %p60
      %p251 = pneg %p57
      %p252 = pneg %p81
      %p253 = pneg %p78
      %p254 = pneg %p102
      %p255 = pneg %p99
      %p256 = pneg %p123
      %p257 = pneg %p120
      %p258 = pneg %p144
      %p259 = pneg %p141
      %p260 = pneg %p165
      %p261 = pneg %p162
      %p262 = pneg %p191
      %p263 = pneg %p188
      %p264 = scmp.lt.s32.totalorder %s18, 1
      %s265 = scalar_select %p264, %s18, 1
      %s266 = smul.addr %s265, 2
      %s267 = smul.addr %s266, 8
      %s268 = scalar_lea.vmem %s7, %s267
      %p269 = scmp.lt.s32.totalorder %s18, 1
      %s270 = scalar_select %p269, %s18, 1
      %s271 = smul.addr %s270, 32
      %s272 = smul.addr %s271, 4
      %s273 = scalar_lea.vmem %s0, %s272
      %p274 = scmp.lt.s32.totalorder %s18, 1
      %s275 = scalar_select %p274, %s18, 1
      %s276 = smul.addr %s275, 2
      %s277 = smul.addr %s276, 8
      %s278 = scalar_lea.vmem %s7, %s277
      %v280 = vld [vmem:[%s273] sm:$0xf]
      %v281 = vld [vmem:[%s273 + $0x4] sm:$0xf]
      %v282 = vld [vmem:[%s273 + $0x8] sm:$0xf]
      %v283 = vld [vmem:[%s273 + $0xc] sm:$0xf]
      %v284 = vld [vmem:[%s273 + $0x10] sm:$0xf]
      %v285 = vld [vmem:[%s273 + $0x14] sm:$0xf]
      %v286 = vld [vmem:[%s273 + $0x18] sm:$0xf]
      %v287 = vld [vmem:[%s273 + $0x1c] sm:$0xf]
      %v288 = vld [vmem:[%s273 + $0x20] sm:$0xf]
      %v289 = vld [vmem:[%s273 + $0x24] sm:$0xf]
      %v290 = vld [vmem:[%s273 + $0x28] sm:$0xf]
      %v291 = vld [vmem:[%s273 + $0x2c] sm:$0xf]
      %v292 = vld [vmem:[%s273 + $0x30] sm:$0xf]
      %v293 = vld [vmem:[%s273 + $0x34] sm:$0xf]
      %v294 = vld [vmem:[%s273 + $0x38] sm:$0xf]
      %v295 = vld [vmem:[%s273 + $0x3c] sm:$0xf]
      %v296 = vld [vmem:[%s273 + $0x40] sm:$0xf]
      %v297 = vld [vmem:[%s273 + $0x44] sm:$0xf]
      %v298 = vld [vmem:[%s273 + $0x48] sm:$0xf]
      %v299 = vld [vmem:[%s273 + $0x4c] sm:$0xf]
      %v300 = vld [vmem:[%s273 + $0x50] sm:$0xf]
      %v301 = vld [vmem:[%s273 + $0x54] sm:$0xf]
      %v302 = vld [vmem:[%s273 + $0x58] sm:$0xf]
      %v303 = vld [vmem:[%s273 + $0x5c] sm:$0xf]
      %v304 = vld [vmem:[%s273 + $0x60] sm:$0xf]
      %v305 = vld [vmem:[%s273 + $0x64] sm:$0xf]
      %v306 = vld [vmem:[%s273 + $0x68] sm:$0xf]
      %v307 = vld [vmem:[%s273 + $0x6c] sm:$0xf]
      %v308 = vld [vmem:[%s273 + $0x70] sm:$0xf]
      %v309 = vld [vmem:[%s273 + $0x74] sm:$0xf]
      %v310 = vld [vmem:[%s273 + $0x78] sm:$0xf]
      %v311 = vld [vmem:[%s273 + $0x7c] sm:$0xf]
      %v312 = vld [vmem:[%s1] sm:$0xf]
      %v313 = vld [vmem:[%s1 + $0x4] sm:$0xf]
      %v314 = vld [vmem:[%s1 + $0x8] sm:$0xf]
      %v315 = vld [vmem:[%s1 + $0xc] sm:$0xf]
      %v316 = vld [vmem:[%s1 + $0x10] sm:$0x3]
      %v349 = vunpack.c.l.b16 %v280
      %v350 = vunpack.c.l.b16 %v281
      %v351 = vunpack.c.l.b16 %v282
      %v352 = vunpack.c.l.b16 %v283
      %v353 = vunpack.c.l.b16 %v284
      %v354 = vunpack.c.l.b16 %v285
      %v355 = vunpack.c.l.b16 %v286
      %v356 = vunpack.c.l.b16 %v287
      %v357 = vunpack.c.l.b16 %v288
      %v358 = vunpack.c.l.b16 %v289
      %v359 = vunpack.c.l.b16 %v290
      %v360 = vunpack.c.l.b16 %v291
      %v361 = vunpack.c.l.b16 %v292
      %v362 = vunpack.c.l.b16 %v293
      %v363 = vunpack.c.l.b16 %v294
      %v364 = vunpack.c.l.b16 %v295
      %v365 = vunpack.c.l.b16 %v296
      %v366 = vunpack.c.l.b16 %v297
      %v367 = vunpack.c.l.b16 %v298
      %v368 = vunpack.c.l.b16 %v299
      %v369 = vunpack.c.l.b16 %v300
      %v370 = vunpack.c.l.b16 %v301
      %v371 = vunpack.c.l.b16 %v302
      %v372 = vunpack.c.l.b16 %v303
      %v373 = vunpack.c.l.b16 %v304
      %v374 = vunpack.c.l.b16 %v305
      %v375 = vunpack.c.l.b16 %v306
      %v376 = vunpack.c.l.b16 %v307
      %v377 = vunpack.c.l.b16 %v308
      %v378 = vunpack.c.l.b16 %v309
      %v379 = vunpack.c.l.b16 %v310
      %v380 = vunpack.c.l.b16 %v311
      %v381 = vpack.c.b16 %v350, %v349
      %v382 = vpack.c.b16 %v352, %v351
      %v383 = vpack.c.b16 %v354, %v353
      %v384 = vpack.c.b16 %v356, %v355
      %v385 = vpack.c.b16 %v358, %v357
      %v386 = vpack.c.b16 %v360, %v359
      %v387 = vpack.c.b16 %v362, %v361
      %v388 = vpack.c.b16 %v364, %v363
      %v389 = vpack.c.b16 %v366, %v365
      %v390 = vpack.c.b16 %v368, %v367
      %v391 = vpack.c.b16 %v370, %v369
      %v392 = vpack.c.b16 %v372, %v371
      %v393 = vpack.c.b16 %v374, %v373
      %v394 = vpack.c.b16 %v376, %v375
      %v395 = vpack.c.b16 %v378, %v377
      %v396 = vpack.c.b16 %v380, %v379
      %v402 = vunpack.c.l.b16 %v312
      %v403 = vunpack.c.l.b16 %v313
      %v404 = vunpack.c.l.b16 %v314
      %v405 = vunpack.c.l.b16 %v315
      %v406 = vunpack.c.l.b16 %v316
      %v407 = vpack.c.b16 %v403, %v402
      %v408 = vpack.c.b16 %v405, %v404
      %v409 = vpack.c.b16 %v406, %v406
      %vm412 = vcmask 293888
      %v414 = vsel %vm412, %v381, 0
      %v417 = vsel %vm412, %v382, 0
      %v420 = vsel %vm412, %v383, 0
      %v423 = vsel %vm412, %v384, 0
      %v426 = vsel %vm412, %v385, 0
      %v429 = vsel %vm412, %v386, 0
      %v432 = vsel %vm412, %v387, 0
      %v435 = vsel %vm412, %v388, 0
      %v438 = vsel %vm412, %v389, 0
      %v441 = vsel %vm412, %v390, 0
      %v444 = vsel %vm412, %v391, 0
      %v447 = vsel %vm412, %v392, 0
      %v450 = vsel %vm412, %v393, 0
      %v453 = vsel %vm412, %v394, 0
      %v456 = vsel %vm412, %v395, 0
      %v459 = vsel %vm412, %v396, 0
      %vm461 = vcmask 1041408
      %v463 = vsel %vm461, %v409, 0
      %465 = vmatpush.bf16.msra.mxu0 0
      %466 = vmatpush.bf16.msra.mxu0 0
      %467 = vmatpush.bf16.msra.mxu0 0
      %468 = vmatpush.bf16.msra.mxu0 0
      %469 = vmatpush.bf16.msra.mxu0 0
      %470 = vmatpush.bf16.msra.mxu0 %v463
      %471 = vmatpush.bf16.msra.mxu0 %v408
      %472 = vmatpush.bf16.msra.mxu0 %v407
      %473 = vmatmul.bf16.gmra.mxu0 %v414
      %v474 = vpop.f32.mrf.mxu0
      %v475 = vadd.f32 0.0, %v474
      %v476 = vpop.f32.mrf.mxu0
      %v477 = vadd.f32 0.0, %v476
      %478 = vmatmul.bf16.gmra.mxu0 %v417
      %v479 = vpop.f32.mrf.mxu0
      %v480 = vadd.f32 0.0, %v479
      %v481 = vpop.f32.mrf.mxu0
      %v482 = vadd.f32 0.0, %v481
      %483 = vmatmul.bf16.gmra.mxu0 %v420
      %v484 = vpop.f32.mrf.mxu0
      %v485 = vadd.f32 0.0, %v484
      %v486 = vpop.f32.mrf.mxu0
      %v487 = vadd.f32 0.0, %v486
      %488 = vmatmul.bf16.gmra.mxu0 %v423
      %v489 = vpop.f32.mrf.mxu0
      %v490 = vadd.f32 0.0, %v489
      %v491 = vpop.f32.mrf.mxu0
      %v492 = vadd.f32 0.0, %v491
      %493 = vmatmul.bf16.gmra.mxu0 %v426
      %v494 = vpop.f32.mrf.mxu0
      %v495 = vadd.f32 0.0, %v494
      %v496 = vpop.f32.mrf.mxu0
      %v497 = vadd.f32 0.0, %v496
      %498 = vmatmul.bf16.gmra.mxu0 %v429
      %v499 = vpop.f32.mrf.mxu0
      %v500 = vadd.f32 0.0, %v499
      %v501 = vpop.f32.mrf.mxu0
      %v502 = vadd.f32 0.0, %v501
      %503 = vmatmul.bf16.gmra.mxu0 %v432
      %v504 = vpop.f32.mrf.mxu0
      %v505 = vadd.f32 0.0, %v504
      %v506 = vpop.f32.mrf.mxu0
      %v507 = vadd.f32 0.0, %v506
      %508 = vmatmul.bf16.gmra.mxu0 %v435
      %v509 = vpop.f32.mrf.mxu0
      %v510 = vadd.f32 0.0, %v509
      %v511 = vpop.f32.mrf.mxu0
      %v512 = vadd.f32 0.0, %v511
      %513 = vmatmul.bf16.gmra.mxu0 %v438
      %v514 = vpop.f32.mrf.mxu0
      %v515 = vadd.f32 0.0, %v514
      %v516 = vpop.f32.mrf.mxu0
      %v517 = vadd.f32 0.0, %v516
      %518 = vmatmul.bf16.gmra.mxu0 %v441
      %v519 = vpop.f32.mrf.mxu0
      %v520 = vadd.f32 0.0, %v519
      %v521 = vpop.f32.mrf.mxu0
      %v522 = vadd.f32 0.0, %v521
      %523 = vmatmul.bf16.gmra.mxu0 %v444
      %v524 = vpop.f32.mrf.mxu0
      %v525 = vadd.f32 0.0, %v524
      %v526 = vpop.f32.mrf.mxu0
      %v527 = vadd.f32 0.0, %v526
      %528 = vmatmul.bf16.gmra.mxu0 %v447
      %v529 = vpop.f32.mrf.mxu0
      %v530 = vadd.f32 0.0, %v529
      %v531 = vpop.f32.mrf.mxu0
      %v532 = vadd.f32 0.0, %v531
      %533 = vmatmul.bf16.gmra.mxu0 %v450
      %v534 = vpop.f32.mrf.mxu0
      %v535 = vadd.f32 0.0, %v534
      %v536 = vpop.f32.mrf.mxu0
      %v537 = vadd.f32 0.0, %v536
      %538 = vmatmul.bf16.gmra.mxu0 %v453
      %v539 = vpop.f32.mrf.mxu0
      %v540 = vadd.f32 0.0, %v539
      %v541 = vpop.f32.mrf.mxu0
      %v542 = vadd.f32 0.0, %v541
      %543 = vmatmul.bf16.gmra.mxu0 %v456
      %v544 = vpop.f32.mrf.mxu0
      %v545 = vadd.f32 0.0, %v544
      %v546 = vpop.f32.mrf.mxu0
      %v547 = vadd.f32 0.0, %v546
      %548 = vmatmul.bf16.gmra.mxu0 %v459
      %v549 = vpop.f32.mrf.mxu0
      %v550 = vadd.f32 0.0, %v549
      %v551 = vpop.f32.mrf.mxu0
      %v552 = vadd.f32 0.0, %v551
      %553 = vdwg.mxu0
      %v554 = vld [vmem:[%s6] sm:$0x1]
      %v555 = vld [vmem:[%s6 + $0x1] sm:$0x1]
      %v556 = vperm.slane %v554, 0
      %v557 = vmul.f32 %v475, %v556
      %v558 = vmul.f32 %v477, %v556
      %v559 = vmul.f32 %v480, %v556
      %v560 = vmul.f32 %v482, %v556
      %v561 = vmul.f32 %v485, %v556
      %v562 = vmul.f32 %v487, %v556
      %v563 = vmul.f32 %v490, %v556
      %v564 = vmul.f32 %v492, %v556
      %v565 = vmul.f32 %v495, %v556
      %v566 = vmul.f32 %v497, %v556
      %v567 = vmul.f32 %v500, %v556
      %v568 = vmul.f32 %v502, %v556
      %v569 = vmul.f32 %v505, %v556
      %v570 = vmul.f32 %v507, %v556
      %v571 = vmul.f32 %v510, %v556
      %v572 = vmul.f32 %v512, %v556
      %v573 = vmul.f32 %v515, %v556
      %v574 = vmul.f32 %v517, %v556
      %v575 = vmul.f32 %v520, %v556
      %v576 = vmul.f32 %v522, %v556
      %v577 = vmul.f32 %v525, %v556
      %v578 = vmul.f32 %v527, %v556
      %v579 = vmul.f32 %v530, %v556
      %v580 = vmul.f32 %v532, %v556
      %v581 = vmul.f32 %v535, %v556
      %v582 = vmul.f32 %v537, %v556
      %v583 = vmul.f32 %v540, %v556
      %v584 = vmul.f32 %v542, %v556
      %v585 = vmul.f32 %v545, %v556
      %v586 = vmul.f32 %v547, %v556
      %v587 = vmul.f32 %v550, %v556
      %v588 = vmul.f32 %v552, %v556
      %v589 = vperm.slane %v555, 0
      %v590 = vadd.f32 %v557, %v589
      %v591 = vadd.f32 %v558, %v589
      %v592 = vadd.f32 %v559, %v589
      %v593 = vadd.f32 %v560, %v589
      %v594 = vadd.f32 %v561, %v589
      %v595 = vadd.f32 %v562, %v589
      %v596 = vadd.f32 %v563, %v589
      %v597 = vadd.f32 %v564, %v589
      %v598 = vadd.f32 %v565, %v589
      %v599 = vadd.f32 %v566, %v589
      %v600 = vadd.f32 %v567, %v589
      %v601 = vadd.f32 %v568, %v589
      %v602 = vadd.f32 %v569, %v589
      %v603 = vadd.f32 %v570, %v589
      %v604 = vadd.f32 %v571, %v589
      %v605 = vadd.f32 %v572, %v589
      %v606 = vadd.f32 %v573, %v589
      %v607 = vadd.f32 %v574, %v589
      %v608 = vadd.f32 %v575, %v589
      %v609 = vadd.f32 %v576, %v589
      %v610 = vadd.f32 %v577, %v589
      %v611 = vadd.f32 %v578, %v589
      %v612 = vadd.f32 %v579, %v589
      %v613 = vadd.f32 %v580, %v589
      %v614 = vadd.f32 %v581, %v589
      %v615 = vadd.f32 %v582, %v589
      %v616 = vadd.f32 %v583, %v589
      %v617 = vadd.f32 %v584, %v589
      %v618 = vadd.f32 %v585, %v589
      %v619 = vadd.f32 %v586, %v589
      %v620 = vadd.f32 %v587, %v589
      %v621 = vadd.f32 %v588, %v589
      %v622 = vmax.f32 %v590, 0.0
      %v623 = vmax.f32 %v591, 0.0
      %v624 = vmax.f32 %v592, 0.0
      %v625 = vmax.f32 %v593, 0.0
      %v626 = vmax.f32 %v594, 0.0
      %v627 = vmax.f32 %v595, 0.0
      %v628 = vmax.f32 %v596, 0.0
      %v629 = vmax.f32 %v597, 0.0
      %v630 = vmax.f32 %v598, 0.0
      %v631 = vmax.f32 %v599, 0.0
      %v632 = vmax.f32 %v600, 0.0
      %v633 = vmax.f32 %v601, 0.0
      %v634 = vmax.f32 %v602, 0.0
      %v635 = vmax.f32 %v603, 0.0
      %v636 = vmax.f32 %v604, 0.0
      %v637 = vmax.f32 %v605, 0.0
      %v638 = vmax.f32 %v606, 0.0
      %v639 = vmax.f32 %v607, 0.0
      %v640 = vmax.f32 %v608, 0.0
      %v641 = vmax.f32 %v609, 0.0
      %v642 = vmax.f32 %v610, 0.0
      %v643 = vmax.f32 %v611, 0.0
      %v644 = vmax.f32 %v612, 0.0
      %v645 = vmax.f32 %v613, 0.0
      %v646 = vmax.f32 %v614, 0.0
      %v647 = vmax.f32 %v615, 0.0
      %v648 = vmax.f32 %v616, 0.0
      %v649 = vmax.f32 %v617, 0.0
      %v650 = vmax.f32 %v618, 0.0
      %v651 = vmax.f32 %v619, 0.0
      %v652 = vmax.f32 %v620, 0.0
      %v653 = vmax.f32 %v621, 0.0
      %vm654 = vcmask 130048
      %655 = vst.msk [vmem:[#allocation2] sm:$0xff] %vm654, 0.0
      %656 = vst.msk [vmem:[#allocation2 + $0x8] sm:$0xff] %vm654, 0.0
      %657 = vst.msk [vmem:[#allocation2 + $0x10] sm:$0xff] %vm654, 0.0
      %vm658 = vcmask 122880
      %659 = vst.msk [vmem:[#allocation2 + $0x18] sm:$0x1] %vm658, 0.0
      %660 = vst.msk [vmem:[#allocation2 + $0x19] sm:$0xff] %vm654, %v622
      %661 = vst.msk [vmem:[#allocation2 + $0x21] sm:$0xff] %vm654, %v623
      %662 = vst.msk [vmem:[#allocation2 + $0x29] sm:$0xff] %vm654, 0.0
      %663 = vst.msk [vmem:[#allocation2 + $0x31] sm:$0xff] %vm654, %v624
      %664 = vst.msk [vmem:[#allocation2 + $0x39] sm:$0xff] %vm654, %v625
      %665 = vst.msk [vmem:[#allocation2 + $0x41] sm:$0xff] %vm654, 0.0
      %666 = vst.msk [vmem:[#allocation2 + $0x49] sm:$0xff] %vm654, %v626
      %667 = vst.msk [vmem:[#allocation2 + $0x51] sm:$0xff] %vm654, %v627
      %668 = vst.msk [vmem:[#allocation2 + $0x59] sm:$0xff] %vm654, 0.0
      %669 = vst.msk [vmem:[#allocation2 + $0x61] sm:$0xff] %vm654, %v628
      %670 = vst.msk [vmem:[#allocation2 + $0x69] sm:$0xff] %vm654, %v629
      %671 = vst.msk [vmem:[#allocation2 + $0x71] sm:$0xff] %vm654, 0.0
      %672 = vst.msk [vmem:[#allocation2 + $0x79] sm:$0xff] %vm654, %v630
      %673 = vst.msk [vmem:[#allocation2 + $0x81] sm:$0xff] %vm654, %v631
      %674 = vst.msk [vmem:[#allocation2 + $0x89] sm:$0xff] %vm654, 0.0
      %675 = vst.msk [vmem:[#allocation2 + $0x91] sm:$0xff] %vm654, %v632
      %676 = vst.msk [vmem:[#allocation2 + $0x99] sm:$0xff] %vm654, %v633
      %677 = vst.msk [vmem:[#allocation2 + $0xa1] sm:$0xff] %vm654, 0.0
      %678 = vst.msk [vmem:[#allocation2 + $0xa9] sm:$0xff] %vm654, %v634
      %679 = vst.msk [vmem:[#allocation2 + $0xb1] sm:$0xff] %vm654, %v635
      %680 = vst.msk [vmem:[#allocation2 + $0xb9] sm:$0xff] %vm654, 0.0
      %681 = vst.msk [vmem:[#allocation2 + $0xc1] sm:$0xff] %vm654, %v636
      %682 = vst.msk [vmem:[#allocation2 + $0xc9] sm:$0xff] %vm654, %v637
      %683 = vst.msk [vmem:[#allocation2 + $0xd1] sm:$0xff] %vm654, 0.0
      %684 = vst.msk [vmem:[#allocation2 + $0xd9] sm:$0xff] %vm654, %v638
      %685 = vst.msk [vmem:[#allocation2 + $0xe1] sm:$0xff] %vm654, %v639
      %686 = vst.msk [vmem:[#allocation2 + $0xe9] sm:$0xff] %vm654, 0.0
      %687 = vst.msk [vmem:[#allocation2 + $0xf1] sm:$0xff] %vm654, %v640
      %688 = vst.msk [vmem:[#allocation2 + $0xf9] sm:$0xff] %vm654, %v641
      %689 = vst.msk [vmem:[#allocation2 + $0x101] sm:$0xff] %vm654, 0.0
      %690 = vst.msk [vmem:[#allocation2 + $0x109] sm:$0xff] %vm654, %v642
      %691 = vst.msk [vmem:[#allocation2 + $0x111] sm:$0xff] %vm654, %v643
      %692 = vst.msk [vmem:[#allocation2 + $0x119] sm:$0xff] %vm654, 0.0
      %693 = vst.msk [vmem:[#allocation2 + $0x121] sm:$0xff] %vm654, %v644
      %694 = vst.msk [vmem:[#allocation2 + $0x129] sm:$0xff] %vm654, %v645
      %695 = vst.msk [vmem:[#allocation2 + $0x131] sm:$0xff] %vm654, 0.0
      %696 = vst.msk [vmem:[#allocation2 + $0x139] sm:$0xff] %vm654, %v646
      %697 = vst.msk [vmem:[#allocation2 + $0x141] sm:$0xff] %vm654, %v647
      %698 = vst.msk [vmem:[#allocation2 + $0x149] sm:$0xff] %vm654, 0.0
      %699 = vst.msk [vmem:[#allocation2 + $0x151] sm:$0xff] %vm654, %v648
      %700 = vst.msk [vmem:[#allocation2 + $0x159] sm:$0xff] %vm654, %v649
      %701 = vst.msk [vmem:[#allocation2 + $0x161] sm:$0xff] %vm654, 0.0
      %702 = vst.msk [vmem:[#allocation2 + $0x169] sm:$0xff] %vm654, %v650
      %703 = vst.msk [vmem:[#allocation2 + $0x171] sm:$0xff] %vm654, %v651
      %704 = vst.msk [vmem:[#allocation2 + $0x179] sm:$0xff] %vm654, 0.0
      %705 = vst.msk [vmem:[#allocation2 + $0x181] sm:$0xff] %vm654, %v652
      %706 = vst.msk [vmem:[#allocation2 + $0x189] sm:$0xff] %vm654, %v653
      %707 = vst.msk [vmem:[#allocation2 + $0x191] sm:$0xff] %vm654, 0.0
      %708 = vst.msk [vmem:[#allocation2 + $0x199] sm:$0xff] %vm654, 0.0
      %709 = vst.msk [vmem:[#allocation2 + $0x1a1] sm:$0xff] %vm654, 0.0
      %710 = vst.msk [vmem:[#allocation2 + $0x1a9] sm:$0xff] %vm654, 0.0
      %vm711 = vcmask 129024
      %712 = vst.msk [vmem:[#allocation2 + $0x1b1] sm:$0x7f] %vm711, 0.0
      %v713 = vld [vmem:[#allocation2] sm:$0xff]
      %v714 = vld [vmem:[#allocation2 + $0x8] sm:$0xff]
      %v715 = vld [vmem:[#allocation2 + $0x10] sm:$0xff]
      %v716 = vld [vmem:[#allocation2 + $0x18] sm:$0xff]
      %v717 = vld [vmem:[#allocation2 + $0x20] sm:$0xff]
      %v718 = vld [vmem:[#allocation2 + $0x28] sm:$0xff]
      %v719 = vld [vmem:[#allocation2 + $0x30] sm:$0xff]
      %v720 = vld [vmem:[#allocation2 + $0x38] sm:$0xff]
      %v721 = vld [vmem:[#allocation2 + $0x40] sm:$0xff]
      %v722 = vld [vmem:[#allocation2 + $0x48] sm:$0xff]
      %v723 = vld [vmem:[#allocation2 + $0x50] sm:$0xff]
      %v724 = vld [vmem:[#allocation2 + $0x58] sm:$0xff]
      %v725 = vld [vmem:[#allocation2 + $0x60] sm:$0xff]
      %v726 = vld [vmem:[#allocation2 + $0x68] sm:$0xff]
      %v727 = vld [vmem:[#allocation2 + $0x70] sm:$0xff]
      %v728 = vld [vmem:[#allocation2 + $0x78] sm:$0xff]
      %v729 = vld [vmem:[#allocation2 + $0x80] sm:$0xff]
      %v730 = vld [vmem:[#allocation2 + $0x88] sm:$0xff]
      %v731 = vld [vmem:[#allocation2 + $0x90] sm:$0xff]
      %v732 = vld [vmem:[#allocation2 + $0x98] sm:$0xff]
      %v733 = vld [vmem:[#allocation2 + $0xa0] sm:$0xff]
      %v734 = vld [vmem:[#allocation2 + $0xa8] sm:$0xff]
      %v735 = vld [vmem:[#allocation2 + $0xb0] sm:$0xff]
      %v736 = vld [vmem:[#allocation2 + $0xb8] sm:$0xff]
      %v737 = vld [vmem:[#allocation2 + $0xc0] sm:$0xff]
      %v738 = vld [vmem:[#allocation2 + $0xc8] sm:$0xff]
      %v739 = vld [vmem:[#allocation2 + $0xd0] sm:$0xff]
      %v740 = vld [vmem:[#allocation2 + $0xd8] sm:$0xff]
      %v741 = vld [vmem:[#allocation2 + $0xe0] sm:$0xff]
      %v742 = vld [vmem:[#allocation2 + $0xe8] sm:$0xff]
      %v743 = vld [vmem:[#allocation2 + $0xf0] sm:$0xff]
      %v744 = vld [vmem:[#allocation2 + $0xf8] sm:$0xff]
      %v745 = vld [vmem:[#allocation2 + $0x100] sm:$0xff]
      %v746 = vld [vmem:[#allocation2 + $0x108] sm:$0xff]
      %v747 = vld [vmem:[#allocation2 + $0x110] sm:$0xff]
      %v748 = vld [vmem:[#allocation2 + $0x118] sm:$0xff]
      %v749 = vld [vmem:[#allocation2 + $0x120] sm:$0xff]
      %v750 = vld [vmem:[#allocation2 + $0x128] sm:$0xff]
      %v751 = vld [vmem:[#allocation2 + $0x130] sm:$0xff]
      %v752 = vld [vmem:[#allocation2 + $0x138] sm:$0xff]
      %v753 = vld [vmem:[#allocation2 + $0x140] sm:$0xff]
      %v754 = vld [vmem:[#allocation2 + $0x148] sm:$0xff]
      %v755 = vld [vmem:[#allocation2 + $0x150] sm:$0xff]
      %v756 = vld [vmem:[#allocation2 + $0x158] sm:$0xff]
      %v757 = vld [vmem:[#allocation2 + $0x160] sm:$0xff]
      %v758 = vld [vmem:[#allocation2 + $0x168] sm:$0xff]
      %v759 = vld [vmem:[#allocation2 + $0x170] sm:$0xff]
      %v760 = vld [vmem:[#allocation2 + $0x178] sm:$0xff]
      %v761 = vpack.c.bf16 %v714, %v713
      %v762 = vpack.c.bf16 %v716, %v715
      %v763 = vpack.c.bf16 %v718, %v717
      %v764 = vpack.c.bf16 %v720, %v719
      %v765 = vpack.c.bf16 %v722, %v721
      %v766 = vpack.c.bf16 %v724, %v723
      %v767 = vpack.c.bf16 %v726, %v725
      %v768 = vpack.c.bf16 %v728, %v727
      %v769 = vpack.c.bf16 %v730, %v729
      %v770 = vpack.c.bf16 %v732, %v731
      %v771 = vpack.c.bf16 %v734, %v733
      %v772 = vpack.c.bf16 %v736, %v735
      %v773 = vpack.c.bf16 %v738, %v737
      %v774 = vpack.c.bf16 %v740, %v739
      %v775 = vpack.c.bf16 %v742, %v741
      %v776 = vpack.c.bf16 %v744, %v743
      %v777 = vpack.c.bf16 %v746, %v745
      %v778 = vpack.c.bf16 %v748, %v747
      %v779 = vpack.c.bf16 %v750, %v749
      %v780 = vpack.c.bf16 %v752, %v751
      %v781 = vpack.c.bf16 %v754, %v753
      %v782 = vpack.c.bf16 %v756, %v755
      %v783 = vpack.c.bf16 %v758, %v757
      %v784 = vpack.c.bf16 %v760, %v759
      %v785 = vld [vmem:[%s2] sm:$0xf]
      %v786 = vld [vmem:[%s2 + $0x4] sm:$0xf]
      %v787 = vld [vmem:[#allocation2 + $0x1] sm:$0xff]
      %v788 = vld [vmem:[#allocation2 + $0x9] sm:$0xff]
      %v789 = vld [vmem:[#allocation2 + $0x11] sm:$0xff]
      %v790 = vld [vmem:[#allocation2 + $0x19] sm:$0xff]
      %v791 = vld [vmem:[#allocation2 + $0x21] sm:$0xff]
      %v792 = vld [vmem:[#allocation2 + $0x29] sm:$0xff]
      %v793 = vld [vmem:[#allocation2 + $0x31] sm:$0xff]
      %v794 = vld [vmem:[#allocation2 + $0x39] sm:$0xff]
      %v795 = vld [vmem:[#allocation2 + $0x41] sm:$0xff]
      %v796 = vld [vmem:[#allocation2 + $0x49] sm:$0xff]
      %v797 = vld [vmem:[#allocation2 + $0x51] sm:$0xff]
      %v798 = vld [vmem:[#allocation2 + $0x59] sm:$0xff]
      %v799 = vld [vmem:[#allocation2 + $0x61] sm:$0xff]
      %v800 = vld [vmem:[#allocation2 + $0x69] sm:$0xff]
      %v801 = vld [vmem:[#allocation2 + $0x71] sm:$0xff]
      %v802 = vld [vmem:[#allocation2 + $0x79] sm:$0xff]
      %v803 = vld [vmem:[#allocation2 + $0x81] sm:$0xff]
      %v804 = vld [vmem:[#allocation2 + $0x89] sm:$0xff]
      %v805 = vld [vmem:[#allocation2 + $0x91] sm:$0xff]
      %v806 = vld [vmem:[#allocation2 + $0x99] sm:$0xff]
      %v807 = vld [vmem:[#allocation2 + $0xa1] sm:$0xff]
      %v808 = vld [vmem:[#allocation2 + $0xa9] sm:$0xff]
      %v809 = vld [vmem:[#allocation2 + $0xb1] sm:$0xff]
      %v810 = vld [vmem:[#allocation2 + $0xb9] sm:$0xff]
      %v811 = vld [vmem:[#allocation2 + $0xc1] sm:$0xff]
      %v812 = vld [vmem:[#allocation2 + $0xc9] sm:$0xff]
      %v813 = vld [vmem:[#allocation2 + $0xd1] sm:$0xff]
      %v814 = vld [vmem:[#allocation2 + $0xd9] sm:$0xff]
      %v815 = vld [vmem:[#allocation2 + $0xe1] sm:$0xff]
      %v816 = vld [vmem:[#allocation2 + $0xe9] sm:$0xff]
      %v817 = vld [vmem:[#allocation2 + $0xf1] sm:$0xff]
      %v818 = vld [vmem:[#allocation2 + $0xf9] sm:$0xff]
      %v819 = vld [vmem:[#allocation2 + $0x101] sm:$0xff]
      %v820 = vld [vmem:[#allocation2 + $0x109] sm:$0xff]
      %v821 = vld [vmem:[#allocation2 + $0x111] sm:$0xff]
      %v822 = vld [vmem:[#allocation2 + $0x119] sm:$0xff]
      %v823 = vld [vmem:[#allocation2 + $0x121] sm:$0xff]
      %v824 = vld [vmem:[#allocation2 + $0x129] sm:$0xff]
      %v825 = vld [vmem:[#allocation2 + $0x131] sm:$0xff]
      %v826 = vld [vmem:[#allocation2 + $0x139] sm:$0xff]
      %v827 = vld [vmem:[#allocation2 + $0x141] sm:$0xff]
      %v828 = vld [vmem:[#allocation2 + $0x149] sm:$0xff]
      %v829 = vld [vmem:[#allocation2 + $0x151] sm:$0xff]
      %v830 = vld [vmem:[#allocation2 + $0x159] sm:$0xff]
      %v831 = vld [vmem:[#allocation2 + $0x161] sm:$0xff]
      %v832 = vld [vmem:[#allocation2 + $0x169] sm:$0xff]
      %v833 = vld [vmem:[#allocation2 + $0x171] sm:$0xff]
      %v834 = vld [vmem:[#allocation2 + $0x179] sm:$0xff]
      %v835 = vpack.c.bf16 %v788, %v787
      %v836 = vpack.c.bf16 %v790, %v789
      %v837 = vpack.c.bf16 %v792, %v791
      %v838 = vpack.c.bf16 %v794, %v793
      %v839 = vpack.c.bf16 %v796, %v795
      %v840 = vpack.c.bf16 %v798, %v797
      %v841 = vpack.c.bf16 %v800, %v799
      %v842 = vpack.c.bf16 %v802, %v801
      %v843 = vpack.c.bf16 %v804, %v803
      %v844 = vpack.c.bf16 %v806, %v805
      %v845 = vpack.c.bf16 %v808, %v807
      %v846 = vpack.c.bf16 %v810, %v809
      %v847 = vpack.c.bf16 %v812, %v811
      %v848 = vpack.c.bf16 %v814, %v813
      %v849 = vpack.c.bf16 %v816, %v815
      %v850 = vpack.c.bf16 %v818, %v817
      %v851 = vpack.c.bf16 %v820, %v819
      %v852 = vpack.c.bf16 %v822, %v821
      %v853 = vpack.c.bf16 %v824, %v823
      %v854 = vpack.c.bf16 %v826, %v825
      %v855 = vpack.c.bf16 %v828, %v827
      %v856 = vpack.c.bf16 %v830, %v829
      %v857 = vpack.c.bf16 %v832, %v831
      %v858 = vpack.c.bf16 %v834, %v833
      %s859 = scalar_lea.vmem %s2, 8
      %v860 = vld [vmem:[%s859] sm:$0xf]
      %v861 = vld [vmem:[%s859 + $0x4] sm:$0xf]
      %v864 = vunpack.c.l.b16 %v860
      %v865 = vunpack.c.l.b16 %v861
      %v866 = vpack.c.b16 %v865, %v864
      %v869 = vsel %vm654, %v835, 0
      %v872 = vsel %vm654, %v836, 0
      %v875 = vsel %vm654, %v837, 0
      %v878 = vsel %vm654, %v838, 0
      %v881 = vsel %vm654, %v839, 0
      %v884 = vsel %vm654, %v840, 0
      %v887 = vsel %vm654, %v841, 0
      %v890 = vsel %vm654, %v842, 0
      %v893 = vsel %vm654, %v843, 0
      %v896 = vsel %vm654, %v844, 0
      %v899 = vsel %vm654, %v845, 0
      %v902 = vsel %vm654, %v846, 0
      %v905 = vsel %vm654, %v847, 0
      %v908 = vsel %vm654, %v848, 0
      %v911 = vsel %vm654, %v849, 0
      %v914 = vsel %vm654, %v850, 0
      %v917 = vsel %vm654, %v851, 0
      %v920 = vsel %vm654, %v852, 0
      %v923 = vsel %vm654, %v853, 0
      %v926 = vsel %vm654, %v854, 0
      %v929 = vsel %vm654, %v855, 0
      %v932 = vsel %vm654, %v856, 0
      %v935 = vsel %vm654, %v857, 0
      %v938 = vsel %vm654, %v858, 0
      %940 = vmatpush.bf16.msra.mxu0 0
      %941 = vmatpush.bf16.msra.mxu0 0
      %942 = vmatpush.bf16.msra.mxu0 0
      %943 = vmatpush.bf16.msra.mxu0 0
      %944 = vmatpush.bf16.msra.mxu0 0
      %945 = vmatpush.bf16.msra.mxu0 0
      %946 = vmatpush.bf16.msra.mxu0 0
      %947 = vmatpush.bf16.msra.mxu0 %v866
      %948 = vmatmul.bf16.gmra.mxu0 %v869
      %v949 = vpop.f32.mrf.mxu0
      %v950 = vadd.f32 0.0, %v949
      %v951 = vpop.f32.mrf.mxu0
      %v952 = vadd.f32 0.0, %v951
      %953 = vmatmul.bf16.gmra.mxu0 %v872
      %v954 = vpop.f32.mrf.mxu0
      %v955 = vadd.f32 0.0, %v954
      %v956 = vpop.f32.mrf.mxu0
      %v957 = vadd.f32 0.0, %v956
      %958 = vmatmul.bf16.gmra.mxu0 %v875
      %v959 = vpop.f32.mrf.mxu0
      %v960 = vadd.f32 0.0, %v959
      %v961 = vpop.f32.mrf.mxu0
      %v962 = vadd.f32 0.0, %v961
      %963 = vmatmul.bf16.gmra.mxu0 %v878
      %v964 = vpop.f32.mrf.mxu0
      %v965 = vadd.f32 0.0, %v964
      %v966 = vpop.f32.mrf.mxu0
      %v967 = vadd.f32 0.0, %v966
      %968 = vmatmul.bf16.gmra.mxu0 %v881
      %v969 = vpop.f32.mrf.mxu0
      %v970 = vadd.f32 0.0, %v969
      %v971 = vpop.f32.mrf.mxu0
      %v972 = vadd.f32 0.0, %v971
      %973 = vmatmul.bf16.gmra.mxu0 %v884
      %v974 = vpop.f32.mrf.mxu0
      %v975 = vadd.f32 0.0, %v974
      %v976 = vpop.f32.mrf.mxu0
      %v977 = vadd.f32 0.0, %v976
      %978 = vmatmul.bf16.gmra.mxu0 %v887
      %v979 = vpop.f32.mrf.mxu0
      %v980 = vadd.f32 0.0, %v979
      %v981 = vpop.f32.mrf.mxu0
      %v982 = vadd.f32 0.0, %v981
      %983 = vmatmul.bf16.gmra.mxu0 %v890
      %v984 = vpop.f32.mrf.mxu0
      %v985 = vadd.f32 0.0, %v984
      %v986 = vpop.f32.mrf.mxu0
      %v987 = vadd.f32 0.0, %v986
      %988 = vmatmul.bf16.gmra.mxu0 %v893
      %v989 = vpop.f32.mrf.mxu0
      %v990 = vadd.f32 0.0, %v989
      %v991 = vpop.f32.mrf.mxu0
      %v992 = vadd.f32 0.0, %v991
      %993 = vmatmul.bf16.gmra.mxu0 %v896
      %v994 = vpop.f32.mrf.mxu0
      %v995 = vadd.f32 0.0, %v994
      %v996 = vpop.f32.mrf.mxu0
      %v997 = vadd.f32 0.0, %v996
      %998 = vmatmul.bf16.gmra.mxu0 %v899
      %v999 = vpop.f32.mrf.mxu0
      %v1000 = vadd.f32 0.0, %v999
      %v1001 = vpop.f32.mrf.mxu0
      %v1002 = vadd.f32 0.0, %v1001
      %1003 = vmatmul.bf16.gmra.mxu0 %v902
      %v1004 = vpop.f32.mrf.mxu0
      %v1005 = vadd.f32 0.0, %v1004
      %v1006 = vpop.f32.mrf.mxu0
      %v1007 = vadd.f32 0.0, %v1006
      %1008 = vmatmul.bf16.gmra.mxu0 %v905
      %v1009 = vpop.f32.mrf.mxu0
      %v1010 = vadd.f32 0.0, %v1009
      %v1011 = vpop.f32.mrf.mxu0
      %v1012 = vadd.f32 0.0, %v1011
      %1013 = vmatmul.bf16.gmra.mxu0 %v908
      %v1014 = vpop.f32.mrf.mxu0
      %v1015 = vadd.f32 0.0, %v1014
      %v1016 = vpop.f32.mrf.mxu0
      %v1017 = vadd.f32 0.0, %v1016
      %1018 = vmatmul.bf16.gmra.mxu0 %v911
      %v1019 = vpop.f32.mrf.mxu0
      %v1020 = vadd.f32 0.0, %v1019
      %v1021 = vpop.f32.mrf.mxu0
      %v1022 = vadd.f32 0.0, %v1021
      %1023 = vmatmul.bf16.gmra.mxu0 %v914
      %v1024 = vpop.f32.mrf.mxu0
      %v1025 = vadd.f32 0.0, %v1024
      %v1026 = vpop.f32.mrf.mxu0
      %v1027 = vadd.f32 0.0, %v1026
      %1028 = vmatmul.bf16.gmra.mxu0 %v917
      %v1029 = vpop.f32.mrf.mxu0
      %v1030 = vadd.f32 0.0, %v1029
      %v1031 = vpop.f32.mrf.mxu0
      %v1032 = vadd.f32 0.0, %v1031
      %1033 = vmatmul.bf16.gmra.mxu0 %v920
      %v1034 = vpop.f32.mrf.mxu0
      %v1035 = vadd.f32 0.0, %v1034
      %v1036 = vpop.f32.mrf.mxu0
      %v1037 = vadd.f32 0.0, %v1036
      %1038 = vmatmul.bf16.gmra.mxu0 %v923
      %v1039 = vpop.f32.mrf.mxu0
      %v1040 = vadd.f32 0.0, %v1039
      %v1041 = vpop.f32.mrf.mxu0
      %v1042 = vadd.f32 0.0, %v1041
      %1043 = vmatmul.bf16.gmra.mxu0 %v926
      %v1044 = vpop.f32.mrf.mxu0
      %v1045 = vadd.f32 0.0, %v1044
      %v1046 = vpop.f32.mrf.mxu0
      %v1047 = vadd.f32 0.0, %v1046
      %1048 = vmatmul.bf16.gmra.mxu0 %v929
      %v1049 = vpop.f32.mrf.mxu0
      %v1050 = vadd.f32 0.0, %v1049
      %v1051 = vpop.f32.mrf.mxu0
      %v1052 = vadd.f32 0.0, %v1051
      %1053 = vmatmul.bf16.gmra.mxu0 %v932
      %v1054 = vpop.f32.mrf.mxu0
      %v1055 = vadd.f32 0.0, %v1054
      %v1056 = vpop.f32.mrf.mxu0
      %v1057 = vadd.f32 0.0, %v1056
      %1058 = vmatmul.bf16.gmra.mxu0 %v935
      %v1059 = vpop.f32.mrf.mxu0
      %v1060 = vadd.f32 0.0, %v1059
      %v1061 = vpop.f32.mrf.mxu0
      %v1062 = vadd.f32 0.0, %v1061
      %1063 = vmatmul.bf16.gmra.mxu0 %v938
      %v1064 = vpop.f32.mrf.mxu0
      %v1065 = vadd.f32 0.0, %v1064
      %v1066 = vpop.f32.mrf.mxu0
      %v1067 = vadd.f32 0.0, %v1066
      %1068 = vdwg.mxu0
      %v1071 = vunpack.c.l.b16 %v785
      %v1072 = vunpack.c.l.b16 %v786
      %v1073 = vpack.c.b16 %v1072, %v1071
      %v1076 = vsel %vm654, %v761, 0
      %v1079 = vsel %vm654, %v762, 0
      %v1082 = vsel %vm654, %v763, 0
      %v1085 = vsel %vm654, %v764, 0
      %v1088 = vsel %vm654, %v765, 0
      %v1091 = vsel %vm654, %v766, 0
      %v1094 = vsel %vm654, %v767, 0
      %v1097 = vsel %vm654, %v768, 0
      %v1100 = vsel %vm654, %v769, 0
      %v1103 = vsel %vm654, %v770, 0
      %v1106 = vsel %vm654, %v771, 0
      %v1109 = vsel %vm654, %v772, 0
      %v1112 = vsel %vm654, %v773, 0
      %v1115 = vsel %vm654, %v774, 0
      %v1118 = vsel %vm654, %v775, 0
      %v1121 = vsel %vm654, %v776, 0
      %v1124 = vsel %vm654, %v777, 0
      %v1127 = vsel %vm654, %v778, 0
      %v1130 = vsel %vm654, %v779, 0
      %v1133 = vsel %vm654, %v780, 0
      %v1136 = vsel %vm654, %v781, 0
      %v1139 = vsel %vm654, %v782, 0
      %v1142 = vsel %vm654, %v783, 0
      %v1145 = vsel %vm654, %v784, 0
      %1147 = vmatpush.bf16.msra.mxu0 0
      %1148 = vmatpush.bf16.msra.mxu0 0
      %1149 = vmatpush.bf16.msra.mxu0 0
      %1150 = vmatpush.bf16.msra.mxu0 0
      %1151 = vmatpush.bf16.msra.mxu0 0
      %1152 = vmatpush.bf16.msra.mxu0 0
      %1153 = vmatpush.bf16.msra.mxu0 0
      %1154 = vmatpush.bf16.msra.mxu0 %v1073
      %1155 = vmatmul.bf16.gmra.mxu0 %v1076
      %v1156 = vpop.f32.mrf.mxu0
      %v1157 = vadd.f32 %v950, %v1156
      %v1158 = vpop.f32.mrf.mxu0
      %v1159 = vadd.f32 %v952, %v1158
      %1160 = vmatmul.bf16.gmra.mxu0 %v1079
      %v1161 = vpop.f32.mrf.mxu0
      %v1162 = vadd.f32 %v955, %v1161
      %v1163 = vpop.f32.mrf.mxu0
      %v1164 = vadd.f32 %v957, %v1163
      %1165 = vmatmul.bf16.gmra.mxu0 %v1082
      %v1166 = vpop.f32.mrf.mxu0
      %v1167 = vadd.f32 %v960, %v1166
      %v1168 = vpop.f32.mrf.mxu0
      %v1169 = vadd.f32 %v962, %v1168
      %1170 = vmatmul.bf16.gmra.mxu0 %v1085
      %v1171 = vpop.f32.mrf.mxu0
      %v1172 = vadd.f32 %v965, %v1171
      %v1173 = vpop.f32.mrf.mxu0
      %v1174 = vadd.f32 %v967, %v1173
      %1175 = vmatmul.bf16.gmra.mxu0 %v1088
      %v1176 = vpop.f32.mrf.mxu0
      %v1177 = vadd.f32 %v970, %v1176
      %v1178 = vpop.f32.mrf.mxu0
      %v1179 = vadd.f32 %v972, %v1178
      %1180 = vmatmul.bf16.gmra.mxu0 %v1091
      %v1181 = vpop.f32.mrf.mxu0
      %v1182 = vadd.f32 %v975, %v1181
      %v1183 = vpop.f32.mrf.mxu0
      %v1184 = vadd.f32 %v977, %v1183
      %1185 = vmatmul.bf16.gmra.mxu0 %v1094
      %v1186 = vpop.f32.mrf.mxu0
      %v1187 = vadd.f32 %v980, %v1186
      %v1188 = vpop.f32.mrf.mxu0
      %v1189 = vadd.f32 %v982, %v1188
      %1190 = vmatmul.bf16.gmra.mxu0 %v1097
      %v1191 = vpop.f32.mrf.mxu0
      %v1192 = vadd.f32 %v985, %v1191
      %v1193 = vpop.f32.mrf.mxu0
      %v1194 = vadd.f32 %v987, %v1193
      %1195 = vmatmul.bf16.gmra.mxu0 %v1100
      %v1196 = vpop.f32.mrf.mxu0
      %v1197 = vadd.f32 %v990, %v1196
      %v1198 = vpop.f32.mrf.mxu0
      %v1199 = vadd.f32 %v992, %v1198
      %1200 = vmatmul.bf16.gmra.mxu0 %v1103
      %v1201 = vpop.f32.mrf.mxu0
      %v1202 = vadd.f32 %v995, %v1201
      %v1203 = vpop.f32.mrf.mxu0
      %v1204 = vadd.f32 %v997, %v1203
      %1205 = vmatmul.bf16.gmra.mxu0 %v1106
      %v1206 = vpop.f32.mrf.mxu0
      %v1207 = vadd.f32 %v1000, %v1206
      %v1208 = vpop.f32.mrf.mxu0
      %v1209 = vadd.f32 %v1002, %v1208
      %1210 = vmatmul.bf16.gmra.mxu0 %v1109
      %v1211 = vpop.f32.mrf.mxu0
      %v1212 = vadd.f32 %v1005, %v1211
      %v1213 = vpop.f32.mrf.mxu0
      %v1214 = vadd.f32 %v1007, %v1213
      %1215 = vmatmul.bf16.gmra.mxu0 %v1112
      %v1216 = vpop.f32.mrf.mxu0
      %v1217 = vadd.f32 %v1010, %v1216
      %v1218 = vpop.f32.mrf.mxu0
      %v1219 = vadd.f32 %v1012, %v1218
      %1220 = vmatmul.bf16.gmra.mxu0 %v1115
      %v1221 = vpop.f32.mrf.mxu0
      %v1222 = vadd.f32 %v1015, %v1221
      %v1223 = vpop.f32.mrf.mxu0
      %v1224 = vadd.f32 %v1017, %v1223
      %1225 = vmatmul.bf16.gmra.mxu0 %v1118
      %v1226 = vpop.f32.mrf.mxu0
      %v1227 = vadd.f32 %v1020, %v1226
      %v1228 = vpop.f32.mrf.mxu0
      %v1229 = vadd.f32 %v1022, %v1228
      %1230 = vmatmul.bf16.gmra.mxu0 %v1121
      %v1231 = vpop.f32.mrf.mxu0
      %v1232 = vadd.f32 %v1025, %v1231
      %v1233 = vpop.f32.mrf.mxu0
      %v1234 = vadd.f32 %v1027, %v1233
      %1235 = vmatmul.bf16.gmra.mxu0 %v1124
      %v1236 = vpop.f32.mrf.mxu0
      %v1237 = vadd.f32 %v1030, %v1236
      %v1238 = vpop.f32.mrf.mxu0
      %v1239 = vadd.f32 %v1032, %v1238
      %1240 = vmatmul.bf16.gmra.mxu0 %v1127
      %v1241 = vpop.f32.mrf.mxu0
      %v1242 = vadd.f32 %v1035, %v1241
      %v1243 = vpop.f32.mrf.mxu0
      %v1244 = vadd.f32 %v1037, %v1243
      %1245 = vmatmul.bf16.gmra.mxu0 %v1130
      %v1246 = vpop.f32.mrf.mxu0
      %v1247 = vadd.f32 %v1040, %v1246
      %v1248 = vpop.f32.mrf.mxu0
      %v1249 = vadd.f32 %v1042, %v1248
      %1250 = vmatmul.bf16.gmra.mxu0 %v1133
      %v1251 = vpop.f32.mrf.mxu0
      %v1252 = vadd.f32 %v1045, %v1251
      %v1253 = vpop.f32.mrf.mxu0
      %v1254 = vadd.f32 %v1047, %v1253
      %1255 = vmatmul.bf16.gmra.mxu0 %v1136
      %v1256 = vpop.f32.mrf.mxu0
      %v1257 = vadd.f32 %v1050, %v1256
      %v1258 = vpop.f32.mrf.mxu0
      %v1259 = vadd.f32 %v1052, %v1258
      %1260 = vmatmul.bf16.gmra.mxu0 %v1139
      %v1261 = vpop.f32.mrf.mxu0
      %v1262 = vadd.f32 %v1055, %v1261
      %v1263 = vpop.f32.mrf.mxu0
      %v1264 = vadd.f32 %v1057, %v1263
      %1265 = vmatmul.bf16.gmra.mxu0 %v1142
      %v1266 = vpop.f32.mrf.mxu0
      %v1267 = vadd.f32 %v1060, %v1266
      %v1268 = vpop.f32.mrf.mxu0
      %v1269 = vadd.f32 %v1062, %v1268
      %1270 = vmatmul.bf16.gmra.mxu0 %v1145
      %v1271 = vpop.f32.mrf.mxu0
      %v1272 = vadd.f32 %v1065, %v1271
      %v1273 = vpop.f32.mrf.mxu0
      %v1274 = vadd.f32 %v1067, %v1273
      %1275 = vdwg.mxu0
      %v1276 = vld [vmem:[#allocation2 + $0x2] sm:$0xff]
      %v1277 = vld [vmem:[#allocation2 + $0xa] sm:$0xff]
      %v1278 = vld [vmem:[#allocation2 + $0x12] sm:$0xff]
      %v1279 = vld [vmem:[#allocation2 + $0x1a] sm:$0xff]
      %v1280 = vld [vmem:[#allocation2 + $0x22] sm:$0xff]
      %v1281 = vld [vmem:[#allocation2 + $0x2a] sm:$0xff]
      %v1282 = vld [vmem:[#allocation2 + $0x32] sm:$0xff]
      %v1283 = vld [vmem:[#allocation2 + $0x3a] sm:$0xff]
      %v1284 = vld [vmem:[#allocation2 + $0x42] sm:$0xff]
      %v1285 = vld [vmem:[#allocation2 + $0x4a] sm:$0xff]
      %v1286 = vld [vmem:[#allocation2 + $0x52] sm:$0xff]
      %v1287 = vld [vmem:[#allocation2 + $0x5a] sm:$0xff]
      %v1288 = vld [vmem:[#allocation2 + $0x62] sm:$0xff]
      %v1289 = vld [vmem:[#allocation2 + $0x6a] sm:$0xff]
      %v1290 = vld [vmem:[#allocation2 + $0x72] sm:$0xff]
      %v1291 = vld [vmem:[#allocation2 + $0x7a] sm:$0xff]
      %v1292 = vld [vmem:[#allocation2 + $0x82] sm:$0xff]
      %v1293 = vld [vmem:[#allocation2 + $0x8a] sm:$0xff]
      %v1294 = vld [vmem:[#allocation2 + $0x92] sm:$0xff]
      %v1295 = vld [vmem:[#allocation2 + $0x9a] sm:$0xff]
      %v1296 = vld [vmem:[#allocation2 + $0xa2] sm:$0xff]
      %v1297 = vld [vmem:[#allocation2 + $0xaa] sm:$0xff]
      %v1298 = vld [vmem:[#allocation2 + $0xb2] sm:$0xff]
      %v1299 = vld [vmem:[#allocation2 + $0xba] sm:$0xff]
      %v1300 = vld [vmem:[#allocation2 + $0xc2] sm:$0xff]
      %v1301 = vld [vmem:[#allocation2 + $0xca] sm:$0xff]
      %v1302 = vld [vmem:[#allocation2 + $0xd2] sm:$0xff]
      %v1303 = vld [vmem:[#allocation2 + $0xda] sm:$0xff]
      %v1304 = vld [vmem:[#allocation2 + $0xe2] sm:$0xff]
      %v1305 = vld [vmem:[#allocation2 + $0xea] sm:$0xff]
      %v1306 = vld [vmem:[#allocation2 + $0xf2] sm:$0xff]
      %v1307 = vld [vmem:[#allocation2 + $0xfa] sm:$0xff]
      %v1308 = vld [vmem:[#allocation2 + $0x102] sm:$0xff]
      %v1309 = vld [vmem:[#allocation2 + $0x10a] sm:$0xff]
      %v1310 = vld [vmem:[#allocation2 + $0x112] sm:$0xff]
      %v1311 = vld [vmem:[#allocation2 + $0x11a] sm:$0xff]
      %v1312 = vld [vmem:[#allocation2 + $0x122] sm:$0xff]
      %v1313 = vld [vmem:[#allocation2 + $0x12a] sm:$0xff]
      %v1314 = vld [vmem:[#allocation2 + $0x132] sm:$0xff]
      %v1315 = vld [vmem:[#allocation2 + $0x13a] sm:$0xff]
      %v1316 = vld [vmem:[#allocation2 + $0x142] sm:$0xff]
      %v1317 = vld [vmem:[#allocation2 + $0x14a] sm:$0xff]
      %v1318 = vld [vmem:[#allocation2 + $0x152] sm:$0xff]
      %v1319 = vld [vmem:[#allocation2 + $0x15a] sm:$0xff]
      %v1320 = vld [vmem:[#allocation2 + $0x162] sm:$0xff]
      %v1321 = vld [vmem:[#allocation2 + $0x16a] sm:$0xff]
      %v1322 = vld [vmem:[#allocation2 + $0x172] sm:$0xff]
      %v1323 = vld [vmem:[#allocation2 + $0x17a] sm:$0xff]
      %v1324 = vpack.c.bf16 %v1277, %v1276
      %v1325 = vpack.c.bf16 %v1279, %v1278
      %v1326 = vpack.c.bf16 %v1281, %v1280
      %v1327 = vpack.c.bf16 %v1283, %v1282
      %v1328 = vpack.c.bf16 %v1285, %v1284
      %v1329 = vpack.c.bf16 %v1287, %v1286
      %v1330 = vpack.c.bf16 %v1289, %v1288
      %v1331 = vpack.c.bf16 %v1291, %v1290
      %v1332 = vpack.c.bf16 %v1293, %v1292
      %v1333 = vpack.c.bf16 %v1295, %v1294
      %v1334 = vpack.c.bf16 %v1297, %v1296
      %v1335 = vpack.c.bf16 %v1299, %v1298
      %v1336 = vpack.c.bf16 %v1301, %v1300
      %v1337 = vpack.c.bf16 %v1303, %v1302
      %v1338 = vpack.c.bf16 %v1305, %v1304
      %v1339 = vpack.c.bf16 %v1307, %v1306
      %v1340 = vpack.c.bf16 %v1309, %v1308
      %v1341 = vpack.c.bf16 %v1311, %v1310
      %v1342 = vpack.c.bf16 %v1313, %v1312
      %v1343 = vpack.c.bf16 %v1315, %v1314
      %v1344 = vpack.c.bf16 %v1317, %v1316
      %v1345 = vpack.c.bf16 %v1319, %v1318
      %v1346 = vpack.c.bf16 %v1321, %v1320
      %v1347 = vpack.c.bf16 %v1323, %v1322
      %s1348 = scalar_lea.vmem %s2, 16
      %v1349 = vld [vmem:[%s1348] sm:$0xf]
      %v1350 = vld [vmem:[%s1348 + $0x4] sm:$0xf]
      %v1353 = vunpack.c.l.b16 %v1349
      %v1354 = vunpack.c.l.b16 %v1350
      %v1355 = vpack.c.b16 %v1354, %v1353
      %v1358 = vsel %vm654, %v1324, 0
      %v1361 = vsel %vm654, %v1325, 0
      %v1364 = vsel %vm654, %v1326, 0
      %v1367 = vsel %vm654, %v1327, 0
      %v1370 = vsel %vm654, %v1328, 0
      %v1373 = vsel %vm654, %v1329, 0
      %v1376 = vsel %vm654, %v1330, 0
      %v1379 = vsel %vm654, %v1331, 0
      %v1382 = vsel %vm654, %v1332, 0
      %v1385 = vsel %vm654, %v1333, 0
      %v1388 = vsel %vm654, %v1334, 0
      %v1391 = vsel %vm654, %v1335, 0
      %v1394 = vsel %vm654, %v1336, 0
      %v1397 = vsel %vm654, %v1337, 0
      %v1400 = vsel %vm654, %v1338, 0
      %v1403 = vsel %vm654, %v1339, 0
      %v1406 = vsel %vm654, %v1340, 0
      %v1409 = vsel %vm654, %v1341, 0
      %v1412 = vsel %vm654, %v1342, 0
      %v1415 = vsel %vm654, %v1343, 0
      %v1418 = vsel %vm654, %v1344, 0
      %v1421 = vsel %vm654, %v1345, 0
      %v1424 = vsel %vm654, %v1346, 0
      %v1427 = vsel %vm654, %v1347, 0
      %1429 = vmatpush.bf16.msra.mxu0 0
      %1430 = vmatpush.bf16.msra.mxu0 0
      %1431 = vmatpush.bf16.msra.mxu0 0
      %1432 = vmatpush.bf16.msra.mxu0 0
      %1433 = vmatpush.bf16.msra.mxu0 0
      %1434 = vmatpush.bf16.msra.mxu0 0
      %1435 = vmatpush.bf16.msra.mxu0 0
      %1436 = vmatpush.bf16.msra.mxu0 %v1355
      %1437 = vmatmul.bf16.gmra.mxu0 %v1358
      %v1438 = vpop.f32.mrf.mxu0
      %v1439 = vadd.f32 0.0, %v1438
      %v1440 = vpop.f32.mrf.mxu0
      %v1441 = vadd.f32 0.0, %v1440
      %1442 = vmatmul.bf16.gmra.mxu0 %v1361
      %v1443 = vpop.f32.mrf.mxu0
      %v1444 = vadd.f32 0.0, %v1443
      %v1445 = vpop.f32.mrf.mxu0
      %v1446 = vadd.f32 0.0, %v1445
      %1447 = vmatmul.bf16.gmra.mxu0 %v1364
      %v1448 = vpop.f32.mrf.mxu0
      %v1449 = vadd.f32 0.0, %v1448
      %v1450 = vpop.f32.mrf.mxu0
      %v1451 = vadd.f32 0.0, %v1450
      %1452 = vmatmul.bf16.gmra.mxu0 %v1367
      %v1453 = vpop.f32.mrf.mxu0
      %v1454 = vadd.f32 0.0, %v1453
      %v1455 = vpop.f32.mrf.mxu0
      %v1456 = vadd.f32 0.0, %v1455
      %1457 = vmatmul.bf16.gmra.mxu0 %v1370
      %v1458 = vpop.f32.mrf.mxu0
      %v1459 = vadd.f32 0.0, %v1458
      %v1460 = vpop.f32.mrf.mxu0
      %v1461 = vadd.f32 0.0, %v1460
      %1462 = vmatmul.bf16.gmra.mxu0 %v1373
      %v1463 = vpop.f32.mrf.mxu0
      %v1464 = vadd.f32 0.0, %v1463
      %v1465 = vpop.f32.mrf.mxu0
      %v1466 = vadd.f32 0.0, %v1465
      %1467 = vmatmul.bf16.gmra.mxu0 %v1376
      %v1468 = vpop.f32.mrf.mxu0
      %v1469 = vadd.f32 0.0, %v1468
      %v1470 = vpop.f32.mrf.mxu0
      %v1471 = vadd.f32 0.0, %v1470
      %1472 = vmatmul.bf16.gmra.mxu0 %v1379
      %v1473 = vpop.f32.mrf.mxu0
      %v1474 = vadd.f32 0.0, %v1473
      %v1475 = vpop.f32.mrf.mxu0
      %v1476 = vadd.f32 0.0, %v1475
      %1477 = vmatmul.bf16.gmra.mxu0 %v1382
      %v1478 = vpop.f32.mrf.mxu0
      %v1479 = vadd.f32 0.0, %v1478
      %v1480 = vpop.f32.mrf.mxu0
      %v1481 = vadd.f32 0.0, %v1480
      %1482 = vmatmul.bf16.gmra.mxu0 %v1385
      %v1483 = vpop.f32.mrf.mxu0
      %v1484 = vadd.f32 0.0, %v1483
      %v1485 = vpop.f32.mrf.mxu0
      %v1486 = vadd.f32 0.0, %v1485
      %1487 = vmatmul.bf16.gmra.mxu0 %v1388
      %v1488 = vpop.f32.mrf.mxu0
      %v1489 = vadd.f32 0.0, %v1488
      %v1490 = vpop.f32.mrf.mxu0
      %v1491 = vadd.f32 0.0, %v1490
      %1492 = vmatmul.bf16.gmra.mxu0 %v1391
      %v1493 = vpop.f32.mrf.mxu0
      %v1494 = vadd.f32 0.0, %v1493
      %v1495 = vpop.f32.mrf.mxu0
      %v1496 = vadd.f32 0.0, %v1495
      %1497 = vmatmul.bf16.gmra.mxu0 %v1394
      %v1498 = vpop.f32.mrf.mxu0
      %v1499 = vadd.f32 0.0, %v1498
      %v1500 = vpop.f32.mrf.mxu0
      %v1501 = vadd.f32 0.0, %v1500
      %1502 = vmatmul.bf16.gmra.mxu0 %v1397
      %v1503 = vpop.f32.mrf.mxu0
      %v1504 = vadd.f32 0.0, %v1503
      %v1505 = vpop.f32.mrf.mxu0
      %v1506 = vadd.f32 0.0, %v1505
      %1507 = vmatmul.bf16.gmra.mxu0 %v1400
      %v1508 = vpop.f32.mrf.mxu0
      %v1509 = vadd.f32 0.0, %v1508
      %v1510 = vpop.f32.mrf.mxu0
      %v1511 = vadd.f32 0.0, %v1510
      %1512 = vmatmul.bf16.gmra.mxu0 %v1403
      %v1513 = vpop.f32.mrf.mxu0
      %v1514 = vadd.f32 0.0, %v1513
      %v1515 = vpop.f32.mrf.mxu0
      %v1516 = vadd.f32 0.0, %v1515
      %1517 = vmatmul.bf16.gmra.mxu0 %v1406
      %v1518 = vpop.f32.mrf.mxu0
      %v1519 = vadd.f32 0.0, %v1518
      %v1520 = vpop.f32.mrf.mxu0
      %v1521 = vadd.f32 0.0, %v1520
      %1522 = vmatmul.bf16.gmra.mxu0 %v1409
      %v1523 = vpop.f32.mrf.mxu0
      %v1524 = vadd.f32 0.0, %v1523
      %v1525 = vpop.f32.mrf.mxu0
      %v1526 = vadd.f32 0.0, %v1525
      %1527 = vmatmul.bf16.gmra.mxu0 %v1412
      %v1528 = vpop.f32.mrf.mxu0
      %v1529 = vadd.f32 0.0, %v1528
      %v1530 = vpop.f32.mrf.mxu0
      %v1531 = vadd.f32 0.0, %v1530
      %1532 = vmatmul.bf16.gmra.mxu0 %v1415
      %v1533 = vpop.f32.mrf.mxu0
      %v1534 = vadd.f32 0.0, %v1533
      %v1535 = vpop.f32.mrf.mxu0
      %v1536 = vadd.f32 0.0, %v1535
      %1537 = vmatmul.bf16.gmra.mxu0 %v1418
      %v1538 = vpop.f32.mrf.mxu0
      %v1539 = vadd.f32 0.0, %v1538
      %v1540 = vpop.f32.mrf.mxu0
      %v1541 = vadd.f32 0.0, %v1540
      %1542 = vmatmul.bf16.gmra.mxu0 %v1421
      %v1543 = vpop.f32.mrf.mxu0
      %v1544 = vadd.f32 0.0, %v1543
      %v1545 = vpop.f32.mrf.mxu0
      %v1546 = vadd.f32 0.0, %v1545
      %1547 = vmatmul.bf16.gmra.mxu0 %v1424
      %v1548 = vpop.f32.mrf.mxu0
      %v1549 = vadd.f32 0.0, %v1548
      %v1550 = vpop.f32.mrf.mxu0
      %v1551 = vadd.f32 0.0, %v1550
      %1552 = vmatmul.bf16.gmra.mxu0 %v1427
      %v1553 = vpop.f32.mrf.mxu0
      %v1554 = vadd.f32 0.0, %v1553
      %v1555 = vpop.f32.mrf.mxu0
      %v1556 = vadd.f32 0.0, %v1555
      %1557 = vdwg.mxu0
      %v1558 = vadd.f32 %v1157, %v1439
      %v1559 = vadd.f32 %v1159, %v1441
      %v1560 = vadd.f32 %v1162, %v1444
      %v1561 = vadd.f32 %v1164, %v1446
      %v1562 = vadd.f32 %v1167, %v1449
      %v1563 = vadd.f32 %v1169, %v1451
      %v1564 = vadd.f32 %v1172, %v1454
      %v1565 = vadd.f32 %v1174, %v1456
      %v1566 = vadd.f32 %v1177, %v1459
      %v1567 = vadd.f32 %v1179, %v1461
      %v1568 = vadd.f32 %v1182, %v1464
      %v1569 = vadd.f32 %v1184, %v1466
      %v1570 = vadd.f32 %v1187, %v1469
      %v1571 = vadd.f32 %v1189, %v1471
      %v1572 = vadd.f32 %v1192, %v1474
      %v1573 = vadd.f32 %v1194, %v1476
      %v1574 = vadd.f32 %v1197, %v1479
      %v1575 = vadd.f32 %v1199, %v1481
      %v1576 = vadd.f32 %v1202, %v1484
      %v1577 = vadd.f32 %v1204, %v1486
      %v1578 = vadd.f32 %v1207, %v1489
      %v1579 = vadd.f32 %v1209, %v1491
      %v1580 = vadd.f32 %v1212, %v1494
      %v1581 = vadd.f32 %v1214, %v1496
      %v1582 = vadd.f32 %v1217, %v1499
      %v1583 = vadd.f32 %v1219, %v1501
      %v1584 = vadd.f32 %v1222, %v1504
      %v1585 = vadd.f32 %v1224, %v1506
      %v1586 = vadd.f32 %v1227, %v1509
      %v1587 = vadd.f32 %v1229, %v1511
      %v1588 = vadd.f32 %v1232, %v1514
      %v1589 = vadd.f32 %v1234, %v1516
      %v1590 = vadd.f32 %v1237, %v1519
      %v1591 = vadd.f32 %v1239, %v1521
      %v1592 = vadd.f32 %v1242, %v1524
      %v1593 = vadd.f32 %v1244, %v1526
      %v1594 = vadd.f32 %v1247, %v1529
      %v1595 = vadd.f32 %v1249, %v1531
      %v1596 = vadd.f32 %v1252, %v1534
      %v1597 = vadd.f32 %v1254, %v1536
      %v1598 = vadd.f32 %v1257, %v1539
      %v1599 = vadd.f32 %v1259, %v1541
      %v1600 = vadd.f32 %v1262, %v1544
      %v1601 = vadd.f32 %v1264, %v1546
      %v1602 = vadd.f32 %v1267, %v1549
      %v1603 = vadd.f32 %v1269, %v1551
      %v1604 = vadd.f32 %v1272, %v1554
      %v1605 = vadd.f32 %v1274, %v1556
      %v1606 = vld [vmem:[#allocation2 + $0x18] sm:$0xff]
      %v1607 = vld [vmem:[#allocation2 + $0x20] sm:$0xff]
      %v1608 = vld [vmem:[#allocation2 + $0x28] sm:$0xff]
      %v1609 = vld [vmem:[#allocation2 + $0x30] sm:$0xff]
      %v1610 = vld [vmem:[#allocation2 + $0x38] sm:$0xff]
      %v1611 = vld [vmem:[#allocation2 + $0x40] sm:$0xff]
      %v1612 = vld [vmem:[#allocation2 + $0x48] sm:$0xff]
      %v1613 = vld [vmem:[#allocation2 + $0x50] sm:$0xff]
      %v1614 = vld [vmem:[#allocation2 + $0x58] sm:$0xff]
      %v1615 = vld [vmem:[#allocation2 + $0x60] sm:$0xff]
      %v1616 = vld [vmem:[#allocation2 + $0x68] sm:$0xff]
      %v1617 = vld [vmem:[#allocation2 + $0x70] sm:$0xff]
      %v1618 = vld [vmem:[#allocation2 + $0x78] sm:$0xff]
      %v1619 = vld [vmem:[#allocation2 + $0x80] sm:$0xff]
      %v1620 = vld [vmem:[#allocation2 + $0x88] sm:$0xff]
      %v1621 = vld [vmem:[#allocation2 + $0x90] sm:$0xff]
      %v1622 = vld [vmem:[#allocation2 + $0x98] sm:$0xff]
      %v1623 = vld [vmem:[#allocation2 + $0xa0] sm:$0xff]
      %v1624 = vld [vmem:[#allocation2 + $0xa8] sm:$0xff]
      %v1625 = vld [vmem:[#allocation2 + $0xb0] sm:$0xff]
      %v1626 = vld [vmem:[#allocation2 + $0xb8] sm:$0xff]
      %v1627 = vld [vmem:[#allocation2 + $0xc0] sm:$0xff]
      %v1628 = vld [vmem:[#allocation2 + $0xc8] sm:$0xff]
      %v1629 = vld [vmem:[#allocation2 + $0xd0] sm:$0xff]
      %v1630 = vld [vmem:[#allocation2 + $0xd8] sm:$0xff]
      %v1631 = vld [vmem:[#allocation2 + $0xe0] sm:$0xff]
      %v1632 = vld [vmem:[#allocation2 + $0xe8] sm:$0xff]
      %v1633 = vld [vmem:[#allocation2 + $0xf0] sm:$0xff]
      %v1634 = vld [vmem:[#allocation2 + $0xf8] sm:$0xff]
      %v1635 = vld [vmem:[#allocation2 + $0x100] sm:$0xff]
      %v1636 = vld [vmem:[#allocation2 + $0x108] sm:$0xff]
      %v1637 = vld [vmem:[#allocation2 + $0x110] sm:$0xff]
      %v1638 = vld [vmem:[#allocation2 + $0x118] sm:$0xff]
      %v1639 = vld [vmem:[#allocation2 + $0x120] sm:$0xff]
      %v1640 = vld [vmem:[#allocation2 + $0x128] sm:$0xff]
      %v1641 = vld [vmem:[#allocation2 + $0x130] sm:$0xff]
      %v1642 = vld [vmem:[#allocation2 + $0x138] sm:$0xff]
      %v1643 = vld [vmem:[#allocation2 + $0x140] sm:$0xff]
      %v1644 = vld [vmem:[#allocation2 + $0x148] sm:$0xff]
      %v1645 = vld [vmem:[#allocation2 + $0x150] sm:$0xff]
      %v1646 = vld [vmem:[#allocation2 + $0x158] sm:$0xff]
      %v1647 = vld [vmem:[#allocation2 + $0x160] sm:$0xff]
      %v1648 = vld [vmem:[#allocation2 + $0x168] sm:$0xff]
      %v1649 = vld [vmem:[#allocation2 + $0x170] sm:$0xff]
      %v1650 = vld [vmem:[#allocation2 + $0x178] sm:$0xff]
      %v1651 = vld [vmem:[#allocation2 + $0x180] sm:$0xff]
      %v1652 = vld [vmem:[#allocation2 + $0x188] sm:$0xff]
      %v1653 = vld [vmem:[#allocation2 + $0x190] sm:$0xff]
      %v1654 = vpack.c.bf16 %v1607, %v1606
      %v1655 = vpack.c.bf16 %v1609, %v1608
      %v1656 = vpack.c.bf16 %v1611, %v1610
      %v1657 = vpack.c.bf16 %v1613, %v1612
      %v1658 = vpack.c.bf16 %v1615, %v1614
      %v1659 = vpack.c.bf16 %v1617, %v1616
      %v1660 = vpack.c.bf16 %v1619, %v1618
      %v1661 = vpack.c.bf16 %v1621, %v1620
      %v1662 = vpack.c.bf16 %v1623, %v1622
      %v1663 = vpack.c.bf16 %v1625, %v1624
      %v1664 = vpack.c.bf16 %v1627, %v1626
      %v1665 = vpack.c.bf16 %v1629, %v1628
      %v1666 = vpack.c.bf16 %v1631, %v1630
      %v1667 = vpack.c.bf16 %v1633, %v1632
      %v1668 = vpack.c.bf16 %v1635, %v1634
      %v1669 = vpack.c.bf16 %v1637, %v1636
      %v1670 = vpack.c.bf16 %v1639, %v1638
      %v1671 = vpack.c.bf16 %v1641, %v1640
      %v1672 = vpack.c.bf16 %v1643, %v1642
      %v1673 = vpack.c.bf16 %v1645, %v1644
      %v1674 = vpack.c.bf16 %v1647, %v1646
      %v1675 = vpack.c.bf16 %v1649, %v1648
      %v1676 = vpack.c.bf16 %v1651, %v1650
      %v1677 = vpack.c.bf16 %v1653, %v1652
      %s1678 = scalar_lea.vmem %s2, 24
      %v1679 = vld [vmem:[%s1678] sm:$0xf]
      %v1680 = vld [vmem:[%s1678 + $0x4] sm:$0xf]
      %v1683 = vunpack.c.l.b16 %v1679
      %v1684 = vunpack.c.l.b16 %v1680
      %v1685 = vpack.c.b16 %v1684, %v1683
      %v1688 = vsel %vm654, %v1654, 0
      %v1691 = vsel %vm654, %v1655, 0
      %v1694 = vsel %vm654, %v1656, 0
      %v1697 = vsel %vm654, %v1657, 0
      %v1700 = vsel %vm654, %v1658, 0
      %v1703 = vsel %vm654, %v1659, 0
      %v1706 = vsel %vm654, %v1660, 0
      %v1709 = vsel %vm654, %v1661, 0
      %v1712 = vsel %vm654, %v1662, 0
      %v1715 = vsel %vm654, %v1663, 0
      %v1718 = vsel %vm654, %v1664, 0
      %v1721 = vsel %vm654, %v1665, 0
      %v1724 = vsel %vm654, %v1666, 0
      %v1727 = vsel %vm654, %v1667, 0
      %v1730 = vsel %vm654, %v1668, 0
      %v1733 = vsel %vm654, %v1669, 0
      %v1736 = vsel %vm654, %v1670, 0
      %v1739 = vsel %vm654, %v1671, 0
      %v1742 = vsel %vm654, %v1672, 0
      %v1745 = vsel %vm654, %v1673, 0
      %v1748 = vsel %vm654, %v1674, 0
      %v1751 = vsel %vm654, %v1675, 0
      %v1754 = vsel %vm654, %v1676, 0
      %v1757 = vsel %vm654, %v1677, 0
      %1759 = vmatpush.bf16.msra.mxu0 0
      %1760 = vmatpush.bf16.msra.mxu0 0
      %1761 = vmatpush.bf16.msra.mxu0 0
      %1762 = vmatpush.bf16.msra.mxu0 0
      %1763 = vmatpush.bf16.msra.mxu0 0
      %1764 = vmatpush.bf16.msra.mxu0 0
      %1765 = vmatpush.bf16.msra.mxu0 0
      %1766 = vmatpush.bf16.msra.mxu0 %v1685
      %1767 = vmatmul.bf16.gmra.mxu0 %v1688
      %v1768 = vpop.f32.mrf.mxu0
      %v1769 = vadd.f32 0.0, %v1768
      %v1770 = vpop.f32.mrf.mxu0
      %v1771 = vadd.f32 0.0, %v1770
      %1772 = vmatmul.bf16.gmra.mxu0 %v1691
      %v1773 = vpop.f32.mrf.mxu0
      %v1774 = vadd.f32 0.0, %v1773
      %v1775 = vpop.f32.mrf.mxu0
      %v1776 = vadd.f32 0.0, %v1775
      %1777 = vmatmul.bf16.gmra.mxu0 %v1694
      %v1778 = vpop.f32.mrf.mxu0
      %v1779 = vadd.f32 0.0, %v1778
      %v1780 = vpop.f32.mrf.mxu0
      %v1781 = vadd.f32 0.0, %v1780
      %1782 = vmatmul.bf16.gmra.mxu0 %v1697
      %v1783 = vpop.f32.mrf.mxu0
      %v1784 = vadd.f32 0.0, %v1783
      %v1785 = vpop.f32.mrf.mxu0
      %v1786 = vadd.f32 0.0, %v1785
      %1787 = vmatmul.bf16.gmra.mxu0 %v1700
      %v1788 = vpop.f32.mrf.mxu0
      %v1789 = vadd.f32 0.0, %v1788
      %v1790 = vpop.f32.mrf.mxu0
      %v1791 = vadd.f32 0.0, %v1790
      %1792 = vmatmul.bf16.gmra.mxu0 %v1703
      %v1793 = vpop.f32.mrf.mxu0
      %v1794 = vadd.f32 0.0, %v1793
      %v1795 = vpop.f32.mrf.mxu0
      %v1796 = vadd.f32 0.0, %v1795
      %1797 = vmatmul.bf16.gmra.mxu0 %v1706
      %v1798 = vpop.f32.mrf.mxu0
      %v1799 = vadd.f32 0.0, %v1798
      %v1800 = vpop.f32.mrf.mxu0
      %v1801 = vadd.f32 0.0, %v1800
      %1802 = vmatmul.bf16.gmra.mxu0 %v1709
      %v1803 = vpop.f32.mrf.mxu0
      %v1804 = vadd.f32 0.0, %v1803
      %v1805 = vpop.f32.mrf.mxu0
      %v1806 = vadd.f32 0.0, %v1805
      %1807 = vmatmul.bf16.gmra.mxu0 %v1712
      %v1808 = vpop.f32.mrf.mxu0
      %v1809 = vadd.f32 0.0, %v1808
      %v1810 = vpop.f32.mrf.mxu0
      %v1811 = vadd.f32 0.0, %v1810
      %1812 = vmatmul.bf16.gmra.mxu0 %v1715
      %v1813 = vpop.f32.mrf.mxu0
      %v1814 = vadd.f32 0.0, %v1813
      %v1815 = vpop.f32.mrf.mxu0
      %v1816 = vadd.f32 0.0, %v1815
      %1817 = vmatmul.bf16.gmra.mxu0 %v1718
      %v1818 = vpop.f32.mrf.mxu0
      %v1819 = vadd.f32 0.0, %v1818
      %v1820 = vpop.f32.mrf.mxu0
      %v1821 = vadd.f32 0.0, %v1820
      %1822 = vmatmul.bf16.gmra.mxu0 %v1721
      %v1823 = vpop.f32.mrf.mxu0
      %v1824 = vadd.f32 0.0, %v1823
      %v1825 = vpop.f32.mrf.mxu0
      %v1826 = vadd.f32 0.0, %v1825
      %1827 = vmatmul.bf16.gmra.mxu0 %v1724
      %v1828 = vpop.f32.mrf.mxu0
      %v1829 = vadd.f32 0.0, %v1828
      %v1830 = vpop.f32.mrf.mxu0
      %v1831 = vadd.f32 0.0, %v1830
      %1832 = vmatmul.bf16.gmra.mxu0 %v1727
      %v1833 = vpop.f32.mrf.mxu0
      %v1834 = vadd.f32 0.0, %v1833
      %v1835 = vpop.f32.mrf.mxu0
      %v1836 = vadd.f32 0.0, %v1835
      %1837 = vmatmul.bf16.gmra.mxu0 %v1730
      %v1838 = vpop.f32.mrf.mxu0
      %v1839 = vadd.f32 0.0, %v1838
      %v1840 = vpop.f32.mrf.mxu0
      %v1841 = vadd.f32 0.0, %v1840
      %1842 = vmatmul.bf16.gmra.mxu0 %v1733
      %v1843 = vpop.f32.mrf.mxu0
      %v1844 = vadd.f32 0.0, %v1843
      %v1845 = vpop.f32.mrf.mxu0
      %v1846 = vadd.f32 0.0, %v1845
      %1847 = vmatmul.bf16.gmra.mxu0 %v1736
      %v1848 = vpop.f32.mrf.mxu0
      %v1849 = vadd.f32 0.0, %v1848
      %v1850 = vpop.f32.mrf.mxu0
      %v1851 = vadd.f32 0.0, %v1850
      %1852 = vmatmul.bf16.gmra.mxu0 %v1739
      %v1853 = vpop.f32.mrf.mxu0
      %v1854 = vadd.f32 0.0, %v1853
      %v1855 = vpop.f32.mrf.mxu0
      %v1856 = vadd.f32 0.0, %v1855
      %1857 = vmatmul.bf16.gmra.mxu0 %v1742
      %v1858 = vpop.f32.mrf.mxu0
      %v1859 = vadd.f32 0.0, %v1858
      %v1860 = vpop.f32.mrf.mxu0
      %v1861 = vadd.f32 0.0, %v1860
      %1862 = vmatmul.bf16.gmra.mxu0 %v1745
      %v1863 = vpop.f32.mrf.mxu0
      %v1864 = vadd.f32 0.0, %v1863
      %v1865 = vpop.f32.mrf.mxu0
      %v1866 = vadd.f32 0.0, %v1865
      %1867 = vmatmul.bf16.gmra.mxu0 %v1748
      %v1868 = vpop.f32.mrf.mxu0
      %v1869 = vadd.f32 0.0, %v1868
      %v1870 = vpop.f32.mrf.mxu0
      %v1871 = vadd.f32 0.0, %v1870
      %1872 = vmatmul.bf16.gmra.mxu0 %v1751
      %v1873 = vpop.f32.mrf.mxu0
      %v1874 = vadd.f32 0.0, %v1873
      %v1875 = vpop.f32.mrf.mxu0
      %v1876 = vadd.f32 0.0, %v1875
      %1877 = vmatmul.bf16.gmra.mxu0 %v1754
      %v1878 = vpop.f32.mrf.mxu0
      %v1879 = vadd.f32 0.0, %v1878
      %v1880 = vpop.f32.mrf.mxu0
      %v1881 = vadd.f32 0.0, %v1880
      %1882 = vmatmul.bf16.gmra.mxu0 %v1757
      %v1883 = vpop.f32.mrf.mxu0
      %v1884 = vadd.f32 0.0, %v1883
      %v1885 = vpop.f32.mrf.mxu0
      %v1886 = vadd.f32 0.0, %v1885
      %1887 = vdwg.mxu0
      %v1888 = vadd.f32 %v1558, %v1769
      %v1889 = vadd.f32 %v1559, %v1771
      %v1890 = vadd.f32 %v1560, %v1774
      %v1891 = vadd.f32 %v1561, %v1776
      %v1892 = vadd.f32 %v1562, %v1779
      %v1893 = vadd.f32 %v1563, %v1781
      %v1894 = vadd.f32 %v1564, %v1784
      %v1895 = vadd.f32 %v1565, %v1786
      %v1896 = vadd.f32 %v1566, %v1789
      %v1897 = vadd.f32 %v1567, %v1791
      %v1898 = vadd.f32 %v1568, %v1794
      %v1899 = vadd.f32 %v1569, %v1796
      %v1900 = vadd.f32 %v1570, %v1799
      %v1901 = vadd.f32 %v1571, %v1801
      %v1902 = vadd.f32 %v1572, %v1804
      %v1903 = vadd.f32 %v1573, %v1806
      %v1904 = vadd.f32 %v1574, %v1809
      %v1905 = vadd.f32 %v1575, %v1811
      %v1906 = vadd.f32 %v1576, %v1814
      %v1907 = vadd.f32 %v1577, %v1816
      %v1908 = vadd.f32 %v1578, %v1819
      %v1909 = vadd.f32 %v1579, %v1821
      %v1910 = vadd.f32 %v1580, %v1824
      %v1911 = vadd.f32 %v1581, %v1826
      %v1912 = vadd.f32 %v1582, %v1829
      %v1913 = vadd.f32 %v1583, %v1831
      %v1914 = vadd.f32 %v1584, %v1834
      %v1915 = vadd.f32 %v1585, %v1836
      %v1916 = vadd.f32 %v1586, %v1839
      %v1917 = vadd.f32 %v1587, %v1841
      %v1918 = vadd.f32 %v1588, %v1844
      %v1919 = vadd.f32 %v1589, %v1846
      %v1920 = vadd.f32 %v1590, %v1849
      %v1921 = vadd.f32 %v1591, %v1851
      %v1922 = vadd.f32 %v1592, %v1854
      %v1923 = vadd.f32 %v1593, %v1856
      %v1924 = vadd.f32 %v1594, %v1859
      %v1925 = vadd.f32 %v1595, %v1861
      %v1926 = vadd.f32 %v1596, %v1864
      %v1927 = vadd.f32 %v1597, %v1866
      %v1928 = vadd.f32 %v1598, %v1869
      %v1929 = vadd.f32 %v1599, %v1871
      %v1930 = vadd.f32 %v1600, %v1874
      %v1931 = vadd.f32 %v1601, %v1876
      %v1932 = vadd.f32 %v1602, %v1879
      %v1933 = vadd.f32 %v1603, %v1881
      %v1934 = vadd.f32 %v1604, %v1884
      %v1935 = vadd.f32 %v1605, %v1886
      %v1936 = vld [vmem:[#allocation2 + $0x19] sm:$0xff]
      %v1937 = vld [vmem:[#allocation2 + $0x21] sm:$0xff]
      %v1938 = vld [vmem:[#allocation2 + $0x29] sm:$0xff]
      %v1939 = vld [vmem:[#allocation2 + $0x31] sm:$0xff]
      %v1940 = vld [vmem:[#allocation2 + $0x39] sm:$0xff]
      %v1941 = vld [vmem:[#allocation2 + $0x41] sm:$0xff]
      %v1942 = vld [vmem:[#allocation2 + $0x49] sm:$0xff]
      %v1943 = vld [vmem:[#allocation2 + $0x51] sm:$0xff]
      %v1944 = vld [vmem:[#allocation2 + $0x59] sm:$0xff]
      %v1945 = vld [vmem:[#allocation2 + $0x61] sm:$0xff]
      %v1946 = vld [vmem:[#allocation2 + $0x69] sm:$0xff]
      %v1947 = vld [vmem:[#allocation2 + $0x71] sm:$0xff]
      %v1948 = vld [vmem:[#allocation2 + $0x79] sm:$0xff]
      %v1949 = vld [vmem:[#allocation2 + $0x81] sm:$0xff]
      %v1950 = vld [vmem:[#allocation2 + $0x89] sm:$0xff]
      %v1951 = vld [vmem:[#allocation2 + $0x91] sm:$0xff]
      %v1952 = vld [vmem:[#allocation2 + $0x99] sm:$0xff]
      %v1953 = vld [vmem:[#allocation2 + $0xa1] sm:$0xff]
      %v1954 = vld [vmem:[#allocation2 + $0xa9] sm:$0xff]
      %v1955 = vld [vmem:[#allocation2 + $0xb1] sm:$0xff]
      %v1956 = vld [vmem:[#allocation2 + $0xb9] sm:$0xff]
      %v1957 = vld [vmem:[#allocation2 + $0xc1] sm:$0xff]
      %v1958 = vld [vmem:[#allocation2 + $0xc9] sm:$0xff]
      %v1959 = vld [vmem:[#allocation2 + $0xd1] sm:$0xff]
      %v1960 = vld [vmem:[#allocation2 + $0xd9] sm:$0xff]
      %v1961 = vld [vmem:[#allocation2 + $0xe1] sm:$0xff]
      %v1962 = vld [vmem:[#allocation2 + $0xe9] sm:$0xff]
      %v1963 = vld [vmem:[#allocation2 + $0xf1] sm:$0xff]
      %v1964 = vld [vmem:[#allocation2 + $0xf9] sm:$0xff]
      %v1965 = vld [vmem:[#allocation2 + $0x101] sm:$0xff]
      %v1966 = vld [vmem:[#allocation2 + $0x109] sm:$0xff]
      %v1967 = vld [vmem:[#allocation2 + $0x111] sm:$0xff]
      %v1968 = vld [vmem:[#allocation2 + $0x119] sm:$0xff]
      %v1969 = vld [vmem:[#allocation2 + $0x121] sm:$0xff]
      %v1970 = vld [vmem:[#allocation2 + $0x129] sm:$0xff]
      %v1971 = vld [vmem:[#allocation2 + $0x131] sm:$0xff]
      %v1972 = vld [vmem:[#allocation2 + $0x139] sm:$0xff]
      %v1973 = vld [vmem:[#allocation2 + $0x141] sm:$0xff]
      %v1974 = vld [vmem:[#allocation2 + $0x149] sm:$0xff]
      %v1975 = vld [vmem:[#allocation2 + $0x151] sm:$0xff]
      %v1976 = vld [vmem:[#allocation2 + $0x159] sm:$0xff]
      %v1977 = vld [vmem:[#allocation2 + $0x161] sm:$0xff]
      %v1978 = vld [vmem:[#allocation2 + $0x169] sm:$0xff]
      %v1979 = vld [vmem:[#allocation2 + $0x171] sm:$0xff]
      %v1980 = vld [vmem:[#allocation2 + $0x179] sm:$0xff]
      %v1981 = vld [vmem:[#allocation2 + $0x181] sm:$0xff]
      %v1982 = vld [vmem:[#allocation2 + $0x189] sm:$0xff]
      %v1983 = vld [vmem:[#allocation2 + $0x191] sm:$0xff]
      %v1984 = vpack.c.bf16 %v1937, %v1936
      %v1985 = vpack.c.bf16 %v1939, %v1938
      %v1986 = vpack.c.bf16 %v1941, %v1940
      %v1987 = vpack.c.bf16 %v1943, %v1942
      %v1988 = vpack.c.bf16 %v1945, %v1944
      %v1989 = vpack.c.bf16 %v1947, %v1946
      %v1990 = vpack.c.bf16 %v1949, %v1948
      %v1991 = vpack.c.bf16 %v1951, %v1950
      %v1992 = vpack.c.bf16 %v1953, %v1952
      %v1993 = vpack.c.bf16 %v1955, %v1954
      %v1994 = vpack.c.bf16 %v1957, %v1956
      %v1995 = vpack.c.bf16 %v1959, %v1958
      %v1996 = vpack.c.bf16 %v1961, %v1960
      %v1997 = vpack.c.bf16 %v1963, %v1962
      %v1998 = vpack.c.bf16 %v1965, %v1964
      %v1999 = vpack.c.bf16 %v1967, %v1966
      %v2000 = vpack.c.bf16 %v1969, %v1968
      %v2001 = vpack.c.bf16 %v1971, %v1970
      %v2002 = vpack.c.bf16 %v1973, %v1972
      %v2003 = vpack.c.bf16 %v1975, %v1974
      %v2004 = vpack.c.bf16 %v1977, %v1976
      %v2005 = vpack.c.bf16 %v1979, %v1978
      %v2006 = vpack.c.bf16 %v1981, %v1980
      %v2007 = vpack.c.bf16 %v1983, %v1982
      %s2008 = scalar_lea.vmem %s2, 32
      %v2009 = vld [vmem:[%s2008] sm:$0xf]
      %v2010 = vld [vmem:[%s2008 + $0x4] sm:$0xf]
      %v2013 = vunpack.c.l.b16 %v2009
      %v2014 = vunpack.c.l.b16 %v2010
      %v2015 = vpack.c.b16 %v2014, %v2013
      %v2018 = vsel %vm654, %v1984, 0
      %v2021 = vsel %vm654, %v1985, 0
      %v2024 = vsel %vm654, %v1986, 0
      %v2027 = vsel %vm654, %v1987, 0
      %v2030 = vsel %vm654, %v1988, 0
      %v2033 = vsel %vm654, %v1989, 0
      %v2036 = vsel %vm654, %v1990, 0
      %v2039 = vsel %vm654, %v1991, 0
      %v2042 = vsel %vm654, %v1992, 0
      %v2045 = vsel %vm654, %v1993, 0
      %v2048 = vsel %vm654, %v1994, 0
      %v2051 = vsel %vm654, %v1995, 0
      %v2054 = vsel %vm654, %v1996, 0
      %v2057 = vsel %vm654, %v1997, 0
      %v2060 = vsel %vm654, %v1998, 0
      %v2063 = vsel %vm654, %v1999, 0
      %v2066 = vsel %vm654, %v2000, 0
      %v2069 = vsel %vm654, %v2001, 0
      %v2072 = vsel %vm654, %v2002, 0
      %v2075 = vsel %vm654, %v2003, 0
      %v2078 = vsel %vm654, %v2004, 0
      %v2081 = vsel %vm654, %v2005, 0
      %v2084 = vsel %vm654, %v2006, 0
      %v2087 = vsel %vm654, %v2007, 0
      %2089 = vmatpush.bf16.msra.mxu0 0
      %2090 = vmatpush.bf16.msra.mxu0 0
      %2091 = vmatpush.bf16.msra.mxu0 0
      %2092 = vmatpush.bf16.msra.mxu0 0
      %2093 = vmatpush.bf16.msra.mxu0 0
      %2094 = vmatpush.bf16.msra.mxu0 0
      %2095 = vmatpush.bf16.msra.mxu0 0
      %2096 = vmatpush.bf16.msra.mxu0 %v2015
      %2097 = vmatmul.bf16.gmra.mxu0 %v2018
      %v2098 = vpop.f32.mrf.mxu0
      %v2099 = vadd.f32 0.0, %v2098
      %v2100 = vpop.f32.mrf.mxu0
      %v2101 = vadd.f32 0.0, %v2100
      %2102 = vmatmul.bf16.gmra.mxu0 %v2021
      %v2103 = vpop.f32.mrf.mxu0
      %v2104 = vadd.f32 0.0, %v2103
      %v2105 = vpop.f32.mrf.mxu0
      %v2106 = vadd.f32 0.0, %v2105
      %2107 = vmatmul.bf16.gmra.mxu0 %v2024
      %v2108 = vpop.f32.mrf.mxu0
      %v2109 = vadd.f32 0.0, %v2108
      %v2110 = vpop.f32.mrf.mxu0
      %v2111 = vadd.f32 0.0, %v2110
      %2112 = vmatmul.bf16.gmra.mxu0 %v2027
      %v2113 = vpop.f32.mrf.mxu0
      %v2114 = vadd.f32 0.0, %v2113
      %v2115 = vpop.f32.mrf.mxu0
      %v2116 = vadd.f32 0.0, %v2115
      %2117 = vmatmul.bf16.gmra.mxu0 %v2030
      %v2118 = vpop.f32.mrf.mxu0
      %v2119 = vadd.f32 0.0, %v2118
      %v2120 = vpop.f32.mrf.mxu0
      %v2121 = vadd.f32 0.0, %v2120
      %2122 = vmatmul.bf16.gmra.mxu0 %v2033
      %v2123 = vpop.f32.mrf.mxu0
      %v2124 = vadd.f32 0.0, %v2123
      %v2125 = vpop.f32.mrf.mxu0
      %v2126 = vadd.f32 0.0, %v2125
      %2127 = vmatmul.bf16.gmra.mxu0 %v2036
      %v2128 = vpop.f32.mrf.mxu0
      %v2129 = vadd.f32 0.0, %v2128
      %v2130 = vpop.f32.mrf.mxu0
      %v2131 = vadd.f32 0.0, %v2130
      %2132 = vmatmul.bf16.gmra.mxu0 %v2039
      %v2133 = vpop.f32.mrf.mxu0
      %v2134 = vadd.f32 0.0, %v2133
      %v2135 = vpop.f32.mrf.mxu0
      %v2136 = vadd.f32 0.0, %v2135
      %2137 = vmatmul.bf16.gmra.mxu0 %v2042
      %v2138 = vpop.f32.mrf.mxu0
      %v2139 = vadd.f32 0.0, %v2138
      %v2140 = vpop.f32.mrf.mxu0
      %v2141 = vadd.f32 0.0, %v2140
      %2142 = vmatmul.bf16.gmra.mxu0 %v2045
      %v2143 = vpop.f32.mrf.mxu0
      %v2144 = vadd.f32 0.0, %v2143
      %v2145 = vpop.f32.mrf.mxu0
      %v2146 = vadd.f32 0.0, %v2145
      %2147 = vmatmul.bf16.gmra.mxu0 %v2048
      %v2148 = vpop.f32.mrf.mxu0
      %v2149 = vadd.f32 0.0, %v2148
      %v2150 = vpop.f32.mrf.mxu0
      %v2151 = vadd.f32 0.0, %v2150
      %2152 = vmatmul.bf16.gmra.mxu0 %v2051
      %v2153 = vpop.f32.mrf.mxu0
      %v2154 = vadd.f32 0.0, %v2153
      %v2155 = vpop.f32.mrf.mxu0
      %v2156 = vadd.f32 0.0, %v2155
      %2157 = vmatmul.bf16.gmra.mxu0 %v2054
      %v2158 = vpop.f32.mrf.mxu0
      %v2159 = vadd.f32 0.0, %v2158
      %v2160 = vpop.f32.mrf.mxu0
      %v2161 = vadd.f32 0.0, %v2160
      %2162 = vmatmul.bf16.gmra.mxu0 %v2057
      %v2163 = vpop.f32.mrf.mxu0
      %v2164 = vadd.f32 0.0, %v2163
      %v2165 = vpop.f32.mrf.mxu0
      %v2166 = vadd.f32 0.0, %v2165
      %2167 = vmatmul.bf16.gmra.mxu0 %v2060
      %v2168 = vpop.f32.mrf.mxu0
      %v2169 = vadd.f32 0.0, %v2168
      %v2170 = vpop.f32.mrf.mxu0
      %v2171 = vadd.f32 0.0, %v2170
      %2172 = vmatmul.bf16.gmra.mxu0 %v2063
      %v2173 = vpop.f32.mrf.mxu0
      %v2174 = vadd.f32 0.0, %v2173
      %v2175 = vpop.f32.mrf.mxu0
      %v2176 = vadd.f32 0.0, %v2175
      %2177 = vmatmul.bf16.gmra.mxu0 %v2066
      %v2178 = vpop.f32.mrf.mxu0
      %v2179 = vadd.f32 0.0, %v2178
      %v2180 = vpop.f32.mrf.mxu0
      %v2181 = vadd.f32 0.0, %v2180
      %2182 = vmatmul.bf16.gmra.mxu0 %v2069
      %v2183 = vpop.f32.mrf.mxu0
      %v2184 = vadd.f32 0.0, %v2183
      %v2185 = vpop.f32.mrf.mxu0
      %v2186 = vadd.f32 0.0, %v2185
      %2187 = vmatmul.bf16.gmra.mxu0 %v2072
      %v2188 = vpop.f32.mrf.mxu0
      %v2189 = vadd.f32 0.0, %v2188
      %v2190 = vpop.f32.mrf.mxu0
      %v2191 = vadd.f32 0.0, %v2190
      %2192 = vmatmul.bf16.gmra.mxu0 %v2075
      %v2193 = vpop.f32.mrf.mxu0
      %v2194 = vadd.f32 0.0, %v2193
      %v2195 = vpop.f32.mrf.mxu0
      %v2196 = vadd.f32 0.0, %v2195
      %2197 = vmatmul.bf16.gmra.mxu0 %v2078
      %v2198 = vpop.f32.mrf.mxu0
      %v2199 = vadd.f32 0.0, %v2198
      %v2200 = vpop.f32.mrf.mxu0
      %v2201 = vadd.f32 0.0, %v2200
      %2202 = vmatmul.bf16.gmra.mxu0 %v2081
      %v2203 = vpop.f32.mrf.mxu0
      %v2204 = vadd.f32 0.0, %v2203
      %v2205 = vpop.f32.mrf.mxu0
      %v2206 = vadd.f32 0.0, %v2205
      %2207 = vmatmul.bf16.gmra.mxu0 %v2084
      %v2208 = vpop.f32.mrf.mxu0
      %v2209 = vadd.f32 0.0, %v2208
      %v2210 = vpop.f32.mrf.mxu0
      %v2211 = vadd.f32 0.0, %v2210
      %2212 = vmatmul.bf16.gmra.mxu0 %v2087
      %v2213 = vpop.f32.mrf.mxu0
      %v2214 = vadd.f32 0.0, %v2213
      %v2215 = vpop.f32.mrf.mxu0
      %v2216 = vadd.f32 0.0, %v2215
      %2217 = vdwg.mxu0
      %v2218 = vadd.f32 %v1888, %v2099
      %v2219 = vadd.f32 %v1889, %v2101
      %v2220 = vadd.f32 %v1890, %v2104
      %v2221 = vadd.f32 %v1891, %v2106
      %v2222 = vadd.f32 %v1892, %v2109
      %v2223 = vadd.f32 %v1893, %v2111
      %v2224 = vadd.f32 %v1894, %v2114
      %v2225 = vadd.f32 %v1895, %v2116
      %v2226 = vadd.f32 %v1896, %v2119
      %v2227 = vadd.f32 %v1897, %v2121
      %v2228 = vadd.f32 %v1898, %v2124
      %v2229 = vadd.f32 %v1899, %v2126
      %v2230 = vadd.f32 %v1900, %v2129
      %v2231 = vadd.f32 %v1901, %v2131
      %v2232 = vadd.f32 %v1902, %v2134
      %v2233 = vadd.f32 %v1903, %v2136
      %v2234 = vadd.f32 %v1904, %v2139
      %v2235 = vadd.f32 %v1905, %v2141
      %v2236 = vadd.f32 %v1906, %v2144
      %v2237 = vadd.f32 %v1907, %v2146
      %v2238 = vadd.f32 %v1908, %v2149
      %v2239 = vadd.f32 %v1909, %v2151
      %v2240 = vadd.f32 %v1910, %v2154
      %v2241 = vadd.f32 %v1911, %v2156
      %v2242 = vadd.f32 %v1912, %v2159
      %v2243 = vadd.f32 %v1913, %v2161
      %v2244 = vadd.f32 %v1914, %v2164
      %v2245 = vadd.f32 %v1915, %v2166
      %v2246 = vadd.f32 %v1916, %v2169
      %v2247 = vadd.f32 %v1917, %v2171
      %v2248 = vadd.f32 %v1918, %v2174
      %v2249 = vadd.f32 %v1919, %v2176
      %v2250 = vadd.f32 %v1920, %v2179
      %v2251 = vadd.f32 %v1921, %v2181
      %v2252 = vadd.f32 %v1922, %v2184
      %v2253 = vadd.f32 %v1923, %v2186
      %v2254 = vadd.f32 %v1924, %v2189
      %v2255 = vadd.f32 %v1925, %v2191
      %v2256 = vadd.f32 %v1926, %v2194
      %v2257 = vadd.f32 %v1927, %v2196
      %v2258 = vadd.f32 %v1928, %v2199
      %v2259 = vadd.f32 %v1929, %v2201
      %v2260 = vadd.f32 %v1930, %v2204
      %v2261 = vadd.f32 %v1931, %v2206
      %v2262 = vadd.f32 %v1932, %v2209
      %v2263 = vadd.f32 %v1933, %v2211
      %v2264 = vadd.f32 %v1934, %v2214
      %v2265 = vadd.f32 %v1935, %v2216
      %v2266 = vld [vmem:[#allocation2 + $0x1a] sm:$0xff]
      %v2267 = vld [vmem:[#allocation2 + $0x22] sm:$0xff]
      %v2268 = vld [vmem:[#allocation2 + $0x2a] sm:$0xff]
      %v2269 = vld [vmem:[#allocation2 + $0x32] sm:$0xff]
      %v2270 = vld [vmem:[#allocation2 + $0x3a] sm:$0xff]
      %v2271 = vld [vmem:[#allocation2 + $0x42] sm:$0xff]
      %v2272 = vld [vmem:[#allocation2 + $0x4a] sm:$0xff]
      %v2273 = vld [vmem:[#allocation2 + $0x52] sm:$0xff]
      %v2274 = vld [vmem:[#allocation2 + $0x5a] sm:$0xff]
      %v2275 = vld [vmem:[#allocation2 + $0x62] sm:$0xff]
      %v2276 = vld [vmem:[#allocation2 + $0x6a] sm:$0xff]
      %v2277 = vld [vmem:[#allocation2 + $0x72] sm:$0xff]
      %v2278 = vld [vmem:[#allocation2 + $0x7a] sm:$0xff]
      %v2279 = vld [vmem:[#allocation2 + $0x82] sm:$0xff]
      %v2280 = vld [vmem:[#allocation2 + $0x8a] sm:$0xff]
      %v2281 = vld [vmem:[#allocation2 + $0x92] sm:$0xff]
      %v2282 = vld [vmem:[#allocation2 + $0x9a] sm:$0xff]
      %v2283 = vld [vmem:[#allocation2 + $0xa2] sm:$0xff]
      %v2284 = vld [vmem:[#allocation2 + $0xaa] sm:$0xff]
      %v2285 = vld [vmem:[#allocation2 + $0xb2] sm:$0xff]
      %v2286 = vld [vmem:[#allocation2 + $0xba] sm:$0xff]
      %v2287 = vld [vmem:[#allocation2 + $0xc2] sm:$0xff]
      %v2288 = vld [vmem:[#allocation2 + $0xca] sm:$0xff]
      %v2289 = vld [vmem:[#allocation2 + $0xd2] sm:$0xff]
      %v2290 = vld [vmem:[#allocation2 + $0xda] sm:$0xff]
      %v2291 = vld [vmem:[#allocation2 + $0xe2] sm:$0xff]
      %v2292 = vld [vmem:[#allocation2 + $0xea] sm:$0xff]
      %v2293 = vld [vmem:[#allocation2 + $0xf2] sm:$0xff]
      %v2294 = vld [vmem:[#allocation2 + $0xfa] sm:$0xff]
      %v2295 = vld [vmem:[#allocation2 + $0x102] sm:$0xff]
      %v2296 = vld [vmem:[#allocation2 + $0x10a] sm:$0xff]
      %v2297 = vld [vmem:[#allocation2 + $0x112] sm:$0xff]
      %v2298 = vld [vmem:[#allocation2 + $0x11a] sm:$0xff]
      %v2299 = vld [vmem:[#allocation2 + $0x122] sm:$0xff]
      %v2300 = vld [vmem:[#allocation2 + $0x12a] sm:$0xff]
      %v2301 = vld [vmem:[#allocation2 + $0x132] sm:$0xff]
      %v2302 = vld [vmem:[#allocation2 + $0x13a] sm:$0xff]
      %v2303 = vld [vmem:[#allocation2 + $0x142] sm:$0xff]
      %v2304 = vld [vmem:[#allocation2 + $0x14a] sm:$0xff]
      %v2305 = vld [vmem:[#allocation2 + $0x152] sm:$0xff]
      %v2306 = vld [vmem:[#allocation2 + $0x15a] sm:$0xff]
      %v2307 = vld [vmem:[#allocation2 + $0x162] sm:$0xff]
      %v2308 = vld [vmem:[#allocation2 + $0x16a] sm:$0xff]
      %v2309 = vld [vmem:[#allocation2 + $0x172] sm:$0xff]
      %v2310 = vld [vmem:[#allocation2 + $0x17a] sm:$0xff]
      %v2311 = vld [vmem:[#allocation2 + $0x182] sm:$0xff]
      %v2312 = vld [vmem:[#allocation2 + $0x18a] sm:$0xff]
      %v2313 = vld [vmem:[#allocation2 + $0x192] sm:$0xff]
      %v2314 = vpack.c.bf16 %v2267, %v2266
      %v2315 = vpack.c.bf16 %v2269, %v2268
      %v2316 = vpack.c.bf16 %v2271, %v2270
      %v2317 = vpack.c.bf16 %v2273, %v2272
      %v2318 = vpack.c.bf16 %v2275, %v2274
      %v2319 = vpack.c.bf16 %v2277, %v2276
      %v2320 = vpack.c.bf16 %v2279, %v2278
      %v2321 = vpack.c.bf16 %v2281, %v2280
      %v2322 = vpack.c.bf16 %v2283, %v2282
      %v2323 = vpack.c.bf16 %v2285, %v2284
      %v2324 = vpack.c.bf16 %v2287, %v2286
      %v2325 = vpack.c.bf16 %v2289, %v2288
      %v2326 = vpack.c.bf16 %v2291, %v2290
      %v2327 = vpack.c.bf16 %v2293, %v2292
      %v2328 = vpack.c.bf16 %v2295, %v2294
      %v2329 = vpack.c.bf16 %v2297, %v2296
      %v2330 = vpack.c.bf16 %v2299, %v2298
      %v2331 = vpack.c.bf16 %v2301, %v2300
      %v2332 = vpack.c.bf16 %v2303, %v2302
      %v2333 = vpack.c.bf16 %v2305, %v2304
      %v2334 = vpack.c.bf16 %v2307, %v2306
      %v2335 = vpack.c.bf16 %v2309, %v2308
      %v2336 = vpack.c.bf16 %v2311, %v2310
      %v2337 = vpack.c.bf16 %v2313, %v2312
      %s2338 = scalar_lea.vmem %s2, 40
      %v2339 = vld [vmem:[%s2338] sm:$0xf]
      %v2340 = vld [vmem:[%s2338 + $0x4] sm:$0xf]
      %v2343 = vunpack.c.l.b16 %v2339
      %v2344 = vunpack.c.l.b16 %v2340
      %v2345 = vpack.c.b16 %v2344, %v2343
      %v2348 = vsel %vm654, %v2314, 0
      %v2351 = vsel %vm654, %v2315, 0
      %v2354 = vsel %vm654, %v2316, 0
      %v2357 = vsel %vm654, %v2317, 0
      %v2360 = vsel %vm654, %v2318, 0
      %v2363 = vsel %vm654, %v2319, 0
      %v2366 = vsel %vm654, %v2320, 0
      %v2369 = vsel %vm654, %v2321, 0
      %v2372 = vsel %vm654, %v2322, 0
      %v2375 = vsel %vm654, %v2323, 0
      %v2378 = vsel %vm654, %v2324, 0
      %v2381 = vsel %vm654, %v2325, 0
      %v2384 = vsel %vm654, %v2326, 0
      %v2387 = vsel %vm654, %v2327, 0
      %v2390 = vsel %vm654, %v2328, 0
      %v2393 = vsel %vm654, %v2329, 0
      %v2396 = vsel %vm654, %v2330, 0
      %v2399 = vsel %vm654, %v2331, 0
      %v2402 = vsel %vm654, %v2332, 0
      %v2405 = vsel %vm654, %v2333, 0
      %v2408 = vsel %vm654, %v2334, 0
      %v2411 = vsel %vm654, %v2335, 0
      %v2414 = vsel %vm654, %v2336, 0
      %v2417 = vsel %vm654, %v2337, 0
      %2419 = vmatpush.bf16.msra.mxu0 0
      %2420 = vmatpush.bf16.msra.mxu0 0
      %2421 = vmatpush.bf16.msra.mxu0 0
      %2422 = vmatpush.bf16.msra.mxu0 0
      %2423 = vmatpush.bf16.msra.mxu0 0
      %2424 = vmatpush.bf16.msra.mxu0 0
      %2425 = vmatpush.bf16.msra.mxu0 0
      %2426 = vmatpush.bf16.msra.mxu0 %v2345
      %2427 = vmatmul.bf16.gmra.mxu0 %v2348
      %v2428 = vpop.f32.mrf.mxu0
      %v2429 = vadd.f32 0.0, %v2428
      %v2430 = vpop.f32.mrf.mxu0
      %v2431 = vadd.f32 0.0, %v2430
      %2432 = vmatmul.bf16.gmra.mxu0 %v2351
      %v2433 = vpop.f32.mrf.mxu0
      %v2434 = vadd.f32 0.0, %v2433
      %v2435 = vpop.f32.mrf.mxu0
      %v2436 = vadd.f32 0.0, %v2435
      %2437 = vmatmul.bf16.gmra.mxu0 %v2354
      %v2438 = vpop.f32.mrf.mxu0
      %v2439 = vadd.f32 0.0, %v2438
      %v2440 = vpop.f32.mrf.mxu0
      %v2441 = vadd.f32 0.0, %v2440
      %2442 = vmatmul.bf16.gmra.mxu0 %v2357
      %v2443 = vpop.f32.mrf.mxu0
      %v2444 = vadd.f32 0.0, %v2443
      %v2445 = vpop.f32.mrf.mxu0
      %v2446 = vadd.f32 0.0, %v2445
      %2447 = vmatmul.bf16.gmra.mxu0 %v2360
      %v2448 = vpop.f32.mrf.mxu0
      %v2449 = vadd.f32 0.0, %v2448
      %v2450 = vpop.f32.mrf.mxu0
      %v2451 = vadd.f32 0.0, %v2450
      %2452 = vmatmul.bf16.gmra.mxu0 %v2363
      %v2453 = vpop.f32.mrf.mxu0
      %v2454 = vadd.f32 0.0, %v2453
      %v2455 = vpop.f32.mrf.mxu0
      %v2456 = vadd.f32 0.0, %v2455
      %2457 = vmatmul.bf16.gmra.mxu0 %v2366
      %v2458 = vpop.f32.mrf.mxu0
      %v2459 = vadd.f32 0.0, %v2458
      %v2460 = vpop.f32.mrf.mxu0
      %v2461 = vadd.f32 0.0, %v2460
      %2462 = vmatmul.bf16.gmra.mxu0 %v2369
      %v2463 = vpop.f32.mrf.mxu0
      %v2464 = vadd.f32 0.0, %v2463
      %v2465 = vpop.f32.mrf.mxu0
      %v2466 = vadd.f32 0.0, %v2465
      %2467 = vmatmul.bf16.gmra.mxu0 %v2372
      %v2468 = vpop.f32.mrf.mxu0
      %v2469 = vadd.f32 0.0, %v2468
      %v2470 = vpop.f32.mrf.mxu0
      %v2471 = vadd.f32 0.0, %v2470
      %2472 = vmatmul.bf16.gmra.mxu0 %v2375
      %v2473 = vpop.f32.mrf.mxu0
      %v2474 = vadd.f32 0.0, %v2473
      %v2475 = vpop.f32.mrf.mxu0
      %v2476 = vadd.f32 0.0, %v2475
      %2477 = vmatmul.bf16.gmra.mxu0 %v2378
      %v2478 = vpop.f32.mrf.mxu0
      %v2479 = vadd.f32 0.0, %v2478
      %v2480 = vpop.f32.mrf.mxu0
      %v2481 = vadd.f32 0.0, %v2480
      %2482 = vmatmul.bf16.gmra.mxu0 %v2381
      %v2483 = vpop.f32.mrf.mxu0
      %v2484 = vadd.f32 0.0, %v2483
      %v2485 = vpop.f32.mrf.mxu0
      %v2486 = vadd.f32 0.0, %v2485
      %2487 = vmatmul.bf16.gmra.mxu0 %v2384
      %v2488 = vpop.f32.mrf.mxu0
      %v2489 = vadd.f32 0.0, %v2488
      %v2490 = vpop.f32.mrf.mxu0
      %v2491 = vadd.f32 0.0, %v2490
      %2492 = vmatmul.bf16.gmra.mxu0 %v2387
      %v2493 = vpop.f32.mrf.mxu0
      %v2494 = vadd.f32 0.0, %v2493
      %v2495 = vpop.f32.mrf.mxu0
      %v2496 = vadd.f32 0.0, %v2495
      %2497 = vmatmul.bf16.gmra.mxu0 %v2390
      %v2498 = vpop.f32.mrf.mxu0
      %v2499 = vadd.f32 0.0, %v2498
      %v2500 = vpop.f32.mrf.mxu0
      %v2501 = vadd.f32 0.0, %v2500
      %2502 = vmatmul.bf16.gmra.mxu0 %v2393
      %v2503 = vpop.f32.mrf.mxu0
      %v2504 = vadd.f32 0.0, %v2503
      %v2505 = vpop.f32.mrf.mxu0
      %v2506 = vadd.f32 0.0, %v2505
      %2507 = vmatmul.bf16.gmra.mxu0 %v2396
      %v2508 = vpop.f32.mrf.mxu0
      %v2509 = vadd.f32 0.0, %v2508
      %v2510 = vpop.f32.mrf.mxu0
      %v2511 = vadd.f32 0.0, %v2510
      %2512 = vmatmul.bf16.gmra.mxu0 %v2399
      %v2513 = vpop.f32.mrf.mxu0
      %v2514 = vadd.f32 0.0, %v2513
      %v2515 = vpop.f32.mrf.mxu0
      %v2516 = vadd.f32 0.0, %v2515
      %2517 = vmatmul.bf16.gmra.mxu0 %v2402
      %v2518 = vpop.f32.mrf.mxu0
      %v2519 = vadd.f32 0.0, %v2518
      %v2520 = vpop.f32.mrf.mxu0
      %v2521 = vadd.f32 0.0, %v2520
      %2522 = vmatmul.bf16.gmra.mxu0 %v2405
      %v2523 = vpop.f32.mrf.mxu0
      %v2524 = vadd.f32 0.0, %v2523
      %v2525 = vpop.f32.mrf.mxu0
      %v2526 = vadd.f32 0.0, %v2525
      %2527 = vmatmul.bf16.gmra.mxu0 %v2408
      %v2528 = vpop.f32.mrf.mxu0
      %v2529 = vadd.f32 0.0, %v2528
      %v2530 = vpop.f32.mrf.mxu0
      %v2531 = vadd.f32 0.0, %v2530
      %2532 = vmatmul.bf16.gmra.mxu0 %v2411
      %v2533 = vpop.f32.mrf.mxu0
      %v2534 = vadd.f32 0.0, %v2533
      %v2535 = vpop.f32.mrf.mxu0
      %v2536 = vadd.f32 0.0, %v2535
      %2537 = vmatmul.bf16.gmra.mxu0 %v2414
      %v2538 = vpop.f32.mrf.mxu0
      %v2539 = vadd.f32 0.0, %v2538
      %v2540 = vpop.f32.mrf.mxu0
      %v2541 = vadd.f32 0.0, %v2540
      %2542 = vmatmul.bf16.gmra.mxu0 %v2417
      %v2543 = vpop.f32.mrf.mxu0
      %v2544 = vadd.f32 0.0, %v2543
      %v2545 = vpop.f32.mrf.mxu0
      %v2546 = vadd.f32 0.0, %v2545
      %2547 = vdwg.mxu0
      %v2548 = vadd.f32 %v2218, %v2429
      %v2549 = vadd.f32 %v2219, %v2431
      %v2550 = vadd.f32 %v2220, %v2434
      %v2551 = vadd.f32 %v2221, %v2436
      %v2552 = vadd.f32 %v2222, %v2439
      %v2553 = vadd.f32 %v2223, %v2441
      %v2554 = vadd.f32 %v2224, %v2444
      %v2555 = vadd.f32 %v2225, %v2446
      %v2556 = vadd.f32 %v2226, %v2449
      %v2557 = vadd.f32 %v2227, %v2451
      %v2558 = vadd.f32 %v2228, %v2454
      %v2559 = vadd.f32 %v2229, %v2456
      %v2560 = vadd.f32 %v2230, %v2459
      %v2561 = vadd.f32 %v2231, %v2461
      %v2562 = vadd.f32 %v2232, %v2464
      %v2563 = vadd.f32 %v2233, %v2466
      %v2564 = vadd.f32 %v2234, %v2469
      %v2565 = vadd.f32 %v2235, %v2471
      %v2566 = vadd.f32 %v2236, %v2474
      %v2567 = vadd.f32 %v2237, %v2476
      %v2568 = vadd.f32 %v2238, %v2479
      %v2569 = vadd.f32 %v2239, %v2481
      %v2570 = vadd.f32 %v2240, %v2484
      %v2571 = vadd.f32 %v2241, %v2486
      %v2572 = vadd.f32 %v2242, %v2489
      %v2573 = vadd.f32 %v2243, %v2491
      %v2574 = vadd.f32 %v2244, %v2494
      %v2575 = vadd.f32 %v2245, %v2496
      %v2576 = vadd.f32 %v2246, %v2499
      %v2577 = vadd.f32 %v2247, %v2501
      %v2578 = vadd.f32 %v2248, %v2504
      %v2579 = vadd.f32 %v2249, %v2506
      %v2580 = vadd.f32 %v2250, %v2509
      %v2581 = vadd.f32 %v2251, %v2511
      %v2582 = vadd.f32 %v2252, %v2514
      %v2583 = vadd.f32 %v2253, %v2516
      %v2584 = vadd.f32 %v2254, %v2519
      %v2585 = vadd.f32 %v2255, %v2521
      %v2586 = vadd.f32 %v2256, %v2524
      %v2587 = vadd.f32 %v2257, %v2526
      %v2588 = vadd.f32 %v2258, %v2529
      %v2589 = vadd.f32 %v2259, %v2531
      %v2590 = vadd.f32 %v2260, %v2534
      %v2591 = vadd.f32 %v2261, %v2536
      %v2592 = vadd.f32 %v2262, %v2539
      %v2593 = vadd.f32 %v2263, %v2541
      %v2594 = vadd.f32 %v2264, %v2544
      %v2595 = vadd.f32 %v2265, %v2546
      %v2596 = vld [vmem:[#allocation2 + $0x30] sm:$0xff]
      %v2597 = vld [vmem:[#allocation2 + $0x38] sm:$0xff]
      %v2598 = vld [vmem:[#allocation2 + $0x40] sm:$0xff]
      %v2599 = vld [vmem:[#allocation2 + $0x48] sm:$0xff]
      %v2600 = vld [vmem:[#allocation2 + $0x50] sm:$0xff]
      %v2601 = vld [vmem:[#allocation2 + $0x58] sm:$0xff]
      %v2602 = vld [vmem:[#allocation2 + $0x60] sm:$0xff]
      %v2603 = vld [vmem:[#allocation2 + $0x68] sm:$0xff]
      %v2604 = vld [vmem:[#allocation2 + $0x70] sm:$0xff]
      %v2605 = vld [vmem:[#allocation2 + $0x78] sm:$0xff]
      %v2606 = vld [vmem:[#allocation2 + $0x80] sm:$0xff]
      %v2607 = vld [vmem:[#allocation2 + $0x88] sm:$0xff]
      %v2608 = vld [vmem:[#allocation2 + $0x90] sm:$0xff]
      %v2609 = vld [vmem:[#allocation2 + $0x98] sm:$0xff]
      %v2610 = vld [vmem:[#allocation2 + $0xa0] sm:$0xff]
      %v2611 = vld [vmem:[#allocation2 + $0xa8] sm:$0xff]
      %v2612 = vld [vmem:[#allocation2 + $0xb0] sm:$0xff]
      %v2613 = vld [vmem:[#allocation2 + $0xb8] sm:$0xff]
      %v2614 = vld [vmem:[#allocation2 + $0xc0] sm:$0xff]
      %v2615 = vld [vmem:[#allocation2 + $0xc8] sm:$0xff]
      %v2616 = vld [vmem:[#allocation2 + $0xd0] sm:$0xff]
      %v2617 = vld [vmem:[#allocation2 + $0xd8] sm:$0xff]
      %v2618 = vld [vmem:[#allocation2 + $0xe0] sm:$0xff]
      %v2619 = vld [vmem:[#allocation2 + $0xe8] sm:$0xff]
      %v2620 = vld [vmem:[#allocation2 + $0xf0] sm:$0xff]
      %v2621 = vld [vmem:[#allocation2 + $0xf8] sm:$0xff]
      %v2622 = vld [vmem:[#allocation2 + $0x100] sm:$0xff]
      %v2623 = vld [vmem:[#allocation2 + $0x108] sm:$0xff]
      %v2624 = vld [vmem:[#allocation2 + $0x110] sm:$0xff]
      %v2625 = vld [vmem:[#allocation2 + $0x118] sm:$0xff]
      %v2626 = vld [vmem:[#allocation2 + $0x120] sm:$0xff]
      %v2627 = vld [vmem:[#allocation2 + $0x128] sm:$0xff]
      %v2628 = vld [vmem:[#allocation2 + $0x130] sm:$0xff]
      %v2629 = vld [vmem:[#allocation2 + $0x138] sm:$0xff]
      %v2630 = vld [vmem:[#allocation2 + $0x140] sm:$0xff]
      %v2631 = vld [vmem:[#allocation2 + $0x148] sm:$0xff]
      %v2632 = vld [vmem:[#allocation2 + $0x150] sm:$0xff]
      %v2633 = vld [vmem:[#allocation2 + $0x158] sm:$0xff]
      %v2634 = vld [vmem:[#allocation2 + $0x160] sm:$0xff]
      %v2635 = vld [vmem:[#allocation2 + $0x168] sm:$0xff]
      %v2636 = vld [vmem:[#allocation2 + $0x170] sm:$0xff]
      %v2637 = vld [vmem:[#allocation2 + $0x178] sm:$0xff]
      %v2638 = vld [vmem:[#allocation2 + $0x180] sm:$0xff]
      %v2639 = vld [vmem:[#allocation2 + $0x188] sm:$0xff]
      %v2640 = vld [vmem:[#allocation2 + $0x190] sm:$0xff]
      %v2641 = vld [vmem:[#allocation2 + $0x198] sm:$0xff]
      %v2642 = vld [vmem:[#allocation2 + $0x1a0] sm:$0xff]
      %v2643 = vld [vmem:[#allocation2 + $0x1a8] sm:$0xff]
      %v2644 = vpack.c.bf16 %v2597, %v2596
      %v2645 = vpack.c.bf16 %v2599, %v2598
      %v2646 = vpack.c.bf16 %v2601, %v2600
      %v2647 = vpack.c.bf16 %v2603, %v2602
      %v2648 = vpack.c.bf16 %v2605, %v2604
      %v2649 = vpack.c.bf16 %v2607, %v2606
      %v2650 = vpack.c.bf16 %v2609, %v2608
      %v2651 = vpack.c.bf16 %v2611, %v2610
      %v2652 = vpack.c.bf16 %v2613, %v2612
      %v2653 = vpack.c.bf16 %v2615, %v2614
      %v2654 = vpack.c.bf16 %v2617, %v2616
      %v2655 = vpack.c.bf16 %v2619, %v2618
      %v2656 = vpack.c.bf16 %v2621, %v2620
      %v2657 = vpack.c.bf16 %v2623, %v2622
      %v2658 = vpack.c.bf16 %v2625, %v2624
      %v2659 = vpack.c.bf16 %v2627, %v2626
      %v2660 = vpack.c.bf16 %v2629, %v2628
      %v2661 = vpack.c.bf16 %v2631, %v2630
      %v2662 = vpack.c.bf16 %v2633, %v2632
      %v2663 = vpack.c.bf16 %v2635, %v2634
      %v2664 = vpack.c.bf16 %v2637, %v2636
      %v2665 = vpack.c.bf16 %v2639, %v2638
      %v2666 = vpack.c.bf16 %v2641, %v2640
      %v2667 = vpack.c.bf16 %v2643, %v2642
      %s2668 = scalar_lea.vmem %s2, 48
      %v2669 = vld [vmem:[%s2668] sm:$0xf]
      %v2670 = vld [vmem:[%s2668 + $0x4] sm:$0xf]
      %v2673 = vunpack.c.l.b16 %v2669
      %v2674 = vunpack.c.l.b16 %v2670
      %v2675 = vpack.c.b16 %v2674, %v2673
      %v2678 = vsel %vm654, %v2644, 0
      %v2681 = vsel %vm654, %v2645, 0
      %v2684 = vsel %vm654, %v2646, 0
      %v2687 = vsel %vm654, %v2647, 0
      %v2690 = vsel %vm654, %v2648, 0
      %v2693 = vsel %vm654, %v2649, 0
      %v2696 = vsel %vm654, %v2650, 0
      %v2699 = vsel %vm654, %v2651, 0
      %v2702 = vsel %vm654, %v2652, 0
      %v2705 = vsel %vm654, %v2653, 0
      %v2708 = vsel %vm654, %v2654, 0
      %v2711 = vsel %vm654, %v2655, 0
      %v2714 = vsel %vm654, %v2656, 0
      %v2717 = vsel %vm654, %v2657, 0
      %v2720 = vsel %vm654, %v2658, 0
      %v2723 = vsel %vm654, %v2659, 0
      %v2726 = vsel %vm654, %v2660, 0
      %v2729 = vsel %vm654, %v2661, 0
      %v2732 = vsel %vm654, %v2662, 0
      %v2735 = vsel %vm654, %v2663, 0
      %v2738 = vsel %vm654, %v2664, 0
      %v2741 = vsel %vm654, %v2665, 0
      %v2744 = vsel %vm654, %v2666, 0
      %v2747 = vsel %vm654, %v2667, 0
      %2749 = vmatpush.bf16.msra.mxu0 0
      %2750 = vmatpush.bf16.msra.mxu0 0
      %2751 = vmatpush.bf16.msra.mxu0 0
      %2752 = vmatpush.bf16.msra.mxu0 0
      %2753 = vmatpush.bf16.msra.mxu0 0
      %2754 = vmatpush.bf16.msra.mxu0 0
      %2755 = vmatpush.bf16.msra.mxu0 0
      %2756 = vmatpush.bf16.msra.mxu0 %v2675
      %2757 = vmatmul.bf16.gmra.mxu0 %v2678
      %v2758 = vpop.f32.mrf.mxu0
      %v2759 = vadd.f32 0.0, %v2758
      %v2760 = vpop.f32.mrf.mxu0
      %v2761 = vadd.f32 0.0, %v2760
      %2762 = vmatmul.bf16.gmra.mxu0 %v2681
      %v2763 = vpop.f32.mrf.mxu0
      %v2764 = vadd.f32 0.0, %v2763
      %v2765 = vpop.f32.mrf.mxu0
      %v2766 = vadd.f32 0.0, %v2765
      %2767 = vmatmul.bf16.gmra.mxu0 %v2684
      %v2768 = vpop.f32.mrf.mxu0
      %v2769 = vadd.f32 0.0, %v2768
      %v2770 = vpop.f32.mrf.mxu0
      %v2771 = vadd.f32 0.0, %v2770
      %2772 = vmatmul.bf16.gmra.mxu0 %v2687
      %v2773 = vpop.f32.mrf.mxu0
      %v2774 = vadd.f32 0.0, %v2773
      %v2775 = vpop.f32.mrf.mxu0
      %v2776 = vadd.f32 0.0, %v2775
      %2777 = vmatmul.bf16.gmra.mxu0 %v2690
      %v2778 = vpop.f32.mrf.mxu0
      %v2779 = vadd.f32 0.0, %v2778
      %v2780 = vpop.f32.mrf.mxu0
      %v2781 = vadd.f32 0.0, %v2780
      %2782 = vmatmul.bf16.gmra.mxu0 %v2693
      %v2783 = vpop.f32.mrf.mxu0
      %v2784 = vadd.f32 0.0, %v2783
      %v2785 = vpop.f32.mrf.mxu0
      %v2786 = vadd.f32 0.0, %v2785
      %2787 = vmatmul.bf16.gmra.mxu0 %v2696
      %v2788 = vpop.f32.mrf.mxu0
      %v2789 = vadd.f32 0.0, %v2788
      %v2790 = vpop.f32.mrf.mxu0
      %v2791 = vadd.f32 0.0, %v2790
      %2792 = vmatmul.bf16.gmra.mxu0 %v2699
      %v2793 = vpop.f32.mrf.mxu0
      %v2794 = vadd.f32 0.0, %v2793
      %v2795 = vpop.f32.mrf.mxu0
      %v2796 = vadd.f32 0.0, %v2795
      %2797 = vmatmul.bf16.gmra.mxu0 %v2702
      %v2798 = vpop.f32.mrf.mxu0
      %v2799 = vadd.f32 0.0, %v2798
      %v2800 = vpop.f32.mrf.mxu0
      %v2801 = vadd.f32 0.0, %v2800
      %2802 = vmatmul.bf16.gmra.mxu0 %v2705
      %v2803 = vpop.f32.mrf.mxu0
      %v2804 = vadd.f32 0.0, %v2803
      %v2805 = vpop.f32.mrf.mxu0
      %v2806 = vadd.f32 0.0, %v2805
      %2807 = vmatmul.bf16.gmra.mxu0 %v2708
      %v2808 = vpop.f32.mrf.mxu0
      %v2809 = vadd.f32 0.0, %v2808
      %v2810 = vpop.f32.mrf.mxu0
      %v2811 = vadd.f32 0.0, %v2810
      %2812 = vmatmul.bf16.gmra.mxu0 %v2711
      %v2813 = vpop.f32.mrf.mxu0
      %v2814 = vadd.f32 0.0, %v2813
      %v2815 = vpop.f32.mrf.mxu0
      %v2816 = vadd.f32 0.0, %v2815
      %2817 = vmatmul.bf16.gmra.mxu0 %v2714
      %v2818 = vpop.f32.mrf.mxu0
      %v2819 = vadd.f32 0.0, %v2818
      %v2820 = vpop.f32.mrf.mxu0
      %v2821 = vadd.f32 0.0, %v2820
      %2822 = vmatmul.bf16.gmra.mxu0 %v2717
      %v2823 = vpop.f32.mrf.mxu0
      %v2824 = vadd.f32 0.0, %v2823
      %v2825 = vpop.f32.mrf.mxu0
      %v2826 = vadd.f32 0.0, %v2825
      %2827 = vmatmul.bf16.gmra.mxu0 %v2720
      %v2828 = vpop.f32.mrf.mxu0
      %v2829 = vadd.f32 0.0, %v2828
      %v2830 = vpop.f32.mrf.mxu0
      %v2831 = vadd.f32 0.0, %v2830
      %2832 = vmatmul.bf16.gmra.mxu0 %v2723
      %v2833 = vpop.f32.mrf.mxu0
      %v2834 = vadd.f32 0.0, %v2833
      %v2835 = vpop.f32.mrf.mxu0
      %v2836 = vadd.f32 0.0, %v2835
      %2837 = vmatmul.bf16.gmra.mxu0 %v2726
      %v2838 = vpop.f32.mrf.mxu0
      %v2839 = vadd.f32 0.0, %v2838
      %v2840 = vpop.f32.mrf.mxu0
      %v2841 = vadd.f32 0.0, %v2840
      %2842 = vmatmul.bf16.gmra.mxu0 %v2729
      %v2843 = vpop.f32.mrf.mxu0
      %v2844 = vadd.f32 0.0, %v2843
      %v2845 = vpop.f32.mrf.mxu0
      %v2846 = vadd.f32 0.0, %v2845
      %2847 = vmatmul.bf16.gmra.mxu0 %v2732
      %v2848 = vpop.f32.mrf.mxu0
      %v2849 = vadd.f32 0.0, %v2848
      %v2850 = vpop.f32.mrf.mxu0
      %v2851 = vadd.f32 0.0, %v2850
      %2852 = vmatmul.bf16.gmra.mxu0 %v2735
      %v2853 = vpop.f32.mrf.mxu0
      %v2854 = vadd.f32 0.0, %v2853
      %v2855 = vpop.f32.mrf.mxu0
      %v2856 = vadd.f32 0.0, %v2855
      %2857 = vmatmul.bf16.gmra.mxu0 %v2738
      %v2858 = vpop.f32.mrf.mxu0
      %v2859 = vadd.f32 0.0, %v2858
      %v2860 = vpop.f32.mrf.mxu0
      %v2861 = vadd.f32 0.0, %v2860
      %2862 = vmatmul.bf16.gmra.mxu0 %v2741
      %v2863 = vpop.f32.mrf.mxu0
      %v2864 = vadd.f32 0.0, %v2863
      %v2865 = vpop.f32.mrf.mxu0
      %v2866 = vadd.f32 0.0, %v2865
      %2867 = vmatmul.bf16.gmra.mxu0 %v2744
      %v2868 = vpop.f32.mrf.mxu0
      %v2869 = vadd.f32 0.0, %v2868
      %v2870 = vpop.f32.mrf.mxu0
      %v2871 = vadd.f32 0.0, %v2870
      %2872 = vmatmul.bf16.gmra.mxu0 %v2747
      %v2873 = vpop.f32.mrf.mxu0
      %v2874 = vadd.f32 0.0, %v2873
      %v2875 = vpop.f32.mrf.mxu0
      %v2876 = vadd.f32 0.0, %v2875
      %2877 = vdwg.mxu0
      %v2878 = vadd.f32 %v2548, %v2759
      %v2879 = vadd.f32 %v2549, %v2761
      %v2880 = vadd.f32 %v2550, %v2764
      %v2881 = vadd.f32 %v2551, %v2766
      %v2882 = vadd.f32 %v2552, %v2769
      %v2883 = vadd.f32 %v2553, %v2771
      %v2884 = vadd.f32 %v2554, %v2774
      %v2885 = vadd.f32 %v2555, %v2776
      %v2886 = vadd.f32 %v2556, %v2779
      %v2887 = vadd.f32 %v2557, %v2781
      %v2888 = vadd.f32 %v2558, %v2784
      %v2889 = vadd.f32 %v2559, %v2786
      %v2890 = vadd.f32 %v2560, %v2789
      %v2891 = vadd.f32 %v2561, %v2791
      %v2892 = vadd.f32 %v2562, %v2794
      %v2893 = vadd.f32 %v2563, %v2796
      %v2894 = vadd.f32 %v2564, %v2799
      %v2895 = vadd.f32 %v2565, %v2801
      %v2896 = vadd.f32 %v2566, %v2804
      %v2897 = vadd.f32 %v2567, %v2806
      %v2898 = vadd.f32 %v2568, %v2809
      %v2899 = vadd.f32 %v2569, %v2811
      %v2900 = vadd.f32 %v2570, %v2814
      %v2901 = vadd.f32 %v2571, %v2816
      %v2902 = vadd.f32 %v2572, %v2819
      %v2903 = vadd.f32 %v2573, %v2821
      %v2904 = vadd.f32 %v2574, %v2824
      %v2905 = vadd.f32 %v2575, %v2826
      %v2906 = vadd.f32 %v2576, %v2829
      %v2907 = vadd.f32 %v2577, %v2831
      %v2908 = vadd.f32 %v2578, %v2834
      %v2909 = vadd.f32 %v2579, %v2836
      %v2910 = vadd.f32 %v2580, %v2839
      %v2911 = vadd.f32 %v2581, %v2841
      %v2912 = vadd.f32 %v2582, %v2844
      %v2913 = vadd.f32 %v2583, %v2846
      %v2914 = vadd.f32 %v2584, %v2849
      %v2915 = vadd.f32 %v2585, %v2851
      %v2916 = vadd.f32 %v2586, %v2854
      %v2917 = vadd.f32 %v2587, %v2856
      %v2918 = vadd.f32 %v2588, %v2859
      %v2919 = vadd.f32 %v2589, %v2861
      %v2920 = vadd.f32 %v2590, %v2864
      %v2921 = vadd.f32 %v2591, %v2866
      %v2922 = vadd.f32 %v2592, %v2869
      %v2923 = vadd.f32 %v2593, %v2871
      %v2924 = vadd.f32 %v2594, %v2874
      %v2925 = vadd.f32 %v2595, %v2876
      %v2926 = vld [vmem:[#allocation2 + $0x31] sm:$0xff]
      %v2927 = vld [vmem:[#allocation2 + $0x39] sm:$0xff]
      %v2928 = vld [vmem:[#allocation2 + $0x41] sm:$0xff]
      %v2929 = vld [vmem:[#allocation2 + $0x49] sm:$0xff]
      %v2930 = vld [vmem:[#allocation2 + $0x51] sm:$0xff]
      %v2931 = vld [vmem:[#allocation2 + $0x59] sm:$0xff]
      %v2932 = vld [vmem:[#allocation2 + $0x61] sm:$0xff]
      %v2933 = vld [vmem:[#allocation2 + $0x69] sm:$0xff]
      %v2934 = vld [vmem:[#allocation2 + $0x71] sm:$0xff]
      %v2935 = vld [vmem:[#allocation2 + $0x79] sm:$0xff]
      %v2936 = vld [vmem:[#allocation2 + $0x81] sm:$0xff]
      %v2937 = vld [vmem:[#allocation2 + $0x89] sm:$0xff]
      %v2938 = vld [vmem:[#allocation2 + $0x91] sm:$0xff]
      %v2939 = vld [vmem:[#allocation2 + $0x99] sm:$0xff]
      %v2940 = vld [vmem:[#allocation2 + $0xa1] sm:$0xff]
      %v2941 = vld [vmem:[#allocation2 + $0xa9] sm:$0xff]
      %v2942 = vld [vmem:[#allocation2 + $0xb1] sm:$0xff]
      %v2943 = vld [vmem:[#allocation2 + $0xb9] sm:$0xff]
      %v2944 = vld [vmem:[#allocation2 + $0xc1] sm:$0xff]
      %v2945 = vld [vmem:[#allocation2 + $0xc9] sm:$0xff]
      %v2946 = vld [vmem:[#allocation2 + $0xd1] sm:$0xff]
      %v2947 = vld [vmem:[#allocation2 + $0xd9] sm:$0xff]
      %v2948 = vld [vmem:[#allocation2 + $0xe1] sm:$0xff]
      %v2949 = vld [vmem:[#allocation2 + $0xe9] sm:$0xff]
      %v2950 = vld [vmem:[#allocation2 + $0xf1] sm:$0xff]
      %v2951 = vld [vmem:[#allocation2 + $0xf9] sm:$0xff]
      %v2952 = vld [vmem:[#allocation2 + $0x101] sm:$0xff]
      %v2953 = vld [vmem:[#allocation2 + $0x109] sm:$0xff]
      %v2954 = vld [vmem:[#allocation2 + $0x111] sm:$0xff]
      %v2955 = vld [vmem:[#allocation2 + $0x119] sm:$0xff]
      %v2956 = vld [vmem:[#allocation2 + $0x121] sm:$0xff]
      %v2957 = vld [vmem:[#allocation2 + $0x129] sm:$0xff]
      %v2958 = vld [vmem:[#allocation2 + $0x131] sm:$0xff]
      %v2959 = vld [vmem:[#allocation2 + $0x139] sm:$0xff]
      %v2960 = vld [vmem:[#allocation2 + $0x141] sm:$0xff]
      %v2961 = vld [vmem:[#allocation2 + $0x149] sm:$0xff]
      %v2962 = vld [vmem:[#allocation2 + $0x151] sm:$0xff]
      %v2963 = vld [vmem:[#allocation2 + $0x159] sm:$0xff]
      %v2964 = vld [vmem:[#allocation2 + $0x161] sm:$0xff]
      %v2965 = vld [vmem:[#allocation2 + $0x169] sm:$0xff]
      %v2966 = vld [vmem:[#allocation2 + $0x171] sm:$0xff]
      %v2967 = vld [vmem:[#allocation2 + $0x179] sm:$0xff]
      %v2968 = vld [vmem:[#allocation2 + $0x181] sm:$0xff]
      %v2969 = vld [vmem:[#allocation2 + $0x189] sm:$0xff]
      %v2970 = vld [vmem:[#allocation2 + $0x191] sm:$0xff]
      %v2971 = vld [vmem:[#allocation2 + $0x199] sm:$0xff]
      %v2972 = vld [vmem:[#allocation2 + $0x1a1] sm:$0xff]
      %v2973 = vld [vmem:[#allocation2 + $0x1a9] sm:$0xff]
      %v2974 = vpack.c.bf16 %v2927, %v2926
      %v2975 = vpack.c.bf16 %v2929, %v2928
      %v2976 = vpack.c.bf16 %v2931, %v2930
      %v2977 = vpack.c.bf16 %v2933, %v2932
      %v2978 = vpack.c.bf16 %v2935, %v2934
      %v2979 = vpack.c.bf16 %v2937, %v2936
      %v2980 = vpack.c.bf16 %v2939, %v2938
      %v2981 = vpack.c.bf16 %v2941, %v2940
      %v2982 = vpack.c.bf16 %v2943, %v2942
      %v2983 = vpack.c.bf16 %v2945, %v2944
      %v2984 = vpack.c.bf16 %v2947, %v2946
      %v2985 = vpack.c.bf16 %v2949, %v2948
      %v2986 = vpack.c.bf16 %v2951, %v2950
      %v2987 = vpack.c.bf16 %v2953, %v2952
      %v2988 = vpack.c.bf16 %v2955, %v2954
      %v2989 = vpack.c.bf16 %v2957, %v2956
      %v2990 = vpack.c.bf16 %v2959, %v2958
      %v2991 = vpack.c.bf16 %v2961, %v2960
      %v2992 = vpack.c.bf16 %v2963, %v2962
      %v2993 = vpack.c.bf16 %v2965, %v2964
      %v2994 = vpack.c.bf16 %v2967, %v2966
      %v2995 = vpack.c.bf16 %v2969, %v2968
      %v2996 = vpack.c.bf16 %v2971, %v2970
      %v2997 = vpack.c.bf16 %v2973, %v2972
      %s2998 = scalar_lea.vmem %s2, 56
      %v2999 = vld [vmem:[%s2998] sm:$0xf]
      %v3000 = vld [vmem:[%s2998 + $0x4] sm:$0xf]
      %v3003 = vunpack.c.l.b16 %v2999
      %v3004 = vunpack.c.l.b16 %v3000
      %v3005 = vpack.c.b16 %v3004, %v3003
      %v3008 = vsel %vm654, %v2974, 0
      %v3011 = vsel %vm654, %v2975, 0
      %v3014 = vsel %vm654, %v2976, 0
      %v3017 = vsel %vm654, %v2977, 0
      %v3020 = vsel %vm654, %v2978, 0
      %v3023 = vsel %vm654, %v2979, 0
      %v3026 = vsel %vm654, %v2980, 0
      %v3029 = vsel %vm654, %v2981, 0
      %v3032 = vsel %vm654, %v2982, 0
      %v3035 = vsel %vm654, %v2983, 0
      %v3038 = vsel %vm654, %v2984, 0
      %v3041 = vsel %vm654, %v2985, 0
      %v3044 = vsel %vm654, %v2986, 0
      %v3047 = vsel %vm654, %v2987, 0
      %v3050 = vsel %vm654, %v2988, 0
      %v3053 = vsel %vm654, %v2989, 0
      %v3056 = vsel %vm654, %v2990, 0
      %v3059 = vsel %vm654, %v2991, 0
      %v3062 = vsel %vm654, %v2992, 0
      %v3065 = vsel %vm654, %v2993, 0
      %v3068 = vsel %vm654, %v2994, 0
      %v3071 = vsel %vm654, %v2995, 0
      %v3074 = vsel %vm654, %v2996, 0
      %v3077 = vsel %vm654, %v2997, 0
      %3079 = vmatpush.bf16.msra.mxu0 0
      %3080 = vmatpush.bf16.msra.mxu0 0
      %3081 = vmatpush.bf16.msra.mxu0 0
      %3082 = vmatpush.bf16.msra.mxu0 0
      %3083 = vmatpush.bf16.msra.mxu0 0
      %3084 = vmatpush.bf16.msra.mxu0 0
      %3085 = vmatpush.bf16.msra.mxu0 0
      %3086 = vmatpush.bf16.msra.mxu0 %v3005
      %3087 = vmatmul.bf16.gmra.mxu0 %v3008
      %v3088 = vpop.f32.mrf.mxu0
      %v3089 = vadd.f32 0.0, %v3088
      %v3090 = vpop.f32.mrf.mxu0
      %v3091 = vadd.f32 0.0, %v3090
      %3092 = vmatmul.bf16.gmra.mxu0 %v3011
      %v3093 = vpop.f32.mrf.mxu0
      %v3094 = vadd.f32 0.0, %v3093
      %v3095 = vpop.f32.mrf.mxu0
      %v3096 = vadd.f32 0.0, %v3095
      %3097 = vmatmul.bf16.gmra.mxu0 %v3014
      %v3098 = vpop.f32.mrf.mxu0
      %v3099 = vadd.f32 0.0, %v3098
      %v3100 = vpop.f32.mrf.mxu0
      %v3101 = vadd.f32 0.0, %v3100
      %3102 = vmatmul.bf16.gmra.mxu0 %v3017
      %v3103 = vpop.f32.mrf.mxu0
      %v3104 = vadd.f32 0.0, %v3103
      %v3105 = vpop.f32.mrf.mxu0
      %v3106 = vadd.f32 0.0, %v3105
      %3107 = vmatmul.bf16.gmra.mxu0 %v3020
      %v3108 = vpop.f32.mrf.mxu0
      %v3109 = vadd.f32 0.0, %v3108
      %v3110 = vpop.f32.mrf.mxu0
      %v3111 = vadd.f32 0.0, %v3110
      %3112 = vmatmul.bf16.gmra.mxu0 %v3023
      %v3113 = vpop.f32.mrf.mxu0
      %v3114 = vadd.f32 0.0, %v3113
      %v3115 = vpop.f32.mrf.mxu0
      %v3116 = vadd.f32 0.0, %v3115
      %3117 = vmatmul.bf16.gmra.mxu0 %v3026
      %v3118 = vpop.f32.mrf.mxu0
      %v3119 = vadd.f32 0.0, %v3118
      %v3120 = vpop.f32.mrf.mxu0
      %v3121 = vadd.f32 0.0, %v3120
      %3122 = vmatmul.bf16.gmra.mxu0 %v3029
      %v3123 = vpop.f32.mrf.mxu0
      %v3124 = vadd.f32 0.0, %v3123
      %v3125 = vpop.f32.mrf.mxu0
      %v3126 = vadd.f32 0.0, %v3125
      %3127 = vmatmul.bf16.gmra.mxu0 %v3032
      %v3128 = vpop.f32.mrf.mxu0
      %v3129 = vadd.f32 0.0, %v3128
      %v3130 = vpop.f32.mrf.mxu0
      %v3131 = vadd.f32 0.0, %v3130
      %3132 = vmatmul.bf16.gmra.mxu0 %v3035
      %v3133 = vpop.f32.mrf.mxu0
      %v3134 = vadd.f32 0.0, %v3133
      %v3135 = vpop.f32.mrf.mxu0
      %v3136 = vadd.f32 0.0, %v3135
      %3137 = vmatmul.bf16.gmra.mxu0 %v3038
      %v3138 = vpop.f32.mrf.mxu0
      %v3139 = vadd.f32 0.0, %v3138
      %v3140 = vpop.f32.mrf.mxu0
      %v3141 = vadd.f32 0.0, %v3140
      %3142 = vmatmul.bf16.gmra.mxu0 %v3041
      %v3143 = vpop.f32.mrf.mxu0
      %v3144 = vadd.f32 0.0, %v3143
      %v3145 = vpop.f32.mrf.mxu0
      %v3146 = vadd.f32 0.0, %v3145
      %3147 = vmatmul.bf16.gmra.mxu0 %v3044
      %v3148 = vpop.f32.mrf.mxu0
      %v3149 = vadd.f32 0.0, %v3148
      %v3150 = vpop.f32.mrf.mxu0
      %v3151 = vadd.f32 0.0, %v3150
      %3152 = vmatmul.bf16.gmra.mxu0 %v3047
      %v3153 = vpop.f32.mrf.mxu0
      %v3154 = vadd.f32 0.0, %v3153
      %v3155 = vpop.f32.mrf.mxu0
      %v3156 = vadd.f32 0.0, %v3155
      %3157 = vmatmul.bf16.gmra.mxu0 %v3050
      %v3158 = vpop.f32.mrf.mxu0
      %v3159 = vadd.f32 0.0, %v3158
      %v3160 = vpop.f32.mrf.mxu0
      %v3161 = vadd.f32 0.0, %v3160
      %3162 = vmatmul.bf16.gmra.mxu0 %v3053
      %v3163 = vpop.f32.mrf.mxu0
      %v3164 = vadd.f32 0.0, %v3163
      %v3165 = vpop.f32.mrf.mxu0
      %v3166 = vadd.f32 0.0, %v3165
      %3167 = vmatmul.bf16.gmra.mxu0 %v3056
      %v3168 = vpop.f32.mrf.mxu0
      %v3169 = vadd.f32 0.0, %v3168
      %v3170 = vpop.f32.mrf.mxu0
      %v3171 = vadd.f32 0.0, %v3170
      %3172 = vmatmul.bf16.gmra.mxu0 %v3059
      %v3173 = vpop.f32.mrf.mxu0
      %v3174 = vadd.f32 0.0, %v3173
      %v3175 = vpop.f32.mrf.mxu0
      %v3176 = vadd.f32 0.0, %v3175
      %3177 = vmatmul.bf16.gmra.mxu0 %v3062
      %v3178 = vpop.f32.mrf.mxu0
      %v3179 = vadd.f32 0.0, %v3178
      %v3180 = vpop.f32.mrf.mxu0
      %v3181 = vadd.f32 0.0, %v3180
      %3182 = vmatmul.bf16.gmra.mxu0 %v3065
      %v3183 = vpop.f32.mrf.mxu0
      %v3184 = vadd.f32 0.0, %v3183
      %v3185 = vpop.f32.mrf.mxu0
      %v3186 = vadd.f32 0.0, %v3185
      %3187 = vmatmul.bf16.gmra.mxu0 %v3068
      %v3188 = vpop.f32.mrf.mxu0
      %v3189 = vadd.f32 0.0, %v3188
      %v3190 = vpop.f32.mrf.mxu0
      %v3191 = vadd.f32 0.0, %v3190
      %3192 = vmatmul.bf16.gmra.mxu0 %v3071
      %v3193 = vpop.f32.mrf.mxu0
      %v3194 = vadd.f32 0.0, %v3193
      %v3195 = vpop.f32.mrf.mxu0
      %v3196 = vadd.f32 0.0, %v3195
      %3197 = vmatmul.bf16.gmra.mxu0 %v3074
      %v3198 = vpop.f32.mrf.mxu0
      %v3199 = vadd.f32 0.0, %v3198
      %v3200 = vpop.f32.mrf.mxu0
      %v3201 = vadd.f32 0.0, %v3200
      %3202 = vmatmul.bf16.gmra.mxu0 %v3077
      %v3203 = vpop.f32.mrf.mxu0
      %v3204 = vadd.f32 0.0, %v3203
      %v3205 = vpop.f32.mrf.mxu0
      %v3206 = vadd.f32 0.0, %v3205
      %3207 = vdwg.mxu0
      %v3208 = vadd.f32 %v2878, %v3089
      %v3209 = vadd.f32 %v2879, %v3091
      %v3210 = vadd.f32 %v2880, %v3094
      %v3211 = vadd.f32 %v2881, %v3096
      %v3212 = vadd.f32 %v2882, %v3099
      %v3213 = vadd.f32 %v2883, %v3101
      %v3214 = vadd.f32 %v2884, %v3104
      %v3215 = vadd.f32 %v2885, %v3106
      %v3216 = vadd.f32 %v2886, %v3109
      %v3217 = vadd.f32 %v2887, %v3111
      %v3218 = vadd.f32 %v2888, %v3114
      %v3219 = vadd.f32 %v2889, %v3116
      %v3220 = vadd.f32 %v2890, %v3119
      %v3221 = vadd.f32 %v2891, %v3121
      %v3222 = vadd.f32 %v2892, %v3124
      %v3223 = vadd.f32 %v2893, %v3126
      %v3224 = vadd.f32 %v2894, %v3129
      %v3225 = vadd.f32 %v2895, %v3131
      %v3226 = vadd.f32 %v2896, %v3134
      %v3227 = vadd.f32 %v2897, %v3136
      %v3228 = vadd.f32 %v2898, %v3139
      %v3229 = vadd.f32 %v2899, %v3141
      %v3230 = vadd.f32 %v2900, %v3144
      %v3231 = vadd.f32 %v2901, %v3146
      %v3232 = vadd.f32 %v2902, %v3149
      %v3233 = vadd.f32 %v2903, %v3151
      %v3234 = vadd.f32 %v2904, %v3154
      %v3235 = vadd.f32 %v2905, %v3156
      %v3236 = vadd.f32 %v2906, %v3159
      %v3237 = vadd.f32 %v2907, %v3161
      %v3238 = vadd.f32 %v2908, %v3164
      %v3239 = vadd.f32 %v2909, %v3166
      %v3240 = vadd.f32 %v2910, %v3169
      %v3241 = vadd.f32 %v2911, %v3171
      %v3242 = vadd.f32 %v2912, %v3174
      %v3243 = vadd.f32 %v2913, %v3176
      %v3244 = vadd.f32 %v2914, %v3179
      %v3245 = vadd.f32 %v2915, %v3181
      %v3246 = vadd.f32 %v2916, %v3184
      %v3247 = vadd.f32 %v2917, %v3186
      %v3248 = vadd.f32 %v2918, %v3189
      %v3249 = vadd.f32 %v2919, %v3191
      %v3250 = vadd.f32 %v2920, %v3194
      %v3251 = vadd.f32 %v2921, %v3196
      %v3252 = vadd.f32 %v2922, %v3199
      %v3253 = vadd.f32 %v2923, %v3201
      %v3254 = vadd.f32 %v2924, %v3204
      %v3255 = vadd.f32 %v2925, %v3206
      %v3256 = vld [vmem:[#allocation2 + $0x32] sm:$0xff]
      %v3257 = vld [vmem:[#allocation2 + $0x3a] sm:$0xff]
      %v3258 = vld [vmem:[#allocation2 + $0x42] sm:$0xff]
      %v3259 = vld [vmem:[#allocation2 + $0x4a] sm:$0xff]
      %v3260 = vld [vmem:[#allocation2 + $0x52] sm:$0xff]
      %v3261 = vld [vmem:[#allocation2 + $0x5a] sm:$0xff]
      %v3262 = vld [vmem:[#allocation2 + $0x62] sm:$0xff]
      %v3263 = vld [vmem:[#allocation2 + $0x6a] sm:$0xff]
      %v3264 = vld [vmem:[#allocation2 + $0x72] sm:$0xff]
      %v3265 = vld [vmem:[#allocation2 + $0x7a] sm:$0xff]
      %v3266 = vld [vmem:[#allocation2 + $0x82] sm:$0xff]
      %v3267 = vld [vmem:[#allocation2 + $0x8a] sm:$0xff]
      %v3268 = vld [vmem:[#allocation2 + $0x92] sm:$0xff]
      %v3269 = vld [vmem:[#allocation2 + $0x9a] sm:$0xff]
      %v3270 = vld [vmem:[#allocation2 + $0xa2] sm:$0xff]
      %v3271 = vld [vmem:[#allocation2 + $0xaa] sm:$0xff]
      %v3272 = vld [vmem:[#allocation2 + $0xb2] sm:$0xff]
      %v3273 = vld [vmem:[#allocation2 + $0xba] sm:$0xff]
      %v3274 = vld [vmem:[#allocation2 + $0xc2] sm:$0xff]
      %v3275 = vld [vmem:[#allocation2 + $0xca] sm:$0xff]
      %v3276 = vld [vmem:[#allocation2 + $0xd2] sm:$0xff]
      %v3277 = vld [vmem:[#allocation2 + $0xda] sm:$0xff]
      %v3278 = vld [vmem:[#allocation2 + $0xe2] sm:$0xff]
      %v3279 = vld [vmem:[#allocation2 + $0xea] sm:$0xff]
      %v3280 = vld [vmem:[#allocation2 + $0xf2] sm:$0xff]
      %v3281 = vld [vmem:[#allocation2 + $0xfa] sm:$0xff]
      %v3282 = vld [vmem:[#allocation2 + $0x102] sm:$0xff]
      %v3283 = vld [vmem:[#allocation2 + $0x10a] sm:$0xff]
      %v3284 = vld [vmem:[#allocation2 + $0x112] sm:$0xff]
      %v3285 = vld [vmem:[#allocation2 + $0x11a] sm:$0xff]
      %v3286 = vld [vmem:[#allocation2 + $0x122] sm:$0xff]
      %v3287 = vld [vmem:[#allocation2 + $0x12a] sm:$0xff]
      %v3288 = vld [vmem:[#allocation2 + $0x132] sm:$0xff]
      %v3289 = vld [vmem:[#allocation2 + $0x13a] sm:$0xff]
      %v3290 = vld [vmem:[#allocation2 + $0x142] sm:$0xff]
      %v3291 = vld [vmem:[#allocation2 + $0x14a] sm:$0xff]
      %v3292 = vld [vmem:[#allocation2 + $0x152] sm:$0xff]
      %v3293 = vld [vmem:[#allocation2 + $0x15a] sm:$0xff]
      %v3294 = vld [vmem:[#allocation2 + $0x162] sm:$0xff]
      %v3295 = vld [vmem:[#allocation2 + $0x16a] sm:$0xff]
      %v3296 = vld [vmem:[#allocation2 + $0x172] sm:$0xff]
      %v3297 = vld [vmem:[#allocation2 + $0x17a] sm:$0xff]
      %v3298 = vld [vmem:[#allocation2 + $0x182] sm:$0xff]
      %v3299 = vld [vmem:[#allocation2 + $0x18a] sm:$0xff]
      %v3300 = vld [vmem:[#allocation2 + $0x192] sm:$0xff]
      %v3301 = vld [vmem:[#allocation2 + $0x19a] sm:$0xff]
      %v3302 = vld [vmem:[#allocation2 + $0x1a2] sm:$0xff]
      %v3303 = vld [vmem:[#allocation2 + $0x1aa] sm:$0xff]
      %v3304 = vpack.c.bf16 %v3257, %v3256
      %v3305 = vpack.c.bf16 %v3259, %v3258
      %v3306 = vpack.c.bf16 %v3261, %v3260
      %v3307 = vpack.c.bf16 %v3263, %v3262
      %v3308 = vpack.c.bf16 %v3265, %v3264
      %v3309 = vpack.c.bf16 %v3267, %v3266
      %v3310 = vpack.c.bf16 %v3269, %v3268
      %v3311 = vpack.c.bf16 %v3271, %v3270
      %v3312 = vpack.c.bf16 %v3273, %v3272
      %v3313 = vpack.c.bf16 %v3275, %v3274
      %v3314 = vpack.c.bf16 %v3277, %v3276
      %v3315 = vpack.c.bf16 %v3279, %v3278
      %v3316 = vpack.c.bf16 %v3281, %v3280
      %v3317 = vpack.c.bf16 %v3283, %v3282
      %v3318 = vpack.c.bf16 %v3285, %v3284
      %v3319 = vpack.c.bf16 %v3287, %v3286
      %v3320 = vpack.c.bf16 %v3289, %v3288
      %v3321 = vpack.c.bf16 %v3291, %v3290
      %v3322 = vpack.c.bf16 %v3293, %v3292
      %v3323 = vpack.c.bf16 %v3295, %v3294
      %v3324 = vpack.c.bf16 %v3297, %v3296
      %v3325 = vpack.c.bf16 %v3299, %v3298
      %v3326 = vpack.c.bf16 %v3301, %v3300
      %v3327 = vpack.c.bf16 %v3303, %v3302
      %s3328 = scalar_lea.vmem %s2, 64
      %v3329 = vld [vmem:[%s3328] sm:$0xf]
      %v3330 = vld [vmem:[%s3328 + $0x4] sm:$0xf]
      %v3333 = vunpack.c.l.b16 %v3329
      %v3334 = vunpack.c.l.b16 %v3330
      %v3335 = vpack.c.b16 %v3334, %v3333
      %v3338 = vsel %vm654, %v3304, 0
      %v3341 = vsel %vm654, %v3305, 0
      %v3344 = vsel %vm654, %v3306, 0
      %v3347 = vsel %vm654, %v3307, 0
      %v3350 = vsel %vm654, %v3308, 0
      %v3353 = vsel %vm654, %v3309, 0
      %v3356 = vsel %vm654, %v3310, 0
      %v3359 = vsel %vm654, %v3311, 0
      %v3362 = vsel %vm654, %v3312, 0
      %v3365 = vsel %vm654, %v3313, 0
      %v3368 = vsel %vm654, %v3314, 0
      %v3371 = vsel %vm654, %v3315, 0
      %v3374 = vsel %vm654, %v3316, 0
      %v3377 = vsel %vm654, %v3317, 0
      %v3380 = vsel %vm654, %v3318, 0
      %v3383 = vsel %vm654, %v3319, 0
      %v3386 = vsel %vm654, %v3320, 0
      %v3389 = vsel %vm654, %v3321, 0
      %v3392 = vsel %vm654, %v3322, 0
      %v3395 = vsel %vm654, %v3323, 0
      %v3398 = vsel %vm654, %v3324, 0
      %v3401 = vsel %vm654, %v3325, 0
      %v3404 = vsel %vm654, %v3326, 0
      %v3407 = vsel %vm654, %v3327, 0
      %3409 = vmatpush.bf16.msra.mxu0 0
      %3410 = vmatpush.bf16.msra.mxu0 0
      %3411 = vmatpush.bf16.msra.mxu0 0
      %3412 = vmatpush.bf16.msra.mxu0 0
      %3413 = vmatpush.bf16.msra.mxu0 0
      %3414 = vmatpush.bf16.msra.mxu0 0
      %3415 = vmatpush.bf16.msra.mxu0 0
      %3416 = vmatpush.bf16.msra.mxu0 %v3335
      %3417 = vmatmul.bf16.gmra.mxu0 %v3338
      %v3418 = vpop.f32.mrf.mxu0
      %v3419 = vadd.f32 0.0, %v3418
      %v3420 = vpop.f32.mrf.mxu0
      %v3421 = vadd.f32 0.0, %v3420
      %3422 = vmatmul.bf16.gmra.mxu0 %v3341
      %v3423 = vpop.f32.mrf.mxu0
      %v3424 = vadd.f32 0.0, %v3423
      %v3425 = vpop.f32.mrf.mxu0
      %v3426 = vadd.f32 0.0, %v3425
      %3427 = vmatmul.bf16.gmra.mxu0 %v3344
      %v3428 = vpop.f32.mrf.mxu0
      %v3429 = vadd.f32 0.0, %v3428
      %v3430 = vpop.f32.mrf.mxu0
      %v3431 = vadd.f32 0.0, %v3430
      %3432 = vmatmul.bf16.gmra.mxu0 %v3347
      %v3433 = vpop.f32.mrf.mxu0
      %v3434 = vadd.f32 0.0, %v3433
      %v3435 = vpop.f32.mrf.mxu0
      %v3436 = vadd.f32 0.0, %v3435
      %3437 = vmatmul.bf16.gmra.mxu0 %v3350
      %v3438 = vpop.f32.mrf.mxu0
      %v3439 = vadd.f32 0.0, %v3438
      %v3440 = vpop.f32.mrf.mxu0
      %v3441 = vadd.f32 0.0, %v3440
      %3442 = vmatmul.bf16.gmra.mxu0 %v3353
      %v3443 = vpop.f32.mrf.mxu0
      %v3444 = vadd.f32 0.0, %v3443
      %v3445 = vpop.f32.mrf.mxu0
      %v3446 = vadd.f32 0.0, %v3445
      %3447 = vmatmul.bf16.gmra.mxu0 %v3356
      %v3448 = vpop.f32.mrf.mxu0
      %v3449 = vadd.f32 0.0, %v3448
      %v3450 = vpop.f32.mrf.mxu0
      %v3451 = vadd.f32 0.0, %v3450
      %3452 = vmatmul.bf16.gmra.mxu0 %v3359
      %v3453 = vpop.f32.mrf.mxu0
      %v3454 = vadd.f32 0.0, %v3453
      %v3455 = vpop.f32.mrf.mxu0
      %v3456 = vadd.f32 0.0, %v3455
      %3457 = vmatmul.bf16.gmra.mxu0 %v3362
      %v3458 = vpop.f32.mrf.mxu0
      %v3459 = vadd.f32 0.0, %v3458
      %v3460 = vpop.f32.mrf.mxu0
      %v3461 = vadd.f32 0.0, %v3460
      %3462 = vmatmul.bf16.gmra.mxu0 %v3365
      %v3463 = vpop.f32.mrf.mxu0
      %v3464 = vadd.f32 0.0, %v3463
      %v3465 = vpop.f32.mrf.mxu0
      %v3466 = vadd.f32 0.0, %v3465
      %3467 = vmatmul.bf16.gmra.mxu0 %v3368
      %v3468 = vpop.f32.mrf.mxu0
      %v3469 = vadd.f32 0.0, %v3468
      %v3470 = vpop.f32.mrf.mxu0
      %v3471 = vadd.f32 0.0, %v3470
      %3472 = vmatmul.bf16.gmra.mxu0 %v3371
      %v3473 = vpop.f32.mrf.mxu0
      %v3474 = vadd.f32 0.0, %v3473
      %v3475 = vpop.f32.mrf.mxu0
      %v3476 = vadd.f32 0.0, %v3475
      %3477 = vmatmul.bf16.gmra.mxu0 %v3374
      %v3478 = vpop.f32.mrf.mxu0
      %v3479 = vadd.f32 0.0, %v3478
      %v3480 = vpop.f32.mrf.mxu0
      %v3481 = vadd.f32 0.0, %v3480
      %3482 = vmatmul.bf16.gmra.mxu0 %v3377
      %v3483 = vpop.f32.mrf.mxu0
      %v3484 = vadd.f32 0.0, %v3483
      %v3485 = vpop.f32.mrf.mxu0
      %v3486 = vadd.f32 0.0, %v3485
      %3487 = vmatmul.bf16.gmra.mxu0 %v3380
      %v3488 = vpop.f32.mrf.mxu0
      %v3489 = vadd.f32 0.0, %v3488
      %v3490 = vpop.f32.mrf.mxu0
      %v3491 = vadd.f32 0.0, %v3490
      %3492 = vmatmul.bf16.gmra.mxu0 %v3383
      %v3493 = vpop.f32.mrf.mxu0
      %v3494 = vadd.f32 0.0, %v3493
      %v3495 = vpop.f32.mrf.mxu0
      %v3496 = vadd.f32 0.0, %v3495
      %3497 = vmatmul.bf16.gmra.mxu0 %v3386
      %v3498 = vpop.f32.mrf.mxu0
      %v3499 = vadd.f32 0.0, %v3498
      %v3500 = vpop.f32.mrf.mxu0
      %v3501 = vadd.f32 0.0, %v3500
      %3502 = vmatmul.bf16.gmra.mxu0 %v3389
      %v3503 = vpop.f32.mrf.mxu0
      %v3504 = vadd.f32 0.0, %v3503
      %v3505 = vpop.f32.mrf.mxu0
      %v3506 = vadd.f32 0.0, %v3505
      %3507 = vmatmul.bf16.gmra.mxu0 %v3392
      %v3508 = vpop.f32.mrf.mxu0
      %v3509 = vadd.f32 0.0, %v3508
      %v3510 = vpop.f32.mrf.mxu0
      %v3511 = vadd.f32 0.0, %v3510
      %3512 = vmatmul.bf16.gmra.mxu0 %v3395
      %v3513 = vpop.f32.mrf.mxu0
      %v3514 = vadd.f32 0.0, %v3513
      %v3515 = vpop.f32.mrf.mxu0
      %v3516 = vadd.f32 0.0, %v3515
      %3517 = vmatmul.bf16.gmra.mxu0 %v3398
      %v3518 = vpop.f32.mrf.mxu0
      %v3519 = vadd.f32 0.0, %v3518
      %v3520 = vpop.f32.mrf.mxu0
      %v3521 = vadd.f32 0.0, %v3520
      %3522 = vmatmul.bf16.gmra.mxu0 %v3401
      %v3523 = vpop.f32.mrf.mxu0
      %v3524 = vadd.f32 0.0, %v3523
      %v3525 = vpop.f32.mrf.mxu0
      %v3526 = vadd.f32 0.0, %v3525
      %3527 = vmatmul.bf16.gmra.mxu0 %v3404
      %v3528 = vpop.f32.mrf.mxu0
      %v3529 = vadd.f32 0.0, %v3528
      %v3530 = vpop.f32.mrf.mxu0
      %v3531 = vadd.f32 0.0, %v3530
      %3532 = vmatmul.bf16.gmra.mxu0 %v3407
      %v3533 = vpop.f32.mrf.mxu0
      %v3534 = vadd.f32 0.0, %v3533
      %v3535 = vpop.f32.mrf.mxu0
      %v3536 = vadd.f32 0.0, %v3535
      %3537 = vdwg.mxu0
      %v3538 = vadd.f32 %v3208, %v3419
      %v3539 = vadd.f32 %v3209, %v3421
      %v3540 = vadd.f32 %v3210, %v3424
      %v3541 = vadd.f32 %v3211, %v3426
      %v3542 = vadd.f32 %v3212, %v3429
      %v3543 = vadd.f32 %v3213, %v3431
      %v3544 = vadd.f32 %v3214, %v3434
      %v3545 = vadd.f32 %v3215, %v3436
      %v3546 = vadd.f32 %v3216, %v3439
      %v3547 = vadd.f32 %v3217, %v3441
      %v3548 = vadd.f32 %v3218, %v3444
      %v3549 = vadd.f32 %v3219, %v3446
      %v3550 = vadd.f32 %v3220, %v3449
      %v3551 = vadd.f32 %v3221, %v3451
      %v3552 = vadd.f32 %v3222, %v3454
      %v3553 = vadd.f32 %v3223, %v3456
      %v3554 = vadd.f32 %v3224, %v3459
      %v3555 = vadd.f32 %v3225, %v3461
      %v3556 = vadd.f32 %v3226, %v3464
      %v3557 = vadd.f32 %v3227, %v3466
      %v3558 = vadd.f32 %v3228, %v3469
      %v3559 = vadd.f32 %v3229, %v3471
      %v3560 = vadd.f32 %v3230, %v3474
      %v3561 = vadd.f32 %v3231, %v3476
      %v3562 = vadd.f32 %v3232, %v3479
      %v3563 = vadd.f32 %v3233, %v3481
      %v3564 = vadd.f32 %v3234, %v3484
      %v3565 = vadd.f32 %v3235, %v3486
      %v3566 = vadd.f32 %v3236, %v3489
      %v3567 = vadd.f32 %v3237, %v3491
      %v3568 = vadd.f32 %v3238, %v3494
      %v3569 = vadd.f32 %v3239, %v3496
      %v3570 = vadd.f32 %v3240, %v3499
      %v3571 = vadd.f32 %v3241, %v3501
      %v3572 = vadd.f32 %v3242, %v3504
      %v3573 = vadd.f32 %v3243, %v3506
      %v3574 = vadd.f32 %v3244, %v3509
      %v3575 = vadd.f32 %v3245, %v3511
      %v3576 = vadd.f32 %v3246, %v3514
      %v3577 = vadd.f32 %v3247, %v3516
      %v3578 = vadd.f32 %v3248, %v3519
      %v3579 = vadd.f32 %v3249, %v3521
      %v3580 = vadd.f32 %v3250, %v3524
      %v3581 = vadd.f32 %v3251, %v3526
      %v3582 = vadd.f32 %v3252, %v3529
      %v3583 = vadd.f32 %v3253, %v3531
      %v3584 = vadd.f32 %v3254, %v3534
      %v3585 = vadd.f32 %v3255, %v3536
      %v3586 = vld [vmem:[%s6 + $0x2] sm:$0x1]
      %v3587 = vld [vmem:[%s6 + $0x3] sm:$0x1]
      %v3588 = vperm.slane %v3586, 0
      %v3589 = vmul.f32 %v3538, %v3588
      %v3590 = vmul.f32 %v3539, %v3588
      %v3591 = vmul.f32 %v3540, %v3588
      %v3592 = vmul.f32 %v3541, %v3588
      %v3593 = vmul.f32 %v3542, %v3588
      %v3594 = vmul.f32 %v3543, %v3588
      %v3595 = vmul.f32 %v3544, %v3588
      %v3596 = vmul.f32 %v3545, %v3588
      %v3597 = vmul.f32 %v3546, %v3588
      %v3598 = vmul.f32 %v3547, %v3588
      %v3599 = vmul.f32 %v3548, %v3588
      %v3600 = vmul.f32 %v3549, %v3588
      %v3601 = vmul.f32 %v3550, %v3588
      %v3602 = vmul.f32 %v3551, %v3588
      %v3603 = vmul.f32 %v3552, %v3588
      %v3604 = vmul.f32 %v3553, %v3588
      %v3605 = vmul.f32 %v3554, %v3588
      %v3606 = vmul.f32 %v3555, %v3588
      %v3607 = vmul.f32 %v3556, %v3588
      %v3608 = vmul.f32 %v3557, %v3588
      %v3609 = vmul.f32 %v3558, %v3588
      %v3610 = vmul.f32 %v3559, %v3588
      %v3611 = vmul.f32 %v3560, %v3588
      %v3612 = vmul.f32 %v3561, %v3588
      %v3613 = vmul.f32 %v3562, %v3588
      %v3614 = vmul.f32 %v3563, %v3588
      %v3615 = vmul.f32 %v3564, %v3588
      %v3616 = vmul.f32 %v3565, %v3588
      %v3617 = vmul.f32 %v3566, %v3588
      %v3618 = vmul.f32 %v3567, %v3588
      %v3619 = vmul.f32 %v3568, %v3588
      %v3620 = vmul.f32 %v3569, %v3588
      %v3621 = vmul.f32 %v3570, %v3588
      %v3622 = vmul.f32 %v3571, %v3588
      %v3623 = vmul.f32 %v3572, %v3588
      %v3624 = vmul.f32 %v3573, %v3588
      %v3625 = vmul.f32 %v3574, %v3588
      %v3626 = vmul.f32 %v3575, %v3588
      %v3627 = vmul.f32 %v3576, %v3588
      %v3628 = vmul.f32 %v3577, %v3588
      %v3629 = vmul.f32 %v3578, %v3588
      %v3630 = vmul.f32 %v3579, %v3588
      %v3631 = vmul.f32 %v3580, %v3588
      %v3632 = vmul.f32 %v3581, %v3588
      %v3633 = vmul.f32 %v3582, %v3588
      %v3634 = vmul.f32 %v3583, %v3588
      %v3635 = vmul.f32 %v3584, %v3588
      %v3636 = vmul.f32 %v3585, %v3588
      %v3637 = vperm.slane %v3587, 0
      %v3638 = vadd.f32 %v3589, %v3637
      %v3639 = vadd.f32 %v3590, %v3637
      %v3640 = vadd.f32 %v3591, %v3637
      %v3641 = vadd.f32 %v3592, %v3637
      %v3642 = vadd.f32 %v3593, %v3637
      %v3643 = vadd.f32 %v3594, %v3637
      %v3644 = vadd.f32 %v3595, %v3637
      %v3645 = vadd.f32 %v3596, %v3637
      %v3646 = vadd.f32 %v3597, %v3637
      %v3647 = vadd.f32 %v3598, %v3637
      %v3648 = vadd.f32 %v3599, %v3637
      %v3649 = vadd.f32 %v3600, %v3637
      %v3650 = vadd.f32 %v3601, %v3637
      %v3651 = vadd.f32 %v3602, %v3637
      %v3652 = vadd.f32 %v3603, %v3637
      %v3653 = vadd.f32 %v3604, %v3637
      %v3654 = vadd.f32 %v3605, %v3637
      %v3655 = vadd.f32 %v3606, %v3637
      %v3656 = vadd.f32 %v3607, %v3637
      %v3657 = vadd.f32 %v3608, %v3637
      %v3658 = vadd.f32 %v3609, %v3637
      %v3659 = vadd.f32 %v3610, %v3637
      %v3660 = vadd.f32 %v3611, %v3637
      %v3661 = vadd.f32 %v3612, %v3637
      %v3662 = vadd.f32 %v3613, %v3637
      %v3663 = vadd.f32 %v3614, %v3637
      %v3664 = vadd.f32 %v3615, %v3637
      %v3665 = vadd.f32 %v3616, %v3637
      %v3666 = vadd.f32 %v3617, %v3637
      %v3667 = vadd.f32 %v3618, %v3637
      %v3668 = vadd.f32 %v3619, %v3637
      %v3669 = vadd.f32 %v3620, %v3637
      %v3670 = vadd.f32 %v3621, %v3637
      %v3671 = vadd.f32 %v3622, %v3637
      %v3672 = vadd.f32 %v3623, %v3637
      %v3673 = vadd.f32 %v3624, %v3637
      %v3674 = vadd.f32 %v3625, %v3637
      %v3675 = vadd.f32 %v3626, %v3637
      %v3676 = vadd.f32 %v3627, %v3637
      %v3677 = vadd.f32 %v3628, %v3637
      %v3678 = vadd.f32 %v3629, %v3637
      %v3679 = vadd.f32 %v3630, %v3637
      %v3680 = vadd.f32 %v3631, %v3637
      %v3681 = vadd.f32 %v3632, %v3637
      %v3682 = vadd.f32 %v3633, %v3637
      %v3683 = vadd.f32 %v3634, %v3637
      %v3684 = vadd.f32 %v3635, %v3637
      %v3685 = vadd.f32 %v3636, %v3637
      %v3686 = vmax.f32 %v3638, 0.0
      %v3687 = vmax.f32 %v3639, 0.0
      %v3688 = vmax.f32 %v3640, 0.0
      %v3689 = vmax.f32 %v3641, 0.0
      %v3690 = vmax.f32 %v3642, 0.0
      %v3691 = vmax.f32 %v3643, 0.0
      %v3692 = vmax.f32 %v3644, 0.0
      %v3693 = vmax.f32 %v3645, 0.0
      %v3694 = vmax.f32 %v3646, 0.0
      %v3695 = vmax.f32 %v3647, 0.0
      %v3696 = vmax.f32 %v3648, 0.0
      %v3697 = vmax.f32 %v3649, 0.0
      %v3698 = vmax.f32 %v3650, 0.0
      %v3699 = vmax.f32 %v3651, 0.0
      %v3700 = vmax.f32 %v3652, 0.0
      %v3701 = vmax.f32 %v3653, 0.0
      %v3702 = vmax.f32 %v3654, 0.0
      %v3703 = vmax.f32 %v3655, 0.0
      %v3704 = vmax.f32 %v3656, 0.0
      %v3705 = vmax.f32 %v3657, 0.0
      %v3706 = vmax.f32 %v3658, 0.0
      %v3707 = vmax.f32 %v3659, 0.0
      %v3708 = vmax.f32 %v3660, 0.0
      %v3709 = vmax.f32 %v3661, 0.0
      %v3710 = vmax.f32 %v3662, 0.0
      %v3711 = vmax.f32 %v3663, 0.0
      %v3712 = vmax.f32 %v3664, 0.0
      %v3713 = vmax.f32 %v3665, 0.0
      %v3714 = vmax.f32 %v3666, 0.0
      %v3715 = vmax.f32 %v3667, 0.0
      %v3716 = vmax.f32 %v3668, 0.0
      %v3717 = vmax.f32 %v3669, 0.0
      %v3718 = vmax.f32 %v3670, 0.0
      %v3719 = vmax.f32 %v3671, 0.0
      %v3720 = vmax.f32 %v3672, 0.0
      %v3721 = vmax.f32 %v3673, 0.0
      %v3722 = vmax.f32 %v3674, 0.0
      %v3723 = vmax.f32 %v3675, 0.0
      %v3724 = vmax.f32 %v3676, 0.0
      %v3725 = vmax.f32 %v3677, 0.0
      %v3726 = vmax.f32 %v3678, 0.0
      %v3727 = vmax.f32 %v3679, 0.0
      %v3728 = vmax.f32 %v3680, 0.0
      %v3729 = vmax.f32 %v3681, 0.0
      %v3730 = vmax.f32 %v3682, 0.0
      %v3731 = vmax.f32 %v3683, 0.0
      %v3732 = vmax.f32 %v3684, 0.0
      %v3733 = vmax.f32 %v3685, 0.0
      %vm3779 = vcmask 1046528
      %v3780 = vrot.slane %v3686, 1
      %v3781 = vrot.slane %v3687, 1
      %v3782 = vsel %vm3779, %v3780, %v3781
      %v3783 = vrot.slane %v3688, 1
      %v3784 = vsel %vm3779, %v3781, %v3783
      %v3785 = vrot.slane %v3689, 1
      %v3786 = vsel %vm3779, %v3783, %v3785
      %v3787 = vrot.slane %v3690, 1
      %v3788 = vsel %vm3779, %v3785, %v3787
      %v3789 = vrot.slane %v3691, 1
      %v3790 = vsel %vm3779, %v3787, %v3789
      %v3791 = vrot.slane %v3692, 1
      %v3792 = vsel %vm3779, %v3789, %v3791
      %v3793 = vrot.slane %v3693, 1
      %v3794 = vsel %vm3779, %v3791, %v3793
      %v3795 = vrot.slane %v3694, 1
      %v3796 = vsel %vm3779, %v3793, %v3795
      %v3797 = vrot.slane %v3695, 1
      %v3798 = vsel %vm3779, %v3795, %v3797
      %v3799 = vrot.slane %v3696, 1
      %v3800 = vsel %vm3779, %v3797, %v3799
      %v3801 = vrot.slane %v3697, 1
      %v3802 = vsel %vm3779, %v3799, %v3801
      %v3803 = vrot.slane %v3698, 1
      %v3804 = vsel %vm3779, %v3801, %v3803
      %v3805 = vrot.slane %v3699, 1
      %v3806 = vsel %vm3779, %v3803, %v3805
      %v3807 = vrot.slane %v3700, 1
      %v3808 = vsel %vm3779, %v3805, %v3807
      %v3809 = vrot.slane %v3701, 1
      %v3810 = vsel %vm3779, %v3807, %v3809
      %v3811 = vrot.slane %v3702, 1
      %v3812 = vsel %vm3779, %v3809, %v3811
      %v3813 = vrot.slane %v3703, 1
      %v3814 = vsel %vm3779, %v3811, %v3813
      %v3815 = vrot.slane %v3704, 1
      %v3816 = vsel %vm3779, %v3813, %v3815
      %v3817 = vrot.slane %v3705, 1
      %v3818 = vsel %vm3779, %v3815, %v3817
      %v3819 = vrot.slane %v3706, 1
      %v3820 = vsel %vm3779, %v3817, %v3819
      %v3821 = vrot.slane %v3707, 1
      %v3822 = vsel %vm3779, %v3819, %v3821
      %v3823 = vrot.slane %v3708, 1
      %v3824 = vsel %vm3779, %v3821, %v3823
      %v3825 = vrot.slane %v3709, 1
      %v3826 = vsel %vm3779, %v3823, %v3825
      %v3827 = vrot.slane %v3710, 1
      %v3828 = vsel %vm3779, %v3825, %v3827
      %v3829 = vrot.slane %v3711, 1
      %v3830 = vsel %vm3779, %v3827, %v3829
      %v3831 = vrot.slane %v3712, 1
      %v3832 = vsel %vm3779, %v3829, %v3831
      %v3833 = vrot.slane %v3713, 1
      %v3834 = vsel %vm3779, %v3831, %v3833
      %v3835 = vrot.slane %v3714, 1
      %v3836 = vsel %vm3779, %v3833, %v3835
      %v3837 = vrot.slane %v3715, 1
      %v3838 = vsel %vm3779, %v3835, %v3837
      %v3839 = vrot.slane %v3716, 1
      %v3840 = vsel %vm3779, %v3837, %v3839
      %v3841 = vrot.slane %v3717, 1
      %v3842 = vsel %vm3779, %v3839, %v3841
      %v3843 = vrot.slane %v3718, 1
      %v3844 = vsel %vm3779, %v3841, %v3843
      %v3845 = vrot.slane %v3719, 1
      %v3846 = vsel %vm3779, %v3843, %v3845
      %v3847 = vrot.slane %v3720, 1
      %v3848 = vsel %vm3779, %v3845, %v3847
      %v3849 = vrot.slane %v3721, 1
      %v3850 = vsel %vm3779, %v3847, %v3849
      %v3851 = vrot.slane %v3722, 1
      %v3852 = vsel %vm3779, %v3849, %v3851
      %v3853 = vrot.slane %v3723, 1
      %v3854 = vsel %vm3779, %v3851, %v3853
      %v3855 = vrot.slane %v3724, 1
      %v3856 = vsel %vm3779, %v3853, %v3855
      %v3857 = vrot.slane %v3725, 1
      %v3858 = vsel %vm3779, %v3855, %v3857
      %v3859 = vrot.slane %v3726, 1
      %v3860 = vsel %vm3779, %v3857, %v3859
      %v3861 = vrot.slane %v3727, 1
      %v3862 = vsel %vm3779, %v3859, %v3861
      %v3863 = vrot.slane %v3728, 1
      %v3864 = vsel %vm3779, %v3861, %v3863
      %v3865 = vrot.slane %v3729, 1
      %v3866 = vsel %vm3779, %v3863, %v3865
      %v3867 = vrot.slane %v3730, 1
      %v3868 = vsel %vm3779, %v3865, %v3867
      %v3914 = vmax.f32 %v3686, %v3782
      %v3915 = vmax.f32 %v3687, %v3784
      %v3916 = vmax.f32 %v3688, %v3786
      %v3917 = vmax.f32 %v3689, %v3788
      %v3918 = vmax.f32 %v3690, %v3790
      %v3919 = vmax.f32 %v3691, %v3792
      %v3920 = vmax.f32 %v3692, %v3794
      %v3921 = vmax.f32 %v3693, %v3796
      %v3922 = vmax.f32 %v3694, %v3798
      %v3923 = vmax.f32 %v3695, %v3800
      %v3924 = vmax.f32 %v3696, %v3802
      %v3925 = vmax.f32 %v3697, %v3804
      %v3926 = vmax.f32 %v3698, %v3806
      %v3927 = vmax.f32 %v3699, %v3808
      %v3928 = vmax.f32 %v3700, %v3810
      %v3929 = vmax.f32 %v3701, %v3812
      %v3930 = vmax.f32 %v3702, %v3814
      %v3931 = vmax.f32 %v3703, %v3816
      %v3932 = vmax.f32 %v3704, %v3818
      %v3933 = vmax.f32 %v3705, %v3820
      %v3934 = vmax.f32 %v3706, %v3822
      %v3935 = vmax.f32 %v3707, %v3824
      %v3936 = vmax.f32 %v3708, %v3826
      %v3937 = vmax.f32 %v3709, %v3828
      %v3938 = vmax.f32 %v3710, %v3830
      %v3939 = vmax.f32 %v3711, %v3832
      %v3940 = vmax.f32 %v3712, %v3834
      %v3941 = vmax.f32 %v3713, %v3836
      %v3942 = vmax.f32 %v3714, %v3838
      %v3943 = vmax.f32 %v3715, %v3840
      %v3944 = vmax.f32 %v3716, %v3842
      %v3945 = vmax.f32 %v3717, %v3844
      %v3946 = vmax.f32 %v3718, %v3846
      %v3947 = vmax.f32 %v3719, %v3848
      %v3948 = vmax.f32 %v3720, %v3850
      %v3949 = vmax.f32 %v3721, %v3852
      %v3950 = vmax.f32 %v3722, %v3854
      %v3951 = vmax.f32 %v3723, %v3856
      %v3952 = vmax.f32 %v3724, %v3858
      %v3953 = vmax.f32 %v3725, %v3860
      %v3954 = vmax.f32 %v3726, %v3862
      %v3955 = vmax.f32 %v3727, %v3864
      %v3956 = vmax.f32 %v3728, %v3866
      %v3957 = vmax.f32 %v3729, %v3868
      %v3958 = vmax.f32 %v3730, %v3867
      %v3962 = vrot.slane %v3731, 1
      %v3963 = vsel %vm3779, %v3867, %v3962
      %v3964 = vrot.slane %v3732, 1
      %v3965 = vsel %vm3779, %v3962, %v3964
      %v3966 = vrot.slane %v3733, 1
      %v3967 = vsel %vm3779, %v3964, %v3966
      %v3972 = vmax.f32 %v3730, %v3963
      %v3973 = vmax.f32 %v3731, %v3965
      %v3974 = vmax.f32 %v3732, %v3967
      %v3975 = vmax.f32 %v3733, %v3966
      %v3976 = vmax.f32 %v3914, %v3917
      %v3977 = vmax.f32 %v3915, %v3918
      %v3978 = vmax.f32 %v3916, %v3919
      %v3979 = vmax.f32 %v3917, %v3920
      %v3980 = vmax.f32 %v3918, %v3921
      %v3981 = vmax.f32 %v3919, %v3922
      %v3982 = vmax.f32 %v3920, %v3923
      %v3983 = vmax.f32 %v3921, %v3924
      %v3984 = vmax.f32 %v3922, %v3925
      %v3985 = vmax.f32 %v3923, %v3926
      %v3986 = vmax.f32 %v3924, %v3927
      %v3987 = vmax.f32 %v3925, %v3928
      %v3988 = vmax.f32 %v3926, %v3929
      %v3989 = vmax.f32 %v3927, %v3930
      %v3990 = vmax.f32 %v3928, %v3931
      %v3991 = vmax.f32 %v3929, %v3932
      %v3992 = vmax.f32 %v3930, %v3933
      %v3993 = vmax.f32 %v3931, %v3934
      %v3994 = vmax.f32 %v3932, %v3935
      %v3995 = vmax.f32 %v3933, %v3936
      %v3996 = vmax.f32 %v3934, %v3937
      %v3997 = vmax.f32 %v3935, %v3938
      %v3998 = vmax.f32 %v3936, %v3939
      %v3999 = vmax.f32 %v3937, %v3940
      %v4000 = vmax.f32 %v3938, %v3941
      %v4001 = vmax.f32 %v3939, %v3942
      %v4002 = vmax.f32 %v3940, %v3943
      %v4003 = vmax.f32 %v3941, %v3944
      %v4004 = vmax.f32 %v3942, %v3945
      %v4005 = vmax.f32 %v3943, %v3946
      %v4006 = vmax.f32 %v3944, %v3947
      %v4007 = vmax.f32 %v3945, %v3948
      %v4008 = vmax.f32 %v3946, %v3949
      %v4009 = vmax.f32 %v3947, %v3950
      %v4010 = vmax.f32 %v3948, %v3951
      %v4011 = vmax.f32 %v3949, %v3952
      %v4012 = vmax.f32 %v3950, %v3953
      %v4013 = vmax.f32 %v3951, %v3954
      %v4014 = vmax.f32 %v3952, %v3955
      %v4015 = vmax.f32 %v3953, %v3956
      %v4016 = vmax.f32 %v3954, %v3957
      %v4017 = vmax.f32 %v3955, %v3972
      %v4018 = vmax.f32 %v3956, %v3973
      %v4019 = vmax.f32 %v3957, %v3974
      %v4020 = vmax.f32 %v3958, %v3975
      %vm4021 = vcmask 261120
      %4022 = vst.msk [vmem:[#allocation6] sm:$0xff] %vm4021, %v3976
      %4023 = vst.msk [vmem:[#allocation6 + $0x8] sm:$0xff] %vm4021, %v3977
      %4024 = vst.msk [vmem:[#allocation6 + $0x10] sm:$0xff] %vm4021, %v3978
      %4025 = vst.msk [vmem:[#allocation6 + $0x18] sm:$0xff] %vm4021, %v3979
      %4026 = vst.msk [vmem:[#allocation6 + $0x20] sm:$0xff] %vm4021, %v3980
      %4027 = vst.msk [vmem:[#allocation6 + $0x28] sm:$0xff] %vm4021, %v3981
      %4028 = vst.msk [vmem:[#allocation6 + $0x30] sm:$0xff] %vm4021, %v3982
      %4029 = vst.msk [vmem:[#allocation6 + $0x38] sm:$0xff] %vm4021, %v3983
      %4030 = vst.msk [vmem:[#allocation6 + $0x40] sm:$0xff] %vm4021, %v3984
      %4031 = vst.msk [vmem:[#allocation6 + $0x48] sm:$0xff] %vm4021, %v3985
      %4032 = vst.msk [vmem:[#allocation6 + $0x50] sm:$0xff] %vm4021, %v3986
      %4033 = vst.msk [vmem:[#allocation6 + $0x58] sm:$0xff] %vm4021, %v3987
      %4034 = vst.msk [vmem:[#allocation6 + $0x60] sm:$0xff] %vm4021, %v3988
      %4035 = vst.msk [vmem:[#allocation6 + $0x68] sm:$0xff] %vm4021, %v3989
      %4036 = vst.msk [vmem:[#allocation6 + $0x70] sm:$0xff] %vm4021, %v3990
      %4037 = vst.msk [vmem:[#allocation6 + $0x78] sm:$0xff] %vm4021, %v3991
      %4038 = vst.msk [vmem:[#allocation6 + $0x80] sm:$0xff] %vm4021, %v3992
      %4039 = vst.msk [vmem:[#allocation6 + $0x88] sm:$0xff] %vm4021, %v3993
      %4040 = vst.msk [vmem:[#allocation6 + $0x90] sm:$0xff] %vm4021, %v3994
      %4041 = vst.msk [vmem:[#allocation6 + $0x98] sm:$0xff] %vm4021, %v3995
      %4042 = vst.msk [vmem:[#allocation6 + $0xa0] sm:$0xff] %vm4021, %v3996
      %4043 = vst.msk [vmem:[#allocation6 + $0xa8] sm:$0xff] %vm4021, %v3997
      %4044 = vst.msk [vmem:[#allocation6 + $0xb0] sm:$0xff] %vm4021, %v3998
      %4045 = vst.msk [vmem:[#allocation6 + $0xb8] sm:$0xff] %vm4021, %v3999
      %4046 = vst.msk [vmem:[#allocation6 + $0xc0] sm:$0xff] %vm4021, %v4000
      %4047 = vst.msk [vmem:[#allocation6 + $0xc8] sm:$0xff] %vm4021, %v4001
      %4048 = vst.msk [vmem:[#allocation6 + $0xd0] sm:$0xff] %vm4021, %v4002
      %4049 = vst.msk [vmem:[#allocation6 + $0xd8] sm:$0xff] %vm4021, %v4003
      %4050 = vst.msk [vmem:[#allocation6 + $0xe0] sm:$0xff] %vm4021, %v4004
      %4051 = vst.msk [vmem:[#allocation6 + $0xe8] sm:$0xff] %vm4021, %v4005
      %4052 = vst.msk [vmem:[#allocation6 + $0xf0] sm:$0xff] %vm4021, %v4006
      %4053 = vst.msk [vmem:[#allocation6 + $0xf8] sm:$0xff] %vm4021, %v4007
      %4054 = vst.msk [vmem:[#allocation6 + $0x100] sm:$0xff] %vm4021, %v4008
      %4055 = vst.msk [vmem:[#allocation6 + $0x108] sm:$0xff] %vm4021, %v4009
      %4056 = vst.msk [vmem:[#allocation6 + $0x110] sm:$0xff] %vm4021, %v4010
      %4057 = vst.msk [vmem:[#allocation6 + $0x118] sm:$0xff] %vm4021, %v4011
      %4058 = vst.msk [vmem:[#allocation6 + $0x120] sm:$0xff] %vm4021, %v4012
      %4059 = vst.msk [vmem:[#allocation6 + $0x128] sm:$0xff] %vm4021, %v4013
      %4060 = vst.msk [vmem:[#allocation6 + $0x130] sm:$0xff] %vm4021, %v4014
      %4061 = vst.msk [vmem:[#allocation6 + $0x138] sm:$0xff] %vm4021, %v4015
      %4062 = vst.msk [vmem:[#allocation6 + $0x140] sm:$0xff] %vm4021, %v4016
      %4063 = vst.msk [vmem:[#allocation6 + $0x148] sm:$0xff] %vm4021, %v4017
      %4064 = vst.msk [vmem:[#allocation6 + $0x150] sm:$0xff] %vm4021, %v4018
      %4065 = vst.msk [vmem:[#allocation6 + $0x158] sm:$0xff] %vm4021, %v4019
      %vm4066 = vcmask 260096
      %4067 = vst.msk [vmem:[#allocation6 + $0x160] sm:$0x7f] %vm4066, %v4020
      %4068 = vst.msk [vmem:[#allocation3] sm:$0xff] %vm4021, 0.0
      %4069 = vst.msk [vmem:[#allocation3 + $0x8] sm:$0xff] %vm4021, 0.0
      %vm4070 = vcmask 253952
      %4071 = vst.msk [vmem:[#allocation3 + $0x10] sm:$0x1] %vm4070, 0.0
      %v4072 = vld [vmem:[#allocation6] ss:$2 sm:$0xff]
      %4073 = vst.msk [vmem:[#allocation3 + $0x11] sm:$0xff] %vm4021, %v4072
      %4074 = vst.msk [vmem:[#allocation3 + $0x19] sm:$0xff] %vm4021, 0.0
      %s4075 = scalar_lea.vmem [#allocation6], 48
      %v4076 = vld [vmem:[%s4075] ss:$2 sm:$0xff]
      %4077 = vst.msk [vmem:[#allocation3 + $0x21] sm:$0xff] %vm4021, %v4076
      %4078 = vst.msk [vmem:[#allocation3 + $0x29] sm:$0xff] %vm4021, 0.0
      %s4079 = scalar_lea.vmem [#allocation6], 96
      %v4080 = vld [vmem:[%s4079] ss:$2 sm:$0xff]
      %4081 = vst.msk [vmem:[#allocation3 + $0x31] sm:$0xff] %vm4021, %v4080
      %4082 = vst.msk [vmem:[#allocation3 + $0x39] sm:$0xff] %vm4021, 0.0
      %s4083 = scalar_lea.vmem [#allocation6], 144
      %v4084 = vld [vmem:[%s4083] ss:$2 sm:$0xff]
      %4085 = vst.msk [vmem:[#allocation3 + $0x41] sm:$0xff] %vm4021, %v4084
      %4086 = vst.msk [vmem:[#allocation3 + $0x49] sm:$0xff] %vm4021, 0.0
      %s4087 = scalar_lea.vmem [#allocation6], 192
      %v4088 = vld [vmem:[%s4087] ss:$2 sm:$0xff]
      %4089 = vst.msk [vmem:[#allocation3 + $0x51] sm:$0xff] %vm4021, %v4088
      %4090 = vst.msk [vmem:[#allocation3 + $0x59] sm:$0xff] %vm4021, 0.0
      %s4091 = scalar_lea.vmem [#allocation6], 240
      %v4092 = vld [vmem:[%s4091] ss:$2 sm:$0xff]
      %4093 = vst.msk [vmem:[#allocation3 + $0x61] sm:$0xff] %vm4021, %v4092
      %4094 = vst.msk [vmem:[#allocation3 + $0x69] sm:$0xff] %vm4021, 0.0
      %s4095 = scalar_lea.vmem [#allocation6], 288
      %v4096 = vld [vmem:[%s4095] ss:$2 sm:$0xff]
      %4097 = vst.msk [vmem:[#allocation3 + $0x71] sm:$0xff] %vm4021, %v4096
      %4098 = vst.msk [vmem:[#allocation3 + $0x79] sm:$0xff] %vm4021, 0.0
      %s4099 = scalar_lea.vmem [#allocation6], 336
      %v4100 = vld [vmem:[%s4099] ss:$2 sm:$0xff]
      %4101 = vst.msk [vmem:[#allocation3 + $0x81] sm:$0xff] %vm4021, %v4100
      %4102 = vst.msk [vmem:[#allocation3 + $0x89] sm:$0xff] %vm4021, 0.0
      %4103 = vst.msk [vmem:[#allocation3 + $0x91] sm:$0xff] %vm4021, 0.0
      %4104 = vst.msk [vmem:[#allocation3 + $0x99] sm:$0xff] %vm4021, 0.0
      %4105 = vst.msk [vmem:[#allocation3 + $0xa1] sm:$0x7f] %vm4066, 0.0
      %v4106 = vld [vmem:[#allocation3] sm:$0xff]
      %v4107 = vld [vmem:[#allocation3 + $0x8] sm:$0xff]
      %v4108 = vld [vmem:[#allocation3 + $0x10] sm:$0xff]
      %v4109 = vld [vmem:[#allocation3 + $0x18] sm:$0xff]
      %v4110 = vld [vmem:[#allocation3 + $0x20] sm:$0xff]
      %v4111 = vld [vmem:[#allocation3 + $0x28] sm:$0xff]
      %v4112 = vld [vmem:[#allocation3 + $0x30] sm:$0xff]
      %v4113 = vld [vmem:[#allocation3 + $0x38] sm:$0xff]
      %v4114 = vld [vmem:[#allocation3 + $0x40] sm:$0xff]
      %v4115 = vld [vmem:[#allocation3 + $0x48] sm:$0xff]
      %v4116 = vld [vmem:[#allocation3 + $0x50] sm:$0xff]
      %v4117 = vld [vmem:[#allocation3 + $0x58] sm:$0xff]
      %v4118 = vld [vmem:[#allocation3 + $0x60] sm:$0xff]
      %v4119 = vld [vmem:[#allocation3 + $0x68] sm:$0xff]
      %v4120 = vld [vmem:[#allocation3 + $0x70] sm:$0xff]
      %v4121 = vld [vmem:[#allocation3 + $0x78] sm:$0xff]
      %v4122 = vpack.c.bf16 %v4107, %v4106
      %v4123 = vpack.c.bf16 %v4109, %v4108
      %v4124 = vpack.c.bf16 %v4111, %v4110
      %v4125 = vpack.c.bf16 %v4113, %v4112
      %v4126 = vpack.c.bf16 %v4115, %v4114
      %v4127 = vpack.c.bf16 %v4117, %v4116
      %v4128 = vpack.c.bf16 %v4119, %v4118
      %v4129 = vpack.c.bf16 %v4121, %v4120
      %v4130 = vld [vmem:[%s3] sm:$0xf]
      %v4131 = vld [vmem:[%s3 + $0x4] sm:$0xf]
      %v4132 = vld [vmem:[%s3 + $0x8] sm:$0xf]
      %v4133 = vld [vmem:[%s3 + $0xc] sm:$0xf]
      %v4134 = vld [vmem:[#allocation3 + $0x1] sm:$0xff]
      %v4135 = vld [vmem:[#allocation3 + $0x9] sm:$0xff]
      %v4136 = vld [vmem:[#allocation3 + $0x11] sm:$0xff]
      %v4137 = vld [vmem:[#allocation3 + $0x19] sm:$0xff]
      %v4138 = vld [vmem:[#allocation3 + $0x21] sm:$0xff]
      %v4139 = vld [vmem:[#allocation3 + $0x29] sm:$0xff]
      %v4140 = vld [vmem:[#allocation3 + $0x31] sm:$0xff]
      %v4141 = vld [vmem:[#allocation3 + $0x39] sm:$0xff]
      %v4142 = vld [vmem:[#allocation3 + $0x41] sm:$0xff]
      %v4143 = vld [vmem:[#allocation3 + $0x49] sm:$0xff]
      %v4144 = vld [vmem:[#allocation3 + $0x51] sm:$0xff]
      %v4145 = vld [vmem:[#allocation3 + $0x59] sm:$0xff]
      %v4146 = vld [vmem:[#allocation3 + $0x61] sm:$0xff]
      %v4147 = vld [vmem:[#allocation3 + $0x69] sm:$0xff]
      %v4148 = vld [vmem:[#allocation3 + $0x71] sm:$0xff]
      %v4149 = vld [vmem:[#allocation3 + $0x79] sm:$0xff]
      %v4150 = vpack.c.bf16 %v4135, %v4134
      %v4151 = vpack.c.bf16 %v4137, %v4136
      %v4152 = vpack.c.bf16 %v4139, %v4138
      %v4153 = vpack.c.bf16 %v4141, %v4140
      %v4154 = vpack.c.bf16 %v4143, %v4142
      %v4155 = vpack.c.bf16 %v4145, %v4144
      %v4156 = vpack.c.bf16 %v4147, %v4146
      %v4157 = vpack.c.bf16 %v4149, %v4148
      %s4158 = scalar_lea.vmem %s3, 16
      %v4159 = vld [vmem:[%s4158] sm:$0xf]
      %v4160 = vld [vmem:[%s4158 + $0x4] sm:$0xf]
      %v4161 = vld [vmem:[%s4158 + $0x8] sm:$0xf]
      %v4162 = vld [vmem:[%s4158 + $0xc] sm:$0xf]
      %v4167 = vunpack.c.l.b16 %v4159
      %v4168 = vunpack.c.l.b16 %v4160
      %v4169 = vunpack.c.l.b16 %v4161
      %v4170 = vunpack.c.l.b16 %v4162
      %v4171 = vpack.c.b16 %v4168, %v4167
      %v4172 = vpack.c.b16 %v4170, %v4169
      %v4176 = vsel %vm4021, %v4150, 0
      %v4179 = vsel %vm4021, %v4151, 0
      %v4182 = vsel %vm4021, %v4152, 0
      %v4185 = vsel %vm4021, %v4153, 0
      %v4188 = vsel %vm4021, %v4154, 0
      %v4191 = vsel %vm4021, %v4155, 0
      %v4194 = vsel %vm4021, %v4156, 0
      %v4197 = vsel %vm4021, %v4157, 0
      %4199 = vmatpush.bf16.msra.mxu0 0
      %4200 = vmatpush.bf16.msra.mxu0 0
      %4201 = vmatpush.bf16.msra.mxu0 0
      %4202 = vmatpush.bf16.msra.mxu0 0
      %4203 = vmatpush.bf16.msra.mxu0 0
      %4204 = vmatpush.bf16.msra.mxu0 0
      %4205 = vmatpush.bf16.msra.mxu0 %v4172
      %4206 = vmatpush.bf16.msra.mxu0 %v4171
      %4207 = vmatmul.bf16.gmra.mxu0 %v4176
      %v4208 = vpop.f32.mrf.mxu0
      %v4209 = vadd.f32 0.0, %v4208
      %v4210 = vpop.f32.mrf.mxu0
      %v4211 = vadd.f32 0.0, %v4210
      %4212 = vmatmul.bf16.gmra.mxu0 %v4179
      %v4213 = vpop.f32.mrf.mxu0
      %v4214 = vadd.f32 0.0, %v4213
      %v4215 = vpop.f32.mrf.mxu0
      %v4216 = vadd.f32 0.0, %v4215
      %4217 = vmatmul.bf16.gmra.mxu0 %v4182
      %v4218 = vpop.f32.mrf.mxu0
      %v4219 = vadd.f32 0.0, %v4218
      %v4220 = vpop.f32.mrf.mxu0
      %v4221 = vadd.f32 0.0, %v4220
      %4222 = vmatmul.bf16.gmra.mxu0 %v4185
      %v4223 = vpop.f32.mrf.mxu0
      %v4224 = vadd.f32 0.0, %v4223
      %v4225 = vpop.f32.mrf.mxu0
      %v4226 = vadd.f32 0.0, %v4225
      %4227 = vmatmul.bf16.gmra.mxu0 %v4188
      %v4228 = vpop.f32.mrf.mxu0
      %v4229 = vadd.f32 0.0, %v4228
      %v4230 = vpop.f32.mrf.mxu0
      %v4231 = vadd.f32 0.0, %v4230
      %4232 = vmatmul.bf16.gmra.mxu0 %v4191
      %v4233 = vpop.f32.mrf.mxu0
      %v4234 = vadd.f32 0.0, %v4233
      %v4235 = vpop.f32.mrf.mxu0
      %v4236 = vadd.f32 0.0, %v4235
      %4237 = vmatmul.bf16.gmra.mxu0 %v4194
      %v4238 = vpop.f32.mrf.mxu0
      %v4239 = vadd.f32 0.0, %v4238
      %v4240 = vpop.f32.mrf.mxu0
      %v4241 = vadd.f32 0.0, %v4240
      %4242 = vmatmul.bf16.gmra.mxu0 %v4197
      %v4243 = vpop.f32.mrf.mxu0
      %v4244 = vadd.f32 0.0, %v4243
      %v4245 = vpop.f32.mrf.mxu0
      %v4246 = vadd.f32 0.0, %v4245
      %4247 = vdwg.mxu0
      %v4252 = vunpack.c.l.b16 %v4130
      %v4253 = vunpack.c.l.b16 %v4131
      %v4254 = vunpack.c.l.b16 %v4132
      %v4255 = vunpack.c.l.b16 %v4133
      %v4256 = vpack.c.b16 %v4253, %v4252
      %v4257 = vpack.c.b16 %v4255, %v4254
      %v4261 = vsel %vm4021, %v4122, 0
      %v4264 = vsel %vm4021, %v4123, 0
      %v4267 = vsel %vm4021, %v4124, 0
      %v4270 = vsel %vm4021, %v4125, 0
      %v4273 = vsel %vm4021, %v4126, 0
      %v4276 = vsel %vm4021, %v4127, 0
      %v4279 = vsel %vm4021, %v4128, 0
      %v4282 = vsel %vm4021, %v4129, 0
      %4284 = vmatpush.bf16.msra.mxu0 0
      %4285 = vmatpush.bf16.msra.mxu0 0
      %4286 = vmatpush.bf16.msra.mxu0 0
      %4287 = vmatpush.bf16.msra.mxu0 0
      %4288 = vmatpush.bf16.msra.mxu0 0
      %4289 = vmatpush.bf16.msra.mxu0 0
      %4290 = vmatpush.bf16.msra.mxu0 %v4257
      %4291 = vmatpush.bf16.msra.mxu0 %v4256
      %4292 = vmatmul.bf16.gmra.mxu0 %v4261
      %v4293 = vpop.f32.mrf.mxu0
      %v4294 = vadd.f32 %v4209, %v4293
      %v4295 = vpop.f32.mrf.mxu0
      %v4296 = vadd.f32 %v4211, %v4295
      %4297 = vmatmul.bf16.gmra.mxu0 %v4264
      %v4298 = vpop.f32.mrf.mxu0
      %v4299 = vadd.f32 %v4214, %v4298
      %v4300 = vpop.f32.mrf.mxu0
      %v4301 = vadd.f32 %v4216, %v4300
      %4302 = vmatmul.bf16.gmra.mxu0 %v4267
      %v4303 = vpop.f32.mrf.mxu0
      %v4304 = vadd.f32 %v4219, %v4303
      %v4305 = vpop.f32.mrf.mxu0
      %v4306 = vadd.f32 %v4221, %v4305
      %4307 = vmatmul.bf16.gmra.mxu0 %v4270
      %v4308 = vpop.f32.mrf.mxu0
      %v4309 = vadd.f32 %v4224, %v4308
      %v4310 = vpop.f32.mrf.mxu0
      %v4311 = vadd.f32 %v4226, %v4310
      %4312 = vmatmul.bf16.gmra.mxu0 %v4273
      %v4313 = vpop.f32.mrf.mxu0
      %v4314 = vadd.f32 %v4229, %v4313
      %v4315 = vpop.f32.mrf.mxu0
      %v4316 = vadd.f32 %v4231, %v4315
      %4317 = vmatmul.bf16.gmra.mxu0 %v4276
      %v4318 = vpop.f32.mrf.mxu0
      %v4319 = vadd.f32 %v4234, %v4318
      %v4320 = vpop.f32.mrf.mxu0
      %v4321 = vadd.f32 %v4236, %v4320
      %4322 = vmatmul.bf16.gmra.mxu0 %v4279
      %v4323 = vpop.f32.mrf.mxu0
      %v4324 = vadd.f32 %v4239, %v4323
      %v4325 = vpop.f32.mrf.mxu0
      %v4326 = vadd.f32 %v4241, %v4325
      %4327 = vmatmul.bf16.gmra.mxu0 %v4282
      %v4328 = vpop.f32.mrf.mxu0
      %v4329 = vadd.f32 %v4244, %v4328
      %v4330 = vpop.f32.mrf.mxu0
      %v4331 = vadd.f32 %v4246, %v4330
      %4332 = vdwg.mxu0
      %v4333 = vld [vmem:[#allocation3 + $0x2] sm:$0xff]
      %v4334 = vld [vmem:[#allocation3 + $0xa] sm:$0xff]
      %v4335 = vld [vmem:[#allocation3 + $0x12] sm:$0xff]
      %v4336 = vld [vmem:[#allocation3 + $0x1a] sm:$0xff]
      %v4337 = vld [vmem:[#allocation3 + $0x22] sm:$0xff]
      %v4338 = vld [vmem:[#allocation3 + $0x2a] sm:$0xff]
      %v4339 = vld [vmem:[#allocation3 + $0x32] sm:$0xff]
      %v4340 = vld [vmem:[#allocation3 + $0x3a] sm:$0xff]
      %v4341 = vld [vmem:[#allocation3 + $0x42] sm:$0xff]
      %v4342 = vld [vmem:[#allocation3 + $0x4a] sm:$0xff]
      %v4343 = vld [vmem:[#allocation3 + $0x52] sm:$0xff]
      %v4344 = vld [vmem:[#allocation3 + $0x5a] sm:$0xff]
      %v4345 = vld [vmem:[#allocation3 + $0x62] sm:$0xff]
      %v4346 = vld [vmem:[#allocation3 + $0x6a] sm:$0xff]
      %v4347 = vld [vmem:[#allocation3 + $0x72] sm:$0xff]
      %v4348 = vld [vmem:[#allocation3 + $0x7a] sm:$0xff]
      %v4349 = vpack.c.bf16 %v4334, %v4333
      %v4350 = vpack.c.bf16 %v4336, %v4335
      %v4351 = vpack.c.bf16 %v4338, %v4337
      %v4352 = vpack.c.bf16 %v4340, %v4339
      %v4353 = vpack.c.bf16 %v4342, %v4341
      %v4354 = vpack.c.bf16 %v4344, %v4343
      %v4355 = vpack.c.bf16 %v4346, %v4345
      %v4356 = vpack.c.bf16 %v4348, %v4347
      %s4357 = scalar_lea.vmem %s3, 32
      %v4358 = vld [vmem:[%s4357] sm:$0xf]
      %v4359 = vld [vmem:[%s4357 + $0x4] sm:$0xf]
      %v4360 = vld [vmem:[%s4357 + $0x8] sm:$0xf]
      %v4361 = vld [vmem:[%s4357 + $0xc] sm:$0xf]
      %v4366 = vunpack.c.l.b16 %v4358
      %v4367 = vunpack.c.l.b16 %v4359
      %v4368 = vunpack.c.l.b16 %v4360
      %v4369 = vunpack.c.l.b16 %v4361
      %v4370 = vpack.c.b16 %v4367, %v4366
      %v4371 = vpack.c.b16 %v4369, %v4368
      %v4375 = vsel %vm4021, %v4349, 0
      %v4378 = vsel %vm4021, %v4350, 0
      %v4381 = vsel %vm4021, %v4351, 0
      %v4384 = vsel %vm4021, %v4352, 0
      %v4387 = vsel %vm4021, %v4353, 0
      %v4390 = vsel %vm4021, %v4354, 0
      %v4393 = vsel %vm4021, %v4355, 0
      %v4396 = vsel %vm4021, %v4356, 0
      %4398 = vmatpush.bf16.msra.mxu0 0
      %4399 = vmatpush.bf16.msra.mxu0 0
      %4400 = vmatpush.bf16.msra.mxu0 0
      %4401 = vmatpush.bf16.msra.mxu0 0
      %4402 = vmatpush.bf16.msra.mxu0 0
      %4403 = vmatpush.bf16.msra.mxu0 0
      %4404 = vmatpush.bf16.msra.mxu0 %v4371
      %4405 = vmatpush.bf16.msra.mxu0 %v4370
      %4406 = vmatmul.bf16.gmra.mxu0 %v4375
      %v4407 = vpop.f32.mrf.mxu0
      %v4408 = vadd.f32 0.0, %v4407
      %v4409 = vpop.f32.mrf.mxu0
      %v4410 = vadd.f32 0.0, %v4409
      %4411 = vmatmul.bf16.gmra.mxu0 %v4378
      %v4412 = vpop.f32.mrf.mxu0
      %v4413 = vadd.f32 0.0, %v4412
      %v4414 = vpop.f32.mrf.mxu0
      %v4415 = vadd.f32 0.0, %v4414
      %4416 = vmatmul.bf16.gmra.mxu0 %v4381
      %v4417 = vpop.f32.mrf.mxu0
      %v4418 = vadd.f32 0.0, %v4417
      %v4419 = vpop.f32.mrf.mxu0
      %v4420 = vadd.f32 0.0, %v4419
      %4421 = vmatmul.bf16.gmra.mxu0 %v4384
      %v4422 = vpop.f32.mrf.mxu0
      %v4423 = vadd.f32 0.0, %v4422
      %v4424 = vpop.f32.mrf.mxu0
      %v4425 = vadd.f32 0.0, %v4424
      %4426 = vmatmul.bf16.gmra.mxu0 %v4387
      %v4427 = vpop.f32.mrf.mxu0
      %v4428 = vadd.f32 0.0, %v4427
      %v4429 = vpop.f32.mrf.mxu0
      %v4430 = vadd.f32 0.0, %v4429
      %4431 = vmatmul.bf16.gmra.mxu0 %v4390
      %v4432 = vpop.f32.mrf.mxu0
      %v4433 = vadd.f32 0.0, %v4432
      %v4434 = vpop.f32.mrf.mxu0
      %v4435 = vadd.f32 0.0, %v4434
      %4436 = vmatmul.bf16.gmra.mxu0 %v4393
      %v4437 = vpop.f32.mrf.mxu0
      %v4438 = vadd.f32 0.0, %v4437
      %v4439 = vpop.f32.mrf.mxu0
      %v4440 = vadd.f32 0.0, %v4439
      %4441 = vmatmul.bf16.gmra.mxu0 %v4396
      %v4442 = vpop.f32.mrf.mxu0
      %v4443 = vadd.f32 0.0, %v4442
      %v4444 = vpop.f32.mrf.mxu0
      %v4445 = vadd.f32 0.0, %v4444
      %4446 = vdwg.mxu0
      %v4447 = vadd.f32 %v4294, %v4408
      %v4448 = vadd.f32 %v4296, %v4410
      %v4449 = vadd.f32 %v4299, %v4413
      %v4450 = vadd.f32 %v4301, %v4415
      %v4451 = vadd.f32 %v4304, %v4418
      %v4452 = vadd.f32 %v4306, %v4420
      %v4453 = vadd.f32 %v4309, %v4423
      %v4454 = vadd.f32 %v4311, %v4425
      %v4455 = vadd.f32 %v4314, %v4428
      %v4456 = vadd.f32 %v4316, %v4430
      %v4457 = vadd.f32 %v4319, %v4433
      %v4458 = vadd.f32 %v4321, %v4435
      %v4459 = vadd.f32 %v4324, %v4438
      %v4460 = vadd.f32 %v4326, %v4440
      %v4461 = vadd.f32 %v4329, %v4443
      %v4462 = vadd.f32 %v4331, %v4445
      %v4463 = vld [vmem:[#allocation3 + $0x10] sm:$0xff]
      %v4464 = vld [vmem:[#allocation3 + $0x18] sm:$0xff]
      %v4465 = vld [vmem:[#allocation3 + $0x20] sm:$0xff]
      %v4466 = vld [vmem:[#allocation3 + $0x28] sm:$0xff]
      %v4467 = vld [vmem:[#allocation3 + $0x30] sm:$0xff]
      %v4468 = vld [vmem:[#allocation3 + $0x38] sm:$0xff]
      %v4469 = vld [vmem:[#allocation3 + $0x40] sm:$0xff]
      %v4470 = vld [vmem:[#allocation3 + $0x48] sm:$0xff]
      %v4471 = vld [vmem:[#allocation3 + $0x50] sm:$0xff]
      %v4472 = vld [vmem:[#allocation3 + $0x58] sm:$0xff]
      %v4473 = vld [vmem:[#allocation3 + $0x60] sm:$0xff]
      %v4474 = vld [vmem:[#allocation3 + $0x68] sm:$0xff]
      %v4475 = vld [vmem:[#allocation3 + $0x70] sm:$0xff]
      %v4476 = vld [vmem:[#allocation3 + $0x78] sm:$0xff]
      %v4477 = vld [vmem:[#allocation3 + $0x80] sm:$0xff]
      %v4478 = vld [vmem:[#allocation3 + $0x88] sm:$0xff]
      %v4479 = vpack.c.bf16 %v4464, %v4463
      %v4480 = vpack.c.bf16 %v4466, %v4465
      %v4481 = vpack.c.bf16 %v4468, %v4467
      %v4482 = vpack.c.bf16 %v4470, %v4469
      %v4483 = vpack.c.bf16 %v4472, %v4471
      %v4484 = vpack.c.bf16 %v4474, %v4473
      %v4485 = vpack.c.bf16 %v4476, %v4475
      %v4486 = vpack.c.bf16 %v4478, %v4477
      %s4487 = scalar_lea.vmem %s3, 48
      %v4488 = vld [vmem:[%s4487] sm:$0xf]
      %v4489 = vld [vmem:[%s4487 + $0x4] sm:$0xf]
      %v4490 = vld [vmem:[%s4487 + $0x8] sm:$0xf]
      %v4491 = vld [vmem:[%s4487 + $0xc] sm:$0xf]
      %v4496 = vunpack.c.l.b16 %v4488
      %v4497 = vunpack.c.l.b16 %v4489
      %v4498 = vunpack.c.l.b16 %v4490
      %v4499 = vunpack.c.l.b16 %v4491
      %v4500 = vpack.c.b16 %v4497, %v4496
      %v4501 = vpack.c.b16 %v4499, %v4498
      %v4505 = vsel %vm4021, %v4479, 0
      %v4508 = vsel %vm4021, %v4480, 0
      %v4511 = vsel %vm4021, %v4481, 0
      %v4514 = vsel %vm4021, %v4482, 0
      %v4517 = vsel %vm4021, %v4483, 0
      %v4520 = vsel %vm4021, %v4484, 0
      %v4523 = vsel %vm4021, %v4485, 0
      %v4526 = vsel %vm4021, %v4486, 0
      %4528 = vmatpush.bf16.msra.mxu0 0
      %4529 = vmatpush.bf16.msra.mxu0 0
      %4530 = vmatpush.bf16.msra.mxu0 0
      %4531 = vmatpush.bf16.msra.mxu0 0
      %4532 = vmatpush.bf16.msra.mxu0 0
      %4533 = vmatpush.bf16.msra.mxu0 0
      %4534 = vmatpush.bf16.msra.mxu0 %v4501
      %4535 = vmatpush.bf16.msra.mxu0 %v4500
      %4536 = vmatmul.bf16.gmra.mxu0 %v4505
      %v4537 = vpop.f32.mrf.mxu0
      %v4538 = vadd.f32 0.0, %v4537
      %v4539 = vpop.f32.mrf.mxu0
      %v4540 = vadd.f32 0.0, %v4539
      %4541 = vmatmul.bf16.gmra.mxu0 %v4508
      %v4542 = vpop.f32.mrf.mxu0
      %v4543 = vadd.f32 0.0, %v4542
      %v4544 = vpop.f32.mrf.mxu0
      %v4545 = vadd.f32 0.0, %v4544
      %4546 = vmatmul.bf16.gmra.mxu0 %v4511
      %v4547 = vpop.f32.mrf.mxu0
      %v4548 = vadd.f32 0.0, %v4547
      %v4549 = vpop.f32.mrf.mxu0
      %v4550 = vadd.f32 0.0, %v4549
      %4551 = vmatmul.bf16.gmra.mxu0 %v4514
      %v4552 = vpop.f32.mrf.mxu0
      %v4553 = vadd.f32 0.0, %v4552
      %v4554 = vpop.f32.mrf.mxu0
      %v4555 = vadd.f32 0.0, %v4554
      %4556 = vmatmul.bf16.gmra.mxu0 %v4517
      %v4557 = vpop.f32.mrf.mxu0
      %v4558 = vadd.f32 0.0, %v4557
      %v4559 = vpop.f32.mrf.mxu0
      %v4560 = vadd.f32 0.0, %v4559
      %4561 = vmatmul.bf16.gmra.mxu0 %v4520
      %v4562 = vpop.f32.mrf.mxu0
      %v4563 = vadd.f32 0.0, %v4562
      %v4564 = vpop.f32.mrf.mxu0
      %v4565 = vadd.f32 0.0, %v4564
      %4566 = vmatmul.bf16.gmra.mxu0 %v4523
      %v4567 = vpop.f32.mrf.mxu0
      %v4568 = vadd.f32 0.0, %v4567
      %v4569 = vpop.f32.mrf.mxu0
      %v4570 = vadd.f32 0.0, %v4569
      %4571 = vmatmul.bf16.gmra.mxu0 %v4526
      %v4572 = vpop.f32.mrf.mxu0
      %v4573 = vadd.f32 0.0, %v4572
      %v4574 = vpop.f32.mrf.mxu0
      %v4575 = vadd.f32 0.0, %v4574
      %4576 = vdwg.mxu0
      %v4577 = vadd.f32 %v4447, %v4538
      %v4578 = vadd.f32 %v4448, %v4540
      %v4579 = vadd.f32 %v4449, %v4543
      %v4580 = vadd.f32 %v4450, %v4545
      %v4581 = vadd.f32 %v4451, %v4548
      %v4582 = vadd.f32 %v4452, %v4550
      %v4583 = vadd.f32 %v4453, %v4553
      %v4584 = vadd.f32 %v4454, %v4555
      %v4585 = vadd.f32 %v4455, %v4558
      %v4586 = vadd.f32 %v4456, %v4560
      %v4587 = vadd.f32 %v4457, %v4563
      %v4588 = vadd.f32 %v4458, %v4565
      %v4589 = vadd.f32 %v4459, %v4568
      %v4590 = vadd.f32 %v4460, %v4570
      %v4591 = vadd.f32 %v4461, %v4573
      %v4592 = vadd.f32 %v4462, %v4575
      %v4593 = vld [vmem:[#allocation3 + $0x11] sm:$0xff]
      %v4594 = vld [vmem:[#allocation3 + $0x19] sm:$0xff]
      %v4595 = vld [vmem:[#allocation3 + $0x21] sm:$0xff]
      %v4596 = vld [vmem:[#allocation3 + $0x29] sm:$0xff]
      %v4597 = vld [vmem:[#allocation3 + $0x31] sm:$0xff]
      %v4598 = vld [vmem:[#allocation3 + $0x39] sm:$0xff]
      %v4599 = vld [vmem:[#allocation3 + $0x41] sm:$0xff]
      %v4600 = vld [vmem:[#allocation3 + $0x49] sm:$0xff]
      %v4601 = vld [vmem:[#allocation3 + $0x51] sm:$0xff]
      %v4602 = vld [vmem:[#allocation3 + $0x59] sm:$0xff]
      %v4603 = vld [vmem:[#allocation3 + $0x61] sm:$0xff]
      %v4604 = vld [vmem:[#allocation3 + $0x69] sm:$0xff]
      %v4605 = vld [vmem:[#allocation3 + $0x71] sm:$0xff]
      %v4606 = vld [vmem:[#allocation3 + $0x79] sm:$0xff]
      %v4607 = vld [vmem:[#allocation3 + $0x81] sm:$0xff]
      %v4608 = vld [vmem:[#allocation3 + $0x89] sm:$0xff]
      %v4609 = vpack.c.bf16 %v4594, %v4593
      %v4610 = vpack.c.bf16 %v4596, %v4595
      %v4611 = vpack.c.bf16 %v4598, %v4597
      %v4612 = vpack.c.bf16 %v4600, %v4599
      %v4613 = vpack.c.bf16 %v4602, %v4601
      %v4614 = vpack.c.bf16 %v4604, %v4603
      %v4615 = vpack.c.bf16 %v4606, %v4605
      %v4616 = vpack.c.bf16 %v4608, %v4607
      %s4617 = scalar_lea.vmem %s3, 64
      %v4618 = vld [vmem:[%s4617] sm:$0xf]
      %v4619 = vld [vmem:[%s4617 + $0x4] sm:$0xf]
      %v4620 = vld [vmem:[%s4617 + $0x8] sm:$0xf]
      %v4621 = vld [vmem:[%s4617 + $0xc] sm:$0xf]
      %v4626 = vunpack.c.l.b16 %v4618
      %v4627 = vunpack.c.l.b16 %v4619
      %v4628 = vunpack.c.l.b16 %v4620
      %v4629 = vunpack.c.l.b16 %v4621
      %v4630 = vpack.c.b16 %v4627, %v4626
      %v4631 = vpack.c.b16 %v4629, %v4628
      %v4635 = vsel %vm4021, %v4609, 0
      %v4638 = vsel %vm4021, %v4610, 0
      %v4641 = vsel %vm4021, %v4611, 0
      %v4644 = vsel %vm4021, %v4612, 0
      %v4647 = vsel %vm4021, %v4613, 0
      %v4650 = vsel %vm4021, %v4614, 0
      %v4653 = vsel %vm4021, %v4615, 0
      %v4656 = vsel %vm4021, %v4616, 0
      %4658 = vmatpush.bf16.msra.mxu0 0
      %4659 = vmatpush.bf16.msra.mxu0 0
      %4660 = vmatpush.bf16.msra.mxu0 0
      %4661 = vmatpush.bf16.msra.mxu0 0
      %4662 = vmatpush.bf16.msra.mxu0 0
      %4663 = vmatpush.bf16.msra.mxu0 0
      %4664 = vmatpush.bf16.msra.mxu0 %v4631
      %4665 = vmatpush.bf16.msra.mxu0 %v4630
      %4666 = vmatmul.bf16.gmra.mxu0 %v4635
      %v4667 = vpop.f32.mrf.mxu0
      %v4668 = vadd.f32 0.0, %v4667
      %v4669 = vpop.f32.mrf.mxu0
      %v4670 = vadd.f32 0.0, %v4669
      %4671 = vmatmul.bf16.gmra.mxu0 %v4638
      %v4672 = vpop.f32.mrf.mxu0
      %v4673 = vadd.f32 0.0, %v4672
      %v4674 = vpop.f32.mrf.mxu0
      %v4675 = vadd.f32 0.0, %v4674
      %4676 = vmatmul.bf16.gmra.mxu0 %v4641
      %v4677 = vpop.f32.mrf.mxu0
      %v4678 = vadd.f32 0.0, %v4677
      %v4679 = vpop.f32.mrf.mxu0
      %v4680 = vadd.f32 0.0, %v4679
      %4681 = vmatmul.bf16.gmra.mxu0 %v4644
      %v4682 = vpop.f32.mrf.mxu0
      %v4683 = vadd.f32 0.0, %v4682
      %v4684 = vpop.f32.mrf.mxu0
      %v4685 = vadd.f32 0.0, %v4684
      %4686 = vmatmul.bf16.gmra.mxu0 %v4647
      %v4687 = vpop.f32.mrf.mxu0
      %v4688 = vadd.f32 0.0, %v4687
      %v4689 = vpop.f32.mrf.mxu0
      %v4690 = vadd.f32 0.0, %v4689
      %4691 = vmatmul.bf16.gmra.mxu0 %v4650
      %v4692 = vpop.f32.mrf.mxu0
      %v4693 = vadd.f32 0.0, %v4692
      %v4694 = vpop.f32.mrf.mxu0
      %v4695 = vadd.f32 0.0, %v4694
      %4696 = vmatmul.bf16.gmra.mxu0 %v4653
      %v4697 = vpop.f32.mrf.mxu0
      %v4698 = vadd.f32 0.0, %v4697
      %v4699 = vpop.f32.mrf.mxu0
      %v4700 = vadd.f32 0.0, %v4699
      %4701 = vmatmul.bf16.gmra.mxu0 %v4656
      %v4702 = vpop.f32.mrf.mxu0
      %v4703 = vadd.f32 0.0, %v4702
      %v4704 = vpop.f32.mrf.mxu0
      %v4705 = vadd.f32 0.0, %v4704
      %4706 = vdwg.mxu0
      %v4707 = vadd.f32 %v4577, %v4668
      %v4708 = vadd.f32 %v4578, %v4670
      %v4709 = vadd.f32 %v4579, %v4673
      %v4710 = vadd.f32 %v4580, %v4675
      %v4711 = vadd.f32 %v4581, %v4678
      %v4712 = vadd.f32 %v4582, %v4680
      %v4713 = vadd.f32 %v4583, %v4683
      %v4714 = vadd.f32 %v4584, %v4685
      %v4715 = vadd.f32 %v4585, %v4688
      %v4716 = vadd.f32 %v4586, %v4690
      %v4717 = vadd.f32 %v4587, %v4693
      %v4718 = vadd.f32 %v4588, %v4695
      %v4719 = vadd.f32 %v4589, %v4698
      %v4720 = vadd.f32 %v4590, %v4700
      %v4721 = vadd.f32 %v4591, %v4703
      %v4722 = vadd.f32 %v4592, %v4705
      %v4723 = vld [vmem:[#allocation3 + $0x12] sm:$0xff]
      %v4724 = vld [vmem:[#allocation3 + $0x1a] sm:$0xff]
      %v4725 = vld [vmem:[#allocation3 + $0x22] sm:$0xff]
      %v4726 = vld [vmem:[#allocation3 + $0x2a] sm:$0xff]
      %v4727 = vld [vmem:[#allocation3 + $0x32] sm:$0xff]
      %v4728 = vld [vmem:[#allocation3 + $0x3a] sm:$0xff]
      %v4729 = vld [vmem:[#allocation3 + $0x42] sm:$0xff]
      %v4730 = vld [vmem:[#allocation3 + $0x4a] sm:$0xff]
      %v4731 = vld [vmem:[#allocation3 + $0x52] sm:$0xff]
      %v4732 = vld [vmem:[#allocation3 + $0x5a] sm:$0xff]
      %v4733 = vld [vmem:[#allocation3 + $0x62] sm:$0xff]
      %v4734 = vld [vmem:[#allocation3 + $0x6a] sm:$0xff]
      %v4735 = vld [vmem:[#allocation3 + $0x72] sm:$0xff]
      %v4736 = vld [vmem:[#allocation3 + $0x7a] sm:$0xff]
      %v4737 = vld [vmem:[#allocation3 + $0x82] sm:$0xff]
      %v4738 = vld [vmem:[#allocation3 + $0x8a] sm:$0xff]
      %v4739 = vpack.c.bf16 %v4724, %v4723
      %v4740 = vpack.c.bf16 %v4726, %v4725
      %v4741 = vpack.c.bf16 %v4728, %v4727
      %v4742 = vpack.c.bf16 %v4730, %v4729
      %v4743 = vpack.c.bf16 %v4732, %v4731
      %v4744 = vpack.c.bf16 %v4734, %v4733
      %v4745 = vpack.c.bf16 %v4736, %v4735
      %v4746 = vpack.c.bf16 %v4738, %v4737
      %s4747 = scalar_lea.vmem %s3, 80
      %v4748 = vld [vmem:[%s4747] sm:$0xf]
      %v4749 = vld [vmem:[%s4747 + $0x4] sm:$0xf]
      %v4750 = vld [vmem:[%s4747 + $0x8] sm:$0xf]
      %v4751 = vld [vmem:[%s4747 + $0xc] sm:$0xf]
      %v4756 = vunpack.c.l.b16 %v4748
      %v4757 = vunpack.c.l.b16 %v4749
      %v4758 = vunpack.c.l.b16 %v4750
      %v4759 = vunpack.c.l.b16 %v4751
      %v4760 = vpack.c.b16 %v4757, %v4756
      %v4761 = vpack.c.b16 %v4759, %v4758
      %v4765 = vsel %vm4021, %v4739, 0
      %v4768 = vsel %vm4021, %v4740, 0
      %v4771 = vsel %vm4021, %v4741, 0
      %v4774 = vsel %vm4021, %v4742, 0
      %v4777 = vsel %vm4021, %v4743, 0
      %v4780 = vsel %vm4021, %v4744, 0
      %v4783 = vsel %vm4021, %v4745, 0
      %v4786 = vsel %vm4021, %v4746, 0
      %4788 = vmatpush.bf16.msra.mxu0 0
      %4789 = vmatpush.bf16.msra.mxu0 0
      %4790 = vmatpush.bf16.msra.mxu0 0
      %4791 = vmatpush.bf16.msra.mxu0 0
      %4792 = vmatpush.bf16.msra.mxu0 0
      %4793 = vmatpush.bf16.msra.mxu0 0
      %4794 = vmatpush.bf16.msra.mxu0 %v4761
      %4795 = vmatpush.bf16.msra.mxu0 %v4760
      %4796 = vmatmul.bf16.gmra.mxu0 %v4765
      %v4797 = vpop.f32.mrf.mxu0
      %v4798 = vadd.f32 0.0, %v4797
      %v4799 = vpop.f32.mrf.mxu0
      %v4800 = vadd.f32 0.0, %v4799
      %4801 = vmatmul.bf16.gmra.mxu0 %v4768
      %v4802 = vpop.f32.mrf.mxu0
      %v4803 = vadd.f32 0.0, %v4802
      %v4804 = vpop.f32.mrf.mxu0
      %v4805 = vadd.f32 0.0, %v4804
      %4806 = vmatmul.bf16.gmra.mxu0 %v4771
      %v4807 = vpop.f32.mrf.mxu0
      %v4808 = vadd.f32 0.0, %v4807
      %v4809 = vpop.f32.mrf.mxu0
      %v4810 = vadd.f32 0.0, %v4809
      %4811 = vmatmul.bf16.gmra.mxu0 %v4774
      %v4812 = vpop.f32.mrf.mxu0
      %v4813 = vadd.f32 0.0, %v4812
      %v4814 = vpop.f32.mrf.mxu0
      %v4815 = vadd.f32 0.0, %v4814
      %4816 = vmatmul.bf16.gmra.mxu0 %v4777
      %v4817 = vpop.f32.mrf.mxu0
      %v4818 = vadd.f32 0.0, %v4817
      %v4819 = vpop.f32.mrf.mxu0
      %v4820 = vadd.f32 0.0, %v4819
      %4821 = vmatmul.bf16.gmra.mxu0 %v4780
      %v4822 = vpop.f32.mrf.mxu0
      %v4823 = vadd.f32 0.0, %v4822
      %v4824 = vpop.f32.mrf.mxu0
      %v4825 = vadd.f32 0.0, %v4824
      %4826 = vmatmul.bf16.gmra.mxu0 %v4783
      %v4827 = vpop.f32.mrf.mxu0
      %v4828 = vadd.f32 0.0, %v4827
      %v4829 = vpop.f32.mrf.mxu0
      %v4830 = vadd.f32 0.0, %v4829
      %4831 = vmatmul.bf16.gmra.mxu0 %v4786
      %v4832 = vpop.f32.mrf.mxu0
      %v4833 = vadd.f32 0.0, %v4832
      %v4834 = vpop.f32.mrf.mxu0
      %v4835 = vadd.f32 0.0, %v4834
      %4836 = vdwg.mxu0
      %v4837 = vadd.f32 %v4707, %v4798
      %v4838 = vadd.f32 %v4708, %v4800
      %v4839 = vadd.f32 %v4709, %v4803
      %v4840 = vadd.f32 %v4710, %v4805
      %v4841 = vadd.f32 %v4711, %v4808
      %v4842 = vadd.f32 %v4712, %v4810
      %v4843 = vadd.f32 %v4713, %v4813
      %v4844 = vadd.f32 %v4714, %v4815
      %v4845 = vadd.f32 %v4715, %v4818
      %v4846 = vadd.f32 %v4716, %v4820
      %v4847 = vadd.f32 %v4717, %v4823
      %v4848 = vadd.f32 %v4718, %v4825
      %v4849 = vadd.f32 %v4719, %v4828
      %v4850 = vadd.f32 %v4720, %v4830
      %v4851 = vadd.f32 %v4721, %v4833
      %v4852 = vadd.f32 %v4722, %v4835
      %v4853 = vld [vmem:[#allocation3 + $0x20] sm:$0xff]
      %v4854 = vld [vmem:[#allocation3 + $0x28] sm:$0xff]
      %v4855 = vld [vmem:[#allocation3 + $0x30] sm:$0xff]
      %v4856 = vld [vmem:[#allocation3 + $0x38] sm:$0xff]
      %v4857 = vld [vmem:[#allocation3 + $0x40] sm:$0xff]
      %v4858 = vld [vmem:[#allocation3 + $0x48] sm:$0xff]
      %v4859 = vld [vmem:[#allocation3 + $0x50] sm:$0xff]
      %v4860 = vld [vmem:[#allocation3 + $0x58] sm:$0xff]
      %v4861 = vld [vmem:[#allocation3 + $0x60] sm:$0xff]
      %v4862 = vld [vmem:[#allocation3 + $0x68] sm:$0xff]
      %v4863 = vld [vmem:[#allocation3 + $0x70] sm:$0xff]
      %v4864 = vld [vmem:[#allocation3 + $0x78] sm:$0xff]
      %v4865 = vld [vmem:[#allocation3 + $0x80] sm:$0xff]
      %v4866 = vld [vmem:[#allocation3 + $0x88] sm:$0xff]
      %v4867 = vld [vmem:[#allocation3 + $0x90] sm:$0xff]
      %v4868 = vld [vmem:[#allocation3 + $0x98] sm:$0xff]
      %v4869 = vpack.c.bf16 %v4854, %v4853
      %v4870 = vpack.c.bf16 %v4856, %v4855
      %v4871 = vpack.c.bf16 %v4858, %v4857
      %v4872 = vpack.c.bf16 %v4860, %v4859
      %v4873 = vpack.c.bf16 %v4862, %v4861
      %v4874 = vpack.c.bf16 %v4864, %v4863
      %v4875 = vpack.c.bf16 %v4866, %v4865
      %v4876 = vpack.c.bf16 %v4868, %v4867
      %s4877 = scalar_lea.vmem %s3, 96
      %v4878 = vld [vmem:[%s4877] sm:$0xf]
      %v4879 = vld [vmem:[%s4877 + $0x4] sm:$0xf]
      %v4880 = vld [vmem:[%s4877 + $0x8] sm:$0xf]
      %v4881 = vld [vmem:[%s4877 + $0xc] sm:$0xf]
      %v4886 = vunpack.c.l.b16 %v4878
      %v4887 = vunpack.c.l.b16 %v4879
      %v4888 = vunpack.c.l.b16 %v4880
      %v4889 = vunpack.c.l.b16 %v4881
      %v4890 = vpack.c.b16 %v4887, %v4886
      %v4891 = vpack.c.b16 %v4889, %v4888
      %v4895 = vsel %vm4021, %v4869, 0
      %v4898 = vsel %vm4021, %v4870, 0
      %v4901 = vsel %vm4021, %v4871, 0
      %v4904 = vsel %vm4021, %v4872, 0
      %v4907 = vsel %vm4021, %v4873, 0
      %v4910 = vsel %vm4021, %v4874, 0
      %v4913 = vsel %vm4021, %v4875, 0
      %v4916 = vsel %vm4021, %v4876, 0
      %4918 = vmatpush.bf16.msra.mxu0 0
      %4919 = vmatpush.bf16.msra.mxu0 0
      %4920 = vmatpush.bf16.msra.mxu0 0
      %4921 = vmatpush.bf16.msra.mxu0 0
      %4922 = vmatpush.bf16.msra.mxu0 0
      %4923 = vmatpush.bf16.msra.mxu0 0
      %4924 = vmatpush.bf16.msra.mxu0 %v4891
      %4925 = vmatpush.bf16.msra.mxu0 %v4890
      %4926 = vmatmul.bf16.gmra.mxu0 %v4895
      %v4927 = vpop.f32.mrf.mxu0
      %v4928 = vadd.f32 0.0, %v4927
      %v4929 = vpop.f32.mrf.mxu0
      %v4930 = vadd.f32 0.0, %v4929
      %4931 = vmatmul.bf16.gmra.mxu0 %v4898
      %v4932 = vpop.f32.mrf.mxu0
      %v4933 = vadd.f32 0.0, %v4932
      %v4934 = vpop.f32.mrf.mxu0
      %v4935 = vadd.f32 0.0, %v4934
      %4936 = vmatmul.bf16.gmra.mxu0 %v4901
      %v4937 = vpop.f32.mrf.mxu0
      %v4938 = vadd.f32 0.0, %v4937
      %v4939 = vpop.f32.mrf.mxu0
      %v4940 = vadd.f32 0.0, %v4939
      %4941 = vmatmul.bf16.gmra.mxu0 %v4904
      %v4942 = vpop.f32.mrf.mxu0
      %v4943 = vadd.f32 0.0, %v4942
      %v4944 = vpop.f32.mrf.mxu0
      %v4945 = vadd.f32 0.0, %v4944
      %4946 = vmatmul.bf16.gmra.mxu0 %v4907
      %v4947 = vpop.f32.mrf.mxu0
      %v4948 = vadd.f32 0.0, %v4947
      %v4949 = vpop.f32.mrf.mxu0
      %v4950 = vadd.f32 0.0, %v4949
      %4951 = vmatmul.bf16.gmra.mxu0 %v4910
      %v4952 = vpop.f32.mrf.mxu0
      %v4953 = vadd.f32 0.0, %v4952
      %v4954 = vpop.f32.mrf.mxu0
      %v4955 = vadd.f32 0.0, %v4954
      %4956 = vmatmul.bf16.gmra.mxu0 %v4913
      %v4957 = vpop.f32.mrf.mxu0
      %v4958 = vadd.f32 0.0, %v4957
      %v4959 = vpop.f32.mrf.mxu0
      %v4960 = vadd.f32 0.0, %v4959
      %4961 = vmatmul.bf16.gmra.mxu0 %v4916
      %v4962 = vpop.f32.mrf.mxu0
      %v4963 = vadd.f32 0.0, %v4962
      %v4964 = vpop.f32.mrf.mxu0
      %v4965 = vadd.f32 0.0, %v4964
      %4966 = vdwg.mxu0
      %v4967 = vadd.f32 %v4837, %v4928
      %v4968 = vadd.f32 %v4838, %v4930
      %v4969 = vadd.f32 %v4839, %v4933
      %v4970 = vadd.f32 %v4840, %v4935
      %v4971 = vadd.f32 %v4841, %v4938
      %v4972 = vadd.f32 %v4842, %v4940
      %v4973 = vadd.f32 %v4843, %v4943
      %v4974 = vadd.f32 %v4844, %v4945
      %v4975 = vadd.f32 %v4845, %v4948
      %v4976 = vadd.f32 %v4846, %v4950
      %v4977 = vadd.f32 %v4847, %v4953
      %v4978 = vadd.f32 %v4848, %v4955
      %v4979 = vadd.f32 %v4849, %v4958
      %v4980 = vadd.f32 %v4850, %v4960
      %v4981 = vadd.f32 %v4851, %v4963
      %v4982 = vadd.f32 %v4852, %v4965
      %v4983 = vld [vmem:[#allocation3 + $0x21] sm:$0xff]
      %v4984 = vld [vmem:[#allocation3 + $0x29] sm:$0xff]
      %v4985 = vld [vmem:[#allocation3 + $0x31] sm:$0xff]
      %v4986 = vld [vmem:[#allocation3 + $0x39] sm:$0xff]
      %v4987 = vld [vmem:[#allocation3 + $0x41] sm:$0xff]
      %v4988 = vld [vmem:[#allocation3 + $0x49] sm:$0xff]
      %v4989 = vld [vmem:[#allocation3 + $0x51] sm:$0xff]
      %v4990 = vld [vmem:[#allocation3 + $0x59] sm:$0xff]
      %v4991 = vld [vmem:[#allocation3 + $0x61] sm:$0xff]
      %v4992 = vld [vmem:[#allocation3 + $0x69] sm:$0xff]
      %v4993 = vld [vmem:[#allocation3 + $0x71] sm:$0xff]
      %v4994 = vld [vmem:[#allocation3 + $0x79] sm:$0xff]
      %v4995 = vld [vmem:[#allocation3 + $0x81] sm:$0xff]
      %v4996 = vld [vmem:[#allocation3 + $0x89] sm:$0xff]
      %v4997 = vld [vmem:[#allocation3 + $0x91] sm:$0xff]
      %v4998 = vld [vmem:[#allocation3 + $0x99] sm:$0xff]
      %v4999 = vpack.c.bf16 %v4984, %v4983
      %v5000 = vpack.c.bf16 %v4986, %v4985
      %v5001 = vpack.c.bf16 %v4988, %v4987
      %v5002 = vpack.c.bf16 %v4990, %v4989
      %v5003 = vpack.c.bf16 %v4992, %v4991
      %v5004 = vpack.c.bf16 %v4994, %v4993
      %v5005 = vpack.c.bf16 %v4996, %v4995
      %v5006 = vpack.c.bf16 %v4998, %v4997
      %s5007 = scalar_lea.vmem %s3, 112
      %v5008 = vld [vmem:[%s5007] sm:$0xf]
      %v5009 = vld [vmem:[%s5007 + $0x4] sm:$0xf]
      %v5010 = vld [vmem:[%s5007 + $0x8] sm:$0xf]
      %v5011 = vld [vmem:[%s5007 + $0xc] sm:$0xf]
      %v5016 = vunpack.c.l.b16 %v5008
      %v5017 = vunpack.c.l.b16 %v5009
      %v5018 = vunpack.c.l.b16 %v5010
      %v5019 = vunpack.c.l.b16 %v5011
      %v5020 = vpack.c.b16 %v5017, %v5016
      %v5021 = vpack.c.b16 %v5019, %v5018
      %v5025 = vsel %vm4021, %v4999, 0
      %v5028 = vsel %vm4021, %v5000, 0
      %v5031 = vsel %vm4021, %v5001, 0
      %v5034 = vsel %vm4021, %v5002, 0
      %v5037 = vsel %vm4021, %v5003, 0
      %v5040 = vsel %vm4021, %v5004, 0
      %v5043 = vsel %vm4021, %v5005, 0
      %v5046 = vsel %vm4021, %v5006, 0
      %5048 = vmatpush.bf16.msra.mxu0 0
      %5049 = vmatpush.bf16.msra.mxu0 0
      %5050 = vmatpush.bf16.msra.mxu0 0
      %5051 = vmatpush.bf16.msra.mxu0 0
      %5052 = vmatpush.bf16.msra.mxu0 0
      %5053 = vmatpush.bf16.msra.mxu0 0
      %5054 = vmatpush.bf16.msra.mxu0 %v5021
      %5055 = vmatpush.bf16.msra.mxu0 %v5020
      %5056 = vmatmul.bf16.gmra.mxu0 %v5025
      %v5057 = vpop.f32.mrf.mxu0
      %v5058 = vadd.f32 0.0, %v5057
      %v5059 = vpop.f32.mrf.mxu0
      %v5060 = vadd.f32 0.0, %v5059
      %5061 = vmatmul.bf16.gmra.mxu0 %v5028
      %v5062 = vpop.f32.mrf.mxu0
      %v5063 = vadd.f32 0.0, %v5062
      %v5064 = vpop.f32.mrf.mxu0
      %v5065 = vadd.f32 0.0, %v5064
      %5066 = vmatmul.bf16.gmra.mxu0 %v5031
      %v5067 = vpop.f32.mrf.mxu0
      %v5068 = vadd.f32 0.0, %v5067
      %v5069 = vpop.f32.mrf.mxu0
      %v5070 = vadd.f32 0.0, %v5069
      %5071 = vmatmul.bf16.gmra.mxu0 %v5034
      %v5072 = vpop.f32.mrf.mxu0
      %v5073 = vadd.f32 0.0, %v5072
      %v5074 = vpop.f32.mrf.mxu0
      %v5075 = vadd.f32 0.0, %v5074
      %5076 = vmatmul.bf16.gmra.mxu0 %v5037
      %v5077 = vpop.f32.mrf.mxu0
      %v5078 = vadd.f32 0.0, %v5077
      %v5079 = vpop.f32.mrf.mxu0
      %v5080 = vadd.f32 0.0, %v5079
      %5081 = vmatmul.bf16.gmra.mxu0 %v5040
      %v5082 = vpop.f32.mrf.mxu0
      %v5083 = vadd.f32 0.0, %v5082
      %v5084 = vpop.f32.mrf.mxu0
      %v5085 = vadd.f32 0.0, %v5084
      %5086 = vmatmul.bf16.gmra.mxu0 %v5043
      %v5087 = vpop.f32.mrf.mxu0
      %v5088 = vadd.f32 0.0, %v5087
      %v5089 = vpop.f32.mrf.mxu0
      %v5090 = vadd.f32 0.0, %v5089
      %5091 = vmatmul.bf16.gmra.mxu0 %v5046
      %v5092 = vpop.f32.mrf.mxu0
      %v5093 = vadd.f32 0.0, %v5092
      %v5094 = vpop.f32.mrf.mxu0
      %v5095 = vadd.f32 0.0, %v5094
      %5096 = vdwg.mxu0
      %v5097 = vadd.f32 %v4967, %v5058
      %v5098 = vadd.f32 %v4968, %v5060
      %v5099 = vadd.f32 %v4969, %v5063
      %v5100 = vadd.f32 %v4970, %v5065
      %v5101 = vadd.f32 %v4971, %v5068
      %v5102 = vadd.f32 %v4972, %v5070
      %v5103 = vadd.f32 %v4973, %v5073
      %v5104 = vadd.f32 %v4974, %v5075
      %v5105 = vadd.f32 %v4975, %v5078
      %v5106 = vadd.f32 %v4976, %v5080
      %v5107 = vadd.f32 %v4977, %v5083
      %v5108 = vadd.f32 %v4978, %v5085
      %v5109 = vadd.f32 %v4979, %v5088
      %v5110 = vadd.f32 %v4980, %v5090
      %v5111 = vadd.f32 %v4981, %v5093
      %v5112 = vadd.f32 %v4982, %v5095
      %v5113 = vld [vmem:[#allocation3 + $0x22] sm:$0xff]
      %v5114 = vld [vmem:[#allocation3 + $0x2a] sm:$0xff]
      %v5115 = vld [vmem:[#allocation3 + $0x32] sm:$0xff]
      %v5116 = vld [vmem:[#allocation3 + $0x3a] sm:$0xff]
      %v5117 = vld [vmem:[#allocation3 + $0x42] sm:$0xff]
      %v5118 = vld [vmem:[#allocation3 + $0x4a] sm:$0xff]
      %v5119 = vld [vmem:[#allocation3 + $0x52] sm:$0xff]
      %v5120 = vld [vmem:[#allocation3 + $0x5a] sm:$0xff]
      %v5121 = vld [vmem:[#allocation3 + $0x62] sm:$0xff]
      %v5122 = vld [vmem:[#allocation3 + $0x6a] sm:$0xff]
      %v5123 = vld [vmem:[#allocation3 + $0x72] sm:$0xff]
      %v5124 = vld [vmem:[#allocation3 + $0x7a] sm:$0xff]
      %v5125 = vld [vmem:[#allocation3 + $0x82] sm:$0xff]
      %v5126 = vld [vmem:[#allocation3 + $0x8a] sm:$0xff]
      %v5127 = vld [vmem:[#allocation3 + $0x92] sm:$0xff]
      %v5128 = vld [vmem:[#allocation3 + $0x9a] sm:$0xff]
      %v5129 = vpack.c.bf16 %v5114, %v5113
      %v5130 = vpack.c.bf16 %v5116, %v5115
      %v5131 = vpack.c.bf16 %v5118, %v5117
      %v5132 = vpack.c.bf16 %v5120, %v5119
      %v5133 = vpack.c.bf16 %v5122, %v5121
      %v5134 = vpack.c.bf16 %v5124, %v5123
      %v5135 = vpack.c.bf16 %v5126, %v5125
      %v5136 = vpack.c.bf16 %v5128, %v5127
      %s5137 = scalar_lea.vmem %s3, 128
      %v5138 = vld [vmem:[%s5137] sm:$0xf]
      %v5139 = vld [vmem:[%s5137 + $0x4] sm:$0xf]
      %v5140 = vld [vmem:[%s5137 + $0x8] sm:$0xf]
      %v5141 = vld [vmem:[%s5137 + $0xc] sm:$0xf]
      %v5146 = vunpack.c.l.b16 %v5138
      %v5147 = vunpack.c.l.b16 %v5139
      %v5148 = vunpack.c.l.b16 %v5140
      %v5149 = vunpack.c.l.b16 %v5141
      %v5150 = vpack.c.b16 %v5147, %v5146
      %v5151 = vpack.c.b16 %v5149, %v5148
      %v5155 = vsel %vm4021, %v5129, 0
      %v5158 = vsel %vm4021, %v5130, 0
      %v5161 = vsel %vm4021, %v5131, 0
      %v5164 = vsel %vm4021, %v5132, 0
      %v5167 = vsel %vm4021, %v5133, 0
      %v5170 = vsel %vm4021, %v5134, 0
      %v5173 = vsel %vm4021, %v5135, 0
      %v5176 = vsel %vm4021, %v5136, 0
      %5178 = vmatpush.bf16.msra.mxu0 0
      %5179 = vmatpush.bf16.msra.mxu0 0
      %5180 = vmatpush.bf16.msra.mxu0 0
      %5181 = vmatpush.bf16.msra.mxu0 0
      %5182 = vmatpush.bf16.msra.mxu0 0
      %5183 = vmatpush.bf16.msra.mxu0 0
      %5184 = vmatpush.bf16.msra.mxu0 %v5151
      %5185 = vmatpush.bf16.msra.mxu0 %v5150
      %5186 = vmatmul.bf16.gmra.mxu0 %v5155
      %v5187 = vpop.f32.mrf.mxu0
      %v5188 = vadd.f32 0.0, %v5187
      %v5189 = vpop.f32.mrf.mxu0
      %v5190 = vadd.f32 0.0, %v5189
      %5191 = vmatmul.bf16.gmra.mxu0 %v5158
      %v5192 = vpop.f32.mrf.mxu0
      %v5193 = vadd.f32 0.0, %v5192
      %v5194 = vpop.f32.mrf.mxu0
      %v5195 = vadd.f32 0.0, %v5194
      %5196 = vmatmul.bf16.gmra.mxu0 %v5161
      %v5197 = vpop.f32.mrf.mxu0
      %v5198 = vadd.f32 0.0, %v5197
      %v5199 = vpop.f32.mrf.mxu0
      %v5200 = vadd.f32 0.0, %v5199
      %5201 = vmatmul.bf16.gmra.mxu0 %v5164
      %v5202 = vpop.f32.mrf.mxu0
      %v5203 = vadd.f32 0.0, %v5202
      %v5204 = vpop.f32.mrf.mxu0
      %v5205 = vadd.f32 0.0, %v5204
      %5206 = vmatmul.bf16.gmra.mxu0 %v5167
      %v5207 = vpop.f32.mrf.mxu0
      %v5208 = vadd.f32 0.0, %v5207
      %v5209 = vpop.f32.mrf.mxu0
      %v5210 = vadd.f32 0.0, %v5209
      %5211 = vmatmul.bf16.gmra.mxu0 %v5170
      %v5212 = vpop.f32.mrf.mxu0
      %v5213 = vadd.f32 0.0, %v5212
      %v5214 = vpop.f32.mrf.mxu0
      %v5215 = vadd.f32 0.0, %v5214
      %5216 = vmatmul.bf16.gmra.mxu0 %v5173
      %v5217 = vpop.f32.mrf.mxu0
      %v5218 = vadd.f32 0.0, %v5217
      %v5219 = vpop.f32.mrf.mxu0
      %v5220 = vadd.f32 0.0, %v5219
      %5221 = vmatmul.bf16.gmra.mxu0 %v5176
      %v5222 = vpop.f32.mrf.mxu0
      %v5223 = vadd.f32 0.0, %v5222
      %v5224 = vpop.f32.mrf.mxu0
      %v5225 = vadd.f32 0.0, %v5224
      %5226 = vdwg.mxu0
      %v5227 = vadd.f32 %v5097, %v5188
      %v5228 = vadd.f32 %v5098, %v5190
      %v5229 = vadd.f32 %v5099, %v5193
      %v5230 = vadd.f32 %v5100, %v5195
      %v5231 = vadd.f32 %v5101, %v5198
      %v5232 = vadd.f32 %v5102, %v5200
      %v5233 = vadd.f32 %v5103, %v5203
      %v5234 = vadd.f32 %v5104, %v5205
      %v5235 = vadd.f32 %v5105, %v5208
      %v5236 = vadd.f32 %v5106, %v5210
      %v5237 = vadd.f32 %v5107, %v5213
      %v5238 = vadd.f32 %v5108, %v5215
      %v5239 = vadd.f32 %v5109, %v5218
      %v5240 = vadd.f32 %v5110, %v5220
      %v5241 = vadd.f32 %v5111, %v5223
      %v5242 = vadd.f32 %v5112, %v5225
      %v5243 = vld [vmem:[%s6 + $0x4] sm:$0x1]
      %v5244 = vld [vmem:[%s6 + $0x5] sm:$0x1]
      %v5245 = vperm.slane %v5243, 0
      %v5246 = vmul.f32 %v5227, %v5245
      %v5247 = vmul.f32 %v5228, %v5245
      %v5248 = vmul.f32 %v5229, %v5245
      %v5249 = vmul.f32 %v5230, %v5245
      %v5250 = vmul.f32 %v5231, %v5245
      %v5251 = vmul.f32 %v5232, %v5245
      %v5252 = vmul.f32 %v5233, %v5245
      %v5253 = vmul.f32 %v5234, %v5245
      %v5254 = vmul.f32 %v5235, %v5245
      %v5255 = vmul.f32 %v5236, %v5245
      %v5256 = vmul.f32 %v5237, %v5245
      %v5257 = vmul.f32 %v5238, %v5245
      %v5258 = vmul.f32 %v5239, %v5245
      %v5259 = vmul.f32 %v5240, %v5245
      %v5260 = vmul.f32 %v5241, %v5245
      %v5261 = vmul.f32 %v5242, %v5245
      %v5262 = vperm.slane %v5244, 0
      %v5263 = vadd.f32 %v5246, %v5262
      %v5264 = vadd.f32 %v5247, %v5262
      %v5265 = vadd.f32 %v5248, %v5262
      %v5266 = vadd.f32 %v5249, %v5262
      %v5267 = vadd.f32 %v5250, %v5262
      %v5268 = vadd.f32 %v5251, %v5262
      %v5269 = vadd.f32 %v5252, %v5262
      %v5270 = vadd.f32 %v5253, %v5262
      %v5271 = vadd.f32 %v5254, %v5262
      %v5272 = vadd.f32 %v5255, %v5262
      %v5273 = vadd.f32 %v5256, %v5262
      %v5274 = vadd.f32 %v5257, %v5262
      %v5275 = vadd.f32 %v5258, %v5262
      %v5276 = vadd.f32 %v5259, %v5262
      %v5277 = vadd.f32 %v5260, %v5262
      %v5278 = vadd.f32 %v5261, %v5262
      %v5279 = vmax.f32 %v5263, 0.0
      %v5280 = vmax.f32 %v5264, 0.0
      %v5281 = vmax.f32 %v5265, 0.0
      %v5282 = vmax.f32 %v5266, 0.0
      %v5283 = vmax.f32 %v5267, 0.0
      %v5284 = vmax.f32 %v5268, 0.0
      %v5285 = vmax.f32 %v5269, 0.0
      %v5286 = vmax.f32 %v5270, 0.0
      %v5287 = vmax.f32 %v5271, 0.0
      %v5288 = vmax.f32 %v5272, 0.0
      %v5289 = vmax.f32 %v5273, 0.0
      %v5290 = vmax.f32 %v5274, 0.0
      %v5291 = vmax.f32 %v5275, 0.0
      %v5292 = vmax.f32 %v5276, 0.0
      %v5293 = vmax.f32 %v5277, 0.0
      %v5294 = vmax.f32 %v5278, 0.0
      %v5309 = vrot.slane %v5279, 1
      %v5310 = vrot.slane %v5280, 1
      %v5311 = vsel %vm3779, %v5309, %v5310
      %v5312 = vrot.slane %v5281, 1
      %v5313 = vsel %vm3779, %v5310, %v5312
      %v5314 = vrot.slane %v5282, 1
      %v5315 = vsel %vm3779, %v5312, %v5314
      %v5316 = vrot.slane %v5283, 1
      %v5317 = vsel %vm3779, %v5314, %v5316
      %v5318 = vrot.slane %v5284, 1
      %v5319 = vsel %vm3779, %v5316, %v5318
      %v5320 = vrot.slane %v5285, 1
      %v5321 = vsel %vm3779, %v5318, %v5320
      %v5322 = vrot.slane %v5286, 1
      %v5323 = vsel %vm3779, %v5320, %v5322
      %v5324 = vrot.slane %v5287, 1
      %v5325 = vsel %vm3779, %v5322, %v5324
      %v5326 = vrot.slane %v5288, 1
      %v5327 = vsel %vm3779, %v5324, %v5326
      %v5328 = vrot.slane %v5289, 1
      %v5329 = vsel %vm3779, %v5326, %v5328
      %v5330 = vrot.slane %v5290, 1
      %v5331 = vsel %vm3779, %v5328, %v5330
      %v5332 = vrot.slane %v5291, 1
      %v5333 = vsel %vm3779, %v5330, %v5332
      %v5334 = vrot.slane %v5292, 1
      %v5335 = vsel %vm3779, %v5332, %v5334
      %v5350 = vmax.f32 %v5279, %v5311
      %v5351 = vmax.f32 %v5280, %v5313
      %v5352 = vmax.f32 %v5281, %v5315
      %v5353 = vmax.f32 %v5282, %v5317
      %v5354 = vmax.f32 %v5283, %v5319
      %v5355 = vmax.f32 %v5284, %v5321
      %v5356 = vmax.f32 %v5285, %v5323
      %v5357 = vmax.f32 %v5286, %v5325
      %v5358 = vmax.f32 %v5287, %v5327
      %v5359 = vmax.f32 %v5288, %v5329
      %v5360 = vmax.f32 %v5289, %v5331
      %v5361 = vmax.f32 %v5290, %v5333
      %v5362 = vmax.f32 %v5291, %v5335
      %v5363 = vmax.f32 %v5292, %v5334
      %v5366 = vrot.slane %v5293, 1
      %v5367 = vsel %vm3779, %v5334, %v5366
      %v5368 = vrot.slane %v5294, 1
      %v5369 = vsel %vm3779, %v5366, %v5368
      %v5373 = vmax.f32 %v5292, %v5367
      %v5374 = vmax.f32 %v5293, %v5369
      %v5375 = vmax.f32 %v5294, %v5368
      %v5376 = vmax.f32 %v5350, %v5352
      %v5377 = vmax.f32 %v5351, %v5353
      %v5378 = vmax.f32 %v5352, %v5354
      %v5379 = vmax.f32 %v5353, %v5355
      %v5380 = vmax.f32 %v5354, %v5356
      %v5381 = vmax.f32 %v5355, %v5357
      %v5382 = vmax.f32 %v5356, %v5358
      %v5383 = vmax.f32 %v5357, %v5359
      %v5384 = vmax.f32 %v5358, %v5360
      %v5385 = vmax.f32 %v5359, %v5361
      %v5386 = vmax.f32 %v5360, %v5362
      %v5387 = vmax.f32 %v5361, %v5373
      %v5388 = vmax.f32 %v5362, %v5374
      %v5389 = vmax.f32 %v5363, %v5375
      %vm5390 = vcmask 392192
      %5391 = vst.msk [vmem:[#allocation7] sm:$0xff] %vm5390, %v5376
      %5392 = vst.msk [vmem:[#allocation7 + $0x8] sm:$0xff] %vm5390, %v5377
      %5393 = vst.msk [vmem:[#allocation7 + $0x10] sm:$0xff] %vm5390, %v5378
      %5394 = vst.msk [vmem:[#allocation7 + $0x18] sm:$0xff] %vm5390, %v5379
      %5395 = vst.msk [vmem:[#allocation7 + $0x20] sm:$0xff] %vm5390, %v5380
      %5396 = vst.msk [vmem:[#allocation7 + $0x28] sm:$0xff] %vm5390, %v5381
      %5397 = vst.msk [vmem:[#allocation7 + $0x30] sm:$0xff] %vm5390, %v5382
      %5398 = vst.msk [vmem:[#allocation7 + $0x38] sm:$0xff] %vm5390, %v5383
      %5399 = vst.msk [vmem:[#allocation7 + $0x40] sm:$0xff] %vm5390, %v5384
      %5400 = vst.msk [vmem:[#allocation7 + $0x48] sm:$0xff] %vm5390, %v5385
      %5401 = vst.msk [vmem:[#allocation7 + $0x50] sm:$0xff] %vm5390, %v5386
      %5402 = vst.msk [vmem:[#allocation7 + $0x58] sm:$0xff] %vm5390, %v5387
      %5403 = vst.msk [vmem:[#allocation7 + $0x60] sm:$0xff] %vm5390, %v5388
      %vm5404 = vcmask 391168
      %5405 = vst.msk [vmem:[#allocation7 + $0x68] sm:$0x7f] %vm5404, %v5389
      %5406 = vst.msk [vmem:[#allocation4] sm:$0xff] %vm5390, 0.0
      %vm5407 = vcmask 385024
      %5408 = vst.msk [vmem:[#allocation4 + $0x8] sm:$0x1] %vm5407, 0.0
      %v5409 = vld [vmem:[#allocation7] ss:$2 sm:$0xf]
      %vm5410 = vcmask 388096
      %5411 = vst.msk [vmem:[#allocation4 + $0x9] sm:$0xf] %vm5410, %v5409
      %5412 = vst.msk [vmem:[#allocation4 + $0xd] sm:$0xf] %vm5410, 0.0
      %s5413 = scalar_lea.vmem [#allocation7], 32
      %v5414 = vld [vmem:[%s5413] ss:$2 sm:$0xf]
      %5415 = vst.msk [vmem:[#allocation4 + $0x11] sm:$0xf] %vm5410, %v5414
      %5416 = vst.msk [vmem:[#allocation4 + $0x15] sm:$0xf] %vm5410, 0.0
      %s5417 = scalar_lea.vmem [#allocation7], 64
      %v5418 = vld [vmem:[%s5417] ss:$2 sm:$0xf]
      %5419 = vst.msk [vmem:[#allocation4 + $0x19] sm:$0xf] %vm5410, %v5418
      %5420 = vst.msk [vmem:[#allocation4 + $0x1d] sm:$0xf] %vm5410, 0.0
      %s5421 = scalar_lea.vmem [#allocation7], 96
      %v5422 = vld [vmem:[%s5421] ss:$2 sm:$0xf]
      %5423 = vst.msk [vmem:[#allocation4 + $0x21] sm:$0xf] %vm5410, %v5422
      %5424 = vst.msk [vmem:[#allocation4 + $0x25] sm:$0xff] %vm5390, 0.0
      %5425 = vst.msk [vmem:[#allocation4 + $0x2d] sm:$0xff] %vm5390, 0.0
      %vm5426 = vcmask 387072
      %5427 = vst.msk [vmem:[#allocation4 + $0x35] sm:$0x7] %vm5426, 0.0
      %v5428 = vld [vmem:[#allocation4] sm:$0xff]
      %v5429 = vld [vmem:[#allocation4 + $0x8] sm:$0xff]
      %v5430 = vld [vmem:[#allocation4 + $0x10] sm:$0xff]
      %v5431 = vld [vmem:[#allocation4 + $0x18] sm:$0xff]
      %v5432 = vpack.c.bf16 %v5429, %v5428
      %v5433 = vpack.c.bf16 %v5431, %v5430
      %v5434 = vld [vmem:[%s4] sm:$0xf]
      %v5435 = vld [vmem:[%s4 + $0x4] sm:$0xf]
      %v5436 = vld [vmem:[%s4 + $0x8] sm:$0xf]
      %v5437 = vld [vmem:[%s4 + $0xc] sm:$0xf]
      %v5438 = vld [vmem:[%s4 + $0x10] sm:$0xf]
      %v5439 = vld [vmem:[%s4 + $0x14] sm:$0xf]
      %v5440 = vld [vmem:[#allocation4 + $0x1] sm:$0xff]
      %v5441 = vld [vmem:[#allocation4 + $0x9] sm:$0xff]
      %v5442 = vld [vmem:[#allocation4 + $0x11] sm:$0xff]
      %v5443 = vld [vmem:[#allocation4 + $0x19] sm:$0xff]
      %v5444 = vpack.c.bf16 %v5441, %v5440
      %v5445 = vpack.c.bf16 %v5443, %v5442
      %s5446 = scalar_lea.vmem %s4, 24
      %v5447 = vld [vmem:[%s5446] sm:$0xf]
      %v5448 = vld [vmem:[%s5446 + $0x4] sm:$0xf]
      %v5449 = vld [vmem:[%s5446 + $0x8] sm:$0xf]
      %v5450 = vld [vmem:[%s5446 + $0xc] sm:$0xf]
      %v5451 = vld [vmem:[%s5446 + $0x10] sm:$0xf]
      %v5452 = vld [vmem:[%s5446 + $0x14] sm:$0xf]
      %v5459 = vunpack.c.l.b16 %v5447
      %v5460 = vunpack.c.l.b16 %v5448
      %v5461 = vunpack.c.l.b16 %v5449
      %v5462 = vunpack.c.l.b16 %v5450
      %v5463 = vunpack.c.l.b16 %v5451
      %v5464 = vunpack.c.l.b16 %v5452
      %v5465 = vpack.c.b16 %v5460, %v5459
      %v5466 = vpack.c.b16 %v5462, %v5461
      %v5467 = vpack.c.b16 %v5464, %v5463
      %v5472 = vsel %vm5390, %v5444, 0
      %v5475 = vsel %vm5390, %v5445, 0
      %5477 = vmatpush.bf16.msra.mxu0 0
      %5478 = vmatpush.bf16.msra.mxu0 0
      %5479 = vmatpush.bf16.msra.mxu0 0
      %5480 = vmatpush.bf16.msra.mxu0 0
      %5481 = vmatpush.bf16.msra.mxu0 0
      %5482 = vmatpush.bf16.msra.mxu0 %v5467
      %5483 = vmatpush.bf16.msra.mxu0 %v5466
      %5484 = vmatpush.bf16.msra.mxu0 %v5465
      %5485 = vmatmul.bf16.gmra.mxu0 %v5472
      %v5486 = vpop.f32.mrf.mxu0
      %v5487 = vadd.f32 0.0, %v5486
      %v5488 = vpop.f32.mrf.mxu0
      %v5489 = vadd.f32 0.0, %v5488
      %5490 = vmatmul.bf16.gmra.mxu0 %v5475
      %v5491 = vpop.f32.mrf.mxu0
      %v5492 = vadd.f32 0.0, %v5491
      %v5493 = vpop.f32.mrf.mxu0
      %v5494 = vadd.f32 0.0, %v5493
      %5495 = vdwg.mxu0
      %v5502 = vunpack.c.l.b16 %v5434
      %v5503 = vunpack.c.l.b16 %v5435
      %v5504 = vunpack.c.l.b16 %v5436
      %v5505 = vunpack.c.l.b16 %v5437
      %v5506 = vunpack.c.l.b16 %v5438
      %v5507 = vunpack.c.l.b16 %v5439
      %v5508 = vpack.c.b16 %v5503, %v5502
      %v5509 = vpack.c.b16 %v5505, %v5504
      %v5510 = vpack.c.b16 %v5507, %v5506
      %v5515 = vsel %vm5390, %v5432, 0
      %v5518 = vsel %vm5390, %v5433, 0
      %5520 = vmatpush.bf16.msra.mxu0 0
      %5521 = vmatpush.bf16.msra.mxu0 0
      %5522 = vmatpush.bf16.msra.mxu0 0
      %5523 = vmatpush.bf16.msra.mxu0 0
      %5524 = vmatpush.bf16.msra.mxu0 0
      %5525 = vmatpush.bf16.msra.mxu0 %v5510
      %5526 = vmatpush.bf16.msra.mxu0 %v5509
      %5527 = vmatpush.bf16.msra.mxu0 %v5508
      %5528 = vmatmul.bf16.gmra.mxu0 %v5515
      %v5529 = vpop.f32.mrf.mxu0
      %v5530 = vadd.f32 %v5487, %v5529
      %v5531 = vpop.f32.mrf.mxu0
      %v5532 = vadd.f32 %v5489, %v5531
      %5533 = vmatmul.bf16.gmra.mxu0 %v5518
      %v5534 = vpop.f32.mrf.mxu0
      %v5535 = vadd.f32 %v5492, %v5534
      %v5536 = vpop.f32.mrf.mxu0
      %v5537 = vadd.f32 %v5494, %v5536
      %5538 = vdwg.mxu0
      %v5539 = vld [vmem:[#allocation4 + $0x2] sm:$0xff]
      %v5540 = vld [vmem:[#allocation4 + $0xa] sm:$0xff]
      %v5541 = vld [vmem:[#allocation4 + $0x12] sm:$0xff]
      %v5542 = vld [vmem:[#allocation4 + $0x1a] sm:$0xff]
      %v5543 = vpack.c.bf16 %v5540, %v5539
      %v5544 = vpack.c.bf16 %v5542, %v5541
      %s5545 = scalar_lea.vmem %s4, 48
      %v5546 = vld [vmem:[%s5545] sm:$0xf]
      %v5547 = vld [vmem:[%s5545 + $0x4] sm:$0xf]
      %v5548 = vld [vmem:[%s5545 + $0x8] sm:$0xf]
      %v5549 = vld [vmem:[%s5545 + $0xc] sm:$0xf]
      %v5550 = vld [vmem:[%s5545 + $0x10] sm:$0xf]
      %v5551 = vld [vmem:[%s5545 + $0x14] sm:$0xf]
      %v5558 = vunpack.c.l.b16 %v5546
      %v5559 = vunpack.c.l.b16 %v5547
      %v5560 = vunpack.c.l.b16 %v5548
      %v5561 = vunpack.c.l.b16 %v5549
      %v5562 = vunpack.c.l.b16 %v5550
      %v5563 = vunpack.c.l.b16 %v5551
      %v5564 = vpack.c.b16 %v5559, %v5558
      %v5565 = vpack.c.b16 %v5561, %v5560
      %v5566 = vpack.c.b16 %v5563, %v5562
      %v5571 = vsel %vm5390, %v5543, 0
      %v5574 = vsel %vm5390, %v5544, 0
      %5576 = vmatpush.bf16.msra.mxu0 0
      %5577 = vmatpush.bf16.msra.mxu0 0
      %5578 = vmatpush.bf16.msra.mxu0 0
      %5579 = vmatpush.bf16.msra.mxu0 0
      %5580 = vmatpush.bf16.msra.mxu0 0
      %5581 = vmatpush.bf16.msra.mxu0 %v5566
      %5582 = vmatpush.bf16.msra.mxu0 %v5565
      %5583 = vmatpush.bf16.msra.mxu0 %v5564
      %5584 = vmatmul.bf16.gmra.mxu0 %v5571
      %v5585 = vpop.f32.mrf.mxu0
      %v5586 = vadd.f32 0.0, %v5585
      %v5587 = vpop.f32.mrf.mxu0
      %v5588 = vadd.f32 0.0, %v5587
      %5589 = vmatmul.bf16.gmra.mxu0 %v5574
      %v5590 = vpop.f32.mrf.mxu0
      %v5591 = vadd.f32 0.0, %v5590
      %v5592 = vpop.f32.mrf.mxu0
      %v5593 = vadd.f32 0.0, %v5592
      %5594 = vdwg.mxu0
      %v5595 = vadd.f32 %v5530, %v5586
      %v5596 = vadd.f32 %v5532, %v5588
      %v5597 = vadd.f32 %v5535, %v5591
      %v5598 = vadd.f32 %v5537, %v5593
      %v5599 = vld [vmem:[#allocation4 + $0x8] sm:$0xff]
      %v5600 = vld [vmem:[#allocation4 + $0x10] sm:$0xff]
      %v5601 = vld [vmem:[#allocation4 + $0x18] sm:$0xff]
      %v5602 = vld [vmem:[#allocation4 + $0x20] sm:$0xff]
      %v5603 = vpack.c.bf16 %v5600, %v5599
      %v5604 = vpack.c.bf16 %v5602, %v5601
      %s5605 = scalar_lea.vmem %s4, 72
      %v5606 = vld [vmem:[%s5605] sm:$0xf]
      %v5607 = vld [vmem:[%s5605 + $0x4] sm:$0xf]
      %v5608 = vld [vmem:[%s5605 + $0x8] sm:$0xf]
      %v5609 = vld [vmem:[%s5605 + $0xc] sm:$0xf]
      %v5610 = vld [vmem:[%s5605 + $0x10] sm:$0xf]
      %v5611 = vld [vmem:[%s5605 + $0x14] sm:$0xf]
      %v5618 = vunpack.c.l.b16 %v5606
      %v5619 = vunpack.c.l.b16 %v5607
      %v5620 = vunpack.c.l.b16 %v5608
      %v5621 = vunpack.c.l.b16 %v5609
      %v5622 = vunpack.c.l.b16 %v5610
      %v5623 = vunpack.c.l.b16 %v5611
      %v5624 = vpack.c.b16 %v5619, %v5618
      %v5625 = vpack.c.b16 %v5621, %v5620
      %v5626 = vpack.c.b16 %v5623, %v5622
      %v5631 = vsel %vm5390, %v5603, 0
      %v5634 = vsel %vm5390, %v5604, 0
      %5636 = vmatpush.bf16.msra.mxu0 0
      %5637 = vmatpush.bf16.msra.mxu0 0
      %5638 = vmatpush.bf16.msra.mxu0 0
      %5639 = vmatpush.bf16.msra.mxu0 0
      %5640 = vmatpush.bf16.msra.mxu0 0
      %5641 = vmatpush.bf16.msra.mxu0 %v5626
      %5642 = vmatpush.bf16.msra.mxu0 %v5625
      %5643 = vmatpush.bf16.msra.mxu0 %v5624
      %5644 = vmatmul.bf16.gmra.mxu0 %v5631
      %v5645 = vpop.f32.mrf.mxu0
      %v5646 = vadd.f32 0.0, %v5645
      %v5647 = vpop.f32.mrf.mxu0
      %v5648 = vadd.f32 0.0, %v5647
      %5649 = vmatmul.bf16.gmra.mxu0 %v5634
      %v5650 = vpop.f32.mrf.mxu0
      %v5651 = vadd.f32 0.0, %v5650
      %v5652 = vpop.f32.mrf.mxu0
      %v5653 = vadd.f32 0.0, %v5652
      %5654 = vdwg.mxu0
      %v5655 = vadd.f32 %v5595, %v5646
      %v5656 = vadd.f32 %v5596, %v5648
      %v5657 = vadd.f32 %v5597, %v5651
      %v5658 = vadd.f32 %v5598, %v5653
      %v5659 = vld [vmem:[#allocation4 + $0x9] sm:$0xff]
      %v5660 = vld [vmem:[#allocation4 + $0x11] sm:$0xff]
      %v5661 = vld [vmem:[#allocation4 + $0x19] sm:$0xff]
      %v5662 = vld [vmem:[#allocation4 + $0x21] sm:$0xff]
      %v5663 = vpack.c.bf16 %v5660, %v5659
      %v5664 = vpack.c.bf16 %v5662, %v5661
      %s5665 = scalar_lea.vmem %s4, 96
      %v5666 = vld [vmem:[%s5665] sm:$0xf]
      %v5667 = vld [vmem:[%s5665 + $0x4] sm:$0xf]
      %v5668 = vld [vmem:[%s5665 + $0x8] sm:$0xf]
      %v5669 = vld [vmem:[%s5665 + $0xc] sm:$0xf]
      %v5670 = vld [vmem:[%s5665 + $0x10] sm:$0xf]
      %v5671 = vld [vmem:[%s5665 + $0x14] sm:$0xf]
      %v5678 = vunpack.c.l.b16 %v5666
      %v5679 = vunpack.c.l.b16 %v5667
      %v5680 = vunpack.c.l.b16 %v5668
      %v5681 = vunpack.c.l.b16 %v5669
      %v5682 = vunpack.c.l.b16 %v5670
      %v5683 = vunpack.c.l.b16 %v5671
      %v5684 = vpack.c.b16 %v5679, %v5678
      %v5685 = vpack.c.b16 %v5681, %v5680
      %v5686 = vpack.c.b16 %v5683, %v5682
      %v5691 = vsel %vm5390, %v5663, 0
      %v5694 = vsel %vm5390, %v5664, 0
      %5696 = vmatpush.bf16.msra.mxu0 0
      %5697 = vmatpush.bf16.msra.mxu0 0
      %5698 = vmatpush.bf16.msra.mxu0 0
      %5699 = vmatpush.bf16.msra.mxu0 0
      %5700 = vmatpush.bf16.msra.mxu0 0
      %5701 = vmatpush.bf16.msra.mxu0 %v5686
      %5702 = vmatpush.bf16.msra.mxu0 %v5685
      %5703 = vmatpush.bf16.msra.mxu0 %v5684
      %5704 = vmatmul.bf16.gmra.mxu0 %v5691
      %v5705 = vpop.f32.mrf.mxu0
      %v5706 = vadd.f32 0.0, %v5705
      %v5707 = vpop.f32.mrf.mxu0
      %v5708 = vadd.f32 0.0, %v5707
      %5709 = vmatmul.bf16.gmra.mxu0 %v5694
      %v5710 = vpop.f32.mrf.mxu0
      %v5711 = vadd.f32 0.0, %v5710
      %v5712 = vpop.f32.mrf.mxu0
      %v5713 = vadd.f32 0.0, %v5712
      %5714 = vdwg.mxu0
      %v5715 = vadd.f32 %v5655, %v5706
      %v5716 = vadd.f32 %v5656, %v5708
      %v5717 = vadd.f32 %v5657, %v5711
      %v5718 = vadd.f32 %v5658, %v5713
      %v5719 = vld [vmem:[#allocation4 + $0xa] sm:$0xff]
      %v5720 = vld [vmem:[#allocation4 + $0x12] sm:$0xff]
      %v5721 = vld [vmem:[#allocation4 + $0x1a] sm:$0xff]
      %v5722 = vld [vmem:[#allocation4 + $0x22] sm:$0xff]
      %v5723 = vpack.c.bf16 %v5720, %v5719
      %v5724 = vpack.c.bf16 %v5722, %v5721
      %s5725 = scalar_lea.vmem %s4, 120
      %v5726 = vld [vmem:[%s5725] sm:$0xf]
      %v5727 = vld [vmem:[%s5725 + $0x4] sm:$0xf]
      %v5728 = vld [vmem:[%s5725 + $0x8] sm:$0xf]
      %v5729 = vld [vmem:[%s5725 + $0xc] sm:$0xf]
      %v5730 = vld [vmem:[%s5725 + $0x10] sm:$0xf]
      %v5731 = vld [vmem:[%s5725 + $0x14] sm:$0xf]
      %v5738 = vunpack.c.l.b16 %v5726
      %v5739 = vunpack.c.l.b16 %v5727
      %v5740 = vunpack.c.l.b16 %v5728
      %v5741 = vunpack.c.l.b16 %v5729
      %v5742 = vunpack.c.l.b16 %v5730
      %v5743 = vunpack.c.l.b16 %v5731
      %v5744 = vpack.c.b16 %v5739, %v5738
      %v5745 = vpack.c.b16 %v5741, %v5740
      %v5746 = vpack.c.b16 %v5743, %v5742
      %v5751 = vsel %vm5390, %v5723, 0
      %v5754 = vsel %vm5390, %v5724, 0
      %5756 = vmatpush.bf16.msra.mxu0 0
      %5757 = vmatpush.bf16.msra.mxu0 0
      %5758 = vmatpush.bf16.msra.mxu0 0
      %5759 = vmatpush.bf16.msra.mxu0 0
      %5760 = vmatpush.bf16.msra.mxu0 0
      %5761 = vmatpush.bf16.msra.mxu0 %v5746
      %5762 = vmatpush.bf16.msra.mxu0 %v5745
      %5763 = vmatpush.bf16.msra.mxu0 %v5744
      %5764 = vmatmul.bf16.gmra.mxu0 %v5751
      %v5765 = vpop.f32.mrf.mxu0
      %v5766 = vadd.f32 0.0, %v5765
      %v5767 = vpop.f32.mrf.mxu0
      %v5768 = vadd.f32 0.0, %v5767
      %5769 = vmatmul.bf16.gmra.mxu0 %v5754
      %v5770 = vpop.f32.mrf.mxu0
      %v5771 = vadd.f32 0.0, %v5770
      %v5772 = vpop.f32.mrf.mxu0
      %v5773 = vadd.f32 0.0, %v5772
      %5774 = vdwg.mxu0
      %v5775 = vadd.f32 %v5715, %v5766
      %v5776 = vadd.f32 %v5716, %v5768
      %v5777 = vadd.f32 %v5717, %v5771
      %v5778 = vadd.f32 %v5718, %v5773
      %v5779 = vld [vmem:[#allocation4 + $0x10] sm:$0xff]
      %v5780 = vld [vmem:[#allocation4 + $0x18] sm:$0xff]
      %v5781 = vld [vmem:[#allocation4 + $0x20] sm:$0xff]
      %v5782 = vld [vmem:[#allocation4 + $0x28] sm:$0xff]
      %v5783 = vpack.c.bf16 %v5780, %v5779
      %v5784 = vpack.c.bf16 %v5782, %v5781
      %s5785 = scalar_lea.vmem %s4, 144
      %v5786 = vld [vmem:[%s5785] sm:$0xf]
      %v5787 = vld [vmem:[%s5785 + $0x4] sm:$0xf]
      %v5788 = vld [vmem:[%s5785 + $0x8] sm:$0xf]
      %v5789 = vld [vmem:[%s5785 + $0xc] sm:$0xf]
      %v5790 = vld [vmem:[%s5785 + $0x10] sm:$0xf]
      %v5791 = vld [vmem:[%s5785 + $0x14] sm:$0xf]
      %v5798 = vunpack.c.l.b16 %v5786
      %v5799 = vunpack.c.l.b16 %v5787
      %v5800 = vunpack.c.l.b16 %v5788
      %v5801 = vunpack.c.l.b16 %v5789
      %v5802 = vunpack.c.l.b16 %v5790
      %v5803 = vunpack.c.l.b16 %v5791
      %v5804 = vpack.c.b16 %v5799, %v5798
      %v5805 = vpack.c.b16 %v5801, %v5800
      %v5806 = vpack.c.b16 %v5803, %v5802
      %v5811 = vsel %vm5390, %v5783, 0
      %v5814 = vsel %vm5390, %v5784, 0
      %5816 = vmatpush.bf16.msra.mxu0 0
      %5817 = vmatpush.bf16.msra.mxu0 0
      %5818 = vmatpush.bf16.msra.mxu0 0
      %5819 = vmatpush.bf16.msra.mxu0 0
      %5820 = vmatpush.bf16.msra.mxu0 0
      %5821 = vmatpush.bf16.msra.mxu0 %v5806
      %5822 = vmatpush.bf16.msra.mxu0 %v5805
      %5823 = vmatpush.bf16.msra.mxu0 %v5804
      %5824 = vmatmul.bf16.gmra.mxu0 %v5811
      %v5825 = vpop.f32.mrf.mxu0
      %v5826 = vadd.f32 0.0, %v5825
      %v5827 = vpop.f32.mrf.mxu0
      %v5828 = vadd.f32 0.0, %v5827
      %5829 = vmatmul.bf16.gmra.mxu0 %v5814
      %v5830 = vpop.f32.mrf.mxu0
      %v5831 = vadd.f32 0.0, %v5830
      %v5832 = vpop.f32.mrf.mxu0
      %v5833 = vadd.f32 0.0, %v5832
      %5834 = vdwg.mxu0
      %v5835 = vadd.f32 %v5775, %v5826
      %v5836 = vadd.f32 %v5776, %v5828
      %v5837 = vadd.f32 %v5777, %v5831
      %v5838 = vadd.f32 %v5778, %v5833
      %v5839 = vld [vmem:[#allocation4 + $0x11] sm:$0xff]
      %v5840 = vld [vmem:[#allocation4 + $0x19] sm:$0xff]
      %v5841 = vld [vmem:[#allocation4 + $0x21] sm:$0xff]
      %v5842 = vld [vmem:[#allocation4 + $0x29] sm:$0xff]
      %v5843 = vpack.c.bf16 %v5840, %v5839
      %v5844 = vpack.c.bf16 %v5842, %v5841
      %s5845 = scalar_lea.vmem %s4, 168
      %v5846 = vld [vmem:[%s5845] sm:$0xf]
      %v5847 = vld [vmem:[%s5845 + $0x4] sm:$0xf]
      %v5848 = vld [vmem:[%s5845 + $0x8] sm:$0xf]
      %v5849 = vld [vmem:[%s5845 + $0xc] sm:$0xf]
      %v5850 = vld [vmem:[%s5845 + $0x10] sm:$0xf]
      %v5851 = vld [vmem:[%s5845 + $0x14] sm:$0xf]
      %v5858 = vunpack.c.l.b16 %v5846
      %v5859 = vunpack.c.l.b16 %v5847
      %v5860 = vunpack.c.l.b16 %v5848
      %v5861 = vunpack.c.l.b16 %v5849
      %v5862 = vunpack.c.l.b16 %v5850
      %v5863 = vunpack.c.l.b16 %v5851
      %v5864 = vpack.c.b16 %v5859, %v5858
      %v5865 = vpack.c.b16 %v5861, %v5860
      %v5866 = vpack.c.b16 %v5863, %v5862
      %v5871 = vsel %vm5390, %v5843, 0
      %v5874 = vsel %vm5390, %v5844, 0
      %5876 = vmatpush.bf16.msra.mxu0 0
      %5877 = vmatpush.bf16.msra.mxu0 0
      %5878 = vmatpush.bf16.msra.mxu0 0
      %5879 = vmatpush.bf16.msra.mxu0 0
      %5880 = vmatpush.bf16.msra.mxu0 0
      %5881 = vmatpush.bf16.msra.mxu0 %v5866
      %5882 = vmatpush.bf16.msra.mxu0 %v5865
      %5883 = vmatpush.bf16.msra.mxu0 %v5864
      %5884 = vmatmul.bf16.gmra.mxu0 %v5871
      %v5885 = vpop.f32.mrf.mxu0
      %v5886 = vadd.f32 0.0, %v5885
      %v5887 = vpop.f32.mrf.mxu0
      %v5888 = vadd.f32 0.0, %v5887
      %5889 = vmatmul.bf16.gmra.mxu0 %v5874
      %v5890 = vpop.f32.mrf.mxu0
      %v5891 = vadd.f32 0.0, %v5890
      %v5892 = vpop.f32.mrf.mxu0
      %v5893 = vadd.f32 0.0, %v5892
      %5894 = vdwg.mxu0
      %v5895 = vadd.f32 %v5835, %v5886
      %v5896 = vadd.f32 %v5836, %v5888
      %v5897 = vadd.f32 %v5837, %v5891
      %v5898 = vadd.f32 %v5838, %v5893
      %v5899 = vld [vmem:[#allocation4 + $0x12] sm:$0xff]
      %v5900 = vld [vmem:[#allocation4 + $0x1a] sm:$0xff]
      %v5901 = vld [vmem:[#allocation4 + $0x22] sm:$0xff]
      %v5902 = vld [vmem:[#allocation4 + $0x2a] sm:$0xff]
      %v5903 = vpack.c.bf16 %v5900, %v5899
      %v5904 = vpack.c.bf16 %v5902, %v5901
      %s5905 = scalar_lea.vmem %s4, 192
      %v5906 = vld [vmem:[%s5905] sm:$0xf]
      %v5907 = vld [vmem:[%s5905 + $0x4] sm:$0xf]
      %v5908 = vld [vmem:[%s5905 + $0x8] sm:$0xf]
      %v5909 = vld [vmem:[%s5905 + $0xc] sm:$0xf]
      %v5910 = vld [vmem:[%s5905 + $0x10] sm:$0xf]
      %v5911 = vld [vmem:[%s5905 + $0x14] sm:$0xf]
      %v5918 = vunpack.c.l.b16 %v5906
      %v5919 = vunpack.c.l.b16 %v5907
      %v5920 = vunpack.c.l.b16 %v5908
      %v5921 = vunpack.c.l.b16 %v5909
      %v5922 = vunpack.c.l.b16 %v5910
      %v5923 = vunpack.c.l.b16 %v5911
      %v5924 = vpack.c.b16 %v5919, %v5918
      %v5925 = vpack.c.b16 %v5921, %v5920
      %v5926 = vpack.c.b16 %v5923, %v5922
      %v5931 = vsel %vm5390, %v5903, 0
      %v5934 = vsel %vm5390, %v5904, 0
      %5936 = vmatpush.bf16.msra.mxu0 0
      %5937 = vmatpush.bf16.msra.mxu0 0
      %5938 = vmatpush.bf16.msra.mxu0 0
      %5939 = vmatpush.bf16.msra.mxu0 0
      %5940 = vmatpush.bf16.msra.mxu0 0
      %5941 = vmatpush.bf16.msra.mxu0 %v5926
      %5942 = vmatpush.bf16.msra.mxu0 %v5925
      %5943 = vmatpush.bf16.msra.mxu0 %v5924
      %5944 = vmatmul.bf16.gmra.mxu0 %v5931
      %v5945 = vpop.f32.mrf.mxu0
      %v5946 = vadd.f32 0.0, %v5945
      %v5947 = vpop.f32.mrf.mxu0
      %v5948 = vadd.f32 0.0, %v5947
      %5949 = vmatmul.bf16.gmra.mxu0 %v5934
      %v5950 = vpop.f32.mrf.mxu0
      %v5951 = vadd.f32 0.0, %v5950
      %v5952 = vpop.f32.mrf.mxu0
      %v5953 = vadd.f32 0.0, %v5952
      %5954 = vdwg.mxu0
      %v5955 = vadd.f32 %v5895, %v5946
      %v5956 = vadd.f32 %v5896, %v5948
      %v5957 = vadd.f32 %v5897, %v5951
      %v5958 = vadd.f32 %v5898, %v5953
      %v5959 = vld [vmem:[%s6 + $0x6] sm:$0x1]
      %v5960 = vld [vmem:[%s6 + $0x7] sm:$0x1]
      %v5961 = vperm.slane %v5959, 0
      %v5962 = vmul.f32 %v5955, %v5961
      %v5963 = vmul.f32 %v5956, %v5961
      %v5964 = vmul.f32 %v5957, %v5961
      %v5965 = vmul.f32 %v5958, %v5961
      %v5966 = vperm.slane %v5960, 0
      %v5967 = vadd.f32 %v5962, %v5966
      %v5968 = vadd.f32 %v5963, %v5966
      %v5969 = vadd.f32 %v5964, %v5966
      %v5970 = vadd.f32 %v5965, %v5966
      %v5971 = vmax.f32 %v5967, 0.0
      %v5972 = vmax.f32 %v5968, 0.0
      %v5973 = vmax.f32 %v5969, 0.0
      %v5974 = vmax.f32 %v5970, 0.0
      %vm5975 = vcmask 523264
      %5976 = vst.msk [vmem:[#allocation5] sm:$0xff] %vm5975, 0.0
      %vm5977 = vcmask 516096
      %5978 = vst.msk [vmem:[#allocation5 + $0x8] sm:$0x1] %vm5977, 0.0
      %vm5979 = vcmask 519168
      %5980 = vst.msk [vmem:[#allocation5 + $0x9] sm:$0xf] %vm5979, %v5971
      %5981 = vst.msk [vmem:[#allocation5 + $0xd] sm:$0xf] %vm5979, 0.0
      %5982 = vst.msk [vmem:[#allocation5 + $0x11] sm:$0xf] %vm5979, %v5972
      %5983 = vst.msk [vmem:[#allocation5 + $0x15] sm:$0xf] %vm5979, 0.0
      %5984 = vst.msk [vmem:[#allocation5 + $0x19] sm:$0xf] %vm5979, %v5973
      %5985 = vst.msk [vmem:[#allocation5 + $0x1d] sm:$0xf] %vm5979, 0.0
      %5986 = vst.msk [vmem:[#allocation5 + $0x21] sm:$0xf] %vm5979, %v5974
      %5987 = vst.msk [vmem:[#allocation5 + $0x25] sm:$0xff] %vm5975, 0.0
      %5988 = vst.msk [vmem:[#allocation5 + $0x2d] sm:$0xff] %vm5975, 0.0
      %vm5989 = vcmask 518144
      %5990 = vst.msk [vmem:[#allocation5 + $0x35] sm:$0x7] %vm5989, 0.0
      %v5991 = vld [vmem:[#allocation5] sm:$0xff]
      %v5992 = vld [vmem:[#allocation5 + $0x8] sm:$0xff]
      %v5993 = vld [vmem:[#allocation5 + $0x10] sm:$0xff]
      %v5994 = vld [vmem:[#allocation5 + $0x18] sm:$0xff]
      %v5995 = vpack.c.bf16 %v5992, %v5991
      %v5996 = vpack.c.bf16 %v5994, %v5993
      %v5997 = vld [vmem:[%s5] sm:$0xf]
      %v5998 = vld [vmem:[%s5 + $0x4] sm:$0xf]
      %v5999 = vld [vmem:[%s5 + $0x8] sm:$0xf]
      %v6000 = vld [vmem:[%s5 + $0xc] sm:$0xf]
      %v6001 = vld [vmem:[%s5 + $0x10] sm:$0xf]
      %v6002 = vld [vmem:[%s5 + $0x14] sm:$0xf]
      %v6003 = vld [vmem:[%s5 + $0x18] sm:$0xf]
      %v6004 = vld [vmem:[%s5 + $0x1c] sm:$0xf]
      %v6005 = vld [vmem:[#allocation5 + $0x1] sm:$0xff]
      %v6006 = vld [vmem:[#allocation5 + $0x9] sm:$0xff]
      %v6007 = vld [vmem:[#allocation5 + $0x11] sm:$0xff]
      %v6008 = vld [vmem:[#allocation5 + $0x19] sm:$0xff]
      %v6009 = vpack.c.bf16 %v6006, %v6005
      %v6010 = vpack.c.bf16 %v6008, %v6007
      %s6011 = scalar_lea.vmem %s5, 32
      %v6012 = vld [vmem:[%s6011] sm:$0xf]
      %v6013 = vld [vmem:[%s6011 + $0x4] sm:$0xf]
      %v6014 = vld [vmem:[%s6011 + $0x8] sm:$0xf]
      %v6015 = vld [vmem:[%s6011 + $0xc] sm:$0xf]
      %v6016 = vld [vmem:[%s6011 + $0x10] sm:$0xf]
      %v6017 = vld [vmem:[%s6011 + $0x14] sm:$0xf]
      %v6018 = vld [vmem:[%s6011 + $0x18] sm:$0xf]
      %v6019 = vld [vmem:[%s6011 + $0x1c] sm:$0xf]
      %v6028 = vunpack.c.l.b16 %v6012
      %v6029 = vunpack.c.l.b16 %v6013
      %v6030 = vunpack.c.l.b16 %v6014
      %v6031 = vunpack.c.l.b16 %v6015
      %v6032 = vunpack.c.l.b16 %v6016
      %v6033 = vunpack.c.l.b16 %v6017
      %v6034 = vunpack.c.l.b16 %v6018
      %v6035 = vunpack.c.l.b16 %v6019
      %v6036 = vpack.c.b16 %v6029, %v6028
      %v6037 = vpack.c.b16 %v6031, %v6030
      %v6038 = vpack.c.b16 %v6033, %v6032
      %v6039 = vpack.c.b16 %v6035, %v6034
      %v6045 = vsel %vm5975, %v6009, 0
      %v6048 = vsel %vm5975, %v6010, 0
      %6050 = vmatpush.bf16.msra.mxu0 0
      %6051 = vmatpush.bf16.msra.mxu0 0
      %6052 = vmatpush.bf16.msra.mxu0 0
      %6053 = vmatpush.bf16.msra.mxu0 0
      %6054 = vmatpush.bf16.msra.mxu0 %v6039
      %6055 = vmatpush.bf16.msra.mxu0 %v6038
      %6056 = vmatpush.bf16.msra.mxu0 %v6037
      %6057 = vmatpush.bf16.msra.mxu0 %v6036
      %6058 = vmatmul.bf16.gmra.mxu0 %v6045
      %v6059 = vpop.f32.mrf.mxu0
      %v6060 = vadd.f32 0.0, %v6059
      %v6061 = vpop.f32.mrf.mxu0
      %v6062 = vadd.f32 0.0, %v6061
      %6063 = vmatmul.bf16.gmra.mxu0 %v6048
      %v6064 = vpop.f32.mrf.mxu0
      %v6065 = vadd.f32 0.0, %v6064
      %v6066 = vpop.f32.mrf.mxu0
      %v6067 = vadd.f32 0.0, %v6066
      %6068 = vdwg.mxu0
      %v6077 = vunpack.c.l.b16 %v5997
      %v6078 = vunpack.c.l.b16 %v5998
      %v6079 = vunpack.c.l.b16 %v5999
      %v6080 = vunpack.c.l.b16 %v6000
      %v6081 = vunpack.c.l.b16 %v6001
      %v6082 = vunpack.c.l.b16 %v6002
      %v6083 = vunpack.c.l.b16 %v6003
      %v6084 = vunpack.c.l.b16 %v6004
      %v6085 = vpack.c.b16 %v6078, %v6077
      %v6086 = vpack.c.b16 %v6080, %v6079
      %v6087 = vpack.c.b16 %v6082, %v6081
      %v6088 = vpack.c.b16 %v6084, %v6083
      %v6094 = vsel %vm5975, %v5995, 0
      %v6097 = vsel %vm5975, %v5996, 0
      %6099 = vmatpush.bf16.msra.mxu0 0
      %6100 = vmatpush.bf16.msra.mxu0 0
      %6101 = vmatpush.bf16.msra.mxu0 0
      %6102 = vmatpush.bf16.msra.mxu0 0
      %6103 = vmatpush.bf16.msra.mxu0 %v6088
      %6104 = vmatpush.bf16.msra.mxu0 %v6087
      %6105 = vmatpush.bf16.msra.mxu0 %v6086
      %6106 = vmatpush.bf16.msra.mxu0 %v6085
      %6107 = vmatmul.bf16.gmra.mxu0 %v6094
      %v6108 = vpop.f32.mrf.mxu0
      %v6109 = vadd.f32 %v6060, %v6108
      %v6110 = vpop.f32.mrf.mxu0
      %v6111 = vadd.f32 %v6062, %v6110
      %6112 = vmatmul.bf16.gmra.mxu0 %v6097
      %v6113 = vpop.f32.mrf.mxu0
      %v6114 = vadd.f32 %v6065, %v6113
      %v6115 = vpop.f32.mrf.mxu0
      %v6116 = vadd.f32 %v6067, %v6115
      %6117 = vdwg.mxu0
      %v6118 = vld [vmem:[#allocation5 + $0x2] sm:$0xff]
      %v6119 = vld [vmem:[#allocation5 + $0xa] sm:$0xff]
      %v6120 = vld [vmem:[#allocation5 + $0x12] sm:$0xff]
      %v6121 = vld [vmem:[#allocation5 + $0x1a] sm:$0xff]
      %v6122 = vpack.c.bf16 %v6119, %v6118
      %v6123 = vpack.c.bf16 %v6121, %v6120
      %s6124 = scalar_lea.vmem %s5, 64
      %v6125 = vld [vmem:[%s6124] sm:$0xf]
      %v6126 = vld [vmem:[%s6124 + $0x4] sm:$0xf]
      %v6127 = vld [vmem:[%s6124 + $0x8] sm:$0xf]
      %v6128 = vld [vmem:[%s6124 + $0xc] sm:$0xf]
      %v6129 = vld [vmem:[%s6124 + $0x10] sm:$0xf]
      %v6130 = vld [vmem:[%s6124 + $0x14] sm:$0xf]
      %v6131 = vld [vmem:[%s6124 + $0x18] sm:$0xf]
      %v6132 = vld [vmem:[%s6124 + $0x1c] sm:$0xf]
      %v6141 = vunpack.c.l.b16 %v6125
      %v6142 = vunpack.c.l.b16 %v6126
      %v6143 = vunpack.c.l.b16 %v6127
      %v6144 = vunpack.c.l.b16 %v6128
      %v6145 = vunpack.c.l.b16 %v6129
      %v6146 = vunpack.c.l.b16 %v6130
      %v6147 = vunpack.c.l.b16 %v6131
      %v6148 = vunpack.c.l.b16 %v6132
      %v6149 = vpack.c.b16 %v6142, %v6141
      %v6150 = vpack.c.b16 %v6144, %v6143
      %v6151 = vpack.c.b16 %v6146, %v6145
      %v6152 = vpack.c.b16 %v6148, %v6147
      %v6158 = vsel %vm5975, %v6122, 0
      %v6161 = vsel %vm5975, %v6123, 0
      %6163 = vmatpush.bf16.msra.mxu0 0
      %6164 = vmatpush.bf16.msra.mxu0 0
      %6165 = vmatpush.bf16.msra.mxu0 0
      %6166 = vmatpush.bf16.msra.mxu0 0
      %6167 = vmatpush.bf16.msra.mxu0 %v6152
      %6168 = vmatpush.bf16.msra.mxu0 %v6151
      %6169 = vmatpush.bf16.msra.mxu0 %v6150
      %6170 = vmatpush.bf16.msra.mxu0 %v6149
      %6171 = vmatmul.bf16.gmra.mxu0 %v6158
      %v6172 = vpop.f32.mrf.mxu0
      %v6173 = vadd.f32 0.0, %v6172
      %v6174 = vpop.f32.mrf.mxu0
      %v6175 = vadd.f32 0.0, %v6174
      %6176 = vmatmul.bf16.gmra.mxu0 %v6161
      %v6177 = vpop.f32.mrf.mxu0
      %v6178 = vadd.f32 0.0, %v6177
      %v6179 = vpop.f32.mrf.mxu0
      %v6180 = vadd.f32 0.0, %v6179
      %6181 = vdwg.mxu0
      %v6182 = vadd.f32 %v6109, %v6173
      %v6183 = vadd.f32 %v6111, %v6175
      %v6184 = vadd.f32 %v6114, %v6178
      %v6185 = vadd.f32 %v6116, %v6180
      %v6186 = vld [vmem:[#allocation5 + $0x8] sm:$0xff]
      %v6187 = vld [vmem:[#allocation5 + $0x10] sm:$0xff]
      %v6188 = vld [vmem:[#allocation5 + $0x18] sm:$0xff]
      %v6189 = vld [vmem:[#allocation5 + $0x20] sm:$0xff]
      %v6190 = vpack.c.bf16 %v6187, %v6186
      %v6191 = vpack.c.bf16 %v6189, %v6188
      %s6192 = scalar_lea.vmem %s5, 96
      %v6193 = vld [vmem:[%s6192] sm:$0xf]
      %v6194 = vld [vmem:[%s6192 + $0x4] sm:$0xf]
      %v6195 = vld [vmem:[%s6192 + $0x8] sm:$0xf]
      %v6196 = vld [vmem:[%s6192 + $0xc] sm:$0xf]
      %v6197 = vld [vmem:[%s6192 + $0x10] sm:$0xf]
      %v6198 = vld [vmem:[%s6192 + $0x14] sm:$0xf]
      %v6199 = vld [vmem:[%s6192 + $0x18] sm:$0xf]
      %v6200 = vld [vmem:[%s6192 + $0x1c] sm:$0xf]
      %v6209 = vunpack.c.l.b16 %v6193
      %v6210 = vunpack.c.l.b16 %v6194
      %v6211 = vunpack.c.l.b16 %v6195
      %v6212 = vunpack.c.l.b16 %v6196
      %v6213 = vunpack.c.l.b16 %v6197
      %v6214 = vunpack.c.l.b16 %v6198
      %v6215 = vunpack.c.l.b16 %v6199
      %v6216 = vunpack.c.l.b16 %v6200
      %v6217 = vpack.c.b16 %v6210, %v6209
      %v6218 = vpack.c.b16 %v6212, %v6211
      %v6219 = vpack.c.b16 %v6214, %v6213
      %v6220 = vpack.c.b16 %v6216, %v6215
      %v6226 = vsel %vm5975, %v6190, 0
      %v6229 = vsel %vm5975, %v6191, 0
      %6231 = vmatpush.bf16.msra.mxu0 0
      %6232 = vmatpush.bf16.msra.mxu0 0
      %6233 = vmatpush.bf16.msra.mxu0 0
      %6234 = vmatpush.bf16.msra.mxu0 0
      %6235 = vmatpush.bf16.msra.mxu0 %v6220
      %6236 = vmatpush.bf16.msra.mxu0 %v6219
      %6237 = vmatpush.bf16.msra.mxu0 %v6218
      %6238 = vmatpush.bf16.msra.mxu0 %v6217
      %6239 = vmatmul.bf16.gmra.mxu0 %v6226
      %v6240 = vpop.f32.mrf.mxu0
      %v6241 = vadd.f32 0.0, %v6240
      %v6242 = vpop.f32.mrf.mxu0
      %v6243 = vadd.f32 0.0, %v6242
      %6244 = vmatmul.bf16.gmra.mxu0 %v6229
      %v6245 = vpop.f32.mrf.mxu0
      %v6246 = vadd.f32 0.0, %v6245
      %v6247 = vpop.f32.mrf.mxu0
      %v6248 = vadd.f32 0.0, %v6247
      %6249 = vdwg.mxu0
      %v6250 = vadd.f32 %v6182, %v6241
      %v6251 = vadd.f32 %v6183, %v6243
      %v6252 = vadd.f32 %v6184, %v6246
      %v6253 = vadd.f32 %v6185, %v6248
      %v6254 = vld [vmem:[#allocation5 + $0x9] sm:$0xff]
      %v6255 = vld [vmem:[#allocation5 + $0x11] sm:$0xff]
      %v6256 = vld [vmem:[#allocation5 + $0x19] sm:$0xff]
      %v6257 = vld [vmem:[#allocation5 + $0x21] sm:$0xff]
      %v6258 = vpack.c.bf16 %v6255, %v6254
      %v6259 = vpack.c.bf16 %v6257, %v6256
      %s6260 = scalar_lea.vmem %s5, 128
      %v6261 = vld [vmem:[%s6260] sm:$0xf]
      %v6262 = vld [vmem:[%s6260 + $0x4] sm:$0xf]
      %v6263 = vld [vmem:[%s6260 + $0x8] sm:$0xf]
      %v6264 = vld [vmem:[%s6260 + $0xc] sm:$0xf]
      %v6265 = vld [vmem:[%s6260 + $0x10] sm:$0xf]
      %v6266 = vld [vmem:[%s6260 + $0x14] sm:$0xf]
      %v6267 = vld [vmem:[%s6260 + $0x18] sm:$0xf]
      %v6268 = vld [vmem:[%s6260 + $0x1c] sm:$0xf]
      %v6277 = vunpack.c.l.b16 %v6261
      %v6278 = vunpack.c.l.b16 %v6262
      %v6279 = vunpack.c.l.b16 %v6263
      %v6280 = vunpack.c.l.b16 %v6264
      %v6281 = vunpack.c.l.b16 %v6265
      %v6282 = vunpack.c.l.b16 %v6266
      %v6283 = vunpack.c.l.b16 %v6267
      %v6284 = vunpack.c.l.b16 %v6268
      %v6285 = vpack.c.b16 %v6278, %v6277
      %v6286 = vpack.c.b16 %v6280, %v6279
      %v6287 = vpack.c.b16 %v6282, %v6281
      %v6288 = vpack.c.b16 %v6284, %v6283
      %v6294 = vsel %vm5975, %v6258, 0
      %v6297 = vsel %vm5975, %v6259, 0
      %6299 = vmatpush.bf16.msra.mxu0 0
      %6300 = vmatpush.bf16.msra.mxu0 0
      %6301 = vmatpush.bf16.msra.mxu0 0
      %6302 = vmatpush.bf16.msra.mxu0 0
      %6303 = vmatpush.bf16.msra.mxu0 %v6288
      %6304 = vmatpush.bf16.msra.mxu0 %v6287
      %6305 = vmatpush.bf16.msra.mxu0 %v6286
      %6306 = vmatpush.bf16.msra.mxu0 %v6285
      %6307 = vmatmul.bf16.gmra.mxu0 %v6294
      %v6308 = vpop.f32.mrf.mxu0
      %v6309 = vadd.f32 0.0, %v6308
      %v6310 = vpop.f32.mrf.mxu0
      %v6311 = vadd.f32 0.0, %v6310
      %6312 = vmatmul.bf16.gmra.mxu0 %v6297
      %v6313 = vpop.f32.mrf.mxu0
      %v6314 = vadd.f32 0.0, %v6313
      %v6315 = vpop.f32.mrf.mxu0
      %v6316 = vadd.f32 0.0, %v6315
      %6317 = vdwg.mxu0
      %v6318 = vadd.f32 %v6250, %v6309
      %v6319 = vadd.f32 %v6251, %v6311
      %v6320 = vadd.f32 %v6252, %v6314
      %v6321 = vadd.f32 %v6253, %v6316
      %v6322 = vld [vmem:[#allocation5 + $0xa] sm:$0xff]
      %v6323 = vld [vmem:[#allocation5 + $0x12] sm:$0xff]
      %v6324 = vld [vmem:[#allocation5 + $0x1a] sm:$0xff]
      %v6325 = vld [vmem:[#allocation5 + $0x22] sm:$0xff]
      %v6326 = vpack.c.bf16 %v6323, %v6322
      %v6327 = vpack.c.bf16 %v6325, %v6324
      %s6328 = scalar_lea.vmem %s5, 160
      %v6329 = vld [vmem:[%s6328] sm:$0xf]
      %v6330 = vld [vmem:[%s6328 + $0x4] sm:$0xf]
      %v6331 = vld [vmem:[%s6328 + $0x8] sm:$0xf]
      %v6332 = vld [vmem:[%s6328 + $0xc] sm:$0xf]
      %v6333 = vld [vmem:[%s6328 + $0x10] sm:$0xf]
      %v6334 = vld [vmem:[%s6328 + $0x14] sm:$0xf]
      %v6335 = vld [vmem:[%s6328 + $0x18] sm:$0xf]
      %v6336 = vld [vmem:[%s6328 + $0x1c] sm:$0xf]
      %v6345 = vunpack.c.l.b16 %v6329
      %v6346 = vunpack.c.l.b16 %v6330
      %v6347 = vunpack.c.l.b16 %v6331
      %v6348 = vunpack.c.l.b16 %v6332
      %v6349 = vunpack.c.l.b16 %v6333
      %v6350 = vunpack.c.l.b16 %v6334
      %v6351 = vunpack.c.l.b16 %v6335
      %v6352 = vunpack.c.l.b16 %v6336
      %v6353 = vpack.c.b16 %v6346, %v6345
      %v6354 = vpack.c.b16 %v6348, %v6347
      %v6355 = vpack.c.b16 %v6350, %v6349
      %v6356 = vpack.c.b16 %v6352, %v6351
      %v6362 = vsel %vm5975, %v6326, 0
      %v6365 = vsel %vm5975, %v6327, 0
      %6367 = vmatpush.bf16.msra.mxu0 0
      %6368 = vmatpush.bf16.msra.mxu0 0
      %6369 = vmatpush.bf16.msra.mxu0 0
      %6370 = vmatpush.bf16.msra.mxu0 0
      %6371 = vmatpush.bf16.msra.mxu0 %v6356
      %6372 = vmatpush.bf16.msra.mxu0 %v6355
      %6373 = vmatpush.bf16.msra.mxu0 %v6354
      %6374 = vmatpush.bf16.msra.mxu0 %v6353
      %6375 = vmatmul.bf16.gmra.mxu0 %v6362
      %v6376 = vpop.f32.mrf.mxu0
      %v6377 = vadd.f32 0.0, %v6376
      %v6378 = vpop.f32.mrf.mxu0
      %v6379 = vadd.f32 0.0, %v6378
      %6380 = vmatmul.bf16.gmra.mxu0 %v6365
      %v6381 = vpop.f32.mrf.mxu0
      %v6382 = vadd.f32 0.0, %v6381
      %v6383 = vpop.f32.mrf.mxu0
      %v6384 = vadd.f32 0.0, %v6383
      %6385 = vdwg.mxu0
      %v6386 = vadd.f32 %v6318, %v6377
      %v6387 = vadd.f32 %v6319, %v6379
      %v6388 = vadd.f32 %v6320, %v6382
      %v6389 = vadd.f32 %v6321, %v6384
      %v6390 = vld [vmem:[#allocation5 + $0x10] sm:$0xff]
      %v6391 = vld [vmem:[#allocation5 + $0x18] sm:$0xff]
      %v6392 = vld [vmem:[#allocation5 + $0x20] sm:$0xff]
      %v6393 = vld [vmem:[#allocation5 + $0x28] sm:$0xff]
      %v6394 = vpack.c.bf16 %v6391, %v6390
      %v6395 = vpack.c.bf16 %v6393, %v6392
      %s6396 = scalar_lea.vmem %s5, 192
      %v6397 = vld [vmem:[%s6396] sm:$0xf]
      %v6398 = vld [vmem:[%s6396 + $0x4] sm:$0xf]
      %v6399 = vld [vmem:[%s6396 + $0x8] sm:$0xf]
      %v6400 = vld [vmem:[%s6396 + $0xc] sm:$0xf]
      %v6401 = vld [vmem:[%s6396 + $0x10] sm:$0xf]
      %v6402 = vld [vmem:[%s6396 + $0x14] sm:$0xf]
      %v6403 = vld [vmem:[%s6396 + $0x18] sm:$0xf]
      %v6404 = vld [vmem:[%s6396 + $0x1c] sm:$0xf]
      %v6413 = vunpack.c.l.b16 %v6397
      %v6414 = vunpack.c.l.b16 %v6398
      %v6415 = vunpack.c.l.b16 %v6399
      %v6416 = vunpack.c.l.b16 %v6400
      %v6417 = vunpack.c.l.b16 %v6401
      %v6418 = vunpack.c.l.b16 %v6402
      %v6419 = vunpack.c.l.b16 %v6403
      %v6420 = vunpack.c.l.b16 %v6404
      %v6421 = vpack.c.b16 %v6414, %v6413
      %v6422 = vpack.c.b16 %v6416, %v6415
      %v6423 = vpack.c.b16 %v6418, %v6417
      %v6424 = vpack.c.b16 %v6420, %v6419
      %v6430 = vsel %vm5975, %v6394, 0
      %v6433 = vsel %vm5975, %v6395, 0
      %6435 = vmatpush.bf16.msra.mxu0 0
      %6436 = vmatpush.bf16.msra.mxu0 0
      %6437 = vmatpush.bf16.msra.mxu0 0
      %6438 = vmatpush.bf16.msra.mxu0 0
      %6439 = vmatpush.bf16.msra.mxu0 %v6424
      %6440 = vmatpush.bf16.msra.mxu0 %v6423
      %6441 = vmatpush.bf16.msra.mxu0 %v6422
      %6442 = vmatpush.bf16.msra.mxu0 %v6421
      %6443 = vmatmul.bf16.gmra.mxu0 %v6430
      %v6444 = vpop.f32.mrf.mxu0
      %v6445 = vadd.f32 0.0, %v6444
      %v6446 = vpop.f32.mrf.mxu0
      %v6447 = vadd.f32 0.0, %v6446
      %6448 = vmatmul.bf16.gmra.mxu0 %v6433
      %v6449 = vpop.f32.mrf.mxu0
      %v6450 = vadd.f32 0.0, %v6449
      %v6451 = vpop.f32.mrf.mxu0
      %v6452 = vadd.f32 0.0, %v6451
      %6453 = vdwg.mxu0
      %v6454 = vadd.f32 %v6386, %v6445
      %v6455 = vadd.f32 %v6387, %v6447
      %v6456 = vadd.f32 %v6388, %v6450
      %v6457 = vadd.f32 %v6389, %v6452
      %v6458 = vld [vmem:[#allocation5 + $0x11] sm:$0xff]
      %v6459 = vld [vmem:[#allocation5 + $0x19] sm:$0xff]
      %v6460 = vld [vmem:[#allocation5 + $0x21] sm:$0xff]
      %v6461 = vld [vmem:[#allocation5 + $0x29] sm:$0xff]
      %v6462 = vpack.c.bf16 %v6459, %v6458
      %v6463 = vpack.c.bf16 %v6461, %v6460
      %s6464 = scalar_lea.vmem %s5, 224
      %v6465 = vld [vmem:[%s6464] sm:$0xf]
      %v6466 = vld [vmem:[%s6464 + $0x4] sm:$0xf]
      %v6467 = vld [vmem:[%s6464 + $0x8] sm:$0xf]
      %v6468 = vld [vmem:[%s6464 + $0xc] sm:$0xf]
      %v6469 = vld [vmem:[%s6464 + $0x10] sm:$0xf]
      %v6470 = vld [vmem:[%s6464 + $0x14] sm:$0xf]
      %v6471 = vld [vmem:[%s6464 + $0x18] sm:$0xf]
      %v6472 = vld [vmem:[%s6464 + $0x1c] sm:$0xf]
      %v6481 = vunpack.c.l.b16 %v6465
      %v6482 = vunpack.c.l.b16 %v6466
      %v6483 = vunpack.c.l.b16 %v6467
      %v6484 = vunpack.c.l.b16 %v6468
      %v6485 = vunpack.c.l.b16 %v6469
      %v6486 = vunpack.c.l.b16 %v6470
      %v6487 = vunpack.c.l.b16 %v6471
      %v6488 = vunpack.c.l.b16 %v6472
      %v6489 = vpack.c.b16 %v6482, %v6481
      %v6490 = vpack.c.b16 %v6484, %v6483
      %v6491 = vpack.c.b16 %v6486, %v6485
      %v6492 = vpack.c.b16 %v6488, %v6487
      %v6498 = vsel %vm5975, %v6462, 0
      %v6501 = vsel %vm5975, %v6463, 0
      %6503 = vmatpush.bf16.msra.mxu0 0
      %6504 = vmatpush.bf16.msra.mxu0 0
      %6505 = vmatpush.bf16.msra.mxu0 0
      %6506 = vmatpush.bf16.msra.mxu0 0
      %6507 = vmatpush.bf16.msra.mxu0 %v6492
      %6508 = vmatpush.bf16.msra.mxu0 %v6491
      %6509 = vmatpush.bf16.msra.mxu0 %v6490
      %6510 = vmatpush.bf16.msra.mxu0 %v6489
      %6511 = vmatmul.bf16.gmra.mxu0 %v6498
      %v6512 = vpop.f32.mrf.mxu0
      %v6513 = vadd.f32 0.0, %v6512
      %v6514 = vpop.f32.mrf.mxu0
      %v6515 = vadd.f32 0.0, %v6514
      %6516 = vmatmul.bf16.gmra.mxu0 %v6501
      %v6517 = vpop.f32.mrf.mxu0
      %v6518 = vadd.f32 0.0, %v6517
      %v6519 = vpop.f32.mrf.mxu0
      %v6520 = vadd.f32 0.0, %v6519
      %6521 = vdwg.mxu0
      %v6522 = vadd.f32 %v6454, %v6513
      %v6523 = vadd.f32 %v6455, %v6515
      %v6524 = vadd.f32 %v6456, %v6518
      %v6525 = vadd.f32 %v6457, %v6520
      %v6526 = vld [vmem:[#allocation5 + $0x12] sm:$0xff]
      %v6527 = vld [vmem:[#allocation5 + $0x1a] sm:$0xff]
      %v6528 = vld [vmem:[#allocation5 + $0x22] sm:$0xff]
      %v6529 = vld [vmem:[#allocation5 + $0x2a] sm:$0xff]
      %v6530 = vpack.c.bf16 %v6527, %v6526
      %v6531 = vpack.c.bf16 %v6529, %v6528
      %s6532 = scalar_lea.vmem %s5, 256
      %v6533 = vld [vmem:[%s6532] sm:$0xf]
      %v6534 = vld [vmem:[%s6532 + $0x4] sm:$0xf]
      %v6535 = vld [vmem:[%s6532 + $0x8] sm:$0xf]
      %v6536 = vld [vmem:[%s6532 + $0xc] sm:$0xf]
      %v6537 = vld [vmem:[%s6532 + $0x10] sm:$0xf]
      %v6538 = vld [vmem:[%s6532 + $0x14] sm:$0xf]
      %v6539 = vld [vmem:[%s6532 + $0x18] sm:$0xf]
      %v6540 = vld [vmem:[%s6532 + $0x1c] sm:$0xf]
      %v6549 = vunpack.c.l.b16 %v6533
      %v6550 = vunpack.c.l.b16 %v6534
      %v6551 = vunpack.c.l.b16 %v6535
      %v6552 = vunpack.c.l.b16 %v6536
      %v6553 = vunpack.c.l.b16 %v6537
      %v6554 = vunpack.c.l.b16 %v6538
      %v6555 = vunpack.c.l.b16 %v6539
      %v6556 = vunpack.c.l.b16 %v6540
      %v6557 = vpack.c.b16 %v6550, %v6549
      %v6558 = vpack.c.b16 %v6552, %v6551
      %v6559 = vpack.c.b16 %v6554, %v6553
      %v6560 = vpack.c.b16 %v6556, %v6555
      %v6566 = vsel %vm5975, %v6530, 0
      %v6569 = vsel %vm5975, %v6531, 0
      %6571 = vmatpush.bf16.msra.mxu0 0
      %6572 = vmatpush.bf16.msra.mxu0 0
      %6573 = vmatpush.bf16.msra.mxu0 0
      %6574 = vmatpush.bf16.msra.mxu0 0
      %6575 = vmatpush.bf16.msra.mxu0 %v6560
      %6576 = vmatpush.bf16.msra.mxu0 %v6559
      %6577 = vmatpush.bf16.msra.mxu0 %v6558
      %6578 = vmatpush.bf16.msra.mxu0 %v6557
      %6579 = vmatmul.bf16.gmra.mxu0 %v6566
      %v6580 = vpop.f32.mrf.mxu0
      %v6581 = vadd.f32 0.0, %v6580
      %v6582 = vpop.f32.mrf.mxu0
      %v6583 = vadd.f32 0.0, %v6582
      %6584 = vmatmul.bf16.gmra.mxu0 %v6569
      %v6585 = vpop.f32.mrf.mxu0
      %v6586 = vadd.f32 0.0, %v6585
      %v6587 = vpop.f32.mrf.mxu0
      %v6588 = vadd.f32 0.0, %v6587
      %6589 = vdwg.mxu0
      %v6590 = vadd.f32 %v6522, %v6581
      %v6591 = vadd.f32 %v6523, %v6583
      %v6592 = vadd.f32 %v6524, %v6586
      %v6593 = vadd.f32 %v6525, %v6588
      %v6594 = vld [vmem:[%s6 + $0x8] sm:$0x1]
      %v6595 = vld [vmem:[%s6 + $0x9] sm:$0x1]
      %v6596 = vperm.slane %v6594, 0
      %v6597 = vmul.f32 %v6590, %v6596
      %v6598 = vmul.f32 %v6591, %v6596
      %v6599 = vmul.f32 %v6592, %v6596
      %v6600 = vmul.f32 %v6593, %v6596
      %v6601 = vperm.slane %v6595, 0
      %v6602 = vadd.f32 %v6597, %v6601
      %v6603 = vadd.f32 %v6598, %v6601
      %v6604 = vadd.f32 %v6599, %v6601
      %v6605 = vadd.f32 %v6600, %v6601
      %v6606 = vmax.f32 %v6602, 0.0
      %v6607 = vmax.f32 %v6603, 0.0
      %v6608 = vmax.f32 %v6604, 0.0
      %v6609 = vmax.f32 %v6605, 0.0
      %vm6610 = vcmask 650240
      %6611 = vst.msk [vmem:[#allocation8] sm:$0xf] %vm6610, %v6606
      %6612 = vst.msk [vmem:[#allocation8 + $0x4] sm:$0xf] %vm6610, %v6607
      %6613 = vst.msk [vmem:[#allocation8 + $0x8] sm:$0xf] %vm6610, %v6608
      %6614 = vst.msk [vmem:[#allocation8 + $0xc] sm:$0xf] %vm6610, %v6609
      %v6615 = vld [vmem:[#allocation8] sm:$0xff]
      %v6616 = vld [vmem:[#allocation8 + $0x8] sm:$0xff]
      %v6619 = vrot.slane %v6615, 1
      %v6620 = vrot.slane %v6616, 1
      %v6621 = vsel %vm3779, %v6619, %v6620
      %v6624 = vadd.f32 %v6615, %v6621
      %v6625 = vadd.f32 %v6616, %v6620
      %vm6626 = vcmask 1045504
      %v6627 = vrot.slane %v6615, 2
      %v6628 = vrot.slane %v6616, 2
      %v6629 = vsel %vm6626, %v6627, %v6628
      %v6632 = vadd.f32 %v6624, %v6629
      %v6633 = vadd.f32 %v6625, %v6628
      %v6634 = vpack.c.bf16 %v6616, %v6615
      %v6635 = vpack.c.bf16 %v6625, %v6624
      %v6636 = vpack.c.bf16 %v6633, %v6632
      %vm6637 = vcmask 654336
      %v6639 = vsel %vm6637, %v6634, 0
      %6641 = vmatpush.bf16.xpose.msra.mxu0 0
      %6642 = vmatpush.bf16.xpose.msra.mxu0 0
      %6643 = vmatpush.bf16.xpose.msra.mxu0 0
      %6644 = vmatpush.bf16.xpose.msra.mxu0 0
      %6645 = vmatpush.bf16.xpose.msra.mxu0 0
      %6646 = vmatpush.bf16.xpose.msra.mxu0 0
      %6647 = vmatpush.bf16.xpose.msra.mxu0 0
      %6648 = vmatpush.bf16.xpose.msra.mxu0 %v6639
      %6649 = vmatmul.bf16.gmra.mxu0 %v6639
      %v6650 = vpop.f32.mrf.mxu0
      %v6651 = vadd.f32 0.0, %v6650
      %v6652 = vpop.f32.mrf.mxu0
      %v6653 = vadd.f32 0.0, %v6652
      %6654 = vdwg.mxu0
      %v6656 = vsel %vm6637, %v6635, 0
      %6658 = vmatpush.bf16.xpose.msra.mxu0 0
      %6659 = vmatpush.bf16.xpose.msra.mxu0 0
      %6660 = vmatpush.bf16.xpose.msra.mxu0 0
      %6661 = vmatpush.bf16.xpose.msra.mxu0 0
      %6662 = vmatpush.bf16.xpose.msra.mxu0 0
      %6663 = vmatpush.bf16.xpose.msra.mxu0 0
      %6664 = vmatpush.bf16.xpose.msra.mxu0 0
      %6665 = vmatpush.bf16.xpose.msra.mxu0 %v6656
      %6666 = vmatmul.bf16.gmra.mxu0 %v6639
      %v6667 = vpop.f32.mrf.mxu0
      %v6668 = vadd.f32 0.0, %v6667
      %v6669 = vpop.f32.mrf.mxu0
      %v6670 = vadd.f32 0.0, %v6669
      %6671 = vdwg.mxu0
      %v6672 = vmul.f32 %v6668, 0.5
      %v6673 = vmul.f32 %v6670, 0.5
      %v6675 = vsel %vm6637, %v6636, 0
      %6677 = vmatpush.bf16.xpose.msra.mxu0 0
      %6678 = vmatpush.bf16.xpose.msra.mxu0 0
      %6679 = vmatpush.bf16.xpose.msra.mxu0 0
      %6680 = vmatpush.bf16.xpose.msra.mxu0 0
      %6681 = vmatpush.bf16.xpose.msra.mxu0 0
      %6682 = vmatpush.bf16.xpose.msra.mxu0 0
      %6683 = vmatpush.bf16.xpose.msra.mxu0 0
      %6684 = vmatpush.bf16.xpose.msra.mxu0 %v6675
      %6685 = vmatmul.bf16.gmra.mxu0 %v6639
      %v6686 = vpop.f32.mrf.mxu0
      %v6687 = vadd.f32 0.0, %v6686
      %v6688 = vpop.f32.mrf.mxu0
      %v6689 = vadd.f32 0.0, %v6688
      %6690 = vdwg.mxu0
      %v6691 = vmul.f32 %v6687, 0.33333334
      %v6692 = vmul.f32 %v6689, 0.33333334
      %v6693 = vsel %vm654, %v6651, -inf
      %6694 = vmax.xlane.f32.xlu0 %v6693
      %v6695 = vpop.xlane.xlu0 %6694
      %v6696 = vsel %vm654, %v6653, -inf
      %6697 = vmax.xlane.f32.xlu0 %v6696
      %v6698 = vpop.xlane.xlu0 %6697
      %vm6699 = vcmask 121856
      %v6700 = vsel %vm6699, %v6672, -inf
      %6701 = vmax.xlane.f32.xlu0 %v6700
      %v6702 = vpop.xlane.xlu0 %6701
      %v6703 = vsel %vm6699, %v6673, -inf
      %6704 = vmax.xlane.f32.xlu0 %v6703
      %v6705 = vpop.xlane.xlu0 %6704
      %v6706 = vmax.f32 %v6695, %v6702
      %v6707 = vmax.f32 %v6698, %v6705
      %vm6708 = vcmask 113664
      %v6709 = vsel %vm6708, %v6691, -inf
      %6710 = vmax.xlane.f32.xlu0 %v6709
      %v6711 = vpop.xlane.xlu0 %6710
      %v6712 = vsel %vm6708, %v6692, -inf
      %6713 = vmax.xlane.f32.xlu0 %v6712
      %v6714 = vpop.xlane.xlu0 %6713
      %v6715 = vmax.f32 %v6706, %v6711
      %v6716 = vmax.f32 %v6707, %v6714
      %v6717 = vsub.f32 %v6651, %v6715
      %v6718 = vsub.f32 %v6653, %v6716
      %v6719 = vmul.f32 %v6717, 1.442695
      %v6720 = vpow.pop %v6719
      %v6721 = vmul.f32 %v6718, 1.442695
      %v6722 = vpow.pop %v6721
      %v6723 = vsub.f32 %v6672, %v6715
      %v6724 = vsub.f32 %v6673, %v6716
      %v6725 = vmul.f32 %v6723, 1.442695
      %v6726 = vpow.pop %v6725
      %v6727 = vmul.f32 %v6724, 1.442695
      %v6728 = vpow.pop %v6727
      %v6729 = vsub.f32 %v6691, %v6715
      %v6730 = vsub.f32 %v6692, %v6716
      %v6731 = vmul.f32 %v6729, 1.442695
      %v6732 = vpow.pop %v6731
      %v6733 = vmul.f32 %v6730, 1.442695
      %v6734 = vpow.pop %v6733
      %v6735 = vsel %vm654, %v6720, 0.0
      %6736 = vadd.xlane.f32.xlu0 %v6735
      %v6737 = vpop.xlane.xlu0 %6736
      %v6738 = vsel %vm654, %v6722, 0.0
      %6739 = vadd.xlane.f32.xlu0 %v6738
      %v6740 = vpop.xlane.xlu0 %6739
      %v6741 = vsel %vm6699, %v6726, 0.0
      %6742 = vadd.xlane.f32.xlu0 %v6741
      %v6743 = vpop.xlane.xlu0 %6742
      %v6744 = vsel %vm6699, %v6728, 0.0
      %6745 = vadd.xlane.f32.xlu0 %v6744
      %v6746 = vpop.xlane.xlu0 %6745
      %v6747 = vadd.f32 %v6737, %v6743
      %v6748 = vadd.f32 %v6740, %v6746
      %v6749 = vsel %vm6708, %v6732, 0.0
      %6750 = vadd.xlane.f32.xlu0 %v6749
      %v6751 = vpop.xlane.xlu0 %6750
      %v6752 = vsel %vm6708, %v6734, 0.0
      %6753 = vadd.xlane.f32.xlu0 %v6752
      %v6754 = vpop.xlane.xlu0 %6753
      %v6755 = vadd.f32 %v6747, %v6751
      %v6756 = vadd.f32 %v6748, %v6754
      %v6757 = vpack.c.bf16 %v6722, %v6720
      %v6758 = vpack.c.bf16 %v6728, %v6726
      %v6760 = vsel %vm6699, %v6758, 0
      %vm6762 = vcmask 1047552
      %v6763 = vsel %vm3779, 4294967295, 65535
      %v6764 = vsel %vm6762, %v6763, 0
      %v6765 = vand.u32 %v6635, %v6764
      %6767 = vmatpush.bf16.msra.mxu0 0
      %6768 = vmatpush.bf16.msra.mxu0 0
      %6769 = vmatpush.bf16.msra.mxu0 0
      %6770 = vmatpush.bf16.msra.mxu0 0
      %6771 = vmatpush.bf16.msra.mxu0 0
      %6772 = vmatpush.bf16.msra.mxu0 0
      %6773 = vmatpush.bf16.msra.mxu0 0
      %6774 = vmatpush.bf16.msra.mxu0 %v6765
      %6775 = vmatmul.bf16.gmra.mxu0 %v6760
      %v6776 = vpop.f32.mrf.mxu0
      %v6777 = vadd.f32 0.0, %v6776
      %v6778 = vpop.f32.mrf.mxu0
      %v6779 = vadd.f32 0.0, %v6778
      %6780 = vdwg.mxu0
      %v6782 = vsel %vm654, %v6757, 0
      %6784 = vmatpush.bf16.msra.mxu0 0
      %6785 = vmatpush.bf16.msra.mxu0 0
      %6786 = vmatpush.bf16.msra.mxu0 0
      %6787 = vmatpush.bf16.msra.mxu0 0
      %6788 = vmatpush.bf16.msra.mxu0 0
      %6789 = vmatpush.bf16.msra.mxu0 0
      %6790 = vmatpush.bf16.msra.mxu0 0
      %6791 = vmatpush.bf16.msra.mxu0 %v6634
      %6792 = vmatmul.bf16.gmra.mxu0 %v6782
      %v6793 = vpop.f32.mrf.mxu0
      %v6794 = vadd.f32 %v6777, %v6793
      %v6795 = vpop.f32.mrf.mxu0
      %v6796 = vadd.f32 %v6779, %v6795
      %6797 = vdwg.mxu0
      %v6798 = vpack.c.bf16 %v6734, %v6732
      %v6800 = vsel %vm6708, %v6798, 0
      %v6802 = vsel %vm3779, %v6636, 0
      %6804 = vmatpush.bf16.msra.mxu0 0
      %6805 = vmatpush.bf16.msra.mxu0 0
      %6806 = vmatpush.bf16.msra.mxu0 0
      %6807 = vmatpush.bf16.msra.mxu0 0
      %6808 = vmatpush.bf16.msra.mxu0 0
      %6809 = vmatpush.bf16.msra.mxu0 0
      %6810 = vmatpush.bf16.msra.mxu0 0
      %6811 = vmatpush.bf16.msra.mxu0 %v6802
      %6812 = vmatmul.bf16.gmra.mxu0 %v6800
      %v6813 = vpop.f32.mrf.mxu0
      %v6814 = vadd.f32 0.0, %v6813
      %v6815 = vpop.f32.mrf.mxu0
      %v6816 = vadd.f32 0.0, %v6815
      %6817 = vdwg.mxu0
      %v6818 = vadd.f32 %v6794, %v6814
      %v6819 = vadd.f32 %v6796, %v6816
      %v6820 = vrcp.pop %v6755
      %v6821 = vrcp.pop %v6756
      %v6822 = vmul.f32 %v6818, %v6820
      %v6823 = vmul.f32 %v6819, %v6821
      %v6824 = vmax.f32 %v6822, 0.0
      %v6825 = vmax.f32 %v6823, 0.0
      %6826 = vst.msk [vmem:[%s278] sm:$0xff] %vm6637, %v6824
      %6827 = vst.msk [vmem:[%s278 + $0x8] sm:$0xff] %vm6637, %v6825
      %p6828 = scmp.lt.s32.totalorder %s18, 1
      %s6829 = scalar_select %p6828, %s18, 1
      %s6830 = smul.addr %s6829, 2
      %s6831 = smul.addr %s6830, 8
      %s6832 = scalar_lea.vmem %s7, %s6831
      // Predicated region
      $region49: #{aacnn_headconcat_forward.1} parent=47 // pred_check
        %p6833 = pneg %p188
      $region50: #{aacnn_headconcat_forward.1} parent=47 // pred_check_branch
        %6835 = sbr.rel (%p6833) target = $region52
      $region51: #{aacnn_headconcat_forward.1} parent=47 // pred_region
        _
      $region52: #{aacnn_headconcat_forward.1} parent=47 // pred_fallthru
        _
    $region48: #{aacnn_headconcat_forward.1} parent=5 // pred_fallthru
      _
    %p6836 = scmp.le.s32.totalorder 2, %s13
    // Predicated region
    $region53: #{aacnn_headconcat_forward.1} parent=5 // pred_check
      %p6837 = pneg %p6836
    $region54: #{aacnn_headconcat_forward.1} parent=5 // pred_check_branch
      %6839 = sbr.rel (%p6837) target = $region56
    $region55: #{aacnn_headconcat_forward.1} parent=5 // pred_region
      %s6840 = ssub.s32 %s13, 2
      // Predicated region
      $region57: #{aacnn_headconcat_forward.1} parent=55 // pred_check
        %p6841 = pneg %p194
      $region58: #{aacnn_headconcat_forward.1} parent=55 // pred_check_branch
        %6843 = sbr.rel (%p6841) target = $region60
      $region59: #{aacnn_headconcat_forward.1} parent=55 // pred_region
        %p6844 = scmp.lt.s32.totalorder %s19, 1
        %s6845 = scalar_select %p6844, %s19, 1
        %s6846 = smul.addr %s6845, 2
        %s6847 = smul.addr %s6846, 8
        %s6848 = scalar_lea.vmem %s7, %s6847
      $region60: #{aacnn_headconcat_forward.1} parent=55 // pred_fallthru
        _
    $region56: #{aacnn_headconcat_forward.1} parent=5 // pred_fallthru
      _
  $region6: #{aacnn_headconcat_forward.1} parent=0 // loop_footer
    %s17 = sadd.s32 1, %s13
  $region7: #{aacnn_headconcat_forward.1} parent=0 // loop_footer_branch
    %12 = sbr.rel target = $region3
  $region8: #{aacnn_headconcat_forward.1} parent=0 // loop_exit
    _

</llo_original>
